<compile_context>
chip_gen: v6e
topology: v6e:2x2x1
jax: 0.10.0
libtpu: 0.0.40
codegen_flags: <defaults>
</compile_context>

<pallas_src>
import math
import numpy as np
import jax
import jax.numpy as jnp
from jax.experimental import pallas as pl
from jax.experimental.pallas import tpu as pltpu

WINDOW_SIZE = 11
SIGMA = 1.5
C1 = 0.01 ** 2
C2 = 0.03 ** 2

_LANE = 128
_SUBLANE = 8


def _round_up(x, m):
    return (x + m - 1) // m * m


def _gaussian_1d(window_size, sigma):
    g = np.array(
        [math.exp(-((x - window_size // 2) ** 2) / float(2 * sigma ** 2))
         for x in range(window_size)],
        dtype=np.float64,
    )
    g = g / g.sum()
    return g.astype(np.float32)  # same weights as create_window()


def _banded_blur_matrices(Hp, Wp, g1d):
    """Banded matrices s.t. Bv @ (x @ Bh) == zero-padded separable Gaussian conv."""
    K = len(g1d)
    p = K // 2
    bh = np.zeros((Wp, Wp), dtype=np.float32)   # right-multiplied: x(H,W) @ bh(W,W)
    for o in range(Wp):
        for k in range(K):
            i = o + k - p
            if 0 <= i < Wp:
                bh[i, o] = g1d[k]
    bv = np.zeros((Hp, Hp), dtype=np.float32)   # left-multiplied: bv(H,H) @ t(H,W)
    for o in range(Hp):
        for k in range(K):
            i = o + k - p
            if 0 <= i < Hp:
                bv[o, i] = g1d[k]
    return bh, bv


def _tpu_vmem_capacity():
    try:
        return pltpu.get_tpu_info().vmem_capacity_bytes
    except Exception:
        return 64 * 1024 * 1024                 # v7x per-TC floor


def _pick_channel_block(C, Hp, Wp):
    """Largest divisor of C (capped at 8) whose folded block fits comfortably in VMEM."""
    budget = int(_tpu_vmem_capacity() * 0.45)
    per_c = Hp * Wp * 4 * 34                    # ~34 live f32 planes per folded channel
    cb = max(1, min(C, 8, budget // max(per_c, 1)))
    while C % cb:
        cb -= 1
    return cb


def _vmem_limit_bytes(Hp, Wp, cb):
    plane = Hp * Wp * 4
    est = 2 * 2 * cb * plane                    # x / y input blocks, double-buffered
    est += 2 * (Hp * Hp + Wp * Wp) * 4          # Bv / Bh (double-buffered by default)
    est += 4 * 5 * cb * plane                   # stacked, h, ht, v intermediates
    est += 10 * cb * plane                      # mu/sigma/num/den/ssim-map temps
    est = int(est * 1.5) + (2 << 20)
    return min(max(est, 32 * 1024 * 1024), int(_tpu_vmem_capacity() * 0.9))


def _make_ssim_kernel(H, W, Hp, Wp, cb, precision):
    need_mask = (Hp != H) or (Wp != W)
    cw = cb * Wp

    def kernel(x_ref, y_ref, bv_ref, bh_ref, osum_ref):
        bv = bv_ref[...]
        bh = bh_ref[...]
        x = x_ref[0].reshape(cb * Hp, Wp)       # channel-folded row stack
        y = y_ref[0].reshape(cb * Hp, Wp)

        # --- pass 1: ONE stacked horizontal blur (row-stacked, quantity-major).
        stacked = jnp.concatenate([x, y, x * x, y * y, x * y], axis=0)  # (5*cb*Hp, Wp)
        h = jnp.dot(stacked, bh,
                    preferred_element_type=jnp.float32, precision=precision)

        # --- relayout (5*cb*Hp, Wp) row-stack -> (Hp, 5*cb*Wp) column-stack.
        # Static tile-aligned slices (Hp % 8 == 0, Wp % 128 == 0) + lane-aligned concat.
        pieces = [h[p * Hp:(p + 1) * Hp, :] for p in range(5 * cb)]
        ht = jnp.concatenate(pieces, axis=1)                            # (Hp, 5*cb*Wp)

        # --- pass 2: ONE stacked vertical blur.
        v = jnp.dot(bv, ht,
                    preferred_element_type=jnp.float32, precision=precision)

        mu1 = v[:, 0 * cw:1 * cw]
        mu2 = v[:, 1 * cw:2 * cw]
        e_xx = v[:, 2 * cw:3 * cw]
        e_yy = v[:, 3 * cw:4 * cw]
        e_xy = v[:, 4 * cw:5 * cw]

        mu1_sq = mu1 * mu1
        mu2_sq = mu2 * mu2
        mu1_mu2 = mu1 * mu2
        sigma1_sq = e_xx - mu1_sq
        sigma2_sq = e_yy - mu2_sq
        sigma12 = e_xy - mu1_mu2

        num = (2.0 * mu1_mu2 + C1) * (2.0 * sigma12 + C2)
        den = (mu1_sq + mu2_sq + C1) * (sigma1_sq + sigma2_sq + C2)
        smap = num * pl.reciprocal(den, approx=False)   # EUP divide, exact

        if need_mask:
            # Padded rows/cols would each contribute num/den == 1; mask them out.
            rows = jax.lax.broadcasted_iota(jnp.int32, (Hp, cw), 0)
            cols = jax.lax.broadcasted_iota(jnp.int32, (Hp, cw), 1) % Wp
            smap = jnp.where((rows < H) & (cols < W), smap, 0.0)

        s = jnp.sum(smap)                               # per-(n, channel-block) partial sum
        osum_ref[0, 0, :, :] = jnp.broadcast_to(s, (8, 128))   # lane-dense store

    return kernel


def ssim(img1, img2, window_size=WINDOW_SIZE, size_average=True,
         precision=jax.lax.Precision.HIGHEST):
    img1 = img1.astype(jnp.float32)
    img2 = img2.astype(jnp.float32)
    N, C, H, W = img1.shape

    # Lane/sublane alignment: pad W to a multiple of 128, H to a multiple of 8.
    Hp = _round_up(H, _SUBLANE)
    Wp = _round_up(W, _LANE)
    if (Hp, Wp) != (H, W):
        pad = ((0, 0), (0, 0), (0, Hp - H), (0, Wp - W))
        img1 = jnp.pad(img1, pad)
        img2 = jnp.pad(img2, pad)

    bh_np, bv_np = _banded_blur_matrices(Hp, Wp, _gaussian_1d(window_size, SIGMA))
    bh = jnp.asarray(bh_np)
    bv = jnp.asarray(bv_np)

    cb = _pick_channel_block(C, Hp, Wp)
    grid = (N, C // cb)

    # TODO(synk): for planes that overflow VMEM (>~0.5 MP on v7x's 64 MiB) add a
    # halo'd H-strip grid axis with a strip-local (tile_h + 2*(ws//2), tile_h) Bv
    # and per-strip partial sums (also cuts band-matrix FLOP waste on v5e/v6e).
    # TODO(synk): single-buffer the constant Bv/Bh blocks (pipeline_mode=Buffered(1))
    # once single-buffered pipeline_mode is confirmed supported on this JAX version.
    sums = pl.pallas_call(
        _make_ssim_kernel(H, W, Hp, Wp, cb, precision),
        out_shape=jax.ShapeDtypeStruct((N, C // cb, 8, 128), jnp.float32),
        grid_spec=pltpu.PrefetchScalarGridSpec(
            num_scalar_prefetch=0,
            grid=grid,
            in_specs=[
                pl.BlockSpec((1, cb, Hp, Wp), lambda n, c: (n, c, 0, 0)),
                pl.BlockSpec((1, cb, Hp, Wp), lambda n, c: (n, c, 0, 0)),
                pl.BlockSpec((Hp, Hp), lambda n, c: (0, 0)),
                pl.BlockSpec((Wp, Wp), lambda n, c: (0, 0)),
            ],
            out_specs=pl.BlockSpec((1, 1, 8, 128), lambda n, c: (n, c, 0, 0)),
        ),
        compiler_params=pltpu.CompilerParams(
            dimension_semantics=("parallel", "parallel"),
            vmem_limit_bytes=_vmem_limit_bytes(Hp, Wp, cb)),
    )(img1, img2, bv, bh)

    per_block = sums[:, :, 0, 0]                        # (N, C//cb) partial sums
    if size_average:
        return jnp.sum(per_block) / (N * C * H * W)     # == ssim_map.mean()
    # matches ssim_map.mean(1).mean(1).mean(1): per-batch mean over (C, H, W)
    return jnp.sum(per_block, axis=1) / (C * H * W)


def _ssim_reference_np(img1, img2, window_size=WINDOW_SIZE, size_average=True):
    """Pure-numpy float64 reference mirroring the PyTorch _ssim exactly."""
    img1 = np.asarray(img1, dtype=np.float64)
    img2 = np.asarray(img2, dtype=np.float64)
    N, C, H, W = img1.shape
    p = window_size // 2
    g = np.asarray(_gaussian_1d(window_size, SIGMA), dtype=np.float64)
    w2d = np.outer(g, g)

    def conv(x):
        xp = np.pad(x, ((0, 0), (0, 0), (p, p), (p, p)))
        out = np.zeros((N, C, H, W), dtype=np.float64)
        for i in range(window_size):
            for j in range(window_size):
                out += w2d[i, j] * xp[:, :, i:i + H, j:j + W]
        return out

    mu1, mu2 = conv(img1), conv(img2)
    mu1_sq, mu2_sq, mu1_mu2 = mu1 * mu1, mu2 * mu2, mu1 * mu2
    sigma1_sq = conv(img1 * img1) - mu1_sq
    sigma2_sq = conv(img2 * img2) - mu2_sq
    sigma12 = conv(img1 * img2) - mu1_mu2
    ssim_map = ((2 * mu1_mu2 + C1) * (2 * sigma12 + C2)
                / ((mu1_sq + mu2_sq + C1) * (sigma1_sq + sigma2_sq + C2)))
    if size_average:
        return ssim_map.mean()
    return ssim_map.mean(axis=(1, 2, 3))


if __name__ == "__main__":
    key = jax.random.PRNGKey(0)
    k1, k2 = jax.random.split(key)
    N, C, H, W = 2, 4, 16, 16
    img1 = jax.random.uniform(k1, (N, C, H, W), dtype=jnp.float32)
    img2 = jax.random.uniform(k2, (N, C, H, W), dtype=jnp.float32)

    out = jax.block_until_ready(ssim(img1, img2))
    ref = _ssim_reference_np(np.asarray(img1), np.asarray(img2))
    np.testing.assert_allclose(np.asarray(out), ref, rtol=1e-4, atol=1e-5)

    out_per_n = jax.block_until_ready(ssim(img1, img2, size_average=False))
    ref_per_n = _ssim_reference_np(np.asarray(img1), np.asarray(img2),
                                   size_average=False)
    np.testing.assert_allclose(np.asarray(out_per_n), ref_per_n,
                               rtol=1e-4, atol=1e-5)

    print("KERNEL_OK")
</pallas_src>

<mosaic_0001>
module attributes {stable_mosaic.version = 11 : i64} {
  func.func @kernel(%arg0: i32, %arg1: i32, %arg2: memref<1x4x16x128xf32, #tpu.memory_space<vmem>>, %arg3: memref<1x4x16x128xf32, #tpu.memory_space<vmem>>, %arg4: memref<16x16xf32, #tpu.memory_space<vmem>>, %arg5: memref<128x128xf32, #tpu.memory_space<vmem>>, %arg6: memref<1x1x8x128xf32, #tpu.memory_space<vmem>>) attributes {dimension_semantics = [#tpu.dimension_semantics<parallel>, #tpu.dimension_semantics<parallel>], iteration_bounds = array<i64: 2, 1>, scalar_prefetch = 0 : i64, scratch_operands = 0 : i64, tpu.core_type = #tpu.core_type<tc>, window_params = [{transform_indices = @transform_0, window_bounds = array<i64: 1, 4, 16, 128>}, {transform_indices = @transform_1, window_bounds = array<i64: 1, 4, 16, 128>}, {pipeline_mode = #tpu.pipeline_mode<synchronous>, transform_indices = @transform_2, window_bounds = array<i64: 16, 16>}, {pipeline_mode = #tpu.pipeline_mode<synchronous>, transform_indices = @transform_3, window_bounds = array<i64: 128, 128>}, {transform_indices = @transform_4, window_bounds = array<i64: 1, 1, 8, 128>}]} {
    %c0 = arith.constant 0 : index
    %c0_0 = arith.constant 0 : index
    %0 = vector.load %arg4[%c0, %c0_0] : memref<16x16xf32, #tpu.memory_space<vmem>>, vector<16x16xf32>
    %c0_1 = arith.constant 0 : index
    %c0_2 = arith.constant 0 : index
    %1 = vector.load %arg5[%c0_1, %c0_2] : memref<128x128xf32, #tpu.memory_space<vmem>>, vector<128x128xf32>
    %c0_3 = arith.constant 0 : index
    %c0_4 = arith.constant 0 : index
    %c0_5 = arith.constant 0 : index
    %c0_6 = arith.constant 0 : index
    %2 = vector.load %arg2[%c0_3, %c0_4, %c0_5, %c0_6] : memref<1x4x16x128xf32, #tpu.memory_space<vmem>>, vector<1x4x16x128xf32>
    %3 = vector.shape_cast %2 : vector<1x4x16x128xf32> to vector<4x16x128xf32>
    %4 = vector.shape_cast %3 : vector<4x16x128xf32> to vector<64x128xf32>
    %c0_7 = arith.constant 0 : index
    %c0_8 = arith.constant 0 : index
    %c0_9 = arith.constant 0 : index
    %c0_10 = arith.constant 0 : index
    %5 = vector.load %arg3[%c0_7, %c0_8, %c0_9, %c0_10] : memref<1x4x16x128xf32, #tpu.memory_space<vmem>>, vector<1x4x16x128xf32>
    %6 = vector.shape_cast %5 : vector<1x4x16x128xf32> to vector<4x16x128xf32>
    %7 = vector.shape_cast %6 : vector<4x16x128xf32> to vector<64x128xf32>
    %8 = arith.mulf %4, %4 : vector<64x128xf32>
    %9 = arith.mulf %7, %7 : vector<64x128xf32>
    %10 = arith.mulf %4, %7 : vector<64x128xf32>
    %11 = tpu.concatenate %4, %7, %8, %9, %10 in 0 : vector<64x128xf32>, vector<64x128xf32>, vector<64x128xf32>, vector<64x128xf32>, vector<64x128xf32> -> vector<320x128xf32>
    %cst = arith.constant dense<0.000000e+00> : vector<320x128xf32>
    %12 = tpu.matmul %11, %1, %cst {dimension_numbers = #tpu.dot_dimension_numbers<[1], [0], [0], [1], [0, 0, 1, 1], [], []>, precision = #tpu.contract_precision<fp32>} : vector<320x128xf32>, vector<128x128xf32>, vector<320x128xf32> -> vector<320x128xf32>
    %13 = vector.extract_strided_slice %12 {offsets = [0, 0], sizes = [16, 128], strides = [1, 1]} : vector<320x128xf32> to vector<16x128xf32>
    %14 = vector.extract_strided_slice %12 {offsets = [16, 0], sizes = [16, 128], strides = [1, 1]} : vector<320x128xf32> to vector<16x128xf32>
    %15 = vector.extract_strided_slice %12 {offsets = [32, 0], sizes = [16, 128], strides = [1, 1]} : vector<320x128xf32> to vector<16x128xf32>
    %16 = vector.extract_strided_slice %12 {offsets = [48, 0], sizes = [16, 128], strides = [1, 1]} : vector<320x128xf32> to vector<16x128xf32>
    %17 = vector.extract_strided_slice %12 {offsets = [64, 0], sizes = [16, 128], strides = [1, 1]} : vector<320x128xf32> to vector<16x128xf32>
    %18 = vector.extract_strided_slice %12 {offsets = [80, 0], sizes = [16, 128], strides = [1, 1]} : vector<320x128xf32> to vector<16x128xf32>
    %19 = vector.extract_strided_slice %12 {offsets = [96, 0], sizes = [16, 128], strides = [1, 1]} : vector<320x128xf32> to vector<16x128xf32>
    %20 = vector.extract_strided_slice %12 {offsets = [112, 0], sizes = [16, 128], strides = [1, 1]} : vector<320x128xf32> to vector<16x128xf32>
    %21 = vector.extract_strided_slice %12 {offsets = [128, 0], sizes = [16, 128], strides = [1, 1]} : vector<320x128xf32> to vector<16x128xf32>
    %22 = vector.extract_strided_slice %12 {offsets = [144, 0], sizes = [16, 128], strides = [1, 1]} : vector<320x128xf32> to vector<16x128xf32>
    %23 = vector.extract_strided_slice %12 {offsets = [160, 0], sizes = [16, 128], strides = [1, 1]} : vector<320x128xf32> to vector<16x128xf32>
    %24 = vector.extract_strided_slice %12 {offsets = [176, 0], sizes = [16, 128], strides = [1, 1]} : vector<320x128xf32> to vector<16x128xf32>
    %25 = vector.extract_strided_slice %12 {offsets = [192, 0], sizes = [16, 128], strides = [1, 1]} : vector<320x128xf32> to vector<16x128xf32>
    %26 = vector.extract_strided_slice %12 {offsets = [208, 0], sizes = [16, 128], strides = [1, 1]} : vector<320x128xf32> to vector<16x128xf32>
    %27 = vector.extract_strided_slice %12 {offsets = [224, 0], sizes = [16, 128], strides = [1, 1]} : vector<320x128xf32> to vector<16x128xf32>
    %28 = vector.extract_strided_slice %12 {offsets = [240, 0], sizes = [16, 128], strides = [1, 1]} : vector<320x128xf32> to vector<16x128xf32>
    %29 = vector.extract_strided_slice %12 {offsets = [256, 0], sizes = [16, 128], strides = [1, 1]} : vector<320x128xf32> to vector<16x128xf32>
    %30 = vector.extract_strided_slice %12 {offsets = [272, 0], sizes = [16, 128], strides = [1, 1]} : vector<320x128xf32> to vector<16x128xf32>
    %31 = vector.extract_strided_slice %12 {offsets = [288, 0], sizes = [16, 128], strides = [1, 1]} : vector<320x128xf32> to vector<16x128xf32>
    %32 = vector.extract_strided_slice %12 {offsets = [304, 0], sizes = [16, 128], strides = [1, 1]} : vector<320x128xf32> to vector<16x128xf32>
    %33 = tpu.concatenate %13, %14, %15, %16, %17, %18, %19, %20, %21, %22, %23, %24, %25, %26, %27, %28 in 1 : vector<16x128xf32>, vector<16x128xf32>, vector<16x128xf32>, vector<16x128xf32>, vector<16x128xf32>, vector<16x128xf32>, vector<16x128xf32>, vector<16x128xf32>, vector<16x128xf32>, vector<16x128xf32>, vector<16x128xf32>, vector<16x128xf32>, vector<16x128xf32>, vector<16x128xf32>, vector<16x128xf32>, vector<16x128xf32> -> vector<16x2048xf32>
    %34 = tpu.concatenate %29, %30, %31, %32 in 1 : vector<16x128xf32>, vector<16x128xf32>, vector<16x128xf32>, vector<16x128xf32> -> vector<16x512xf32>
    %35 = tpu.concatenate %33, %34 in 1 : vector<16x2048xf32>, vector<16x512xf32> -> vector<16x2560xf32>
    %cst_11 = arith.constant dense<0.000000e+00> : vector<16x2560xf32>
    %36 = tpu.matmul %0, %35, %cst_11 {dimension_numbers = #tpu.dot_dimension_numbers<[1], [0], [0], [1], [0, 0, 1, 1], [], []>, precision = #tpu.contract_precision<fp32>} : vector<16x16xf32>, vector<16x2560xf32>, vector<16x2560xf32> -> vector<16x2560xf32>
    %37 = vector.extract_strided_slice %36 {offsets = [0, 0], sizes = [16, 512], strides = [1, 1]} : vector<16x2560xf32> to vector<16x512xf32>
    %38 = vector.extract_strided_slice %36 {offsets = [0, 512], sizes = [16, 512], strides = [1, 1]} : vector<16x2560xf32> to vector<16x512xf32>
    %39 = vector.extract_strided_slice %36 {offsets = [0, 1024], sizes = [16, 512], strides = [1, 1]} : vector<16x2560xf32> to vector<16x512xf32>
    %40 = vector.extract_strided_slice %36 {offsets = [0, 1536], sizes = [16, 512], strides = [1, 1]} : vector<16x2560xf32> to vector<16x512xf32>
    %41 = vector.extract_strided_slice %36 {offsets = [0, 2048], sizes = [16, 512], strides = [1, 1]} : vector<16x2560xf32> to vector<16x512xf32>
    %42 = arith.mulf %37, %37 : vector<16x512xf32>
    %43 = arith.mulf %38, %38 : vector<16x512xf32>
    %44 = arith.mulf %37, %38 : vector<16x512xf32>
    %45 = arith.subf %39, %42 : vector<16x512xf32>
    %46 = arith.subf %40, %43 : vector<16x512xf32>
    %47 = arith.subf %41, %44 : vector<16x512xf32>
    %cst_12 = arith.constant 2.000000e+00 : f32
    %48 = vector.broadcast %cst_12 : f32 to vector<16x512xf32>
    %49 = arith.mulf %48, %44 : vector<16x512xf32>
    %cst_13 = arith.constant 9.99999974E-5 : f32
    %50 = vector.broadcast %cst_13 : f32 to vector<16x512xf32>
    %51 = arith.addf %49, %50 : vector<16x512xf32>
    %cst_14 = arith.constant 2.000000e+00 : f32
    %52 = vector.broadcast %cst_14 : f32 to vector<16x512xf32>
    %53 = arith.mulf %52, %47 : vector<16x512xf32>
    %cst_15 = arith.constant 8.99999984E-4 : f32
    %54 = vector.broadcast %cst_15 : f32 to vector<16x512xf32>
    %55 = arith.addf %53, %54 : vector<16x512xf32>
    %56 = arith.mulf %51, %55 : vector<16x512xf32>
    %57 = arith.addf %42, %43 : vector<16x512xf32>
    %cst_16 = arith.constant 9.99999974E-5 : f32
    %58 = vector.broadcast %cst_16 : f32 to vector<16x512xf32>
    %59 = arith.addf %57, %58 : vector<16x512xf32>
    %60 = arith.addf %45, %46 : vector<16x512xf32>
    %cst_17 = arith.constant 8.99999984E-4 : f32
    %61 = vector.broadcast %cst_17 : f32 to vector<16x512xf32>
    %62 = arith.addf %60, %61 : vector<16x512xf32>
    %63 = arith.mulf %59, %62 : vector<16x512xf32>
    %64 = tpu.reciprocal %63 : vector<16x512xf32> -> vector<16x512xf32>
    %65 = arith.mulf %56, %64 : vector<16x512xf32>
    %66 = tpu.iota {dimensions = array<i32: 0>} : vector<16x512xi32>
    %67 = tpu.iota {dimensions = array<i32: 1>} : vector<16x512xi32>
    %c128_i32 = arith.constant 128 : i32
    %c0_i32 = arith.constant 0 : i32
    %68 = arith.cmpi eq, %c128_i32, %c0_i32 : i32
    %c1_i32 = arith.constant 1 : i32
    %69 = arith.select %68, %c1_i32, %c128_i32 : i32
    %70 = vector.broadcast %69 : i32 to vector<16x512xi32>
    %71 = arith.remsi %67, %70 : vector<16x512xi32>
    %c0_i32_18 = arith.constant 0 : i32
    %72 = vector.broadcast %c0_i32_18 : i32 to vector<16x512xi32>
    %73 = arith.cmpi ne, %71, %72 : vector<16x512xi32>
    %c0_i32_19 = arith.constant 0 : i32
    %74 = vector.broadcast %c0_i32_19 : i32 to vector<16x512xi32>
    %75 = arith.cmpi slt, %71, %74 : vector<16x512xi32>
    %c0_i32_20 = arith.constant 0 : i32
    %76 = arith.cmpi slt, %69, %c0_i32_20 : i32
    %77 = vector.broadcast %76 : i1 to vector<16x512xi1>
    %78 = vector.broadcast %77 : vector<16x512xi1> to vector<16x512xi1>
    %79 = arith.xori %75, %78 : vector<16x512xi1>
    %80 = arith.andi %79, %73 : vector<16x512xi1>
    %81 = vector.broadcast %69 : i32 to vector<16x512xi32>
    %82 = arith.addi %71, %81 : vector<16x512xi32>
    %83 = arith.select %80, %82, %71 : vector<16x512xi1>, vector<16x512xi32>
    %c16_i32 = arith.constant 16 : i32
    %84 = vector.broadcast %c16_i32 : i32 to vector<16x512xi32>
    %85 = arith.cmpi slt, %66, %84 : vector<16x512xi32>
    %c16_i32_21 = arith.constant 16 : i32
    %86 = vector.broadcast %c16_i32_21 : i32 to vector<16x512xi32>
    %87 = arith.cmpi slt, %83, %86 : vector<16x512xi32>
    %88 = arith.andi %85, %87 : vector<16x512xi1>
    %cst_22 = arith.constant 0.000000e+00 : f32
    %89 = vector.broadcast %cst_22 : f32 to vector<16x512xf32>
    %90 = arith.select %88, %65, %89 : vector<16x512xi1>, vector<16x512xf32>
    %91 = vector.shape_cast %90 : vector<16x512xf32> to vector<1x16x512xf32>
    %cst_23 = arith.constant dense<0.000000e+00> : vector<1xf32>
    %92 = vector.multi_reduction <add>, %91, %cst_23 [1, 2] : vector<1x16x512xf32> to vector<1xf32>
    %93 = vector.shape_cast %92 : vector<1xf32> to vector<1x1x1xf32>
    %94 = vector.extract %93[0, 0, 0] : f32 from vector<1x1x1xf32>
    %95 = vector.broadcast %94 : f32 to vector<8x128xf32>
    %c0_24 = arith.constant 0 : index
    %c0_25 = arith.constant 0 : index
    %c0_26 = arith.constant 0 : index
    %c0_27 = arith.constant 0 : index
    %96 = vector.load %arg6[%c0_24, %c0_25, %c0_26, %c0_27] : memref<1x1x8x128xf32, #tpu.memory_space<vmem>>, vector<1x1x8x128xf32>
    %97 = vector.shape_cast %96 : vector<1x1x8x128xf32> to vector<8x128xf32>
    %98 = vector.shape_cast %95 : vector<8x128xf32> to vector<1x1x8x128xf32>
    tpu.vector_store %arg6[%c0_24, %c0_25, %c0_26, %c0_27], %98 {strides = array<i32>} : memref<1x1x8x128xf32, #tpu.memory_space<vmem>>, vector<1x1x8x128xf32>,
    return
  }
  func.func @transform_0(%arg0: i32, %arg1: i32) -> (i32, i32, i32, i32) {
    %c0_i32 = arith.constant 0 : i32
    %c0_i32_0 = arith.constant 0 : i32
    %c0_i32_1 = arith.constant 0 : i32
    return %arg0, %arg1, %c0_i32, %c0_i32_0 : i32, i32, i32, i32
  }
  func.func @transform_1(%arg0: i32, %arg1: i32) -> (i32, i32, i32, i32) {
    %c0_i32 = arith.constant 0 : i32
    %c0_i32_0 = arith.constant 0 : i32
    %c0_i32_1 = arith.constant 0 : i32
    return %arg0, %arg1, %c0_i32, %c0_i32_0 : i32, i32, i32, i32
  }
  func.func @transform_2(%arg0: i32, %arg1: i32) -> (i32, i32) {
    %c0_i32 = arith.constant 0 : i32
    %c0_i32_0 = arith.constant 0 : i32
    %c0_i32_1 = arith.constant 0 : i32
    return %c0_i32, %c0_i32_0 : i32, i32
  }
  func.func @transform_3(%arg0: i32, %arg1: i32) -> (i32, i32) {
    %c0_i32 = arith.constant 0 : i32
    %c0_i32_0 = arith.constant 0 : i32
    %c0_i32_1 = arith.constant 0 : i32
    return %c0_i32, %c0_i32_0 : i32, i32
  }
  func.func @transform_4(%arg0: i32, %arg1: i32) -> (i32, i32, i32, i32) {
    %c0_i32 = arith.constant 0 : i32
    %c0_i32_0 = arith.constant 0 : i32
    %c0_i32_1 = arith.constant 0 : i32
    return %arg0, %arg1, %c0_i32, %c0_i32_0 : i32, i32, i32, i32
  }
}

</mosaic_0001>

<llo_original>
// kernel: tpu_custom_call.1
$region0: #{tpu_custom_call.1}
  #allocation0 [shape = 'u32[]', space=smem, size = 0x4, offset = 0x4, fixed_abs, tag = 'smem constant byte address 0x4 - core index']
  #allocation1 [shape = 'u32[144,128]{1,0:T(1,128)}', space=vmem, size = 0x12000, scoped, tag = 'internal scratch']
  %s0 = inlined_call_operand.hbm [shape: f32[2,4,16,128], index: 0, kind: input, shape index: {}]
  %s1 = inlined_call_operand.hbm [shape: f32[2,4,16,128], index: 1, kind: input, shape index: {}]
  %s2 = inlined_call_operand.hbm [shape: f32[16,16], index: 2, kind: input, shape index: {}]
  %s3 = inlined_call_operand.hbm [shape: f32[128,128], index: 3, kind: input, shape index: {}]
  %s4 = inlined_call_operand.hbm [shape: f32[2,1,8,128], index: 4, kind: output, shape index: {}]
  %s5 = sld [smem:[#allocation0]]
  $region65: #{tpu_custom_call.1} parent=0
    _
  %s7 = ssub.s32 1, %s5
  %s8 = scalar_select 0, %s7, %s5
  $region1: #{tpu_custom_call.1} parent=0
    #allocation2 [shape = 'u8[65536]{0}', space=vmem, size = 0x10000, scoped, tag = 'input window, operand 0']
    #allocation3 [shape = 's32[2]{0}', space=sflag, size = 0x8, scoped, tag = 'scoped memory for tpu_custom_call.1']
    #allocation4 [shape = 's32[2]{0}', space=sflag, size = 0x8, scoped, tag = 'scoped memory for tpu_custom_call.1']
    #allocation5 [shape = 'u8[65536]{0}', space=vmem, size = 0x10000, scoped, tag = 'input window, operand 1']
    #allocation6 [shape = 's32[2]{0}', space=sflag, size = 0x8, scoped, tag = 'scoped memory for tpu_custom_call.1']
    #allocation7 [shape = 'u8[8192]{0}', space=vmem, size = 0x2000, scoped, tag = 'input window, operand 2, single buffered']
    #allocation8 [shape = 'u8[65536]{0}', space=vmem, size = 0x10000, scoped, tag = 'input window, operand 3, single buffered']
    #allocation9 [shape = 's32[1]{0}', space=sflag, size = 0x4, scoped, tag = 'scoped memory for tpu_custom_call.1']
    #allocation10 [shape = 'u8[8192]{0}', space=vmem, size = 0x2000, scoped, tag = 'output window, operand 0']
    %9 = vsyncpa [#allocation3], 0
    %s10 = scalar_lea.sflag [#allocation3], 1
    %11 = vsyncpa %s10, 0
    %12 = vsyncpa [#allocation6], 0
    %s13 = scalar_lea.sflag [#allocation6], 1
    %14 = vsyncpa %s13, 0
    %15 = vsyncpa [#allocation9], 0
    %16 = vsyncpa [#allocation4], 0
    %s17 = scalar_lea.sflag [#allocation4], 1
    %18 = vsyncpa %s17, 0
    loop: start=0, step=1, limit=4
    $region2: #{tpu_custom_call.1} parent=1 // loop_pre_header
      _
    $region3: #{tpu_custom_call.1} parent=1 // loop_header
      %s20 = sphi 0, %s24
      %p21 = scmp.ge.s32.totalorder %s20, 4
      %s27 = sphi 0, %s39
      %s28 = sphi 0, %s35
      %s29 = sphi 0, %s27
      %s30 = sphi 0, %s28
      %s31 = sphi 0, %s29
      %s32 = sphi 0, %s30
      %s44 = sphi 0, %s46
      %s47 = sphi 0, %s44
      %s48 = sphi 0, %s47
      %s64 = sphi 0, %s48
      %s72 = sphi 0, %s74
      %s75 = sphi 0, %s72
      %s76 = sphi 0, %s75
      %s92 = sphi 0, %s76
      %s96 = sphi 0, %s96
      %s98 = sphi 0, %s96
      %s99 = sphi 0, %s98
      %s113 = sphi 0, %s99
      %s117 = sphi 0, %s117
      %s119 = sphi 0, %s117
      %s120 = sphi 0, %s119
      %s134 = sphi 0, %s120
      %s142 = sphi 0, %s144
      %s145 = sphi 0, %s142
      %s146 = sphi 0, %s145
      %s162 = sphi 0, %s146
    $region4: #{tpu_custom_call.1} parent=1 // loop_header_branch
      %23 = sbr.rel (%p21) target = $region8
    $region5: #{tpu_custom_call.1} parent=1 // loop_body
      %s25 = ssub.s32 %s20, 1
      %s26 = ssub.s32 %s20, 2
      %s33 = sadd.s32 1, %s28
      %p34 = scmp.ge.s32.totalorder %s33, 1
      %s35 = scalar_select %p34, 0, %s33
      %s36 = sadd.s32 1, %s27
      %s37 = scalar_select %p34, %s36, %s27
      %p38 = scmp.ge.s32.totalorder %s37, 2
      %s39 = scalar_select %p38, 0, %s37
      %s40 = ssub.s32 %s27, %s39
      %s41 = ssub.s32 %s28, %s35
      %s42 = sor.u32 %s40, %s41
      %p43 = scmp.eq.s32.totalorder %s42, 0
      %s45 = sadd.s32 %s44, 1
      %s46 = scalar_select %p43, %s44, %s45
      %p49 = pneg %p43
      %p50 = scmp.eq.s32.totalorder %s20, 1
      %p51 = por %p49, %p50
      %p52 = scmp.ne.s32.totalorder %s44, %s47
      %p53 = scmp.eq.s32.totalorder %s20, 0
      %p54 = por %p52, %p53
      %p55 = scmp.ne.s32.totalorder %s44, %s47
      %p56 = scmp.eq.s32.totalorder %s25, 1
      %p57 = por %p55, %p56
      %p58 = scmp.ne.s32.totalorder %s47, %s48
      %p59 = scmp.eq.s32.totalorder %s25, 0
      %p60 = por %p58, %p59
      %p61 = scmp.ne.s32.totalorder %s47, %s48
      %p62 = scmp.eq.s32.totalorder %s26, 1
      %p63 = por %p61, %p62
      %p65 = scmp.ne.s32.totalorder %s48, %s64
      %p66 = scmp.eq.s32.totalorder %s26, 0
      %p67 = por %p65, %p66
      %s68 = ssub.s32 %s27, %s39
      %s69 = ssub.s32 %s28, %s35
      %s70 = sor.u32 %s68, %s69
      %p71 = scmp.eq.s32.totalorder %s70, 0
      %s73 = sadd.s32 %s72, 1
      %s74 = scalar_select %p71, %s72, %s73
      %p77 = pneg %p71
      %p78 = scmp.eq.s32.totalorder %s20, 1
      %p79 = por %p77, %p78
      %p80 = scmp.ne.s32.totalorder %s72, %s75
      %p81 = scmp.eq.s32.totalorder %s20, 0
      %p82 = por %p80, %p81
      %p83 = scmp.ne.s32.totalorder %s72, %s75
      %p84 = scmp.eq.s32.totalorder %s25, 1
      %p85 = por %p83, %p84
      %p86 = scmp.ne.s32.totalorder %s75, %s76
      %p87 = scmp.eq.s32.totalorder %s25, 0
      %p88 = por %p86, %p87
      %p89 = scmp.ne.s32.totalorder %s75, %s76
      %p90 = scmp.eq.s32.totalorder %s26, 1
      %p91 = por %p89, %p90
      %p93 = scmp.ne.s32.totalorder %s76, %s92
      %p94 = scmp.eq.s32.totalorder %s26, 0
      %p95 = por %p93, %p94
      %s97 = sadd.s32 %s96, 1
      %p100 = scmp.eq.s32.totalorder %s20, 1
      %p101 = scmp.ne.s32.totalorder %s96, %s98
      %p102 = scmp.eq.s32.totalorder %s20, 0
      %p103 = por %p101, %p102
      %p104 = scmp.ne.s32.totalorder %s96, %s98
      %p105 = scmp.eq.s32.totalorder %s25, 1
      %p106 = por %p104, %p105
      %p107 = scmp.ne.s32.totalorder %s98, %s99
      %p108 = scmp.eq.s32.totalorder %s25, 0
      %p109 = por %p107, %p108
      %p110 = scmp.ne.s32.totalorder %s98, %s99
      %p111 = scmp.eq.s32.totalorder %s26, 1
      %p112 = por %p110, %p111
      %p114 = scmp.ne.s32.totalorder %s99, %s113
      %p115 = scmp.eq.s32.totalorder %s26, 0
      %p116 = por %p114, %p115
      %s118 = sadd.s32 %s117, 1
      %p121 = scmp.eq.s32.totalorder %s20, 1
      %p122 = scmp.ne.s32.totalorder %s117, %s119
      %p123 = scmp.eq.s32.totalorder %s20, 0
      %p124 = por %p122, %p123
      %p125 = scmp.ne.s32.totalorder %s117, %s119
      %p126 = scmp.eq.s32.totalorder %s25, 1
      %p127 = por %p125, %p126
      %p128 = scmp.ne.s32.totalorder %s119, %s120
      %p129 = scmp.eq.s32.totalorder %s25, 0
      %p130 = por %p128, %p129
      %p131 = scmp.ne.s32.totalorder %s119, %s120
      %p132 = scmp.eq.s32.totalorder %s26, 1
      %p133 = por %p131, %p132
      %p135 = scmp.ne.s32.totalorder %s120, %s134
      %p136 = scmp.eq.s32.totalorder %s26, 0
      %p137 = por %p135, %p136
      %s138 = ssub.s32 %s27, %s39
      %s139 = ssub.s32 %s28, %s35
      %s140 = sor.u32 %s138, %s139
      %p141 = scmp.eq.s32.totalorder %s140, 0
      %s143 = sadd.s32 %s142, 1
      %s144 = scalar_select %p141, %s142, %s143
      %p147 = pneg %p141
      %p148 = scmp.eq.s32.totalorder %s20, 1
      %p149 = por %p147, %p148
      %p150 = scmp.ne.s32.totalorder %s142, %s145
      %p151 = scmp.eq.s32.totalorder %s20, 0
      %p152 = por %p150, %p151
      %p153 = scmp.ne.s32.totalorder %s142, %s145
      %p154 = scmp.eq.s32.totalorder %s25, 1
      %p155 = por %p153, %p154
      %p156 = scmp.ne.s32.totalorder %s145, %s146
      %p157 = scmp.eq.s32.totalorder %s25, 0
      %p158 = por %p156, %p157
      %p159 = scmp.ne.s32.totalorder %s145, %s146
      %p160 = scmp.eq.s32.totalorder %s26, 1
      %p161 = por %p159, %p160
      %p163 = scmp.ne.s32.totalorder %s146, %s162
      %p164 = scmp.eq.s32.totalorder %s26, 0
      %p165 = por %p163, %p164
      %p166 = scmp.le.s32.totalorder 1, %s20
      %p167 = scmp.lt.s32.totalorder %s20, 3
      %p168 = pnand %p166, %p167
      %p169 = pneg %p168
      // Predicated region
      $region9: #{tpu_custom_call.1} parent=5 // pred_check
        _
      $region10: #{tpu_custom_call.1} parent=5 // pred_check_branch
        %171 = sbr.rel (%p168) target = $region12
      $region11: #{tpu_custom_call.1} parent=5 // pred_region
        %s172 = ssub.s32 %s20, 1
        // Predicated region
        $region13: #{tpu_custom_call.1} parent=11 // pred_check
          %p173 = pneg %p109
        $region14: #{tpu_custom_call.1} parent=11 // pred_check_branch
          %175 = sbr.rel (%p173) target = $region16
        $region15: #{tpu_custom_call.1} parent=11 // pred_region
          %s177 = ssub.s32 256, 256
          %178 = vsyncadd [#allocation6], %s177
          %s179 = sshll.u32 [#allocation7], 4
          %s180 = int_to_ptr.vmem [resolvable:$true] %s179
          %185 = dma.hbm_to_vmem [thread:$0]  %s2, 256, %s180, [#allocation6], 128, 128, 8
        $region16: #{tpu_custom_call.1} parent=11 // pred_fallthru
          _
        // Predicated region
        $region17: #{tpu_custom_call.1} parent=11 // pred_check
          %p186 = pneg %p130
        $region18: #{tpu_custom_call.1} parent=11 // pred_check_branch
          %188 = sbr.rel (%p186) target = $region20
        $region19: #{tpu_custom_call.1} parent=11 // pred_region
          %s190 = ssub.s32 2048, 2048
          %191 = vsyncadd [#allocation9], %s190
          %s192 = sshll.u32 [#allocation8], 4
          %s193 = int_to_ptr.vmem [resolvable:$true] %s192
          %198 = dma.hbm_to_vmem [thread:$0]  %s3, 2048, %s193, [#allocation9], 128, 128, 8
        $region20: #{tpu_custom_call.1} parent=11 // pred_fallthru
          _
      $region12: #{tpu_custom_call.1} parent=5 // pred_fallthru
        _
      %p199 = scmp.lt.s32.totalorder %s20, 2
      // Predicated region
      $region21: #{tpu_custom_call.1} parent=5 // pred_check
        %p200 = pneg %p199
      $region22: #{tpu_custom_call.1} parent=5 // pred_check_branch
        %202 = sbr.rel (%p200) target = $region24
      $region23: #{tpu_custom_call.1} parent=5 // pred_region
        // Predicated region
        $region25: #{tpu_custom_call.1} parent=23 // pred_check
          %p203 = pneg %p54
        $region26: #{tpu_custom_call.1} parent=23 // pred_check_branch
          %205 = sbr.rel (%p203) target = $region28
        $region27: #{tpu_custom_call.1} parent=23 // pred_region
          %s206 = sand.u32 %s44, 1
          %s207 = scalar_lea.sflag [#allocation3], %s206
          %s208 = sand.u32 %s44, 1
          %s209 = smul.addr %s208, 64
          %s210 = scalar_lea.vmem [#allocation2], %s209
          %s211 = smul.u32 4, %s28
          %s213 = ssub.s32 1024, 1024
          %214 = vsyncadd %s207, %s213
          %s215 = smul.addr %s211, 2
          %s216 = smul.addr %s27, 8
          %s217 = sadd.s32 %s215, %s216
          %s218 = smul.addr %s217, 128
          %s219 = scalar_lea.hbm %s0, %s218
          %s220 = sshll.u32 %s210, 4
          %s221 = int_to_ptr.vmem [resolvable:$true] %s220
          %226 = dma.hbm_to_vmem [thread:$0]  %s219, 1024, %s221, %s207, 128, 128, 8
        $region28: #{tpu_custom_call.1} parent=23 // pred_fallthru
          _
        // Predicated region
        $region29: #{tpu_custom_call.1} parent=23 // pred_check
          %p227 = pneg %p82
        $region30: #{tpu_custom_call.1} parent=23 // pred_check_branch
          %229 = sbr.rel (%p227) target = $region32
        $region31: #{tpu_custom_call.1} parent=23 // pred_region
          %s230 = sand.u32 %s20, 1
          %s231 = scalar_lea.sflag [#allocation6], %s230
          %s232 = sand.u32 %s72, 1
          %s233 = smul.addr %s232, 64
          %s234 = scalar_lea.vmem [#allocation5], %s233
          %s235 = smul.u32 4, %s28
          %s237 = ssub.s32 1024, 1024
          %238 = vsyncadd %s231, %s237
          %s239 = smul.addr %s235, 2
          %s240 = smul.addr %s27, 8
          %s241 = sadd.s32 %s239, %s240
          %s242 = smul.addr %s241, 128
          %s243 = scalar_lea.hbm %s1, %s242
          %s244 = sshll.u32 %s234, 4
          %s245 = int_to_ptr.vmem [resolvable:$true] %s244
          %250 = dma.hbm_to_vmem [thread:$0]  %s243, 1024, %s245, %s231, 128, 128, 8
        $region32: #{tpu_custom_call.1} parent=23 // pred_fallthru
          _
      $region24: #{tpu_custom_call.1} parent=5 // pred_fallthru
        _
      %p251 = scmp.le.s32.totalorder 1, %s20
      %p252 = scmp.lt.s32.totalorder %s20, 3
      %p253 = pnand %p251, %p252
      %p254 = pneg %p253
      // Predicated region
      $region33: #{tpu_custom_call.1} parent=5 // pred_check
        _
      $region34: #{tpu_custom_call.1} parent=5 // pred_check_branch
        %256 = sbr.rel (%p253) target = $region36
      $region35: #{tpu_custom_call.1} parent=5 // pred_region
        %s257 = ssub.s32 %s20, 1
        %s258 = sand.u32 %s47, 1
        %s259 = scalar_lea.sflag [#allocation3], %s258
        %s260 = sand.u32 %s47, 1
        %s261 = smul.addr %s260, 64
        %s262 = scalar_lea.vmem [#allocation2], %s261
        // Predicated region
        $region37: #{tpu_custom_call.1} parent=35 // pred_check
          %p263 = pneg %p60
        $region38: #{tpu_custom_call.1} parent=35 // pred_check_branch
          %265 = sbr.rel (%p263) target = $region40
        $region39: #{tpu_custom_call.1} parent=35 // pred_region
          %266 = dma.done %s259, 1024
        $region40: #{tpu_custom_call.1} parent=35 // pred_fallthru
          _
        %s267 = sand.u32 %s25, 1
        %s268 = scalar_lea.sflag [#allocation6], %s267
        %s269 = sand.u32 %s75, 1
        %s270 = smul.addr %s269, 64
        %s271 = scalar_lea.vmem [#allocation5], %s270
        // Predicated region
        $region41: #{tpu_custom_call.1} parent=35 // pred_check
          %p272 = pneg %p88
        $region42: #{tpu_custom_call.1} parent=35 // pred_check_branch
          %274 = sbr.rel (%p272) target = $region44
        $region43: #{tpu_custom_call.1} parent=35 // pred_region
          %275 = dma.done %s268, 1024
        $region44: #{tpu_custom_call.1} parent=35 // pred_fallthru
          _
        // Predicated region
        $region45: #{tpu_custom_call.1} parent=35 // pred_check
          %p276 = pneg %p109
        $region46: #{tpu_custom_call.1} parent=35 // pred_check_branch
          %278 = sbr.rel (%p276) target = $region48
        $region47: #{tpu_custom_call.1} parent=35 // pred_region
          %279 = dma.done [#allocation6], 256
        $region48: #{tpu_custom_call.1} parent=35 // pred_fallthru
          _
        // Predicated region
        $region49: #{tpu_custom_call.1} parent=35 // pred_check
          %p280 = pneg %p130
        $region50: #{tpu_custom_call.1} parent=35 // pred_check_branch
          %282 = sbr.rel (%p280) target = $region52
        $region51: #{tpu_custom_call.1} parent=35 // pred_region
          %283 = dma.done [#allocation9], 2048
        $region52: #{tpu_custom_call.1} parent=35 // pred_fallthru
          _
        %s284 = sand.u32 %s47, 1
        %s285 = scalar_lea.sflag [#allocation3], %s284
        %s286 = sand.u32 %s47, 1
        %s287 = smul.addr %s286, 64
        %s288 = scalar_lea.vmem [#allocation2], %s287
        %p289 = pneg %p60
        %p290 = pneg %p57
        %s291 = sand.u32 %s25, 1
        %s292 = scalar_lea.sflag [#allocation6], %s291
        %s293 = sand.u32 %s75, 1
        %s294 = smul.addr %s293, 64
        %s295 = scalar_lea.vmem [#allocation5], %s294
        %p296 = pneg %p88
        %p297 = pneg %p85
        %p298 = pneg %p109
        %p299 = pneg %p106
        %p300 = pneg %p130
        %p301 = pneg %p127
        %p302 = pneg %p158
        %p303 = pneg %p155
        %s304 = sand.u32 %s145, 1
        %s305 = scalar_lea.sflag [#allocation4], %s304
        %s306 = sand.u32 %s145, 1
        %s307 = smul.addr %s306, 8
        %s308 = scalar_lea.vmem [#allocation10], %s307
        %s309 = smul.u32 4, %s30
        %s310 = smul.u32 4, %s30
        %v311 = vld [vmem:[#allocation7] sm:$0xff]
        %v312 = vld [vmem:[#allocation7 + $0x8] sm:$0xff]
        %v313 = vld [vmem:[#allocation8] sm:$0xff]
        %v314 = vld [vmem:[#allocation8 + $0x8] sm:$0xff]
        %v315 = vld [vmem:[#allocation8 + $0x10] sm:$0xff]
        %v316 = vld [vmem:[#allocation8 + $0x18] sm:$0xff]
        %v317 = vld [vmem:[#allocation8 + $0x20] sm:$0xff]
        %v318 = vld [vmem:[#allocation8 + $0x28] sm:$0xff]
        %v319 = vld [vmem:[#allocation8 + $0x30] sm:$0xff]
        %v320 = vld [vmem:[#allocation8 + $0x38] sm:$0xff]
        %v321 = vld [vmem:[#allocation8 + $0x40] sm:$0xff]
        %v322 = vld [vmem:[#allocation8 + $0x48] sm:$0xff]
        %v323 = vld [vmem:[#allocation8 + $0x50] sm:$0xff]
        %v324 = vld [vmem:[#allocation8 + $0x58] sm:$0xff]
        %v325 = vld [vmem:[#allocation8 + $0x60] sm:$0xff]
        %v326 = vld [vmem:[#allocation8 + $0x68] sm:$0xff]
        %v327 = vld [vmem:[#allocation8 + $0x70] sm:$0xff]
        %v328 = vld [vmem:[#allocation8 + $0x78] sm:$0xff]
        %v329 = vld [vmem:[%s262] sm:$0xff]
        %v330 = vld [vmem:[%s262 + $0x8] sm:$0xff]
        %v331 = vld [vmem:[%s262 + $0x10] sm:$0xff]
        %v332 = vld [vmem:[%s262 + $0x18] sm:$0xff]
        %v333 = vld [vmem:[%s262 + $0x20] sm:$0xff]
        %v334 = vld [vmem:[%s262 + $0x28] sm:$0xff]
        %v335 = vld [vmem:[%s262 + $0x30] sm:$0xff]
        %v336 = vld [vmem:[%s262 + $0x38] sm:$0xff]
        %v337 = vld [vmem:[%s271] sm:$0xff]
        %v338 = vld [vmem:[%s271 + $0x8] sm:$0xff]
        %v339 = vld [vmem:[%s271 + $0x10] sm:$0xff]
        %v340 = vld [vmem:[%s271 + $0x18] sm:$0xff]
        %v341 = vld [vmem:[%s271 + $0x20] sm:$0xff]
        %v342 = vld [vmem:[%s271 + $0x28] sm:$0xff]
        %v343 = vld [vmem:[%s271 + $0x30] sm:$0xff]
        %v344 = vld [vmem:[%s271 + $0x38] sm:$0xff]
        %v345 = vmul.f32 %v329, %v329
        %v346 = vmul.f32 %v330, %v330
        %v347 = vmul.f32 %v331, %v331
        %v348 = vmul.f32 %v332, %v332
        %v349 = vmul.f32 %v333, %v333
        %v350 = vmul.f32 %v334, %v334
        %v351 = vmul.f32 %v335, %v335
        %v352 = vmul.f32 %v336, %v336
        %v353 = vmul.f32 %v337, %v337
        %v354 = vmul.f32 %v338, %v338
        %v355 = vmul.f32 %v339, %v339
        %v356 = vmul.f32 %v340, %v340
        %v357 = vmul.f32 %v341, %v341
        %v358 = vmul.f32 %v342, %v342
        %v359 = vmul.f32 %v343, %v343
        %v360 = vmul.f32 %v344, %v344
        %v361 = vmul.f32 %v329, %v337
        %v362 = vmul.f32 %v330, %v338
        %v363 = vmul.f32 %v331, %v339
        %v364 = vmul.f32 %v332, %v340
        %v365 = vmul.f32 %v333, %v341
        %v366 = vmul.f32 %v334, %v342
        %v367 = vmul.f32 %v335, %v343
        %v368 = vmul.f32 %v336, %v344
        %369 = vmatprep.subr.mxu0 0.0
        %v370 = vand.u32 %v328, 4294901760
        %371 = vmatpush1.msra.mxu0 %v370
        %372 = vmatprep.subr.mxu0 0.0
        %v373 = vand.u32 %v327, 4294901760
        %374 = vmatpush1.msra.mxu0 %v373
        %375 = vmatprep.subr.mxu0 0.0
        %v376 = vand.u32 %v326, 4294901760
        %377 = vmatpush1.msra.mxu0 %v376
        %378 = vmatprep.subr.mxu0 0.0
        %v379 = vand.u32 %v325, 4294901760
        %380 = vmatpush1.msra.mxu0 %v379
        %381 = vmatprep.subr.mxu0 0.0
        %v382 = vand.u32 %v324, 4294901760
        %383 = vmatpush1.msra.mxu0 %v382
        %384 = vmatprep.subr.mxu0 0.0
        %v385 = vand.u32 %v323, 4294901760
        %386 = vmatpush1.msra.mxu0 %v385
        %387 = vmatprep.subr.mxu0 0.0
        %v388 = vand.u32 %v322, 4294901760
        %389 = vmatpush1.msra.mxu0 %v388
        %390 = vmatprep.subr.mxu0 0.0
        %v391 = vand.u32 %v321, 4294901760
        %392 = vmatpush1.msra.mxu0 %v391
        %393 = vmatprep.subr.mxu0 0.0
        %v394 = vand.u32 %v320, 4294901760
        %395 = vmatpush1.msra.mxu0 %v394
        %396 = vmatprep.subr.mxu0 0.0
        %v397 = vand.u32 %v319, 4294901760
        %398 = vmatpush1.msra.mxu0 %v397
        %399 = vmatprep.subr.mxu0 0.0
        %v400 = vand.u32 %v318, 4294901760
        %401 = vmatpush1.msra.mxu0 %v400
        %402 = vmatprep.subr.mxu0 0.0
        %v403 = vand.u32 %v317, 4294901760
        %404 = vmatpush1.msra.mxu0 %v403
        %405 = vmatprep.subr.mxu0 0.0
        %v406 = vand.u32 %v316, 4294901760
        %407 = vmatpush1.msra.mxu0 %v406
        %408 = vmatprep.subr.mxu0 0.0
        %v409 = vand.u32 %v315, 4294901760
        %410 = vmatpush1.msra.mxu0 %v409
        %411 = vmatprep.subr.mxu0 0.0
        %v412 = vand.u32 %v314, 4294901760
        %413 = vmatpush1.msra.mxu0 %v412
        %414 = vmatprep.subr.mxu0 0.0
        %v415 = vand.u32 %v313, 4294901760
        %416 = vmatpush1.msra.mxu0 %v415
        %417 = vmatprep.subr.mxu0 0.0
        %418 = vmatpush2.msra.mxu0 0.0
        %419 = vmatprep.subr.mxu0 0.0
        %420 = vmatpush2.msra.mxu0 0.0
        %421 = vmatprep.subr.mxu0 0.0
        %422 = vmatpush2.msra.mxu0 0.0
        %423 = vmatprep.subr.mxu0 0.0
        %424 = vmatpush2.msra.mxu0 0.0
        %425 = vmatprep.subr.mxu0 0.0
        %426 = vmatpush2.msra.mxu0 0.0
        %427 = vmatprep.subr.mxu0 0.0
        %428 = vmatpush2.msra.mxu0 0.0
        %429 = vmatprep.subr.mxu0 0.0
        %430 = vmatpush2.msra.mxu0 0.0
        %431 = vmatprep.subr.mxu0 0.0
        %432 = vmatpush2.msra.mxu0 0.0
        %433 = vmatprep.subr.mxu0 0.0
        %434 = vmatpush2.msra.mxu0 0.0
        %435 = vmatprep.subr.mxu0 0.0
        %436 = vmatpush2.msra.mxu0 0.0
        %437 = vmatprep.subr.mxu0 0.0
        %438 = vmatpush2.msra.mxu0 0.0
        %439 = vmatprep.subr.mxu0 0.0
        %440 = vmatpush2.msra.mxu0 0.0
        %441 = vmatprep.subr.mxu0 0.0
        %442 = vmatpush2.msra.mxu0 0.0
        %443 = vmatprep.subr.mxu0 0.0
        %444 = vmatpush2.msra.mxu0 0.0
        %445 = vmatprep.subr.mxu0 0.0
        %446 = vmatpush2.msra.mxu0 0.0
        %447 = vmatprep.subr.mxu0 0.0
        %448 = vmatpush2.msra.mxu0 0.0
        %449 = vmatprep.mubr.f32.mxu0 0.0
        %v450 = vand.u32 %v329, 4294901760
        %v451 = vsub.f32 %v329, %v450
        %v452 = vand.u32 %v451, 4294901760
        %v453 = vsub.f32 %v451, %v452
        %v454 = vand.u32 %v453, 4294901760
        %455 = vmatmul.mubr.f32.gmra.mxu0 %v454
        %v456 = vpop.f32.mrf.mxu0
        %v457 = vadd.f32 0.0, %v456
        %v458 = vpop.f32.mrf.mxu0
        %459 = vmatprep.mubr.f32.mxu0 0.0
        %v460 = vand.u32 %v330, 4294901760
        %v461 = vsub.f32 %v330, %v460
        %v462 = vand.u32 %v461, 4294901760
        %v463 = vsub.f32 %v461, %v462
        %v464 = vand.u32 %v463, 4294901760
        %465 = vmatmul.mubr.f32.gmra.mxu0 %v464
        %v466 = vpop.f32.mrf.mxu0
        %v467 = vadd.f32 0.0, %v466
        %v468 = vpop.f32.mrf.mxu0
        %469 = vmatprep.mubr.f32.mxu0 0.0
        %v470 = vand.u32 %v331, 4294901760
        %v471 = vsub.f32 %v331, %v470
        %v472 = vand.u32 %v471, 4294901760
        %v473 = vsub.f32 %v471, %v472
        %v474 = vand.u32 %v473, 4294901760
        %475 = vmatmul.mubr.f32.gmra.mxu0 %v474
        %v476 = vpop.f32.mrf.mxu0
        %v477 = vadd.f32 0.0, %v476
        %v478 = vpop.f32.mrf.mxu0
        %479 = vmatprep.mubr.f32.mxu0 0.0
        %v480 = vand.u32 %v332, 4294901760
        %v481 = vsub.f32 %v332, %v480
        %v482 = vand.u32 %v481, 4294901760
        %v483 = vsub.f32 %v481, %v482
        %v484 = vand.u32 %v483, 4294901760
        %485 = vmatmul.mubr.f32.gmra.mxu0 %v484
        %v486 = vpop.f32.mrf.mxu0
        %v487 = vadd.f32 0.0, %v486
        %v488 = vpop.f32.mrf.mxu0
        %489 = vmatprep.mubr.f32.mxu0 0.0
        %v490 = vand.u32 %v333, 4294901760
        %v491 = vsub.f32 %v333, %v490
        %v492 = vand.u32 %v491, 4294901760
        %v493 = vsub.f32 %v491, %v492
        %v494 = vand.u32 %v493, 4294901760
        %495 = vmatmul.mubr.f32.gmra.mxu0 %v494
        %v496 = vpop.f32.mrf.mxu0
        %v497 = vadd.f32 0.0, %v496
        %v498 = vpop.f32.mrf.mxu0
        %499 = vmatprep.mubr.f32.mxu0 0.0
        %v500 = vand.u32 %v334, 4294901760
        %v501 = vsub.f32 %v334, %v500
        %v502 = vand.u32 %v501, 4294901760
        %v503 = vsub.f32 %v501, %v502
        %v504 = vand.u32 %v503, 4294901760
        %505 = vmatmul.mubr.f32.gmra.mxu0 %v504
        %v506 = vpop.f32.mrf.mxu0
        %v507 = vadd.f32 0.0, %v506
        %v508 = vpop.f32.mrf.mxu0
        %509 = vmatprep.mubr.f32.mxu0 0.0
        %v510 = vand.u32 %v335, 4294901760
        %v511 = vsub.f32 %v335, %v510
        %v512 = vand.u32 %v511, 4294901760
        %v513 = vsub.f32 %v511, %v512
        %v514 = vand.u32 %v513, 4294901760
        %515 = vmatmul.mubr.f32.gmra.mxu0 %v514
        %v516 = vpop.f32.mrf.mxu0
        %v517 = vadd.f32 0.0, %v516
        %v518 = vpop.f32.mrf.mxu0
        %519 = vmatprep.mubr.f32.mxu0 0.0
        %v520 = vand.u32 %v336, 4294901760
        %v521 = vsub.f32 %v336, %v520
        %v522 = vand.u32 %v521, 4294901760
        %v523 = vsub.f32 %v521, %v522
        %v524 = vand.u32 %v523, 4294901760
        %525 = vmatmul.mubr.f32.gmra.mxu0 %v524
        %v526 = vpop.f32.mrf.mxu0
        %v527 = vadd.f32 0.0, %v526
        %v528 = vpop.f32.mrf.mxu0
        %529 = vmatprep.mubr.f32.mxu0 0.0
        %v530 = vand.u32 %v337, 4294901760
        %v531 = vsub.f32 %v337, %v530
        %v532 = vand.u32 %v531, 4294901760
        %v533 = vsub.f32 %v531, %v532
        %v534 = vand.u32 %v533, 4294901760
        %535 = vmatmul.mubr.f32.gmra.mxu0 %v534
        %v536 = vpop.f32.mrf.mxu0
        %v537 = vadd.f32 0.0, %v536
        %v538 = vpop.f32.mrf.mxu0
        %539 = vmatprep.mubr.f32.mxu0 0.0
        %v540 = vand.u32 %v338, 4294901760
        %v541 = vsub.f32 %v338, %v540
        %v542 = vand.u32 %v541, 4294901760
        %v543 = vsub.f32 %v541, %v542
        %v544 = vand.u32 %v543, 4294901760
        %545 = vmatmul.mubr.f32.gmra.mxu0 %v544
        %v546 = vpop.f32.mrf.mxu0
        %v547 = vadd.f32 0.0, %v546
        %v548 = vpop.f32.mrf.mxu0
        %549 = vmatprep.mubr.f32.mxu0 0.0
        %v550 = vand.u32 %v339, 4294901760
        %v551 = vsub.f32 %v339, %v550
        %v552 = vand.u32 %v551, 4294901760
        %v553 = vsub.f32 %v551, %v552
        %v554 = vand.u32 %v553, 4294901760
        %555 = vmatmul.mubr.f32.gmra.mxu0 %v554
        %v556 = vpop.f32.mrf.mxu0
        %v557 = vadd.f32 0.0, %v556
        %v558 = vpop.f32.mrf.mxu0
        %559 = vmatprep.mubr.f32.mxu0 0.0
        %v560 = vand.u32 %v340, 4294901760
        %v561 = vsub.f32 %v340, %v560
        %v562 = vand.u32 %v561, 4294901760
        %v563 = vsub.f32 %v561, %v562
        %v564 = vand.u32 %v563, 4294901760
        %565 = vmatmul.mubr.f32.gmra.mxu0 %v564
        %v566 = vpop.f32.mrf.mxu0
        %v567 = vadd.f32 0.0, %v566
        %v568 = vpop.f32.mrf.mxu0
        %569 = vmatprep.mubr.f32.mxu0 0.0
        %v570 = vand.u32 %v341, 4294901760
        %v571 = vsub.f32 %v341, %v570
        %v572 = vand.u32 %v571, 4294901760
        %v573 = vsub.f32 %v571, %v572
        %v574 = vand.u32 %v573, 4294901760
        %575 = vmatmul.mubr.f32.gmra.mxu0 %v574
        %v576 = vpop.f32.mrf.mxu0
        %v577 = vadd.f32 0.0, %v576
        %v578 = vpop.f32.mrf.mxu0
        %579 = vmatprep.mubr.f32.mxu0 0.0
        %v580 = vand.u32 %v342, 4294901760
        %v581 = vsub.f32 %v342, %v580
        %v582 = vand.u32 %v581, 4294901760
        %v583 = vsub.f32 %v581, %v582
        %v584 = vand.u32 %v583, 4294901760
        %585 = vmatmul.mubr.f32.gmra.mxu0 %v584
        %v586 = vpop.f32.mrf.mxu0
        %v587 = vadd.f32 0.0, %v586
        %v588 = vpop.f32.mrf.mxu0
        %589 = vmatprep.mubr.f32.mxu0 0.0
        %v590 = vand.u32 %v343, 4294901760
        %v591 = vsub.f32 %v343, %v590
        %v592 = vand.u32 %v591, 4294901760
        %v593 = vsub.f32 %v591, %v592
        %v594 = vand.u32 %v593, 4294901760
        %595 = vmatmul.mubr.f32.gmra.mxu0 %v594
        %v596 = vpop.f32.mrf.mxu0
        %v597 = vadd.f32 0.0, %v596
        %v598 = vpop.f32.mrf.mxu0
        %599 = vmatprep.mubr.f32.mxu0 0.0
        %v600 = vand.u32 %v344, 4294901760
        %v601 = vsub.f32 %v344, %v600
        %v602 = vand.u32 %v601, 4294901760
        %v603 = vsub.f32 %v601, %v602
        %v604 = vand.u32 %v603, 4294901760
        %605 = vmatmul.mubr.f32.gmra.mxu0 %v604
        %v606 = vpop.f32.mrf.mxu0
        %v607 = vadd.f32 0.0, %v606
        %v608 = vpop.f32.mrf.mxu0
        %609 = vmatprep.mubr.f32.mxu0 0.0
        %v610 = vand.u32 %v345, 4294901760
        %v611 = vsub.f32 %v345, %v610
        %v612 = vand.u32 %v611, 4294901760
        %v613 = vsub.f32 %v611, %v612
        %v614 = vand.u32 %v613, 4294901760
        %615 = vmatmul.mubr.f32.gmra.mxu0 %v614
        %v616 = vpop.f32.mrf.mxu0
        %v617 = vadd.f32 0.0, %v616
        %v618 = vpop.f32.mrf.mxu0
        %619 = vmatprep.mubr.f32.mxu0 0.0
        %v620 = vand.u32 %v346, 4294901760
        %v621 = vsub.f32 %v346, %v620
        %v622 = vand.u32 %v621, 4294901760
        %v623 = vsub.f32 %v621, %v622
        %v624 = vand.u32 %v623, 4294901760
        %625 = vmatmul.mubr.f32.gmra.mxu0 %v624
        %v626 = vpop.f32.mrf.mxu0
        %v627 = vadd.f32 0.0, %v626
        %v628 = vpop.f32.mrf.mxu0
        %629 = vmatprep.mubr.f32.mxu0 0.0
        %v630 = vand.u32 %v347, 4294901760
        %v631 = vsub.f32 %v347, %v630
        %v632 = vand.u32 %v631, 4294901760
        %v633 = vsub.f32 %v631, %v632
        %v634 = vand.u32 %v633, 4294901760
        %635 = vmatmul.mubr.f32.gmra.mxu0 %v634
        %v636 = vpop.f32.mrf.mxu0
        %v637 = vadd.f32 0.0, %v636
        %v638 = vpop.f32.mrf.mxu0
        %639 = vmatprep.mubr.f32.mxu0 0.0
        %v640 = vand.u32 %v348, 4294901760
        %v641 = vsub.f32 %v348, %v640
        %v642 = vand.u32 %v641, 4294901760
        %v643 = vsub.f32 %v641, %v642
        %v644 = vand.u32 %v643, 4294901760
        %645 = vmatmul.mubr.f32.gmra.mxu0 %v644
        %v646 = vpop.f32.mrf.mxu0
        %v647 = vadd.f32 0.0, %v646
        %v648 = vpop.f32.mrf.mxu0
        %649 = vmatprep.mubr.f32.mxu0 0.0
        %v650 = vand.u32 %v349, 4294901760
        %v651 = vsub.f32 %v349, %v650
        %v652 = vand.u32 %v651, 4294901760
        %v653 = vsub.f32 %v651, %v652
        %v654 = vand.u32 %v653, 4294901760
        %655 = vmatmul.mubr.f32.gmra.mxu0 %v654
        %v656 = vpop.f32.mrf.mxu0
        %v657 = vadd.f32 0.0, %v656
        %v658 = vpop.f32.mrf.mxu0
        %659 = vmatprep.mubr.f32.mxu0 0.0
        %v660 = vand.u32 %v350, 4294901760
        %v661 = vsub.f32 %v350, %v660
        %v662 = vand.u32 %v661, 4294901760
        %v663 = vsub.f32 %v661, %v662
        %v664 = vand.u32 %v663, 4294901760
        %665 = vmatmul.mubr.f32.gmra.mxu0 %v664
        %v666 = vpop.f32.mrf.mxu0
        %v667 = vadd.f32 0.0, %v666
        %v668 = vpop.f32.mrf.mxu0
        %669 = vmatprep.mubr.f32.mxu0 0.0
        %v670 = vand.u32 %v351, 4294901760
        %v671 = vsub.f32 %v351, %v670
        %v672 = vand.u32 %v671, 4294901760
        %v673 = vsub.f32 %v671, %v672
        %v674 = vand.u32 %v673, 4294901760
        %675 = vmatmul.mubr.f32.gmra.mxu0 %v674
        %v676 = vpop.f32.mrf.mxu0
        %v677 = vadd.f32 0.0, %v676
        %v678 = vpop.f32.mrf.mxu0
        %679 = vmatprep.mubr.f32.mxu0 0.0
        %v680 = vand.u32 %v352, 4294901760
        %v681 = vsub.f32 %v352, %v680
        %v682 = vand.u32 %v681, 4294901760
        %v683 = vsub.f32 %v681, %v682
        %v684 = vand.u32 %v683, 4294901760
        %685 = vmatmul.mubr.f32.gmra.mxu0 %v684
        %v686 = vpop.f32.mrf.mxu0
        %v687 = vadd.f32 0.0, %v686
        %v688 = vpop.f32.mrf.mxu0
        %689 = vmatprep.mubr.f32.mxu0 0.0
        %v690 = vand.u32 %v353, 4294901760
        %v691 = vsub.f32 %v353, %v690
        %v692 = vand.u32 %v691, 4294901760
        %v693 = vsub.f32 %v691, %v692
        %v694 = vand.u32 %v693, 4294901760
        %695 = vmatmul.mubr.f32.gmra.mxu0 %v694
        %v696 = vpop.f32.mrf.mxu0
        %v697 = vadd.f32 0.0, %v696
        %v698 = vpop.f32.mrf.mxu0
        %699 = vmatprep.mubr.f32.mxu0 0.0
        %v700 = vand.u32 %v354, 4294901760
        %v701 = vsub.f32 %v354, %v700
        %v702 = vand.u32 %v701, 4294901760
        %v703 = vsub.f32 %v701, %v702
        %v704 = vand.u32 %v703, 4294901760
        %705 = vmatmul.mubr.f32.gmra.mxu0 %v704
        %v706 = vpop.f32.mrf.mxu0
        %v707 = vadd.f32 0.0, %v706
        %v708 = vpop.f32.mrf.mxu0
        %709 = vmatprep.mubr.f32.mxu0 0.0
        %v710 = vand.u32 %v355, 4294901760
        %v711 = vsub.f32 %v355, %v710
        %v712 = vand.u32 %v711, 4294901760
        %v713 = vsub.f32 %v711, %v712
        %v714 = vand.u32 %v713, 4294901760
        %715 = vmatmul.mubr.f32.gmra.mxu0 %v714
        %v716 = vpop.f32.mrf.mxu0
        %v717 = vadd.f32 0.0, %v716
        %v718 = vpop.f32.mrf.mxu0
        %719 = vmatprep.mubr.f32.mxu0 0.0
        %v720 = vand.u32 %v356, 4294901760
        %v721 = vsub.f32 %v356, %v720
        %v722 = vand.u32 %v721, 4294901760
        %v723 = vsub.f32 %v721, %v722
        %v724 = vand.u32 %v723, 4294901760
        %725 = vmatmul.mubr.f32.gmra.mxu0 %v724
        %v726 = vpop.f32.mrf.mxu0
        %v727 = vadd.f32 0.0, %v726
        %v728 = vpop.f32.mrf.mxu0
        %729 = vmatprep.mubr.f32.mxu0 0.0
        %v730 = vand.u32 %v357, 4294901760
        %v731 = vsub.f32 %v357, %v730
        %v732 = vand.u32 %v731, 4294901760
        %v733 = vsub.f32 %v731, %v732
        %v734 = vand.u32 %v733, 4294901760
        %735 = vmatmul.mubr.f32.gmra.mxu0 %v734
        %v736 = vpop.f32.mrf.mxu0
        %v737 = vadd.f32 0.0, %v736
        %v738 = vpop.f32.mrf.mxu0
        %739 = vmatprep.mubr.f32.mxu0 0.0
        %v740 = vand.u32 %v358, 4294901760
        %v741 = vsub.f32 %v358, %v740
        %v742 = vand.u32 %v741, 4294901760
        %v743 = vsub.f32 %v741, %v742
        %v744 = vand.u32 %v743, 4294901760
        %745 = vmatmul.mubr.f32.gmra.mxu0 %v744
        %v746 = vpop.f32.mrf.mxu0
        %v747 = vadd.f32 0.0, %v746
        %v748 = vpop.f32.mrf.mxu0
        %749 = vmatprep.mubr.f32.mxu0 0.0
        %v750 = vand.u32 %v359, 4294901760
        %v751 = vsub.f32 %v359, %v750
        %v752 = vand.u32 %v751, 4294901760
        %v753 = vsub.f32 %v751, %v752
        %v754 = vand.u32 %v753, 4294901760
        %755 = vmatmul.mubr.f32.gmra.mxu0 %v754
        %v756 = vpop.f32.mrf.mxu0
        %v757 = vadd.f32 0.0, %v756
        %v758 = vpop.f32.mrf.mxu0
        %759 = vmatprep.mubr.f32.mxu0 0.0
        %v760 = vand.u32 %v360, 4294901760
        %v761 = vsub.f32 %v360, %v760
        %v762 = vand.u32 %v761, 4294901760
        %v763 = vsub.f32 %v761, %v762
        %v764 = vand.u32 %v763, 4294901760
        %765 = vmatmul.mubr.f32.gmra.mxu0 %v764
        %v766 = vpop.f32.mrf.mxu0
        %v767 = vadd.f32 0.0, %v766
        %v768 = vpop.f32.mrf.mxu0
        %769 = vmatprep.mubr.f32.mxu0 0.0
        %v770 = vand.u32 %v361, 4294901760
        %v771 = vsub.f32 %v361, %v770
        %v772 = vand.u32 %v771, 4294901760
        %v773 = vsub.f32 %v771, %v772
        %v774 = vand.u32 %v773, 4294901760
        %775 = vmatmul.mubr.f32.gmra.mxu0 %v774
        %v776 = vpop.f32.mrf.mxu0
        %v777 = vadd.f32 0.0, %v776
        %v778 = vpop.f32.mrf.mxu0
        %779 = vmatprep.mubr.f32.mxu0 0.0
        %v780 = vand.u32 %v362, 4294901760
        %v781 = vsub.f32 %v362, %v780
        %v782 = vand.u32 %v781, 4294901760
        %v783 = vsub.f32 %v781, %v782
        %v784 = vand.u32 %v783, 4294901760
        %785 = vmatmul.mubr.f32.gmra.mxu0 %v784
        %v786 = vpop.f32.mrf.mxu0
        %v787 = vadd.f32 0.0, %v786
        %v788 = vpop.f32.mrf.mxu0
        %789 = vmatprep.mubr.f32.mxu0 0.0
        %v790 = vand.u32 %v363, 4294901760
        %v791 = vsub.f32 %v363, %v790
        %v792 = vand.u32 %v791, 4294901760
        %v793 = vsub.f32 %v791, %v792
        %v794 = vand.u32 %v793, 4294901760
        %795 = vmatmul.mubr.f32.gmra.mxu0 %v794
        %v796 = vpop.f32.mrf.mxu0
        %v797 = vadd.f32 0.0, %v796
        %v798 = vpop.f32.mrf.mxu0
        %799 = vmatprep.mubr.f32.mxu0 0.0
        %v800 = vand.u32 %v364, 4294901760
        %v801 = vsub.f32 %v364, %v800
        %v802 = vand.u32 %v801, 4294901760
        %v803 = vsub.f32 %v801, %v802
        %v804 = vand.u32 %v803, 4294901760
        %805 = vmatmul.mubr.f32.gmra.mxu0 %v804
        %v806 = vpop.f32.mrf.mxu0
        %v807 = vadd.f32 0.0, %v806
        %v808 = vpop.f32.mrf.mxu0
        %809 = vmatprep.mubr.f32.mxu0 0.0
        %v810 = vand.u32 %v365, 4294901760
        %v811 = vsub.f32 %v365, %v810
        %v812 = vand.u32 %v811, 4294901760
        %v813 = vsub.f32 %v811, %v812
        %v814 = vand.u32 %v813, 4294901760
        %815 = vmatmul.mubr.f32.gmra.mxu0 %v814
        %v816 = vpop.f32.mrf.mxu0
        %v817 = vadd.f32 0.0, %v816
        %v818 = vpop.f32.mrf.mxu0
        %819 = vmatprep.mubr.f32.mxu0 0.0
        %v820 = vand.u32 %v366, 4294901760
        %v821 = vsub.f32 %v366, %v820
        %v822 = vand.u32 %v821, 4294901760
        %v823 = vsub.f32 %v821, %v822
        %v824 = vand.u32 %v823, 4294901760
        %825 = vmatmul.mubr.f32.gmra.mxu0 %v824
        %v826 = vpop.f32.mrf.mxu0
        %v827 = vadd.f32 0.0, %v826
        %v828 = vpop.f32.mrf.mxu0
        %829 = vmatprep.mubr.f32.mxu0 0.0
        %v830 = vand.u32 %v367, 4294901760
        %v831 = vsub.f32 %v367, %v830
        %v832 = vand.u32 %v831, 4294901760
        %v833 = vsub.f32 %v831, %v832
        %v834 = vand.u32 %v833, 4294901760
        %835 = vmatmul.mubr.f32.gmra.mxu0 %v834
        %v836 = vpop.f32.mrf.mxu0
        %v837 = vadd.f32 0.0, %v836
        %v838 = vpop.f32.mrf.mxu0
        %839 = vmatprep.mubr.f32.mxu0 0.0
        %v840 = vand.u32 %v368, 4294901760
        %v841 = vsub.f32 %v368, %v840
        %v842 = vand.u32 %v841, 4294901760
        %v843 = vsub.f32 %v841, %v842
        %v844 = vand.u32 %v843, 4294901760
        %845 = vmatmul.mubr.f32.gmra.mxu0 %v844
        %v846 = vpop.f32.mrf.mxu0
        %v847 = vadd.f32 0.0, %v846
        %v848 = vpop.f32.mrf.mxu0
        %849 = vdwg.mxu0
        %850 = vmatprep.subr.mxu0 0.0
        %v851 = vand.u32 %v328, 4294901760
        %v852 = vsub.f32 %v328, %v851
        %v853 = vand.u32 %v852, 4294901760
        %v854 = vsub.f32 %v852, %v853
        %v855 = vand.u32 %v854, 4294901760
        %856 = vmatpush1.msra.mxu0 %v855
        %857 = vmatprep.subr.mxu0 0.0
        %v858 = vand.u32 %v327, 4294901760
        %v859 = vsub.f32 %v327, %v858
        %v860 = vand.u32 %v859, 4294901760
        %v861 = vsub.f32 %v859, %v860
        %v862 = vand.u32 %v861, 4294901760
        %863 = vmatpush1.msra.mxu0 %v862
        %864 = vmatprep.subr.mxu0 0.0
        %v865 = vand.u32 %v326, 4294901760
        %v866 = vsub.f32 %v326, %v865
        %v867 = vand.u32 %v866, 4294901760
        %v868 = vsub.f32 %v866, %v867
        %v869 = vand.u32 %v868, 4294901760
        %870 = vmatpush1.msra.mxu0 %v869
        %871 = vmatprep.subr.mxu0 0.0
        %v872 = vand.u32 %v325, 4294901760
        %v873 = vsub.f32 %v325, %v872
        %v874 = vand.u32 %v873, 4294901760
        %v875 = vsub.f32 %v873, %v874
        %v876 = vand.u32 %v875, 4294901760
        %877 = vmatpush1.msra.mxu0 %v876
        %878 = vmatprep.subr.mxu0 0.0
        %v879 = vand.u32 %v324, 4294901760
        %v880 = vsub.f32 %v324, %v879
        %v881 = vand.u32 %v880, 4294901760
        %v882 = vsub.f32 %v880, %v881
        %v883 = vand.u32 %v882, 4294901760
        %884 = vmatpush1.msra.mxu0 %v883
        %885 = vmatprep.subr.mxu0 0.0
        %v886 = vand.u32 %v323, 4294901760
        %v887 = vsub.f32 %v323, %v886
        %v888 = vand.u32 %v887, 4294901760
        %v889 = vsub.f32 %v887, %v888
        %v890 = vand.u32 %v889, 4294901760
        %891 = vmatpush1.msra.mxu0 %v890
        %892 = vmatprep.subr.mxu0 0.0
        %v893 = vand.u32 %v322, 4294901760
        %v894 = vsub.f32 %v322, %v893
        %v895 = vand.u32 %v894, 4294901760
        %v896 = vsub.f32 %v894, %v895
        %v897 = vand.u32 %v896, 4294901760
        %898 = vmatpush1.msra.mxu0 %v897
        %899 = vmatprep.subr.mxu0 0.0
        %v900 = vand.u32 %v321, 4294901760
        %v901 = vsub.f32 %v321, %v900
        %v902 = vand.u32 %v901, 4294901760
        %v903 = vsub.f32 %v901, %v902
        %v904 = vand.u32 %v903, 4294901760
        %905 = vmatpush1.msra.mxu0 %v904
        %906 = vmatprep.subr.mxu0 0.0
        %v907 = vand.u32 %v320, 4294901760
        %v908 = vsub.f32 %v320, %v907
        %v909 = vand.u32 %v908, 4294901760
        %v910 = vsub.f32 %v908, %v909
        %v911 = vand.u32 %v910, 4294901760
        %912 = vmatpush1.msra.mxu0 %v911
        %913 = vmatprep.subr.mxu0 0.0
        %v914 = vand.u32 %v319, 4294901760
        %v915 = vsub.f32 %v319, %v914
        %v916 = vand.u32 %v915, 4294901760
        %v917 = vsub.f32 %v915, %v916
        %v918 = vand.u32 %v917, 4294901760
        %919 = vmatpush1.msra.mxu0 %v918
        %920 = vmatprep.subr.mxu0 0.0
        %v921 = vand.u32 %v318, 4294901760
        %v922 = vsub.f32 %v318, %v921
        %v923 = vand.u32 %v922, 4294901760
        %v924 = vsub.f32 %v922, %v923
        %v925 = vand.u32 %v924, 4294901760
        %926 = vmatpush1.msra.mxu0 %v925
        %927 = vmatprep.subr.mxu0 0.0
        %v928 = vand.u32 %v317, 4294901760
        %v929 = vsub.f32 %v317, %v928
        %v930 = vand.u32 %v929, 4294901760
        %v931 = vsub.f32 %v929, %v930
        %v932 = vand.u32 %v931, 4294901760
        %933 = vmatpush1.msra.mxu0 %v932
        %934 = vmatprep.subr.mxu0 0.0
        %v935 = vand.u32 %v316, 4294901760
        %v936 = vsub.f32 %v316, %v935
        %v937 = vand.u32 %v936, 4294901760
        %v938 = vsub.f32 %v936, %v937
        %v939 = vand.u32 %v938, 4294901760
        %940 = vmatpush1.msra.mxu0 %v939
        %941 = vmatprep.subr.mxu0 0.0
        %v942 = vand.u32 %v315, 4294901760
        %v943 = vsub.f32 %v315, %v942
        %v944 = vand.u32 %v943, 4294901760
        %v945 = vsub.f32 %v943, %v944
        %v946 = vand.u32 %v945, 4294901760
        %947 = vmatpush1.msra.mxu0 %v946
        %948 = vmatprep.subr.mxu0 0.0
        %v949 = vand.u32 %v314, 4294901760
        %v950 = vsub.f32 %v314, %v949
        %v951 = vand.u32 %v950, 4294901760
        %v952 = vsub.f32 %v950, %v951
        %v953 = vand.u32 %v952, 4294901760
        %954 = vmatpush1.msra.mxu0 %v953
        %955 = vmatprep.subr.mxu0 0.0
        %v956 = vand.u32 %v313, 4294901760
        %v957 = vsub.f32 %v313, %v956
        %v958 = vand.u32 %v957, 4294901760
        %v959 = vsub.f32 %v957, %v958
        %v960 = vand.u32 %v959, 4294901760
        %961 = vmatpush1.msra.mxu0 %v960
        %962 = vmatprep.subr.mxu0 0.0
        %963 = vmatpush2.msra.mxu0 0.0
        %964 = vmatprep.subr.mxu0 0.0
        %965 = vmatpush2.msra.mxu0 0.0
        %966 = vmatprep.subr.mxu0 0.0
        %967 = vmatpush2.msra.mxu0 0.0
        %968 = vmatprep.subr.mxu0 0.0
        %969 = vmatpush2.msra.mxu0 0.0
        %970 = vmatprep.subr.mxu0 0.0
        %971 = vmatpush2.msra.mxu0 0.0
        %972 = vmatprep.subr.mxu0 0.0
        %973 = vmatpush2.msra.mxu0 0.0
        %974 = vmatprep.subr.mxu0 0.0
        %975 = vmatpush2.msra.mxu0 0.0
        %976 = vmatprep.subr.mxu0 0.0
        %977 = vmatpush2.msra.mxu0 0.0
        %978 = vmatprep.subr.mxu0 0.0
        %979 = vmatpush2.msra.mxu0 0.0
        %980 = vmatprep.subr.mxu0 0.0
        %981 = vmatpush2.msra.mxu0 0.0
        %982 = vmatprep.subr.mxu0 0.0
        %983 = vmatpush2.msra.mxu0 0.0
        %984 = vmatprep.subr.mxu0 0.0
        %985 = vmatpush2.msra.mxu0 0.0
        %986 = vmatprep.subr.mxu0 0.0
        %987 = vmatpush2.msra.mxu0 0.0
        %988 = vmatprep.subr.mxu0 0.0
        %989 = vmatpush2.msra.mxu0 0.0
        %990 = vmatprep.subr.mxu0 0.0
        %991 = vmatpush2.msra.mxu0 0.0
        %992 = vmatprep.subr.mxu0 0.0
        %993 = vmatpush2.msra.mxu0 0.0
        %994 = vmatprep.mubr.f32.mxu0 0.0
        %v995 = vand.u32 %v329, 4294901760
        %996 = vmatmul.mubr.f32.gmra.mxu0 %v995
        %v997 = vpop.f32.mrf.mxu0
        %v998 = vadd.f32 %v457, %v997
        %v999 = vpop.f32.mrf.mxu0
        %1000 = vmatprep.mubr.f32.mxu0 0.0
        %v1001 = vand.u32 %v330, 4294901760
        %1002 = vmatmul.mubr.f32.gmra.mxu0 %v1001
        %v1003 = vpop.f32.mrf.mxu0
        %v1004 = vadd.f32 %v467, %v1003
        %v1005 = vpop.f32.mrf.mxu0
        %1006 = vmatprep.mubr.f32.mxu0 0.0
        %v1007 = vand.u32 %v331, 4294901760
        %1008 = vmatmul.mubr.f32.gmra.mxu0 %v1007
        %v1009 = vpop.f32.mrf.mxu0
        %v1010 = vadd.f32 %v477, %v1009
        %v1011 = vpop.f32.mrf.mxu0
        %1012 = vmatprep.mubr.f32.mxu0 0.0
        %v1013 = vand.u32 %v332, 4294901760
        %1014 = vmatmul.mubr.f32.gmra.mxu0 %v1013
        %v1015 = vpop.f32.mrf.mxu0
        %v1016 = vadd.f32 %v487, %v1015
        %v1017 = vpop.f32.mrf.mxu0
        %1018 = vmatprep.mubr.f32.mxu0 0.0
        %v1019 = vand.u32 %v333, 4294901760
        %1020 = vmatmul.mubr.f32.gmra.mxu0 %v1019
        %v1021 = vpop.f32.mrf.mxu0
        %v1022 = vadd.f32 %v497, %v1021
        %v1023 = vpop.f32.mrf.mxu0
        %1024 = vmatprep.mubr.f32.mxu0 0.0
        %v1025 = vand.u32 %v334, 4294901760
        %1026 = vmatmul.mubr.f32.gmra.mxu0 %v1025
        %v1027 = vpop.f32.mrf.mxu0
        %v1028 = vadd.f32 %v507, %v1027
        %v1029 = vpop.f32.mrf.mxu0
        %1030 = vmatprep.mubr.f32.mxu0 0.0
        %v1031 = vand.u32 %v335, 4294901760
        %1032 = vmatmul.mubr.f32.gmra.mxu0 %v1031
        %v1033 = vpop.f32.mrf.mxu0
        %v1034 = vadd.f32 %v517, %v1033
        %v1035 = vpop.f32.mrf.mxu0
        %1036 = vmatprep.mubr.f32.mxu0 0.0
        %v1037 = vand.u32 %v336, 4294901760
        %1038 = vmatmul.mubr.f32.gmra.mxu0 %v1037
        %v1039 = vpop.f32.mrf.mxu0
        %v1040 = vadd.f32 %v527, %v1039
        %v1041 = vpop.f32.mrf.mxu0
        %1042 = vmatprep.mubr.f32.mxu0 0.0
        %v1043 = vand.u32 %v337, 4294901760
        %1044 = vmatmul.mubr.f32.gmra.mxu0 %v1043
        %v1045 = vpop.f32.mrf.mxu0
        %v1046 = vadd.f32 %v537, %v1045
        %v1047 = vpop.f32.mrf.mxu0
        %1048 = vmatprep.mubr.f32.mxu0 0.0
        %v1049 = vand.u32 %v338, 4294901760
        %1050 = vmatmul.mubr.f32.gmra.mxu0 %v1049
        %v1051 = vpop.f32.mrf.mxu0
        %v1052 = vadd.f32 %v547, %v1051
        %v1053 = vpop.f32.mrf.mxu0
        %1054 = vmatprep.mubr.f32.mxu0 0.0
        %v1055 = vand.u32 %v339, 4294901760
        %1056 = vmatmul.mubr.f32.gmra.mxu0 %v1055
        %v1057 = vpop.f32.mrf.mxu0
        %v1058 = vadd.f32 %v557, %v1057
        %v1059 = vpop.f32.mrf.mxu0
        %1060 = vmatprep.mubr.f32.mxu0 0.0
        %v1061 = vand.u32 %v340, 4294901760
        %1062 = vmatmul.mubr.f32.gmra.mxu0 %v1061
        %v1063 = vpop.f32.mrf.mxu0
        %v1064 = vadd.f32 %v567, %v1063
        %v1065 = vpop.f32.mrf.mxu0
        %1066 = vmatprep.mubr.f32.mxu0 0.0
        %v1067 = vand.u32 %v341, 4294901760
        %1068 = vmatmul.mubr.f32.gmra.mxu0 %v1067
        %v1069 = vpop.f32.mrf.mxu0
        %v1070 = vadd.f32 %v577, %v1069
        %v1071 = vpop.f32.mrf.mxu0
        %1072 = vmatprep.mubr.f32.mxu0 0.0
        %v1073 = vand.u32 %v342, 4294901760
        %1074 = vmatmul.mubr.f32.gmra.mxu0 %v1073
        %v1075 = vpop.f32.mrf.mxu0
        %v1076 = vadd.f32 %v587, %v1075
        %v1077 = vpop.f32.mrf.mxu0
        %1078 = vmatprep.mubr.f32.mxu0 0.0
        %v1079 = vand.u32 %v343, 4294901760
        %1080 = vmatmul.mubr.f32.gmra.mxu0 %v1079
        %v1081 = vpop.f32.mrf.mxu0
        %v1082 = vadd.f32 %v597, %v1081
        %v1083 = vpop.f32.mrf.mxu0
        %1084 = vmatprep.mubr.f32.mxu0 0.0
        %v1085 = vand.u32 %v344, 4294901760
        %1086 = vmatmul.mubr.f32.gmra.mxu0 %v1085
        %v1087 = vpop.f32.mrf.mxu0
        %v1088 = vadd.f32 %v607, %v1087
        %v1089 = vpop.f32.mrf.mxu0
        %1090 = vmatprep.mubr.f32.mxu0 0.0
        %v1091 = vand.u32 %v345, 4294901760
        %1092 = vmatmul.mubr.f32.gmra.mxu0 %v1091
        %v1093 = vpop.f32.mrf.mxu0
        %v1094 = vadd.f32 %v617, %v1093
        %v1095 = vpop.f32.mrf.mxu0
        %1096 = vmatprep.mubr.f32.mxu0 0.0
        %v1097 = vand.u32 %v346, 4294901760
        %1098 = vmatmul.mubr.f32.gmra.mxu0 %v1097
        %v1099 = vpop.f32.mrf.mxu0
        %v1100 = vadd.f32 %v627, %v1099
        %v1101 = vpop.f32.mrf.mxu0
        %1102 = vmatprep.mubr.f32.mxu0 0.0
        %v1103 = vand.u32 %v347, 4294901760
        %1104 = vmatmul.mubr.f32.gmra.mxu0 %v1103
        %v1105 = vpop.f32.mrf.mxu0
        %v1106 = vadd.f32 %v637, %v1105
        %v1107 = vpop.f32.mrf.mxu0
        %1108 = vmatprep.mubr.f32.mxu0 0.0
        %v1109 = vand.u32 %v348, 4294901760
        %1110 = vmatmul.mubr.f32.gmra.mxu0 %v1109
        %v1111 = vpop.f32.mrf.mxu0
        %v1112 = vadd.f32 %v647, %v1111
        %v1113 = vpop.f32.mrf.mxu0
        %1114 = vmatprep.mubr.f32.mxu0 0.0
        %v1115 = vand.u32 %v349, 4294901760
        %1116 = vmatmul.mubr.f32.gmra.mxu0 %v1115
        %v1117 = vpop.f32.mrf.mxu0
        %v1118 = vadd.f32 %v657, %v1117
        %v1119 = vpop.f32.mrf.mxu0
        %1120 = vmatprep.mubr.f32.mxu0 0.0
        %v1121 = vand.u32 %v350, 4294901760
        %1122 = vmatmul.mubr.f32.gmra.mxu0 %v1121
        %v1123 = vpop.f32.mrf.mxu0
        %v1124 = vadd.f32 %v667, %v1123
        %v1125 = vpop.f32.mrf.mxu0
        %1126 = vmatprep.mubr.f32.mxu0 0.0
        %v1127 = vand.u32 %v351, 4294901760
        %1128 = vmatmul.mubr.f32.gmra.mxu0 %v1127
        %v1129 = vpop.f32.mrf.mxu0
        %v1130 = vadd.f32 %v677, %v1129
        %v1131 = vpop.f32.mrf.mxu0
        %1132 = vmatprep.mubr.f32.mxu0 0.0
        %v1133 = vand.u32 %v352, 4294901760
        %1134 = vmatmul.mubr.f32.gmra.mxu0 %v1133
        %v1135 = vpop.f32.mrf.mxu0
        %v1136 = vadd.f32 %v687, %v1135
        %v1137 = vpop.f32.mrf.mxu0
        %1138 = vmatprep.mubr.f32.mxu0 0.0
        %v1139 = vand.u32 %v353, 4294901760
        %1140 = vmatmul.mubr.f32.gmra.mxu0 %v1139
        %v1141 = vpop.f32.mrf.mxu0
        %v1142 = vadd.f32 %v697, %v1141
        %v1143 = vpop.f32.mrf.mxu0
        %1144 = vmatprep.mubr.f32.mxu0 0.0
        %v1145 = vand.u32 %v354, 4294901760
        %1146 = vmatmul.mubr.f32.gmra.mxu0 %v1145
        %v1147 = vpop.f32.mrf.mxu0
        %v1148 = vadd.f32 %v707, %v1147
        %v1149 = vpop.f32.mrf.mxu0
        %1150 = vmatprep.mubr.f32.mxu0 0.0
        %v1151 = vand.u32 %v355, 4294901760
        %1152 = vmatmul.mubr.f32.gmra.mxu0 %v1151
        %v1153 = vpop.f32.mrf.mxu0
        %v1154 = vadd.f32 %v717, %v1153
        %v1155 = vpop.f32.mrf.mxu0
        %1156 = vmatprep.mubr.f32.mxu0 0.0
        %v1157 = vand.u32 %v356, 4294901760
        %1158 = vmatmul.mubr.f32.gmra.mxu0 %v1157
        %v1159 = vpop.f32.mrf.mxu0
        %v1160 = vadd.f32 %v727, %v1159
        %v1161 = vpop.f32.mrf.mxu0
        %1162 = vmatprep.mubr.f32.mxu0 0.0
        %v1163 = vand.u32 %v357, 4294901760
        %1164 = vmatmul.mubr.f32.gmra.mxu0 %v1163
        %v1165 = vpop.f32.mrf.mxu0
        %v1166 = vadd.f32 %v737, %v1165
        %v1167 = vpop.f32.mrf.mxu0
        %1168 = vmatprep.mubr.f32.mxu0 0.0
        %v1169 = vand.u32 %v358, 4294901760
        %1170 = vmatmul.mubr.f32.gmra.mxu0 %v1169
        %v1171 = vpop.f32.mrf.mxu0
        %v1172 = vadd.f32 %v747, %v1171
        %v1173 = vpop.f32.mrf.mxu0
        %1174 = vmatprep.mubr.f32.mxu0 0.0
        %v1175 = vand.u32 %v359, 4294901760
        %1176 = vmatmul.mubr.f32.gmra.mxu0 %v1175
        %v1177 = vpop.f32.mrf.mxu0
        %v1178 = vadd.f32 %v757, %v1177
        %v1179 = vpop.f32.mrf.mxu0
        %1180 = vmatprep.mubr.f32.mxu0 0.0
        %v1181 = vand.u32 %v360, 4294901760
        %1182 = vmatmul.mubr.f32.gmra.mxu0 %v1181
        %v1183 = vpop.f32.mrf.mxu0
        %v1184 = vadd.f32 %v767, %v1183
        %v1185 = vpop.f32.mrf.mxu0
        %1186 = vmatprep.mubr.f32.mxu0 0.0
        %v1187 = vand.u32 %v361, 4294901760
        %1188 = vmatmul.mubr.f32.gmra.mxu0 %v1187
        %v1189 = vpop.f32.mrf.mxu0
        %v1190 = vadd.f32 %v777, %v1189
        %v1191 = vpop.f32.mrf.mxu0
        %1192 = vmatprep.mubr.f32.mxu0 0.0
        %v1193 = vand.u32 %v362, 4294901760
        %1194 = vmatmul.mubr.f32.gmra.mxu0 %v1193
        %v1195 = vpop.f32.mrf.mxu0
        %v1196 = vadd.f32 %v787, %v1195
        %v1197 = vpop.f32.mrf.mxu0
        %1198 = vmatprep.mubr.f32.mxu0 0.0
        %v1199 = vand.u32 %v363, 4294901760
        %1200 = vmatmul.mubr.f32.gmra.mxu0 %v1199
        %v1201 = vpop.f32.mrf.mxu0
        %v1202 = vadd.f32 %v797, %v1201
        %v1203 = vpop.f32.mrf.mxu0
        %1204 = vmatprep.mubr.f32.mxu0 0.0
        %v1205 = vand.u32 %v364, 4294901760
        %1206 = vmatmul.mubr.f32.gmra.mxu0 %v1205
        %v1207 = vpop.f32.mrf.mxu0
        %v1208 = vadd.f32 %v807, %v1207
        %v1209 = vpop.f32.mrf.mxu0
        %1210 = vmatprep.mubr.f32.mxu0 0.0
        %v1211 = vand.u32 %v365, 4294901760
        %1212 = vmatmul.mubr.f32.gmra.mxu0 %v1211
        %v1213 = vpop.f32.mrf.mxu0
        %v1214 = vadd.f32 %v817, %v1213
        %v1215 = vpop.f32.mrf.mxu0
        %1216 = vmatprep.mubr.f32.mxu0 0.0
        %v1217 = vand.u32 %v366, 4294901760
        %1218 = vmatmul.mubr.f32.gmra.mxu0 %v1217
        %v1219 = vpop.f32.mrf.mxu0
        %v1220 = vadd.f32 %v827, %v1219
        %v1221 = vpop.f32.mrf.mxu0
        %1222 = vmatprep.mubr.f32.mxu0 0.0
        %v1223 = vand.u32 %v367, 4294901760
        %1224 = vmatmul.mubr.f32.gmra.mxu0 %v1223
        %v1225 = vpop.f32.mrf.mxu0
        %v1226 = vadd.f32 %v837, %v1225
        %v1227 = vpop.f32.mrf.mxu0
        %1228 = vmatprep.mubr.f32.mxu0 0.0
        %v1229 = vand.u32 %v368, 4294901760
        %1230 = vmatmul.mubr.f32.gmra.mxu0 %v1229
        %v1231 = vpop.f32.mrf.mxu0
        %v1232 = vadd.f32 %v847, %v1231
        %v1233 = vpop.f32.mrf.mxu0
        %1234 = vdwg.mxu0
        %1235 = vmatprep.subr.mxu0 0.0
        %v1236 = vand.u32 %v328, 4294901760
        %v1237 = vsub.f32 %v328, %v1236
        %1238 = vmatpush1.msra.mxu0 %v1237
        %1239 = vmatprep.subr.mxu0 0.0
        %v1240 = vand.u32 %v327, 4294901760
        %v1241 = vsub.f32 %v327, %v1240
        %1242 = vmatpush1.msra.mxu0 %v1241
        %1243 = vmatprep.subr.mxu0 0.0
        %v1244 = vand.u32 %v326, 4294901760
        %v1245 = vsub.f32 %v326, %v1244
        %1246 = vmatpush1.msra.mxu0 %v1245
        %1247 = vmatprep.subr.mxu0 0.0
        %v1248 = vand.u32 %v325, 4294901760
        %v1249 = vsub.f32 %v325, %v1248
        %1250 = vmatpush1.msra.mxu0 %v1249
        %1251 = vmatprep.subr.mxu0 0.0
        %v1252 = vand.u32 %v324, 4294901760
        %v1253 = vsub.f32 %v324, %v1252
        %1254 = vmatpush1.msra.mxu0 %v1253
        %1255 = vmatprep.subr.mxu0 0.0
        %v1256 = vand.u32 %v323, 4294901760
        %v1257 = vsub.f32 %v323, %v1256
        %1258 = vmatpush1.msra.mxu0 %v1257
        %1259 = vmatprep.subr.mxu0 0.0
        %v1260 = vand.u32 %v322, 4294901760
        %v1261 = vsub.f32 %v322, %v1260
        %1262 = vmatpush1.msra.mxu0 %v1261
        %1263 = vmatprep.subr.mxu0 0.0
        %v1264 = vand.u32 %v321, 4294901760
        %v1265 = vsub.f32 %v321, %v1264
        %1266 = vmatpush1.msra.mxu0 %v1265
        %1267 = vmatprep.subr.mxu0 0.0
        %v1268 = vand.u32 %v320, 4294901760
        %v1269 = vsub.f32 %v320, %v1268
        %1270 = vmatpush1.msra.mxu0 %v1269
        %1271 = vmatprep.subr.mxu0 0.0
        %v1272 = vand.u32 %v319, 4294901760
        %v1273 = vsub.f32 %v319, %v1272
        %1274 = vmatpush1.msra.mxu0 %v1273
        %1275 = vmatprep.subr.mxu0 0.0
        %v1276 = vand.u32 %v318, 4294901760
        %v1277 = vsub.f32 %v318, %v1276
        %1278 = vmatpush1.msra.mxu0 %v1277
        %1279 = vmatprep.subr.mxu0 0.0
        %v1280 = vand.u32 %v317, 4294901760
        %v1281 = vsub.f32 %v317, %v1280
        %1282 = vmatpush1.msra.mxu0 %v1281
        %1283 = vmatprep.subr.mxu0 0.0
        %v1284 = vand.u32 %v316, 4294901760
        %v1285 = vsub.f32 %v316, %v1284
        %1286 = vmatpush1.msra.mxu0 %v1285
        %1287 = vmatprep.subr.mxu0 0.0
        %v1288 = vand.u32 %v315, 4294901760
        %v1289 = vsub.f32 %v315, %v1288
        %1290 = vmatpush1.msra.mxu0 %v1289
        %1291 = vmatprep.subr.mxu0 0.0
        %v1292 = vand.u32 %v314, 4294901760
        %v1293 = vsub.f32 %v314, %v1292
        %1294 = vmatpush1.msra.mxu0 %v1293
        %1295 = vmatprep.subr.mxu0 0.0
        %v1296 = vand.u32 %v313, 4294901760
        %v1297 = vsub.f32 %v313, %v1296
        %1298 = vmatpush1.msra.mxu0 %v1297
        %1299 = vmatprep.subr.mxu0 0.0
        %1300 = vmatpush2.msra.mxu0 0.0
        %1301 = vmatprep.subr.mxu0 0.0
        %1302 = vmatpush2.msra.mxu0 0.0
        %1303 = vmatprep.subr.mxu0 0.0
        %1304 = vmatpush2.msra.mxu0 0.0
        %1305 = vmatprep.subr.mxu0 0.0
        %1306 = vmatpush2.msra.mxu0 0.0
        %1307 = vmatprep.subr.mxu0 0.0
        %1308 = vmatpush2.msra.mxu0 0.0
        %1309 = vmatprep.subr.mxu0 0.0
        %1310 = vmatpush2.msra.mxu0 0.0
        %1311 = vmatprep.subr.mxu0 0.0
        %1312 = vmatpush2.msra.mxu0 0.0
        %1313 = vmatprep.subr.mxu0 0.0
        %1314 = vmatpush2.msra.mxu0 0.0
        %1315 = vmatprep.subr.mxu0 0.0
        %1316 = vmatpush2.msra.mxu0 0.0
        %1317 = vmatprep.subr.mxu0 0.0
        %1318 = vmatpush2.msra.mxu0 0.0
        %1319 = vmatprep.subr.mxu0 0.0
        %1320 = vmatpush2.msra.mxu0 0.0
        %1321 = vmatprep.subr.mxu0 0.0
        %1322 = vmatpush2.msra.mxu0 0.0
        %1323 = vmatprep.subr.mxu0 0.0
        %1324 = vmatpush2.msra.mxu0 0.0
        %1325 = vmatprep.subr.mxu0 0.0
        %1326 = vmatpush2.msra.mxu0 0.0
        %1327 = vmatprep.subr.mxu0 0.0
        %1328 = vmatpush2.msra.mxu0 0.0
        %1329 = vmatprep.subr.mxu0 0.0
        %1330 = vmatpush2.msra.mxu0 0.0
        %1331 = vmatprep.mubr.f32.mxu0 0.0
        %v1332 = vand.u32 %v329, 4294901760
        %v1333 = vsub.f32 %v329, %v1332
        %1334 = vmatmul.mubr.f32.gmra.mxu0 %v1333
        %v1335 = vpop.f32.mrf.mxu0
        %v1336 = vadd.f32 %v998, %v1335
        %v1337 = vpop.f32.mrf.mxu0
        %1338 = vmatprep.mubr.f32.mxu0 0.0
        %v1339 = vand.u32 %v330, 4294901760
        %v1340 = vsub.f32 %v330, %v1339
        %1341 = vmatmul.mubr.f32.gmra.mxu0 %v1340
        %v1342 = vpop.f32.mrf.mxu0
        %v1343 = vadd.f32 %v1004, %v1342
        %v1344 = vpop.f32.mrf.mxu0
        %1345 = vmatprep.mubr.f32.mxu0 0.0
        %v1346 = vand.u32 %v331, 4294901760
        %v1347 = vsub.f32 %v331, %v1346
        %1348 = vmatmul.mubr.f32.gmra.mxu0 %v1347
        %v1349 = vpop.f32.mrf.mxu0
        %v1350 = vadd.f32 %v1010, %v1349
        %v1351 = vpop.f32.mrf.mxu0
        %1352 = vmatprep.mubr.f32.mxu0 0.0
        %v1353 = vand.u32 %v332, 4294901760
        %v1354 = vsub.f32 %v332, %v1353
        %1355 = vmatmul.mubr.f32.gmra.mxu0 %v1354
        %v1356 = vpop.f32.mrf.mxu0
        %v1357 = vadd.f32 %v1016, %v1356
        %v1358 = vpop.f32.mrf.mxu0
        %1359 = vmatprep.mubr.f32.mxu0 0.0
        %v1360 = vand.u32 %v333, 4294901760
        %v1361 = vsub.f32 %v333, %v1360
        %1362 = vmatmul.mubr.f32.gmra.mxu0 %v1361
        %v1363 = vpop.f32.mrf.mxu0
        %v1364 = vadd.f32 %v1022, %v1363
        %v1365 = vpop.f32.mrf.mxu0
        %1366 = vmatprep.mubr.f32.mxu0 0.0
        %v1367 = vand.u32 %v334, 4294901760
        %v1368 = vsub.f32 %v334, %v1367
        %1369 = vmatmul.mubr.f32.gmra.mxu0 %v1368
        %v1370 = vpop.f32.mrf.mxu0
        %v1371 = vadd.f32 %v1028, %v1370
        %v1372 = vpop.f32.mrf.mxu0
        %1373 = vmatprep.mubr.f32.mxu0 0.0
        %v1374 = vand.u32 %v335, 4294901760
        %v1375 = vsub.f32 %v335, %v1374
        %1376 = vmatmul.mubr.f32.gmra.mxu0 %v1375
        %v1377 = vpop.f32.mrf.mxu0
        %v1378 = vadd.f32 %v1034, %v1377
        %v1379 = vpop.f32.mrf.mxu0
        %1380 = vmatprep.mubr.f32.mxu0 0.0
        %v1381 = vand.u32 %v336, 4294901760
        %v1382 = vsub.f32 %v336, %v1381
        %1383 = vmatmul.mubr.f32.gmra.mxu0 %v1382
        %v1384 = vpop.f32.mrf.mxu0
        %v1385 = vadd.f32 %v1040, %v1384
        %v1386 = vpop.f32.mrf.mxu0
        %1387 = vmatprep.mubr.f32.mxu0 0.0
        %v1388 = vand.u32 %v337, 4294901760
        %v1389 = vsub.f32 %v337, %v1388
        %1390 = vmatmul.mubr.f32.gmra.mxu0 %v1389
        %v1391 = vpop.f32.mrf.mxu0
        %v1392 = vadd.f32 %v1046, %v1391
        %v1393 = vpop.f32.mrf.mxu0
        %1394 = vmatprep.mubr.f32.mxu0 0.0
        %v1395 = vand.u32 %v338, 4294901760
        %v1396 = vsub.f32 %v338, %v1395
        %1397 = vmatmul.mubr.f32.gmra.mxu0 %v1396
        %v1398 = vpop.f32.mrf.mxu0
        %v1399 = vadd.f32 %v1052, %v1398
        %v1400 = vpop.f32.mrf.mxu0
        %1401 = vmatprep.mubr.f32.mxu0 0.0
        %v1402 = vand.u32 %v339, 4294901760
        %v1403 = vsub.f32 %v339, %v1402
        %1404 = vmatmul.mubr.f32.gmra.mxu0 %v1403
        %v1405 = vpop.f32.mrf.mxu0
        %v1406 = vadd.f32 %v1058, %v1405
        %v1407 = vpop.f32.mrf.mxu0
        %1408 = vmatprep.mubr.f32.mxu0 0.0
        %v1409 = vand.u32 %v340, 4294901760
        %v1410 = vsub.f32 %v340, %v1409
        %1411 = vmatmul.mubr.f32.gmra.mxu0 %v1410
        %v1412 = vpop.f32.mrf.mxu0
        %v1413 = vadd.f32 %v1064, %v1412
        %v1414 = vpop.f32.mrf.mxu0
        %1415 = vmatprep.mubr.f32.mxu0 0.0
        %v1416 = vand.u32 %v341, 4294901760
        %v1417 = vsub.f32 %v341, %v1416
        %1418 = vmatmul.mubr.f32.gmra.mxu0 %v1417
        %v1419 = vpop.f32.mrf.mxu0
        %v1420 = vadd.f32 %v1070, %v1419
        %v1421 = vpop.f32.mrf.mxu0
        %1422 = vmatprep.mubr.f32.mxu0 0.0
        %v1423 = vand.u32 %v342, 4294901760
        %v1424 = vsub.f32 %v342, %v1423
        %1425 = vmatmul.mubr.f32.gmra.mxu0 %v1424
        %v1426 = vpop.f32.mrf.mxu0
        %v1427 = vadd.f32 %v1076, %v1426
        %v1428 = vpop.f32.mrf.mxu0
        %1429 = vmatprep.mubr.f32.mxu0 0.0
        %v1430 = vand.u32 %v343, 4294901760
        %v1431 = vsub.f32 %v343, %v1430
        %1432 = vmatmul.mubr.f32.gmra.mxu0 %v1431
        %v1433 = vpop.f32.mrf.mxu0
        %v1434 = vadd.f32 %v1082, %v1433
        %v1435 = vpop.f32.mrf.mxu0
        %1436 = vmatprep.mubr.f32.mxu0 0.0
        %v1437 = vand.u32 %v344, 4294901760
        %v1438 = vsub.f32 %v344, %v1437
        %1439 = vmatmul.mubr.f32.gmra.mxu0 %v1438
        %v1440 = vpop.f32.mrf.mxu0
        %v1441 = vadd.f32 %v1088, %v1440
        %v1442 = vpop.f32.mrf.mxu0
        %1443 = vmatprep.mubr.f32.mxu0 0.0
        %v1444 = vand.u32 %v345, 4294901760
        %v1445 = vsub.f32 %v345, %v1444
        %1446 = vmatmul.mubr.f32.gmra.mxu0 %v1445
        %v1447 = vpop.f32.mrf.mxu0
        %v1448 = vadd.f32 %v1094, %v1447
        %v1449 = vpop.f32.mrf.mxu0
        %1450 = vmatprep.mubr.f32.mxu0 0.0
        %v1451 = vand.u32 %v346, 4294901760
        %v1452 = vsub.f32 %v346, %v1451
        %1453 = vmatmul.mubr.f32.gmra.mxu0 %v1452
        %v1454 = vpop.f32.mrf.mxu0
        %v1455 = vadd.f32 %v1100, %v1454
        %v1456 = vpop.f32.mrf.mxu0
        %1457 = vmatprep.mubr.f32.mxu0 0.0
        %v1458 = vand.u32 %v347, 4294901760
        %v1459 = vsub.f32 %v347, %v1458
        %1460 = vmatmul.mubr.f32.gmra.mxu0 %v1459
        %v1461 = vpop.f32.mrf.mxu0
        %v1462 = vadd.f32 %v1106, %v1461
        %v1463 = vpop.f32.mrf.mxu0
        %1464 = vmatprep.mubr.f32.mxu0 0.0
        %v1465 = vand.u32 %v348, 4294901760
        %v1466 = vsub.f32 %v348, %v1465
        %1467 = vmatmul.mubr.f32.gmra.mxu0 %v1466
        %v1468 = vpop.f32.mrf.mxu0
        %v1469 = vadd.f32 %v1112, %v1468
        %v1470 = vpop.f32.mrf.mxu0
        %1471 = vmatprep.mubr.f32.mxu0 0.0
        %v1472 = vand.u32 %v349, 4294901760
        %v1473 = vsub.f32 %v349, %v1472
        %1474 = vmatmul.mubr.f32.gmra.mxu0 %v1473
        %v1475 = vpop.f32.mrf.mxu0
        %v1476 = vadd.f32 %v1118, %v1475
        %v1477 = vpop.f32.mrf.mxu0
        %1478 = vmatprep.mubr.f32.mxu0 0.0
        %v1479 = vand.u32 %v350, 4294901760
        %v1480 = vsub.f32 %v350, %v1479
        %1481 = vmatmul.mubr.f32.gmra.mxu0 %v1480
        %v1482 = vpop.f32.mrf.mxu0
        %v1483 = vadd.f32 %v1124, %v1482
        %v1484 = vpop.f32.mrf.mxu0
        %1485 = vmatprep.mubr.f32.mxu0 0.0
        %v1486 = vand.u32 %v351, 4294901760
        %v1487 = vsub.f32 %v351, %v1486
        %1488 = vmatmul.mubr.f32.gmra.mxu0 %v1487
        %v1489 = vpop.f32.mrf.mxu0
        %v1490 = vadd.f32 %v1130, %v1489
        %v1491 = vpop.f32.mrf.mxu0
        %1492 = vmatprep.mubr.f32.mxu0 0.0
        %v1493 = vand.u32 %v352, 4294901760
        %v1494 = vsub.f32 %v352, %v1493
        %1495 = vmatmul.mubr.f32.gmra.mxu0 %v1494
        %v1496 = vpop.f32.mrf.mxu0
        %v1497 = vadd.f32 %v1136, %v1496
        %v1498 = vpop.f32.mrf.mxu0
        %1499 = vmatprep.mubr.f32.mxu0 0.0
        %v1500 = vand.u32 %v353, 4294901760
        %v1501 = vsub.f32 %v353, %v1500
        %1502 = vmatmul.mubr.f32.gmra.mxu0 %v1501
        %v1503 = vpop.f32.mrf.mxu0
        %v1504 = vadd.f32 %v1142, %v1503
        %v1505 = vpop.f32.mrf.mxu0
        %1506 = vmatprep.mubr.f32.mxu0 0.0
        %v1507 = vand.u32 %v354, 4294901760
        %v1508 = vsub.f32 %v354, %v1507
        %1509 = vmatmul.mubr.f32.gmra.mxu0 %v1508
        %v1510 = vpop.f32.mrf.mxu0
        %v1511 = vadd.f32 %v1148, %v1510
        %v1512 = vpop.f32.mrf.mxu0
        %1513 = vmatprep.mubr.f32.mxu0 0.0
        %v1514 = vand.u32 %v355, 4294901760
        %v1515 = vsub.f32 %v355, %v1514
        %1516 = vmatmul.mubr.f32.gmra.mxu0 %v1515
        %v1517 = vpop.f32.mrf.mxu0
        %v1518 = vadd.f32 %v1154, %v1517
        %v1519 = vpop.f32.mrf.mxu0
        %1520 = vmatprep.mubr.f32.mxu0 0.0
        %v1521 = vand.u32 %v356, 4294901760
        %v1522 = vsub.f32 %v356, %v1521
        %1523 = vmatmul.mubr.f32.gmra.mxu0 %v1522
        %v1524 = vpop.f32.mrf.mxu0
        %v1525 = vadd.f32 %v1160, %v1524
        %v1526 = vpop.f32.mrf.mxu0
        %1527 = vmatprep.mubr.f32.mxu0 0.0
        %v1528 = vand.u32 %v357, 4294901760
        %v1529 = vsub.f32 %v357, %v1528
        %1530 = vmatmul.mubr.f32.gmra.mxu0 %v1529
        %v1531 = vpop.f32.mrf.mxu0
        %v1532 = vadd.f32 %v1166, %v1531
        %v1533 = vpop.f32.mrf.mxu0
        %1534 = vmatprep.mubr.f32.mxu0 0.0
        %v1535 = vand.u32 %v358, 4294901760
        %v1536 = vsub.f32 %v358, %v1535
        %1537 = vmatmul.mubr.f32.gmra.mxu0 %v1536
        %v1538 = vpop.f32.mrf.mxu0
        %v1539 = vadd.f32 %v1172, %v1538
        %v1540 = vpop.f32.mrf.mxu0
        %1541 = vmatprep.mubr.f32.mxu0 0.0
        %v1542 = vand.u32 %v359, 4294901760
        %v1543 = vsub.f32 %v359, %v1542
        %1544 = vmatmul.mubr.f32.gmra.mxu0 %v1543
        %v1545 = vpop.f32.mrf.mxu0
        %v1546 = vadd.f32 %v1178, %v1545
        %v1547 = vpop.f32.mrf.mxu0
        %1548 = vmatprep.mubr.f32.mxu0 0.0
        %v1549 = vand.u32 %v360, 4294901760
        %v1550 = vsub.f32 %v360, %v1549
        %1551 = vmatmul.mubr.f32.gmra.mxu0 %v1550
        %v1552 = vpop.f32.mrf.mxu0
        %v1553 = vadd.f32 %v1184, %v1552
        %v1554 = vpop.f32.mrf.mxu0
        %1555 = vmatprep.mubr.f32.mxu0 0.0
        %v1556 = vand.u32 %v361, 4294901760
        %v1557 = vsub.f32 %v361, %v1556
        %1558 = vmatmul.mubr.f32.gmra.mxu0 %v1557
        %v1559 = vpop.f32.mrf.mxu0
        %v1560 = vadd.f32 %v1190, %v1559
        %v1561 = vpop.f32.mrf.mxu0
        %1562 = vmatprep.mubr.f32.mxu0 0.0
        %v1563 = vand.u32 %v362, 4294901760
        %v1564 = vsub.f32 %v362, %v1563
        %1565 = vmatmul.mubr.f32.gmra.mxu0 %v1564
        %v1566 = vpop.f32.mrf.mxu0
        %v1567 = vadd.f32 %v1196, %v1566
        %v1568 = vpop.f32.mrf.mxu0
        %1569 = vmatprep.mubr.f32.mxu0 0.0
        %v1570 = vand.u32 %v363, 4294901760
        %v1571 = vsub.f32 %v363, %v1570
        %1572 = vmatmul.mubr.f32.gmra.mxu0 %v1571
        %v1573 = vpop.f32.mrf.mxu0
        %v1574 = vadd.f32 %v1202, %v1573
        %v1575 = vpop.f32.mrf.mxu0
        %1576 = vmatprep.mubr.f32.mxu0 0.0
        %v1577 = vand.u32 %v364, 4294901760
        %v1578 = vsub.f32 %v364, %v1577
        %1579 = vmatmul.mubr.f32.gmra.mxu0 %v1578
        %v1580 = vpop.f32.mrf.mxu0
        %v1581 = vadd.f32 %v1208, %v1580
        %v1582 = vpop.f32.mrf.mxu0
        %1583 = vmatprep.mubr.f32.mxu0 0.0
        %v1584 = vand.u32 %v365, 4294901760
        %v1585 = vsub.f32 %v365, %v1584
        %1586 = vmatmul.mubr.f32.gmra.mxu0 %v1585
        %v1587 = vpop.f32.mrf.mxu0
        %v1588 = vadd.f32 %v1214, %v1587
        %v1589 = vpop.f32.mrf.mxu0
        %1590 = vmatprep.mubr.f32.mxu0 0.0
        %v1591 = vand.u32 %v366, 4294901760
        %v1592 = vsub.f32 %v366, %v1591
        %1593 = vmatmul.mubr.f32.gmra.mxu0 %v1592
        %v1594 = vpop.f32.mrf.mxu0
        %v1595 = vadd.f32 %v1220, %v1594
        %v1596 = vpop.f32.mrf.mxu0
        %1597 = vmatprep.mubr.f32.mxu0 0.0
        %v1598 = vand.u32 %v367, 4294901760
        %v1599 = vsub.f32 %v367, %v1598
        %1600 = vmatmul.mubr.f32.gmra.mxu0 %v1599
        %v1601 = vpop.f32.mrf.mxu0
        %v1602 = vadd.f32 %v1226, %v1601
        %v1603 = vpop.f32.mrf.mxu0
        %1604 = vmatprep.mubr.f32.mxu0 0.0
        %v1605 = vand.u32 %v368, 4294901760
        %v1606 = vsub.f32 %v368, %v1605
        %1607 = vmatmul.mubr.f32.gmra.mxu0 %v1606
        %v1608 = vpop.f32.mrf.mxu0
        %v1609 = vadd.f32 %v1232, %v1608
        %v1610 = vpop.f32.mrf.mxu0
        %1611 = vdwg.mxu0
        %1612 = vmatprep.subr.mxu0 0.0
        %v1613 = vand.u32 %v328, 4294901760
        %1614 = vmatpush1.msra.mxu0 %v1613
        %1615 = vmatprep.subr.mxu0 0.0
        %v1616 = vand.u32 %v327, 4294901760
        %1617 = vmatpush1.msra.mxu0 %v1616
        %1618 = vmatprep.subr.mxu0 0.0
        %v1619 = vand.u32 %v326, 4294901760
        %1620 = vmatpush1.msra.mxu0 %v1619
        %1621 = vmatprep.subr.mxu0 0.0
        %v1622 = vand.u32 %v325, 4294901760
        %1623 = vmatpush1.msra.mxu0 %v1622
        %1624 = vmatprep.subr.mxu0 0.0
        %v1625 = vand.u32 %v324, 4294901760
        %1626 = vmatpush1.msra.mxu0 %v1625
        %1627 = vmatprep.subr.mxu0 0.0
        %v1628 = vand.u32 %v323, 4294901760
        %1629 = vmatpush1.msra.mxu0 %v1628
        %1630 = vmatprep.subr.mxu0 0.0
        %v1631 = vand.u32 %v322, 4294901760
        %1632 = vmatpush1.msra.mxu0 %v1631
        %1633 = vmatprep.subr.mxu0 0.0
        %v1634 = vand.u32 %v321, 4294901760
        %1635 = vmatpush1.msra.mxu0 %v1634
        %1636 = vmatprep.subr.mxu0 0.0
        %v1637 = vand.u32 %v320, 4294901760
        %1638 = vmatpush1.msra.mxu0 %v1637
        %1639 = vmatprep.subr.mxu0 0.0
        %v1640 = vand.u32 %v319, 4294901760
        %1641 = vmatpush1.msra.mxu0 %v1640
        %1642 = vmatprep.subr.mxu0 0.0
        %v1643 = vand.u32 %v318, 4294901760
        %1644 = vmatpush1.msra.mxu0 %v1643
        %1645 = vmatprep.subr.mxu0 0.0
        %v1646 = vand.u32 %v317, 4294901760
        %1647 = vmatpush1.msra.mxu0 %v1646
        %1648 = vmatprep.subr.mxu0 0.0
        %v1649 = vand.u32 %v316, 4294901760
        %1650 = vmatpush1.msra.mxu0 %v1649
        %1651 = vmatprep.subr.mxu0 0.0
        %v1652 = vand.u32 %v315, 4294901760
        %1653 = vmatpush1.msra.mxu0 %v1652
        %1654 = vmatprep.subr.mxu0 0.0
        %v1655 = vand.u32 %v314, 4294901760
        %1656 = vmatpush1.msra.mxu0 %v1655
        %1657 = vmatprep.subr.mxu0 0.0
        %v1658 = vand.u32 %v313, 4294901760
        %1659 = vmatpush1.msra.mxu0 %v1658
        %1660 = vmatprep.subr.mxu0 0.0
        %1661 = vmatpush2.msra.mxu0 0.0
        %1662 = vmatprep.subr.mxu0 0.0
        %1663 = vmatpush2.msra.mxu0 0.0
        %1664 = vmatprep.subr.mxu0 0.0
        %1665 = vmatpush2.msra.mxu0 0.0
        %1666 = vmatprep.subr.mxu0 0.0
        %1667 = vmatpush2.msra.mxu0 0.0
        %1668 = vmatprep.subr.mxu0 0.0
        %1669 = vmatpush2.msra.mxu0 0.0
        %1670 = vmatprep.subr.mxu0 0.0
        %1671 = vmatpush2.msra.mxu0 0.0
        %1672 = vmatprep.subr.mxu0 0.0
        %1673 = vmatpush2.msra.mxu0 0.0
        %1674 = vmatprep.subr.mxu0 0.0
        %1675 = vmatpush2.msra.mxu0 0.0
        %1676 = vmatprep.subr.mxu0 0.0
        %1677 = vmatpush2.msra.mxu0 0.0
        %1678 = vmatprep.subr.mxu0 0.0
        %1679 = vmatpush2.msra.mxu0 0.0
        %1680 = vmatprep.subr.mxu0 0.0
        %1681 = vmatpush2.msra.mxu0 0.0
        %1682 = vmatprep.subr.mxu0 0.0
        %1683 = vmatpush2.msra.mxu0 0.0
        %1684 = vmatprep.subr.mxu0 0.0
        %1685 = vmatpush2.msra.mxu0 0.0
        %1686 = vmatprep.subr.mxu0 0.0
        %1687 = vmatpush2.msra.mxu0 0.0
        %1688 = vmatprep.subr.mxu0 0.0
        %1689 = vmatpush2.msra.mxu0 0.0
        %1690 = vmatprep.subr.mxu0 0.0
        %1691 = vmatpush2.msra.mxu0 0.0
        %1692 = vmatprep.mubr.f32.mxu0 0.0
        %v1693 = vand.u32 %v329, 4294901760
        %v1694 = vsub.f32 %v329, %v1693
        %v1695 = vand.u32 %v1694, 4294901760
        %1696 = vmatmul.mubr.f32.gmra.mxu0 %v1695
        %v1697 = vpop.f32.mrf.mxu0
        %v1698 = vadd.f32 %v1336, %v1697
        %v1699 = vpop.f32.mrf.mxu0
        %1700 = vmatprep.mubr.f32.mxu0 0.0
        %v1701 = vand.u32 %v330, 4294901760
        %v1702 = vsub.f32 %v330, %v1701
        %v1703 = vand.u32 %v1702, 4294901760
        %1704 = vmatmul.mubr.f32.gmra.mxu0 %v1703
        %v1705 = vpop.f32.mrf.mxu0
        %v1706 = vadd.f32 %v1343, %v1705
        %v1707 = vpop.f32.mrf.mxu0
        %1708 = vmatprep.mubr.f32.mxu0 0.0
        %v1709 = vand.u32 %v331, 4294901760
        %v1710 = vsub.f32 %v331, %v1709
        %v1711 = vand.u32 %v1710, 4294901760
        %1712 = vmatmul.mubr.f32.gmra.mxu0 %v1711
        %v1713 = vpop.f32.mrf.mxu0
        %v1714 = vadd.f32 %v1350, %v1713
        %v1715 = vpop.f32.mrf.mxu0
        %1716 = vmatprep.mubr.f32.mxu0 0.0
        %v1717 = vand.u32 %v332, 4294901760
        %v1718 = vsub.f32 %v332, %v1717
        %v1719 = vand.u32 %v1718, 4294901760
        %1720 = vmatmul.mubr.f32.gmra.mxu0 %v1719
        %v1721 = vpop.f32.mrf.mxu0
        %v1722 = vadd.f32 %v1357, %v1721
        %v1723 = vpop.f32.mrf.mxu0
        %1724 = vmatprep.mubr.f32.mxu0 0.0
        %v1725 = vand.u32 %v333, 4294901760
        %v1726 = vsub.f32 %v333, %v1725
        %v1727 = vand.u32 %v1726, 4294901760
        %1728 = vmatmul.mubr.f32.gmra.mxu0 %v1727
        %v1729 = vpop.f32.mrf.mxu0
        %v1730 = vadd.f32 %v1364, %v1729
        %v1731 = vpop.f32.mrf.mxu0
        %1732 = vmatprep.mubr.f32.mxu0 0.0
        %v1733 = vand.u32 %v334, 4294901760
        %v1734 = vsub.f32 %v334, %v1733
        %v1735 = vand.u32 %v1734, 4294901760
        %1736 = vmatmul.mubr.f32.gmra.mxu0 %v1735
        %v1737 = vpop.f32.mrf.mxu0
        %v1738 = vadd.f32 %v1371, %v1737
        %v1739 = vpop.f32.mrf.mxu0
        %1740 = vmatprep.mubr.f32.mxu0 0.0
        %v1741 = vand.u32 %v335, 4294901760
        %v1742 = vsub.f32 %v335, %v1741
        %v1743 = vand.u32 %v1742, 4294901760
        %1744 = vmatmul.mubr.f32.gmra.mxu0 %v1743
        %v1745 = vpop.f32.mrf.mxu0
        %v1746 = vadd.f32 %v1378, %v1745
        %v1747 = vpop.f32.mrf.mxu0
        %1748 = vmatprep.mubr.f32.mxu0 0.0
        %v1749 = vand.u32 %v336, 4294901760
        %v1750 = vsub.f32 %v336, %v1749
        %v1751 = vand.u32 %v1750, 4294901760
        %1752 = vmatmul.mubr.f32.gmra.mxu0 %v1751
        %v1753 = vpop.f32.mrf.mxu0
        %v1754 = vadd.f32 %v1385, %v1753
        %v1755 = vpop.f32.mrf.mxu0
        %1756 = vmatprep.mubr.f32.mxu0 0.0
        %v1757 = vand.u32 %v337, 4294901760
        %v1758 = vsub.f32 %v337, %v1757
        %v1759 = vand.u32 %v1758, 4294901760
        %1760 = vmatmul.mubr.f32.gmra.mxu0 %v1759
        %v1761 = vpop.f32.mrf.mxu0
        %v1762 = vadd.f32 %v1392, %v1761
        %v1763 = vpop.f32.mrf.mxu0
        %1764 = vmatprep.mubr.f32.mxu0 0.0
        %v1765 = vand.u32 %v338, 4294901760
        %v1766 = vsub.f32 %v338, %v1765
        %v1767 = vand.u32 %v1766, 4294901760
        %1768 = vmatmul.mubr.f32.gmra.mxu0 %v1767
        %v1769 = vpop.f32.mrf.mxu0
        %v1770 = vadd.f32 %v1399, %v1769
        %v1771 = vpop.f32.mrf.mxu0
        %1772 = vmatprep.mubr.f32.mxu0 0.0
        %v1773 = vand.u32 %v339, 4294901760
        %v1774 = vsub.f32 %v339, %v1773
        %v1775 = vand.u32 %v1774, 4294901760
        %1776 = vmatmul.mubr.f32.gmra.mxu0 %v1775
        %v1777 = vpop.f32.mrf.mxu0
        %v1778 = vadd.f32 %v1406, %v1777
        %v1779 = vpop.f32.mrf.mxu0
        %1780 = vmatprep.mubr.f32.mxu0 0.0
        %v1781 = vand.u32 %v340, 4294901760
        %v1782 = vsub.f32 %v340, %v1781
        %v1783 = vand.u32 %v1782, 4294901760
        %1784 = vmatmul.mubr.f32.gmra.mxu0 %v1783
        %v1785 = vpop.f32.mrf.mxu0
        %v1786 = vadd.f32 %v1413, %v1785
        %v1787 = vpop.f32.mrf.mxu0
        %1788 = vmatprep.mubr.f32.mxu0 0.0
        %v1789 = vand.u32 %v341, 4294901760
        %v1790 = vsub.f32 %v341, %v1789
        %v1791 = vand.u32 %v1790, 4294901760
        %1792 = vmatmul.mubr.f32.gmra.mxu0 %v1791
        %v1793 = vpop.f32.mrf.mxu0
        %v1794 = vadd.f32 %v1420, %v1793
        %v1795 = vpop.f32.mrf.mxu0
        %1796 = vmatprep.mubr.f32.mxu0 0.0
        %v1797 = vand.u32 %v342, 4294901760
        %v1798 = vsub.f32 %v342, %v1797
        %v1799 = vand.u32 %v1798, 4294901760
        %1800 = vmatmul.mubr.f32.gmra.mxu0 %v1799
        %v1801 = vpop.f32.mrf.mxu0
        %v1802 = vadd.f32 %v1427, %v1801
        %v1803 = vpop.f32.mrf.mxu0
        %1804 = vmatprep.mubr.f32.mxu0 0.0
        %v1805 = vand.u32 %v343, 4294901760
        %v1806 = vsub.f32 %v343, %v1805
        %v1807 = vand.u32 %v1806, 4294901760
        %1808 = vmatmul.mubr.f32.gmra.mxu0 %v1807
        %v1809 = vpop.f32.mrf.mxu0
        %v1810 = vadd.f32 %v1434, %v1809
        %v1811 = vpop.f32.mrf.mxu0
        %1812 = vmatprep.mubr.f32.mxu0 0.0
        %v1813 = vand.u32 %v344, 4294901760
        %v1814 = vsub.f32 %v344, %v1813
        %v1815 = vand.u32 %v1814, 4294901760
        %1816 = vmatmul.mubr.f32.gmra.mxu0 %v1815
        %v1817 = vpop.f32.mrf.mxu0
        %v1818 = vadd.f32 %v1441, %v1817
        %v1819 = vpop.f32.mrf.mxu0
        %1820 = vmatprep.mubr.f32.mxu0 0.0
        %v1821 = vand.u32 %v345, 4294901760
        %v1822 = vsub.f32 %v345, %v1821
        %v1823 = vand.u32 %v1822, 4294901760
        %1824 = vmatmul.mubr.f32.gmra.mxu0 %v1823
        %v1825 = vpop.f32.mrf.mxu0
        %v1826 = vadd.f32 %v1448, %v1825
        %v1827 = vpop.f32.mrf.mxu0
        %1828 = vmatprep.mubr.f32.mxu0 0.0
        %v1829 = vand.u32 %v346, 4294901760
        %v1830 = vsub.f32 %v346, %v1829
        %v1831 = vand.u32 %v1830, 4294901760
        %1832 = vmatmul.mubr.f32.gmra.mxu0 %v1831
        %v1833 = vpop.f32.mrf.mxu0
        %v1834 = vadd.f32 %v1455, %v1833
        %v1835 = vpop.f32.mrf.mxu0
        %1836 = vmatprep.mubr.f32.mxu0 0.0
        %v1837 = vand.u32 %v347, 4294901760
        %v1838 = vsub.f32 %v347, %v1837
        %v1839 = vand.u32 %v1838, 4294901760
        %1840 = vmatmul.mubr.f32.gmra.mxu0 %v1839
        %v1841 = vpop.f32.mrf.mxu0
        %v1842 = vadd.f32 %v1462, %v1841
        %v1843 = vpop.f32.mrf.mxu0
        %1844 = vmatprep.mubr.f32.mxu0 0.0
        %v1845 = vand.u32 %v348, 4294901760
        %v1846 = vsub.f32 %v348, %v1845
        %v1847 = vand.u32 %v1846, 4294901760
        %1848 = vmatmul.mubr.f32.gmra.mxu0 %v1847
        %v1849 = vpop.f32.mrf.mxu0
        %v1850 = vadd.f32 %v1469, %v1849
        %v1851 = vpop.f32.mrf.mxu0
        %1852 = vmatprep.mubr.f32.mxu0 0.0
        %v1853 = vand.u32 %v349, 4294901760
        %v1854 = vsub.f32 %v349, %v1853
        %v1855 = vand.u32 %v1854, 4294901760
        %1856 = vmatmul.mubr.f32.gmra.mxu0 %v1855
        %v1857 = vpop.f32.mrf.mxu0
        %v1858 = vadd.f32 %v1476, %v1857
        %v1859 = vpop.f32.mrf.mxu0
        %1860 = vmatprep.mubr.f32.mxu0 0.0
        %v1861 = vand.u32 %v350, 4294901760
        %v1862 = vsub.f32 %v350, %v1861
        %v1863 = vand.u32 %v1862, 4294901760
        %1864 = vmatmul.mubr.f32.gmra.mxu0 %v1863
        %v1865 = vpop.f32.mrf.mxu0
        %v1866 = vadd.f32 %v1483, %v1865
        %v1867 = vpop.f32.mrf.mxu0
        %1868 = vmatprep.mubr.f32.mxu0 0.0
        %v1869 = vand.u32 %v351, 4294901760
        %v1870 = vsub.f32 %v351, %v1869
        %v1871 = vand.u32 %v1870, 4294901760
        %1872 = vmatmul.mubr.f32.gmra.mxu0 %v1871
        %v1873 = vpop.f32.mrf.mxu0
        %v1874 = vadd.f32 %v1490, %v1873
        %v1875 = vpop.f32.mrf.mxu0
        %1876 = vmatprep.mubr.f32.mxu0 0.0
        %v1877 = vand.u32 %v352, 4294901760
        %v1878 = vsub.f32 %v352, %v1877
        %v1879 = vand.u32 %v1878, 4294901760
        %1880 = vmatmul.mubr.f32.gmra.mxu0 %v1879
        %v1881 = vpop.f32.mrf.mxu0
        %v1882 = vadd.f32 %v1497, %v1881
        %v1883 = vpop.f32.mrf.mxu0
        %1884 = vmatprep.mubr.f32.mxu0 0.0
        %v1885 = vand.u32 %v353, 4294901760
        %v1886 = vsub.f32 %v353, %v1885
        %v1887 = vand.u32 %v1886, 4294901760
        %1888 = vmatmul.mubr.f32.gmra.mxu0 %v1887
        %v1889 = vpop.f32.mrf.mxu0
        %v1890 = vadd.f32 %v1504, %v1889
        %v1891 = vpop.f32.mrf.mxu0
        %1892 = vmatprep.mubr.f32.mxu0 0.0
        %v1893 = vand.u32 %v354, 4294901760
        %v1894 = vsub.f32 %v354, %v1893
        %v1895 = vand.u32 %v1894, 4294901760
        %1896 = vmatmul.mubr.f32.gmra.mxu0 %v1895
        %v1897 = vpop.f32.mrf.mxu0
        %v1898 = vadd.f32 %v1511, %v1897
        %v1899 = vpop.f32.mrf.mxu0
        %1900 = vmatprep.mubr.f32.mxu0 0.0
        %v1901 = vand.u32 %v355, 4294901760
        %v1902 = vsub.f32 %v355, %v1901
        %v1903 = vand.u32 %v1902, 4294901760
        %1904 = vmatmul.mubr.f32.gmra.mxu0 %v1903
        %v1905 = vpop.f32.mrf.mxu0
        %v1906 = vadd.f32 %v1518, %v1905
        %v1907 = vpop.f32.mrf.mxu0
        %1908 = vmatprep.mubr.f32.mxu0 0.0
        %v1909 = vand.u32 %v356, 4294901760
        %v1910 = vsub.f32 %v356, %v1909
        %v1911 = vand.u32 %v1910, 4294901760
        %1912 = vmatmul.mubr.f32.gmra.mxu0 %v1911
        %v1913 = vpop.f32.mrf.mxu0
        %v1914 = vadd.f32 %v1525, %v1913
        %v1915 = vpop.f32.mrf.mxu0
        %1916 = vmatprep.mubr.f32.mxu0 0.0
        %v1917 = vand.u32 %v357, 4294901760
        %v1918 = vsub.f32 %v357, %v1917
        %v1919 = vand.u32 %v1918, 4294901760
        %1920 = vmatmul.mubr.f32.gmra.mxu0 %v1919
        %v1921 = vpop.f32.mrf.mxu0
        %v1922 = vadd.f32 %v1532, %v1921
        %v1923 = vpop.f32.mrf.mxu0
        %1924 = vmatprep.mubr.f32.mxu0 0.0
        %v1925 = vand.u32 %v358, 4294901760
        %v1926 = vsub.f32 %v358, %v1925
        %v1927 = vand.u32 %v1926, 4294901760
        %1928 = vmatmul.mubr.f32.gmra.mxu0 %v1927
        %v1929 = vpop.f32.mrf.mxu0
        %v1930 = vadd.f32 %v1539, %v1929
        %v1931 = vpop.f32.mrf.mxu0
        %1932 = vmatprep.mubr.f32.mxu0 0.0
        %v1933 = vand.u32 %v359, 4294901760
        %v1934 = vsub.f32 %v359, %v1933
        %v1935 = vand.u32 %v1934, 4294901760
        %1936 = vmatmul.mubr.f32.gmra.mxu0 %v1935
        %v1937 = vpop.f32.mrf.mxu0
        %v1938 = vadd.f32 %v1546, %v1937
        %v1939 = vpop.f32.mrf.mxu0
        %1940 = vmatprep.mubr.f32.mxu0 0.0
        %v1941 = vand.u32 %v360, 4294901760
        %v1942 = vsub.f32 %v360, %v1941
        %v1943 = vand.u32 %v1942, 4294901760
        %1944 = vmatmul.mubr.f32.gmra.mxu0 %v1943
        %v1945 = vpop.f32.mrf.mxu0
        %v1946 = vadd.f32 %v1553, %v1945
        %v1947 = vpop.f32.mrf.mxu0
        %1948 = vmatprep.mubr.f32.mxu0 0.0
        %v1949 = vand.u32 %v361, 4294901760
        %v1950 = vsub.f32 %v361, %v1949
        %v1951 = vand.u32 %v1950, 4294901760
        %1952 = vmatmul.mubr.f32.gmra.mxu0 %v1951
        %v1953 = vpop.f32.mrf.mxu0
        %v1954 = vadd.f32 %v1560, %v1953
        %v1955 = vpop.f32.mrf.mxu0
        %1956 = vmatprep.mubr.f32.mxu0 0.0
        %v1957 = vand.u32 %v362, 4294901760
        %v1958 = vsub.f32 %v362, %v1957
        %v1959 = vand.u32 %v1958, 4294901760
        %1960 = vmatmul.mubr.f32.gmra.mxu0 %v1959
        %v1961 = vpop.f32.mrf.mxu0
        %v1962 = vadd.f32 %v1567, %v1961
        %v1963 = vpop.f32.mrf.mxu0
        %1964 = vmatprep.mubr.f32.mxu0 0.0
        %v1965 = vand.u32 %v363, 4294901760
        %v1966 = vsub.f32 %v363, %v1965
        %v1967 = vand.u32 %v1966, 4294901760
        %1968 = vmatmul.mubr.f32.gmra.mxu0 %v1967
        %v1969 = vpop.f32.mrf.mxu0
        %v1970 = vadd.f32 %v1574, %v1969
        %v1971 = vpop.f32.mrf.mxu0
        %1972 = vmatprep.mubr.f32.mxu0 0.0
        %v1973 = vand.u32 %v364, 4294901760
        %v1974 = vsub.f32 %v364, %v1973
        %v1975 = vand.u32 %v1974, 4294901760
        %1976 = vmatmul.mubr.f32.gmra.mxu0 %v1975
        %v1977 = vpop.f32.mrf.mxu0
        %v1978 = vadd.f32 %v1581, %v1977
        %v1979 = vpop.f32.mrf.mxu0
        %1980 = vmatprep.mubr.f32.mxu0 0.0
        %v1981 = vand.u32 %v365, 4294901760
        %v1982 = vsub.f32 %v365, %v1981
        %v1983 = vand.u32 %v1982, 4294901760
        %1984 = vmatmul.mubr.f32.gmra.mxu0 %v1983
        %v1985 = vpop.f32.mrf.mxu0
        %v1986 = vadd.f32 %v1588, %v1985
        %v1987 = vpop.f32.mrf.mxu0
        %1988 = vmatprep.mubr.f32.mxu0 0.0
        %v1989 = vand.u32 %v366, 4294901760
        %v1990 = vsub.f32 %v366, %v1989
        %v1991 = vand.u32 %v1990, 4294901760
        %1992 = vmatmul.mubr.f32.gmra.mxu0 %v1991
        %v1993 = vpop.f32.mrf.mxu0
        %v1994 = vadd.f32 %v1595, %v1993
        %v1995 = vpop.f32.mrf.mxu0
        %1996 = vmatprep.mubr.f32.mxu0 0.0
        %v1997 = vand.u32 %v367, 4294901760
        %v1998 = vsub.f32 %v367, %v1997
        %v1999 = vand.u32 %v1998, 4294901760
        %2000 = vmatmul.mubr.f32.gmra.mxu0 %v1999
        %v2001 = vpop.f32.mrf.mxu0
        %v2002 = vadd.f32 %v1602, %v2001
        %v2003 = vpop.f32.mrf.mxu0
        %2004 = vmatprep.mubr.f32.mxu0 0.0
        %v2005 = vand.u32 %v368, 4294901760
        %v2006 = vsub.f32 %v368, %v2005
        %v2007 = vand.u32 %v2006, 4294901760
        %2008 = vmatmul.mubr.f32.gmra.mxu0 %v2007
        %v2009 = vpop.f32.mrf.mxu0
        %v2010 = vadd.f32 %v1609, %v2009
        %v2011 = vpop.f32.mrf.mxu0
        %2012 = vdwg.mxu0
        %2013 = vmatprep.subr.mxu0 0.0
        %v2014 = vand.u32 %v328, 4294901760
        %v2015 = vsub.f32 %v328, %v2014
        %v2016 = vand.u32 %v2015, 4294901760
        %2017 = vmatpush1.msra.mxu0 %v2016
        %2018 = vmatprep.subr.mxu0 0.0
        %v2019 = vand.u32 %v327, 4294901760
        %v2020 = vsub.f32 %v327, %v2019
        %v2021 = vand.u32 %v2020, 4294901760
        %2022 = vmatpush1.msra.mxu0 %v2021
        %2023 = vmatprep.subr.mxu0 0.0
        %v2024 = vand.u32 %v326, 4294901760
        %v2025 = vsub.f32 %v326, %v2024
        %v2026 = vand.u32 %v2025, 4294901760
        %2027 = vmatpush1.msra.mxu0 %v2026
        %2028 = vmatprep.subr.mxu0 0.0
        %v2029 = vand.u32 %v325, 4294901760
        %v2030 = vsub.f32 %v325, %v2029
        %v2031 = vand.u32 %v2030, 4294901760
        %2032 = vmatpush1.msra.mxu0 %v2031
        %2033 = vmatprep.subr.mxu0 0.0
        %v2034 = vand.u32 %v324, 4294901760
        %v2035 = vsub.f32 %v324, %v2034
        %v2036 = vand.u32 %v2035, 4294901760
        %2037 = vmatpush1.msra.mxu0 %v2036
        %2038 = vmatprep.subr.mxu0 0.0
        %v2039 = vand.u32 %v323, 4294901760
        %v2040 = vsub.f32 %v323, %v2039
        %v2041 = vand.u32 %v2040, 4294901760
        %2042 = vmatpush1.msra.mxu0 %v2041
        %2043 = vmatprep.subr.mxu0 0.0
        %v2044 = vand.u32 %v322, 4294901760
        %v2045 = vsub.f32 %v322, %v2044
        %v2046 = vand.u32 %v2045, 4294901760
        %2047 = vmatpush1.msra.mxu0 %v2046
        %2048 = vmatprep.subr.mxu0 0.0
        %v2049 = vand.u32 %v321, 4294901760
        %v2050 = vsub.f32 %v321, %v2049
        %v2051 = vand.u32 %v2050, 4294901760
        %2052 = vmatpush1.msra.mxu0 %v2051
        %2053 = vmatprep.subr.mxu0 0.0
        %v2054 = vand.u32 %v320, 4294901760
        %v2055 = vsub.f32 %v320, %v2054
        %v2056 = vand.u32 %v2055, 4294901760
        %2057 = vmatpush1.msra.mxu0 %v2056
        %2058 = vmatprep.subr.mxu0 0.0
        %v2059 = vand.u32 %v319, 4294901760
        %v2060 = vsub.f32 %v319, %v2059
        %v2061 = vand.u32 %v2060, 4294901760
        %2062 = vmatpush1.msra.mxu0 %v2061
        %2063 = vmatprep.subr.mxu0 0.0
        %v2064 = vand.u32 %v318, 4294901760
        %v2065 = vsub.f32 %v318, %v2064
        %v2066 = vand.u32 %v2065, 4294901760
        %2067 = vmatpush1.msra.mxu0 %v2066
        %2068 = vmatprep.subr.mxu0 0.0
        %v2069 = vand.u32 %v317, 4294901760
        %v2070 = vsub.f32 %v317, %v2069
        %v2071 = vand.u32 %v2070, 4294901760
        %2072 = vmatpush1.msra.mxu0 %v2071
        %2073 = vmatprep.subr.mxu0 0.0
        %v2074 = vand.u32 %v316, 4294901760
        %v2075 = vsub.f32 %v316, %v2074
        %v2076 = vand.u32 %v2075, 4294901760
        %2077 = vmatpush1.msra.mxu0 %v2076
        %2078 = vmatprep.subr.mxu0 0.0
        %v2079 = vand.u32 %v315, 4294901760
        %v2080 = vsub.f32 %v315, %v2079
        %v2081 = vand.u32 %v2080, 4294901760
        %2082 = vmatpush1.msra.mxu0 %v2081
        %2083 = vmatprep.subr.mxu0 0.0
        %v2084 = vand.u32 %v314, 4294901760
        %v2085 = vsub.f32 %v314, %v2084
        %v2086 = vand.u32 %v2085, 4294901760
        %2087 = vmatpush1.msra.mxu0 %v2086
        %2088 = vmatprep.subr.mxu0 0.0
        %v2089 = vand.u32 %v313, 4294901760
        %v2090 = vsub.f32 %v313, %v2089
        %v2091 = vand.u32 %v2090, 4294901760
        %2092 = vmatpush1.msra.mxu0 %v2091
        %2093 = vmatprep.subr.mxu0 0.0
        %2094 = vmatpush2.msra.mxu0 0.0
        %2095 = vmatprep.subr.mxu0 0.0
        %2096 = vmatpush2.msra.mxu0 0.0
        %2097 = vmatprep.subr.mxu0 0.0
        %2098 = vmatpush2.msra.mxu0 0.0
        %2099 = vmatprep.subr.mxu0 0.0
        %2100 = vmatpush2.msra.mxu0 0.0
        %2101 = vmatprep.subr.mxu0 0.0
        %2102 = vmatpush2.msra.mxu0 0.0
        %2103 = vmatprep.subr.mxu0 0.0
        %2104 = vmatpush2.msra.mxu0 0.0
        %2105 = vmatprep.subr.mxu0 0.0
        %2106 = vmatpush2.msra.mxu0 0.0
        %2107 = vmatprep.subr.mxu0 0.0
        %2108 = vmatpush2.msra.mxu0 0.0
        %2109 = vmatprep.subr.mxu0 0.0
        %2110 = vmatpush2.msra.mxu0 0.0
        %2111 = vmatprep.subr.mxu0 0.0
        %2112 = vmatpush2.msra.mxu0 0.0
        %2113 = vmatprep.subr.mxu0 0.0
        %2114 = vmatpush2.msra.mxu0 0.0
        %2115 = vmatprep.subr.mxu0 0.0
        %2116 = vmatpush2.msra.mxu0 0.0
        %2117 = vmatprep.subr.mxu0 0.0
        %2118 = vmatpush2.msra.mxu0 0.0
        %2119 = vmatprep.subr.mxu0 0.0
        %2120 = vmatpush2.msra.mxu0 0.0
        %2121 = vmatprep.subr.mxu0 0.0
        %2122 = vmatpush2.msra.mxu0 0.0
        %2123 = vmatprep.subr.mxu0 0.0
        %2124 = vmatpush2.msra.mxu0 0.0
        %2125 = vmatprep.mubr.f32.mxu0 0.0
        %v2126 = vand.u32 %v329, 4294901760
        %2127 = vmatmul.mubr.f32.gmra.mxu0 %v2126
        %v2128 = vpop.f32.mrf.mxu0
        %v2129 = vadd.f32 %v1698, %v2128
        %v2130 = vpop.f32.mrf.mxu0
        %2131 = vmatprep.mubr.f32.mxu0 0.0
        %v2132 = vand.u32 %v330, 4294901760
        %2133 = vmatmul.mubr.f32.gmra.mxu0 %v2132
        %v2134 = vpop.f32.mrf.mxu0
        %v2135 = vadd.f32 %v1706, %v2134
        %v2136 = vpop.f32.mrf.mxu0
        %2137 = vmatprep.mubr.f32.mxu0 0.0
        %v2138 = vand.u32 %v331, 4294901760
        %2139 = vmatmul.mubr.f32.gmra.mxu0 %v2138
        %v2140 = vpop.f32.mrf.mxu0
        %v2141 = vadd.f32 %v1714, %v2140
        %v2142 = vpop.f32.mrf.mxu0
        %2143 = vmatprep.mubr.f32.mxu0 0.0
        %v2144 = vand.u32 %v332, 4294901760
        %2145 = vmatmul.mubr.f32.gmra.mxu0 %v2144
        %v2146 = vpop.f32.mrf.mxu0
        %v2147 = vadd.f32 %v1722, %v2146
        %v2148 = vpop.f32.mrf.mxu0
        %2149 = vmatprep.mubr.f32.mxu0 0.0
        %v2150 = vand.u32 %v333, 4294901760
        %2151 = vmatmul.mubr.f32.gmra.mxu0 %v2150
        %v2152 = vpop.f32.mrf.mxu0
        %v2153 = vadd.f32 %v1730, %v2152
        %v2154 = vpop.f32.mrf.mxu0
        %2155 = vmatprep.mubr.f32.mxu0 0.0
        %v2156 = vand.u32 %v334, 4294901760
        %2157 = vmatmul.mubr.f32.gmra.mxu0 %v2156
        %v2158 = vpop.f32.mrf.mxu0
        %v2159 = vadd.f32 %v1738, %v2158
        %v2160 = vpop.f32.mrf.mxu0
        %2161 = vmatprep.mubr.f32.mxu0 0.0
        %v2162 = vand.u32 %v335, 4294901760
        %2163 = vmatmul.mubr.f32.gmra.mxu0 %v2162
        %v2164 = vpop.f32.mrf.mxu0
        %v2165 = vadd.f32 %v1746, %v2164
        %v2166 = vpop.f32.mrf.mxu0
        %2167 = vmatprep.mubr.f32.mxu0 0.0
        %v2168 = vand.u32 %v336, 4294901760
        %2169 = vmatmul.mubr.f32.gmra.mxu0 %v2168
        %v2170 = vpop.f32.mrf.mxu0
        %v2171 = vadd.f32 %v1754, %v2170
        %v2172 = vpop.f32.mrf.mxu0
        %2173 = vmatprep.mubr.f32.mxu0 0.0
        %v2174 = vand.u32 %v337, 4294901760
        %2175 = vmatmul.mubr.f32.gmra.mxu0 %v2174
        %v2176 = vpop.f32.mrf.mxu0
        %v2177 = vadd.f32 %v1762, %v2176
        %v2178 = vpop.f32.mrf.mxu0
        %2179 = vmatprep.mubr.f32.mxu0 0.0
        %v2180 = vand.u32 %v338, 4294901760
        %2181 = vmatmul.mubr.f32.gmra.mxu0 %v2180
        %v2182 = vpop.f32.mrf.mxu0
        %v2183 = vadd.f32 %v1770, %v2182
        %v2184 = vpop.f32.mrf.mxu0
        %2185 = vmatprep.mubr.f32.mxu0 0.0
        %v2186 = vand.u32 %v339, 4294901760
        %2187 = vmatmul.mubr.f32.gmra.mxu0 %v2186
        %v2188 = vpop.f32.mrf.mxu0
        %v2189 = vadd.f32 %v1778, %v2188
        %v2190 = vpop.f32.mrf.mxu0
        %2191 = vmatprep.mubr.f32.mxu0 0.0
        %v2192 = vand.u32 %v340, 4294901760
        %2193 = vmatmul.mubr.f32.gmra.mxu0 %v2192
        %v2194 = vpop.f32.mrf.mxu0
        %v2195 = vadd.f32 %v1786, %v2194
        %v2196 = vpop.f32.mrf.mxu0
        %2197 = vmatprep.mubr.f32.mxu0 0.0
        %v2198 = vand.u32 %v341, 4294901760
        %2199 = vmatmul.mubr.f32.gmra.mxu0 %v2198
        %v2200 = vpop.f32.mrf.mxu0
        %v2201 = vadd.f32 %v1794, %v2200
        %v2202 = vpop.f32.mrf.mxu0
        %2203 = vmatprep.mubr.f32.mxu0 0.0
        %v2204 = vand.u32 %v342, 4294901760
        %2205 = vmatmul.mubr.f32.gmra.mxu0 %v2204
        %v2206 = vpop.f32.mrf.mxu0
        %v2207 = vadd.f32 %v1802, %v2206
        %v2208 = vpop.f32.mrf.mxu0
        %2209 = vmatprep.mubr.f32.mxu0 0.0
        %v2210 = vand.u32 %v343, 4294901760
        %2211 = vmatmul.mubr.f32.gmra.mxu0 %v2210
        %v2212 = vpop.f32.mrf.mxu0
        %v2213 = vadd.f32 %v1810, %v2212
        %v2214 = vpop.f32.mrf.mxu0
        %2215 = vmatprep.mubr.f32.mxu0 0.0
        %v2216 = vand.u32 %v344, 4294901760
        %2217 = vmatmul.mubr.f32.gmra.mxu0 %v2216
        %v2218 = vpop.f32.mrf.mxu0
        %v2219 = vadd.f32 %v1818, %v2218
        %v2220 = vpop.f32.mrf.mxu0
        %2221 = vmatprep.mubr.f32.mxu0 0.0
        %v2222 = vand.u32 %v345, 4294901760
        %2223 = vmatmul.mubr.f32.gmra.mxu0 %v2222
        %v2224 = vpop.f32.mrf.mxu0
        %v2225 = vadd.f32 %v1826, %v2224
        %v2226 = vpop.f32.mrf.mxu0
        %2227 = vmatprep.mubr.f32.mxu0 0.0
        %v2228 = vand.u32 %v346, 4294901760
        %2229 = vmatmul.mubr.f32.gmra.mxu0 %v2228
        %v2230 = vpop.f32.mrf.mxu0
        %v2231 = vadd.f32 %v1834, %v2230
        %v2232 = vpop.f32.mrf.mxu0
        %2233 = vmatprep.mubr.f32.mxu0 0.0
        %v2234 = vand.u32 %v347, 4294901760
        %2235 = vmatmul.mubr.f32.gmra.mxu0 %v2234
        %v2236 = vpop.f32.mrf.mxu0
        %v2237 = vadd.f32 %v1842, %v2236
        %v2238 = vpop.f32.mrf.mxu0
        %2239 = vmatprep.mubr.f32.mxu0 0.0
        %v2240 = vand.u32 %v348, 4294901760
        %2241 = vmatmul.mubr.f32.gmra.mxu0 %v2240
        %v2242 = vpop.f32.mrf.mxu0
        %v2243 = vadd.f32 %v1850, %v2242
        %v2244 = vpop.f32.mrf.mxu0
        %2245 = vmatprep.mubr.f32.mxu0 0.0
        %v2246 = vand.u32 %v349, 4294901760
        %2247 = vmatmul.mubr.f32.gmra.mxu0 %v2246
        %v2248 = vpop.f32.mrf.mxu0
        %v2249 = vadd.f32 %v1858, %v2248
        %v2250 = vpop.f32.mrf.mxu0
        %2251 = vmatprep.mubr.f32.mxu0 0.0
        %v2252 = vand.u32 %v350, 4294901760
        %2253 = vmatmul.mubr.f32.gmra.mxu0 %v2252
        %v2254 = vpop.f32.mrf.mxu0
        %v2255 = vadd.f32 %v1866, %v2254
        %v2256 = vpop.f32.mrf.mxu0
        %2257 = vmatprep.mubr.f32.mxu0 0.0
        %v2258 = vand.u32 %v351, 4294901760
        %2259 = vmatmul.mubr.f32.gmra.mxu0 %v2258
        %v2260 = vpop.f32.mrf.mxu0
        %v2261 = vadd.f32 %v1874, %v2260
        %v2262 = vpop.f32.mrf.mxu0
        %2263 = vmatprep.mubr.f32.mxu0 0.0
        %v2264 = vand.u32 %v352, 4294901760
        %2265 = vmatmul.mubr.f32.gmra.mxu0 %v2264
        %v2266 = vpop.f32.mrf.mxu0
        %v2267 = vadd.f32 %v1882, %v2266
        %v2268 = vpop.f32.mrf.mxu0
        %2269 = vmatprep.mubr.f32.mxu0 0.0
        %v2270 = vand.u32 %v353, 4294901760
        %2271 = vmatmul.mubr.f32.gmra.mxu0 %v2270
        %v2272 = vpop.f32.mrf.mxu0
        %v2273 = vadd.f32 %v1890, %v2272
        %v2274 = vpop.f32.mrf.mxu0
        %2275 = vmatprep.mubr.f32.mxu0 0.0
        %v2276 = vand.u32 %v354, 4294901760
        %2277 = vmatmul.mubr.f32.gmra.mxu0 %v2276
        %v2278 = vpop.f32.mrf.mxu0
        %v2279 = vadd.f32 %v1898, %v2278
        %v2280 = vpop.f32.mrf.mxu0
        %2281 = vmatprep.mubr.f32.mxu0 0.0
        %v2282 = vand.u32 %v355, 4294901760
        %2283 = vmatmul.mubr.f32.gmra.mxu0 %v2282
        %v2284 = vpop.f32.mrf.mxu0
        %v2285 = vadd.f32 %v1906, %v2284
        %v2286 = vpop.f32.mrf.mxu0
        %2287 = vmatprep.mubr.f32.mxu0 0.0
        %v2288 = vand.u32 %v356, 4294901760
        %2289 = vmatmul.mubr.f32.gmra.mxu0 %v2288
        %v2290 = vpop.f32.mrf.mxu0
        %v2291 = vadd.f32 %v1914, %v2290
        %v2292 = vpop.f32.mrf.mxu0
        %2293 = vmatprep.mubr.f32.mxu0 0.0
        %v2294 = vand.u32 %v357, 4294901760
        %2295 = vmatmul.mubr.f32.gmra.mxu0 %v2294
        %v2296 = vpop.f32.mrf.mxu0
        %v2297 = vadd.f32 %v1922, %v2296
        %v2298 = vpop.f32.mrf.mxu0
        %2299 = vmatprep.mubr.f32.mxu0 0.0
        %v2300 = vand.u32 %v358, 4294901760
        %2301 = vmatmul.mubr.f32.gmra.mxu0 %v2300
        %v2302 = vpop.f32.mrf.mxu0
        %v2303 = vadd.f32 %v1930, %v2302
        %v2304 = vpop.f32.mrf.mxu0
        %2305 = vmatprep.mubr.f32.mxu0 0.0
        %v2306 = vand.u32 %v359, 4294901760
        %2307 = vmatmul.mubr.f32.gmra.mxu0 %v2306
        %v2308 = vpop.f32.mrf.mxu0
        %v2309 = vadd.f32 %v1938, %v2308
        %v2310 = vpop.f32.mrf.mxu0
        %2311 = vmatprep.mubr.f32.mxu0 0.0
        %v2312 = vand.u32 %v360, 4294901760
        %2313 = vmatmul.mubr.f32.gmra.mxu0 %v2312
        %v2314 = vpop.f32.mrf.mxu0
        %v2315 = vadd.f32 %v1946, %v2314
        %v2316 = vpop.f32.mrf.mxu0
        %2317 = vmatprep.mubr.f32.mxu0 0.0
        %v2318 = vand.u32 %v361, 4294901760
        %2319 = vmatmul.mubr.f32.gmra.mxu0 %v2318
        %v2320 = vpop.f32.mrf.mxu0
        %v2321 = vadd.f32 %v1954, %v2320
        %v2322 = vpop.f32.mrf.mxu0
        %2323 = vmatprep.mubr.f32.mxu0 0.0
        %v2324 = vand.u32 %v362, 4294901760
        %2325 = vmatmul.mubr.f32.gmra.mxu0 %v2324
        %v2326 = vpop.f32.mrf.mxu0
        %v2327 = vadd.f32 %v1962, %v2326
        %v2328 = vpop.f32.mrf.mxu0
        %2329 = vmatprep.mubr.f32.mxu0 0.0
        %v2330 = vand.u32 %v363, 4294901760
        %2331 = vmatmul.mubr.f32.gmra.mxu0 %v2330
        %v2332 = vpop.f32.mrf.mxu0
        %v2333 = vadd.f32 %v1970, %v2332
        %v2334 = vpop.f32.mrf.mxu0
        %2335 = vmatprep.mubr.f32.mxu0 0.0
        %v2336 = vand.u32 %v364, 4294901760
        %2337 = vmatmul.mubr.f32.gmra.mxu0 %v2336
        %v2338 = vpop.f32.mrf.mxu0
        %v2339 = vadd.f32 %v1978, %v2338
        %v2340 = vpop.f32.mrf.mxu0
        %2341 = vmatprep.mubr.f32.mxu0 0.0
        %v2342 = vand.u32 %v365, 4294901760
        %2343 = vmatmul.mubr.f32.gmra.mxu0 %v2342
        %v2344 = vpop.f32.mrf.mxu0
        %v2345 = vadd.f32 %v1986, %v2344
        %v2346 = vpop.f32.mrf.mxu0
        %2347 = vmatprep.mubr.f32.mxu0 0.0
        %v2348 = vand.u32 %v366, 4294901760
        %2349 = vmatmul.mubr.f32.gmra.mxu0 %v2348
        %v2350 = vpop.f32.mrf.mxu0
        %v2351 = vadd.f32 %v1994, %v2350
        %v2352 = vpop.f32.mrf.mxu0
        %2353 = vmatprep.mubr.f32.mxu0 0.0
        %v2354 = vand.u32 %v367, 4294901760
        %2355 = vmatmul.mubr.f32.gmra.mxu0 %v2354
        %v2356 = vpop.f32.mrf.mxu0
        %v2357 = vadd.f32 %v2002, %v2356
        %v2358 = vpop.f32.mrf.mxu0
        %2359 = vmatprep.mubr.f32.mxu0 0.0
        %v2360 = vand.u32 %v368, 4294901760
        %2361 = vmatmul.mubr.f32.gmra.mxu0 %v2360
        %v2362 = vpop.f32.mrf.mxu0
        %v2363 = vadd.f32 %v2010, %v2362
        %v2364 = vpop.f32.mrf.mxu0
        %2365 = vdwg.mxu0
        %2366 = vmatprep.subr.mxu0 0.0
        %v2367 = vand.u32 %v328, 4294901760
        %2368 = vmatpush1.msra.mxu0 %v2367
        %2369 = vmatprep.subr.mxu0 0.0
        %v2370 = vand.u32 %v327, 4294901760
        %2371 = vmatpush1.msra.mxu0 %v2370
        %2372 = vmatprep.subr.mxu0 0.0
        %v2373 = vand.u32 %v326, 4294901760
        %2374 = vmatpush1.msra.mxu0 %v2373
        %2375 = vmatprep.subr.mxu0 0.0
        %v2376 = vand.u32 %v325, 4294901760
        %2377 = vmatpush1.msra.mxu0 %v2376
        %2378 = vmatprep.subr.mxu0 0.0
        %v2379 = vand.u32 %v324, 4294901760
        %2380 = vmatpush1.msra.mxu0 %v2379
        %2381 = vmatprep.subr.mxu0 0.0
        %v2382 = vand.u32 %v323, 4294901760
        %2383 = vmatpush1.msra.mxu0 %v2382
        %2384 = vmatprep.subr.mxu0 0.0
        %v2385 = vand.u32 %v322, 4294901760
        %2386 = vmatpush1.msra.mxu0 %v2385
        %2387 = vmatprep.subr.mxu0 0.0
        %v2388 = vand.u32 %v321, 4294901760
        %2389 = vmatpush1.msra.mxu0 %v2388
        %2390 = vmatprep.subr.mxu0 0.0
        %v2391 = vand.u32 %v320, 4294901760
        %2392 = vmatpush1.msra.mxu0 %v2391
        %2393 = vmatprep.subr.mxu0 0.0
        %v2394 = vand.u32 %v319, 4294901760
        %2395 = vmatpush1.msra.mxu0 %v2394
        %2396 = vmatprep.subr.mxu0 0.0
        %v2397 = vand.u32 %v318, 4294901760
        %2398 = vmatpush1.msra.mxu0 %v2397
        %2399 = vmatprep.subr.mxu0 0.0
        %v2400 = vand.u32 %v317, 4294901760
        %2401 = vmatpush1.msra.mxu0 %v2400
        %2402 = vmatprep.subr.mxu0 0.0
        %v2403 = vand.u32 %v316, 4294901760
        %2404 = vmatpush1.msra.mxu0 %v2403
        %2405 = vmatprep.subr.mxu0 0.0
        %v2406 = vand.u32 %v315, 4294901760
        %2407 = vmatpush1.msra.mxu0 %v2406
        %2408 = vmatprep.subr.mxu0 0.0
        %v2409 = vand.u32 %v314, 4294901760
        %2410 = vmatpush1.msra.mxu0 %v2409
        %2411 = vmatprep.subr.mxu0 0.0
        %v2412 = vand.u32 %v313, 4294901760
        %2413 = vmatpush1.msra.mxu0 %v2412
        %2414 = vmatprep.subr.mxu0 0.0
        %2415 = vmatpush2.msra.mxu0 0.0
        %2416 = vmatprep.subr.mxu0 0.0
        %2417 = vmatpush2.msra.mxu0 0.0
        %2418 = vmatprep.subr.mxu0 0.0
        %2419 = vmatpush2.msra.mxu0 0.0
        %2420 = vmatprep.subr.mxu0 0.0
        %2421 = vmatpush2.msra.mxu0 0.0
        %2422 = vmatprep.subr.mxu0 0.0
        %2423 = vmatpush2.msra.mxu0 0.0
        %2424 = vmatprep.subr.mxu0 0.0
        %2425 = vmatpush2.msra.mxu0 0.0
        %2426 = vmatprep.subr.mxu0 0.0
        %2427 = vmatpush2.msra.mxu0 0.0
        %2428 = vmatprep.subr.mxu0 0.0
        %2429 = vmatpush2.msra.mxu0 0.0
        %2430 = vmatprep.subr.mxu0 0.0
        %2431 = vmatpush2.msra.mxu0 0.0
        %2432 = vmatprep.subr.mxu0 0.0
        %2433 = vmatpush2.msra.mxu0 0.0
        %2434 = vmatprep.subr.mxu0 0.0
        %2435 = vmatpush2.msra.mxu0 0.0
        %2436 = vmatprep.subr.mxu0 0.0
        %2437 = vmatpush2.msra.mxu0 0.0
        %2438 = vmatprep.subr.mxu0 0.0
        %2439 = vmatpush2.msra.mxu0 0.0
        %2440 = vmatprep.subr.mxu0 0.0
        %2441 = vmatpush2.msra.mxu0 0.0
        %2442 = vmatprep.subr.mxu0 0.0
        %2443 = vmatpush2.msra.mxu0 0.0
        %2444 = vmatprep.subr.mxu0 0.0
        %2445 = vmatpush2.msra.mxu0 0.0
        %2446 = vmatprep.mubr.f32.mxu0 0.0
        %v2447 = vand.u32 %v329, 4294901760
        %2448 = vmatmul.mubr.f32.gmra.mxu0 %v2447
        %v2449 = vpop.f32.mrf.mxu0
        %v2450 = vadd.f32 %v2129, %v2449
        %v2451 = vpop.f32.mrf.mxu0
        %2452 = vmatprep.mubr.f32.mxu0 0.0
        %v2453 = vand.u32 %v330, 4294901760
        %2454 = vmatmul.mubr.f32.gmra.mxu0 %v2453
        %v2455 = vpop.f32.mrf.mxu0
        %v2456 = vadd.f32 %v2135, %v2455
        %v2457 = vpop.f32.mrf.mxu0
        %2458 = vmatprep.mubr.f32.mxu0 0.0
        %v2459 = vand.u32 %v331, 4294901760
        %2460 = vmatmul.mubr.f32.gmra.mxu0 %v2459
        %v2461 = vpop.f32.mrf.mxu0
        %v2462 = vadd.f32 %v2141, %v2461
        %v2463 = vpop.f32.mrf.mxu0
        %2464 = vmatprep.mubr.f32.mxu0 0.0
        %v2465 = vand.u32 %v332, 4294901760
        %2466 = vmatmul.mubr.f32.gmra.mxu0 %v2465
        %v2467 = vpop.f32.mrf.mxu0
        %v2468 = vadd.f32 %v2147, %v2467
        %v2469 = vpop.f32.mrf.mxu0
        %2470 = vmatprep.mubr.f32.mxu0 0.0
        %v2471 = vand.u32 %v333, 4294901760
        %2472 = vmatmul.mubr.f32.gmra.mxu0 %v2471
        %v2473 = vpop.f32.mrf.mxu0
        %v2474 = vadd.f32 %v2153, %v2473
        %v2475 = vpop.f32.mrf.mxu0
        %2476 = vmatprep.mubr.f32.mxu0 0.0
        %v2477 = vand.u32 %v334, 4294901760
        %2478 = vmatmul.mubr.f32.gmra.mxu0 %v2477
        %v2479 = vpop.f32.mrf.mxu0
        %v2480 = vadd.f32 %v2159, %v2479
        %v2481 = vpop.f32.mrf.mxu0
        %2482 = vmatprep.mubr.f32.mxu0 0.0
        %v2483 = vand.u32 %v335, 4294901760
        %2484 = vmatmul.mubr.f32.gmra.mxu0 %v2483
        %v2485 = vpop.f32.mrf.mxu0
        %v2486 = vadd.f32 %v2165, %v2485
        %v2487 = vpop.f32.mrf.mxu0
        %2488 = vmatprep.mubr.f32.mxu0 0.0
        %v2489 = vand.u32 %v336, 4294901760
        %2490 = vmatmul.mubr.f32.gmra.mxu0 %v2489
        %v2491 = vpop.f32.mrf.mxu0
        %v2492 = vadd.f32 %v2171, %v2491
        %v2493 = vpop.f32.mrf.mxu0
        %2494 = vmatprep.mubr.f32.mxu0 0.0
        %v2495 = vand.u32 %v337, 4294901760
        %2496 = vmatmul.mubr.f32.gmra.mxu0 %v2495
        %v2497 = vpop.f32.mrf.mxu0
        %v2498 = vadd.f32 %v2177, %v2497
        %v2499 = vpop.f32.mrf.mxu0
        %2500 = vmatprep.mubr.f32.mxu0 0.0
        %v2501 = vand.u32 %v338, 4294901760
        %2502 = vmatmul.mubr.f32.gmra.mxu0 %v2501
        %v2503 = vpop.f32.mrf.mxu0
        %v2504 = vadd.f32 %v2183, %v2503
        %v2505 = vpop.f32.mrf.mxu0
        %2506 = vmatprep.mubr.f32.mxu0 0.0
        %v2507 = vand.u32 %v339, 4294901760
        %2508 = vmatmul.mubr.f32.gmra.mxu0 %v2507
        %v2509 = vpop.f32.mrf.mxu0
        %v2510 = vadd.f32 %v2189, %v2509
        %v2511 = vpop.f32.mrf.mxu0
        %2512 = vmatprep.mubr.f32.mxu0 0.0
        %v2513 = vand.u32 %v340, 4294901760
        %2514 = vmatmul.mubr.f32.gmra.mxu0 %v2513
        %v2515 = vpop.f32.mrf.mxu0
        %v2516 = vadd.f32 %v2195, %v2515
        %v2517 = vpop.f32.mrf.mxu0
        %2518 = vmatprep.mubr.f32.mxu0 0.0
        %v2519 = vand.u32 %v341, 4294901760
        %2520 = vmatmul.mubr.f32.gmra.mxu0 %v2519
        %v2521 = vpop.f32.mrf.mxu0
        %v2522 = vadd.f32 %v2201, %v2521
        %v2523 = vpop.f32.mrf.mxu0
        %2524 = vmatprep.mubr.f32.mxu0 0.0
        %v2525 = vand.u32 %v342, 4294901760
        %2526 = vmatmul.mubr.f32.gmra.mxu0 %v2525
        %v2527 = vpop.f32.mrf.mxu0
        %v2528 = vadd.f32 %v2207, %v2527
        %v2529 = vpop.f32.mrf.mxu0
        %2530 = vmatprep.mubr.f32.mxu0 0.0
        %v2531 = vand.u32 %v343, 4294901760
        %2532 = vmatmul.mubr.f32.gmra.mxu0 %v2531
        %v2533 = vpop.f32.mrf.mxu0
        %v2534 = vadd.f32 %v2213, %v2533
        %v2535 = vpop.f32.mrf.mxu0
        %2536 = vmatprep.mubr.f32.mxu0 0.0
        %v2537 = vand.u32 %v344, 4294901760
        %2538 = vmatmul.mubr.f32.gmra.mxu0 %v2537
        %v2539 = vpop.f32.mrf.mxu0
        %v2540 = vadd.f32 %v2219, %v2539
        %v2541 = vpop.f32.mrf.mxu0
        %2542 = vmatprep.mubr.f32.mxu0 0.0
        %v2543 = vand.u32 %v345, 4294901760
        %2544 = vmatmul.mubr.f32.gmra.mxu0 %v2543
        %v2545 = vpop.f32.mrf.mxu0
        %v2546 = vadd.f32 %v2225, %v2545
        %v2547 = vpop.f32.mrf.mxu0
        %2548 = vmatprep.mubr.f32.mxu0 0.0
        %v2549 = vand.u32 %v346, 4294901760
        %2550 = vmatmul.mubr.f32.gmra.mxu0 %v2549
        %v2551 = vpop.f32.mrf.mxu0
        %v2552 = vadd.f32 %v2231, %v2551
        %v2553 = vpop.f32.mrf.mxu0
        %2554 = vmatprep.mubr.f32.mxu0 0.0
        %v2555 = vand.u32 %v347, 4294901760
        %2556 = vmatmul.mubr.f32.gmra.mxu0 %v2555
        %v2557 = vpop.f32.mrf.mxu0
        %v2558 = vadd.f32 %v2237, %v2557
        %v2559 = vpop.f32.mrf.mxu0
        %2560 = vmatprep.mubr.f32.mxu0 0.0
        %v2561 = vand.u32 %v348, 4294901760
        %2562 = vmatmul.mubr.f32.gmra.mxu0 %v2561
        %v2563 = vpop.f32.mrf.mxu0
        %v2564 = vadd.f32 %v2243, %v2563
        %v2565 = vpop.f32.mrf.mxu0
        %2566 = vmatprep.mubr.f32.mxu0 0.0
        %v2567 = vand.u32 %v349, 4294901760
        %2568 = vmatmul.mubr.f32.gmra.mxu0 %v2567
        %v2569 = vpop.f32.mrf.mxu0
        %v2570 = vadd.f32 %v2249, %v2569
        %v2571 = vpop.f32.mrf.mxu0
        %2572 = vmatprep.mubr.f32.mxu0 0.0
        %v2573 = vand.u32 %v350, 4294901760
        %2574 = vmatmul.mubr.f32.gmra.mxu0 %v2573
        %v2575 = vpop.f32.mrf.mxu0
        %v2576 = vadd.f32 %v2255, %v2575
        %v2577 = vpop.f32.mrf.mxu0
        %2578 = vmatprep.mubr.f32.mxu0 0.0
        %v2579 = vand.u32 %v351, 4294901760
        %2580 = vmatmul.mubr.f32.gmra.mxu0 %v2579
        %v2581 = vpop.f32.mrf.mxu0
        %v2582 = vadd.f32 %v2261, %v2581
        %v2583 = vpop.f32.mrf.mxu0
        %2584 = vmatprep.mubr.f32.mxu0 0.0
        %v2585 = vand.u32 %v352, 4294901760
        %2586 = vmatmul.mubr.f32.gmra.mxu0 %v2585
        %v2587 = vpop.f32.mrf.mxu0
        %v2588 = vadd.f32 %v2267, %v2587
        %v2589 = vpop.f32.mrf.mxu0
        %2590 = vmatprep.mubr.f32.mxu0 0.0
        %v2591 = vand.u32 %v353, 4294901760
        %2592 = vmatmul.mubr.f32.gmra.mxu0 %v2591
        %v2593 = vpop.f32.mrf.mxu0
        %v2594 = vadd.f32 %v2273, %v2593
        %v2595 = vpop.f32.mrf.mxu0
        %2596 = vmatprep.mubr.f32.mxu0 0.0
        %v2597 = vand.u32 %v354, 4294901760
        %2598 = vmatmul.mubr.f32.gmra.mxu0 %v2597
        %v2599 = vpop.f32.mrf.mxu0
        %v2600 = vadd.f32 %v2279, %v2599
        %v2601 = vpop.f32.mrf.mxu0
        %2602 = vmatprep.mubr.f32.mxu0 0.0
        %v2603 = vand.u32 %v355, 4294901760
        %2604 = vmatmul.mubr.f32.gmra.mxu0 %v2603
        %v2605 = vpop.f32.mrf.mxu0
        %v2606 = vadd.f32 %v2285, %v2605
        %v2607 = vpop.f32.mrf.mxu0
        %2608 = vmatprep.mubr.f32.mxu0 0.0
        %v2609 = vand.u32 %v356, 4294901760
        %2610 = vmatmul.mubr.f32.gmra.mxu0 %v2609
        %v2611 = vpop.f32.mrf.mxu0
        %v2612 = vadd.f32 %v2291, %v2611
        %v2613 = vpop.f32.mrf.mxu0
        %2614 = vmatprep.mubr.f32.mxu0 0.0
        %v2615 = vand.u32 %v357, 4294901760
        %2616 = vmatmul.mubr.f32.gmra.mxu0 %v2615
        %v2617 = vpop.f32.mrf.mxu0
        %v2618 = vadd.f32 %v2297, %v2617
        %v2619 = vpop.f32.mrf.mxu0
        %2620 = vmatprep.mubr.f32.mxu0 0.0
        %v2621 = vand.u32 %v358, 4294901760
        %2622 = vmatmul.mubr.f32.gmra.mxu0 %v2621
        %v2623 = vpop.f32.mrf.mxu0
        %v2624 = vadd.f32 %v2303, %v2623
        %v2625 = vpop.f32.mrf.mxu0
        %2626 = vmatprep.mubr.f32.mxu0 0.0
        %v2627 = vand.u32 %v359, 4294901760
        %2628 = vmatmul.mubr.f32.gmra.mxu0 %v2627
        %v2629 = vpop.f32.mrf.mxu0
        %v2630 = vadd.f32 %v2309, %v2629
        %v2631 = vpop.f32.mrf.mxu0
        %2632 = vmatprep.mubr.f32.mxu0 0.0
        %v2633 = vand.u32 %v360, 4294901760
        %2634 = vmatmul.mubr.f32.gmra.mxu0 %v2633
        %v2635 = vpop.f32.mrf.mxu0
        %v2636 = vadd.f32 %v2315, %v2635
        %v2637 = vpop.f32.mrf.mxu0
        %2638 = vmatprep.mubr.f32.mxu0 0.0
        %v2639 = vand.u32 %v361, 4294901760
        %2640 = vmatmul.mubr.f32.gmra.mxu0 %v2639
        %v2641 = vpop.f32.mrf.mxu0
        %v2642 = vadd.f32 %v2321, %v2641
        %v2643 = vpop.f32.mrf.mxu0
        %2644 = vmatprep.mubr.f32.mxu0 0.0
        %v2645 = vand.u32 %v362, 4294901760
        %2646 = vmatmul.mubr.f32.gmra.mxu0 %v2645
        %v2647 = vpop.f32.mrf.mxu0
        %v2648 = vadd.f32 %v2327, %v2647
        %v2649 = vpop.f32.mrf.mxu0
        %2650 = vmatprep.mubr.f32.mxu0 0.0
        %v2651 = vand.u32 %v363, 4294901760
        %2652 = vmatmul.mubr.f32.gmra.mxu0 %v2651
        %v2653 = vpop.f32.mrf.mxu0
        %v2654 = vadd.f32 %v2333, %v2653
        %v2655 = vpop.f32.mrf.mxu0
        %2656 = vmatprep.mubr.f32.mxu0 0.0
        %v2657 = vand.u32 %v364, 4294901760
        %2658 = vmatmul.mubr.f32.gmra.mxu0 %v2657
        %v2659 = vpop.f32.mrf.mxu0
        %v2660 = vadd.f32 %v2339, %v2659
        %v2661 = vpop.f32.mrf.mxu0
        %2662 = vmatprep.mubr.f32.mxu0 0.0
        %v2663 = vand.u32 %v365, 4294901760
        %2664 = vmatmul.mubr.f32.gmra.mxu0 %v2663
        %v2665 = vpop.f32.mrf.mxu0
        %v2666 = vadd.f32 %v2345, %v2665
        %v2667 = vpop.f32.mrf.mxu0
        %2668 = vmatprep.mubr.f32.mxu0 0.0
        %v2669 = vand.u32 %v366, 4294901760
        %2670 = vmatmul.mubr.f32.gmra.mxu0 %v2669
        %v2671 = vpop.f32.mrf.mxu0
        %v2672 = vadd.f32 %v2351, %v2671
        %v2673 = vpop.f32.mrf.mxu0
        %2674 = vmatprep.mubr.f32.mxu0 0.0
        %v2675 = vand.u32 %v367, 4294901760
        %2676 = vmatmul.mubr.f32.gmra.mxu0 %v2675
        %v2677 = vpop.f32.mrf.mxu0
        %v2678 = vadd.f32 %v2357, %v2677
        %v2679 = vpop.f32.mrf.mxu0
        %2680 = vmatprep.mubr.f32.mxu0 0.0
        %v2681 = vand.u32 %v368, 4294901760
        %2682 = vmatmul.mubr.f32.gmra.mxu0 %v2681
        %v2683 = vpop.f32.mrf.mxu0
        %v2684 = vadd.f32 %v2363, %v2683
        %v2685 = vpop.f32.mrf.mxu0
        %2686 = vdwg.mxu0
        %vm2687 = vcmask 130048
        %v2689 = vsel %vm2687, %v311, 0
        %v2692 = vsel %vm2687, %v312, 0
        %2694 = vmatprep.subr.mxu0 0.0
        %2695 = vmatpush1.msra.mxu0 0.0
        %2696 = vmatprep.subr.mxu0 0.0
        %2697 = vmatpush1.msra.mxu0 0.0
        %2698 = vmatprep.subr.mxu0 0.0
        %2699 = vmatpush1.msra.mxu0 0.0
        %2700 = vmatprep.subr.mxu0 0.0
        %2701 = vmatpush1.msra.mxu0 0.0
        %2702 = vmatprep.subr.mxu0 0.0
        %2703 = vmatpush1.msra.mxu0 0.0
        %2704 = vmatprep.subr.mxu0 0.0
        %2705 = vmatpush1.msra.mxu0 0.0
        %2706 = vmatprep.subr.mxu0 0.0
        %2707 = vmatpush1.msra.mxu0 0.0
        %2708 = vmatprep.subr.mxu0 0.0
        %2709 = vmatpush1.msra.mxu0 0.0
        %2710 = vmatprep.subr.mxu0 0.0
        %2711 = vmatpush1.msra.mxu0 0.0
        %2712 = vmatprep.subr.mxu0 0.0
        %2713 = vmatpush1.msra.mxu0 0.0
        %2714 = vmatprep.subr.mxu0 0.0
        %2715 = vmatpush1.msra.mxu0 0.0
        %2716 = vmatprep.subr.mxu0 0.0
        %2717 = vmatpush1.msra.mxu0 0.0
        %2718 = vmatprep.subr.mxu0 0.0
        %2719 = vmatpush1.msra.mxu0 0.0
        %2720 = vmatprep.subr.mxu0 0.0
        %2721 = vmatpush1.msra.mxu0 0.0
        %v2722 = vand.u32 %v2468, 4294901760
        %2723 = vmatprep.subr.mxu0 %v2722
        %v2724 = vand.u32 %v2456, 4294901760
        %2725 = vmatpush1.msra.mxu0 %v2724
        %v2726 = vand.u32 %v2462, 4294901760
        %2727 = vmatprep.subr.mxu0 %v2726
        %v2728 = vand.u32 %v2450, 4294901760
        %2729 = vmatpush1.msra.mxu0 %v2728
        %2730 = vmatprep.subr.mxu0 0.0
        %2731 = vmatpush2.msra.mxu0 0.0
        %2732 = vmatprep.subr.mxu0 0.0
        %2733 = vmatpush2.msra.mxu0 0.0
        %2734 = vmatprep.subr.mxu0 0.0
        %2735 = vmatpush2.msra.mxu0 0.0
        %2736 = vmatprep.subr.mxu0 0.0
        %2737 = vmatpush2.msra.mxu0 0.0
        %2738 = vmatprep.subr.mxu0 0.0
        %2739 = vmatpush2.msra.mxu0 0.0
        %2740 = vmatprep.subr.mxu0 0.0
        %2741 = vmatpush2.msra.mxu0 0.0
        %2742 = vmatprep.subr.mxu0 0.0
        %2743 = vmatpush2.msra.mxu0 0.0
        %2744 = vmatprep.subr.mxu0 0.0
        %2745 = vmatpush2.msra.mxu0 0.0
        %2746 = vmatprep.subr.mxu0 0.0
        %2747 = vmatpush2.msra.mxu0 0.0
        %2748 = vmatprep.subr.mxu0 0.0
        %2749 = vmatpush2.msra.mxu0 0.0
        %2750 = vmatprep.subr.mxu0 0.0
        %2751 = vmatpush2.msra.mxu0 0.0
        %2752 = vmatprep.subr.mxu0 0.0
        %2753 = vmatpush2.msra.mxu0 0.0
        %2754 = vmatprep.subr.mxu0 0.0
        %2755 = vmatpush2.msra.mxu0 0.0
        %2756 = vmatprep.subr.mxu0 0.0
        %2757 = vmatpush2.msra.mxu0 0.0
        %2758 = vmatprep.subr.mxu0 0.0
        %2759 = vmatpush2.msra.mxu0 0.0
        %2760 = vmatprep.subr.mxu0 0.0
        %2761 = vmatpush2.msra.mxu0 0.0
        %2762 = vmatprep.mubr.f32.mxu0 0.0
        %v2763 = vand.u32 %v2689, 4294901760
        %v2764 = vsub.f32 %v2689, %v2763
        %v2765 = vand.u32 %v2764, 4294901760
        %v2766 = vsub.f32 %v2764, %v2765
        %v2767 = vand.u32 %v2766, 4294901760
        %2768 = vmatmul.mubr.f32.gmra.mxu0 %v2767
        %v2769 = vpop.f32.mrf.mxu0
        %v2770 = vadd.f32 0.0, %v2769
        %v2771 = vpop.f32.mrf.mxu0
        %v2772 = vadd.f32 0.0, %v2771
        %2773 = vmatprep.mubr.f32.mxu0 0.0
        %v2774 = vand.u32 %v2692, 4294901760
        %v2775 = vsub.f32 %v2692, %v2774
        %v2776 = vand.u32 %v2775, 4294901760
        %v2777 = vsub.f32 %v2775, %v2776
        %v2778 = vand.u32 %v2777, 4294901760
        %2779 = vmatmul.mubr.f32.gmra.mxu0 %v2778
        %v2780 = vpop.f32.mrf.mxu0
        %v2781 = vadd.f32 0.0, %v2780
        %v2782 = vpop.f32.mrf.mxu0
        %v2783 = vadd.f32 0.0, %v2782
        %2784 = vdwg.mxu0
        %2785 = vmatprep.subr.mxu0 0.0
        %2786 = vmatpush1.msra.mxu0 0.0
        %2787 = vmatprep.subr.mxu0 0.0
        %2788 = vmatpush1.msra.mxu0 0.0
        %2789 = vmatprep.subr.mxu0 0.0
        %2790 = vmatpush1.msra.mxu0 0.0
        %2791 = vmatprep.subr.mxu0 0.0
        %2792 = vmatpush1.msra.mxu0 0.0
        %2793 = vmatprep.subr.mxu0 0.0
        %2794 = vmatpush1.msra.mxu0 0.0
        %2795 = vmatprep.subr.mxu0 0.0
        %2796 = vmatpush1.msra.mxu0 0.0
        %2797 = vmatprep.subr.mxu0 0.0
        %2798 = vmatpush1.msra.mxu0 0.0
        %2799 = vmatprep.subr.mxu0 0.0
        %2800 = vmatpush1.msra.mxu0 0.0
        %2801 = vmatprep.subr.mxu0 0.0
        %2802 = vmatpush1.msra.mxu0 0.0
        %2803 = vmatprep.subr.mxu0 0.0
        %2804 = vmatpush1.msra.mxu0 0.0
        %2805 = vmatprep.subr.mxu0 0.0
        %2806 = vmatpush1.msra.mxu0 0.0
        %2807 = vmatprep.subr.mxu0 0.0
        %2808 = vmatpush1.msra.mxu0 0.0
        %2809 = vmatprep.subr.mxu0 0.0
        %2810 = vmatpush1.msra.mxu0 0.0
        %2811 = vmatprep.subr.mxu0 0.0
        %2812 = vmatpush1.msra.mxu0 0.0
        %v2813 = vand.u32 %v2468, 4294901760
        %v2814 = vsub.f32 %v2468, %v2813
        %v2815 = vand.u32 %v2814, 4294901760
        %v2816 = vsub.f32 %v2814, %v2815
        %v2817 = vand.u32 %v2816, 4294901760
        %2818 = vmatprep.subr.mxu0 %v2817
        %v2819 = vand.u32 %v2456, 4294901760
        %v2820 = vsub.f32 %v2456, %v2819
        %v2821 = vand.u32 %v2820, 4294901760
        %v2822 = vsub.f32 %v2820, %v2821
        %v2823 = vand.u32 %v2822, 4294901760
        %2824 = vmatpush1.msra.mxu0 %v2823
        %v2825 = vand.u32 %v2462, 4294901760
        %v2826 = vsub.f32 %v2462, %v2825
        %v2827 = vand.u32 %v2826, 4294901760
        %v2828 = vsub.f32 %v2826, %v2827
        %v2829 = vand.u32 %v2828, 4294901760
        %2830 = vmatprep.subr.mxu0 %v2829
        %v2831 = vand.u32 %v2450, 4294901760
        %v2832 = vsub.f32 %v2450, %v2831
        %v2833 = vand.u32 %v2832, 4294901760
        %v2834 = vsub.f32 %v2832, %v2833
        %v2835 = vand.u32 %v2834, 4294901760
        %2836 = vmatpush1.msra.mxu0 %v2835
        %2837 = vmatprep.subr.mxu0 0.0
        %2838 = vmatpush2.msra.mxu0 0.0
        %2839 = vmatprep.subr.mxu0 0.0
        %2840 = vmatpush2.msra.mxu0 0.0
        %2841 = vmatprep.subr.mxu0 0.0
        %2842 = vmatpush2.msra.mxu0 0.0
        %2843 = vmatprep.subr.mxu0 0.0
        %2844 = vmatpush2.msra.mxu0 0.0
        %2845 = vmatprep.subr.mxu0 0.0
        %2846 = vmatpush2.msra.mxu0 0.0
        %2847 = vmatprep.subr.mxu0 0.0
        %2848 = vmatpush2.msra.mxu0 0.0
        %2849 = vmatprep.subr.mxu0 0.0
        %2850 = vmatpush2.msra.mxu0 0.0
        %2851 = vmatprep.subr.mxu0 0.0
        %2852 = vmatpush2.msra.mxu0 0.0
        %2853 = vmatprep.subr.mxu0 0.0
        %2854 = vmatpush2.msra.mxu0 0.0
        %2855 = vmatprep.subr.mxu0 0.0
        %2856 = vmatpush2.msra.mxu0 0.0
        %2857 = vmatprep.subr.mxu0 0.0
        %2858 = vmatpush2.msra.mxu0 0.0
        %2859 = vmatprep.subr.mxu0 0.0
        %2860 = vmatpush2.msra.mxu0 0.0
        %2861 = vmatprep.subr.mxu0 0.0
        %2862 = vmatpush2.msra.mxu0 0.0
        %2863 = vmatprep.subr.mxu0 0.0
        %2864 = vmatpush2.msra.mxu0 0.0
        %2865 = vmatprep.subr.mxu0 0.0
        %2866 = vmatpush2.msra.mxu0 0.0
        %2867 = vmatprep.subr.mxu0 0.0
        %2868 = vmatpush2.msra.mxu0 0.0
        %2869 = vmatprep.mubr.f32.mxu0 0.0
        %v2870 = vand.u32 %v2689, 4294901760
        %2871 = vmatmul.mubr.f32.gmra.mxu0 %v2870
        %v2872 = vpop.f32.mrf.mxu0
        %v2873 = vadd.f32 %v2770, %v2872
        %v2874 = vpop.f32.mrf.mxu0
        %v2875 = vadd.f32 %v2772, %v2874
        %2876 = vmatprep.mubr.f32.mxu0 0.0
        %v2877 = vand.u32 %v2692, 4294901760
        %2878 = vmatmul.mubr.f32.gmra.mxu0 %v2877
        %v2879 = vpop.f32.mrf.mxu0
        %v2880 = vadd.f32 %v2781, %v2879
        %v2881 = vpop.f32.mrf.mxu0
        %v2882 = vadd.f32 %v2783, %v2881
        %2883 = vdwg.mxu0
        %2884 = vmatprep.subr.mxu0 0.0
        %2885 = vmatpush1.msra.mxu0 0.0
        %2886 = vmatprep.subr.mxu0 0.0
        %2887 = vmatpush1.msra.mxu0 0.0
        %2888 = vmatprep.subr.mxu0 0.0
        %2889 = vmatpush1.msra.mxu0 0.0
        %2890 = vmatprep.subr.mxu0 0.0
        %2891 = vmatpush1.msra.mxu0 0.0
        %2892 = vmatprep.subr.mxu0 0.0
        %2893 = vmatpush1.msra.mxu0 0.0
        %2894 = vmatprep.subr.mxu0 0.0
        %2895 = vmatpush1.msra.mxu0 0.0
        %2896 = vmatprep.subr.mxu0 0.0
        %2897 = vmatpush1.msra.mxu0 0.0
        %2898 = vmatprep.subr.mxu0 0.0
        %2899 = vmatpush1.msra.mxu0 0.0
        %2900 = vmatprep.subr.mxu0 0.0
        %2901 = vmatpush1.msra.mxu0 0.0
        %2902 = vmatprep.subr.mxu0 0.0
        %2903 = vmatpush1.msra.mxu0 0.0
        %2904 = vmatprep.subr.mxu0 0.0
        %2905 = vmatpush1.msra.mxu0 0.0
        %2906 = vmatprep.subr.mxu0 0.0
        %2907 = vmatpush1.msra.mxu0 0.0
        %2908 = vmatprep.subr.mxu0 0.0
        %2909 = vmatpush1.msra.mxu0 0.0
        %2910 = vmatprep.subr.mxu0 0.0
        %2911 = vmatpush1.msra.mxu0 0.0
        %v2912 = vand.u32 %v2468, 4294901760
        %v2913 = vsub.f32 %v2468, %v2912
        %2914 = vmatprep.subr.mxu0 %v2913
        %v2915 = vand.u32 %v2456, 4294901760
        %v2916 = vsub.f32 %v2456, %v2915
        %2917 = vmatpush1.msra.mxu0 %v2916
        %v2918 = vand.u32 %v2462, 4294901760
        %v2919 = vsub.f32 %v2462, %v2918
        %2920 = vmatprep.subr.mxu0 %v2919
        %v2921 = vand.u32 %v2450, 4294901760
        %v2922 = vsub.f32 %v2450, %v2921
        %2923 = vmatpush1.msra.mxu0 %v2922
        %2924 = vmatprep.subr.mxu0 0.0
        %2925 = vmatpush2.msra.mxu0 0.0
        %2926 = vmatprep.subr.mxu0 0.0
        %2927 = vmatpush2.msra.mxu0 0.0
        %2928 = vmatprep.subr.mxu0 0.0
        %2929 = vmatpush2.msra.mxu0 0.0
        %2930 = vmatprep.subr.mxu0 0.0
        %2931 = vmatpush2.msra.mxu0 0.0
        %2932 = vmatprep.subr.mxu0 0.0
        %2933 = vmatpush2.msra.mxu0 0.0
        %2934 = vmatprep.subr.mxu0 0.0
        %2935 = vmatpush2.msra.mxu0 0.0
        %2936 = vmatprep.subr.mxu0 0.0
        %2937 = vmatpush2.msra.mxu0 0.0
        %2938 = vmatprep.subr.mxu0 0.0
        %2939 = vmatpush2.msra.mxu0 0.0
        %2940 = vmatprep.subr.mxu0 0.0
        %2941 = vmatpush2.msra.mxu0 0.0
        %2942 = vmatprep.subr.mxu0 0.0
        %2943 = vmatpush2.msra.mxu0 0.0
        %2944 = vmatprep.subr.mxu0 0.0
        %2945 = vmatpush2.msra.mxu0 0.0
        %2946 = vmatprep.subr.mxu0 0.0
        %2947 = vmatpush2.msra.mxu0 0.0
        %2948 = vmatprep.subr.mxu0 0.0
        %2949 = vmatpush2.msra.mxu0 0.0
        %2950 = vmatprep.subr.mxu0 0.0
        %2951 = vmatpush2.msra.mxu0 0.0
        %2952 = vmatprep.subr.mxu0 0.0
        %2953 = vmatpush2.msra.mxu0 0.0
        %2954 = vmatprep.subr.mxu0 0.0
        %2955 = vmatpush2.msra.mxu0 0.0
        %2956 = vmatprep.mubr.f32.mxu0 0.0
        %v2957 = vand.u32 %v2689, 4294901760
        %v2958 = vsub.f32 %v2689, %v2957
        %2959 = vmatmul.mubr.f32.gmra.mxu0 %v2958
        %v2960 = vpop.f32.mrf.mxu0
        %v2961 = vadd.f32 %v2873, %v2960
        %v2962 = vpop.f32.mrf.mxu0
        %v2963 = vadd.f32 %v2875, %v2962
        %2964 = vmatprep.mubr.f32.mxu0 0.0
        %v2965 = vand.u32 %v2692, 4294901760
        %v2966 = vsub.f32 %v2692, %v2965
        %2967 = vmatmul.mubr.f32.gmra.mxu0 %v2966
        %v2968 = vpop.f32.mrf.mxu0
        %v2969 = vadd.f32 %v2880, %v2968
        %v2970 = vpop.f32.mrf.mxu0
        %v2971 = vadd.f32 %v2882, %v2970
        %2972 = vdwg.mxu0
        %2973 = vmatprep.subr.mxu0 0.0
        %2974 = vmatpush1.msra.mxu0 0.0
        %2975 = vmatprep.subr.mxu0 0.0
        %2976 = vmatpush1.msra.mxu0 0.0
        %2977 = vmatprep.subr.mxu0 0.0
        %2978 = vmatpush1.msra.mxu0 0.0
        %2979 = vmatprep.subr.mxu0 0.0
        %2980 = vmatpush1.msra.mxu0 0.0
        %2981 = vmatprep.subr.mxu0 0.0
        %2982 = vmatpush1.msra.mxu0 0.0
        %2983 = vmatprep.subr.mxu0 0.0
        %2984 = vmatpush1.msra.mxu0 0.0
        %2985 = vmatprep.subr.mxu0 0.0
        %2986 = vmatpush1.msra.mxu0 0.0
        %2987 = vmatprep.subr.mxu0 0.0
        %2988 = vmatpush1.msra.mxu0 0.0
        %2989 = vmatprep.subr.mxu0 0.0
        %2990 = vmatpush1.msra.mxu0 0.0
        %2991 = vmatprep.subr.mxu0 0.0
        %2992 = vmatpush1.msra.mxu0 0.0
        %2993 = vmatprep.subr.mxu0 0.0
        %2994 = vmatpush1.msra.mxu0 0.0
        %2995 = vmatprep.subr.mxu0 0.0
        %2996 = vmatpush1.msra.mxu0 0.0
        %2997 = vmatprep.subr.mxu0 0.0
        %2998 = vmatpush1.msra.mxu0 0.0
        %2999 = vmatprep.subr.mxu0 0.0
        %3000 = vmatpush1.msra.mxu0 0.0
        %v3001 = vand.u32 %v2468, 4294901760
        %3002 = vmatprep.subr.mxu0 %v3001
        %v3003 = vand.u32 %v2456, 4294901760
        %3004 = vmatpush1.msra.mxu0 %v3003
        %v3005 = vand.u32 %v2462, 4294901760
        %3006 = vmatprep.subr.mxu0 %v3005
        %v3007 = vand.u32 %v2450, 4294901760
        %3008 = vmatpush1.msra.mxu0 %v3007
        %3009 = vmatprep.subr.mxu0 0.0
        %3010 = vmatpush2.msra.mxu0 0.0
        %3011 = vmatprep.subr.mxu0 0.0
        %3012 = vmatpush2.msra.mxu0 0.0
        %3013 = vmatprep.subr.mxu0 0.0
        %3014 = vmatpush2.msra.mxu0 0.0
        %3015 = vmatprep.subr.mxu0 0.0
        %3016 = vmatpush2.msra.mxu0 0.0
        %3017 = vmatprep.subr.mxu0 0.0
        %3018 = vmatpush2.msra.mxu0 0.0
        %3019 = vmatprep.subr.mxu0 0.0
        %3020 = vmatpush2.msra.mxu0 0.0
        %3021 = vmatprep.subr.mxu0 0.0
        %3022 = vmatpush2.msra.mxu0 0.0
        %3023 = vmatprep.subr.mxu0 0.0
        %3024 = vmatpush2.msra.mxu0 0.0
        %3025 = vmatprep.subr.mxu0 0.0
        %3026 = vmatpush2.msra.mxu0 0.0
        %3027 = vmatprep.subr.mxu0 0.0
        %3028 = vmatpush2.msra.mxu0 0.0
        %3029 = vmatprep.subr.mxu0 0.0
        %3030 = vmatpush2.msra.mxu0 0.0
        %3031 = vmatprep.subr.mxu0 0.0
        %3032 = vmatpush2.msra.mxu0 0.0
        %3033 = vmatprep.subr.mxu0 0.0
        %3034 = vmatpush2.msra.mxu0 0.0
        %3035 = vmatprep.subr.mxu0 0.0
        %3036 = vmatpush2.msra.mxu0 0.0
        %3037 = vmatprep.subr.mxu0 0.0
        %3038 = vmatpush2.msra.mxu0 0.0
        %3039 = vmatprep.subr.mxu0 0.0
        %3040 = vmatpush2.msra.mxu0 0.0
        %3041 = vmatprep.mubr.f32.mxu0 0.0
        %v3042 = vand.u32 %v2689, 4294901760
        %v3043 = vsub.f32 %v2689, %v3042
        %v3044 = vand.u32 %v3043, 4294901760
        %3045 = vmatmul.mubr.f32.gmra.mxu0 %v3044
        %v3046 = vpop.f32.mrf.mxu0
        %v3047 = vadd.f32 %v2961, %v3046
        %v3048 = vpop.f32.mrf.mxu0
        %v3049 = vadd.f32 %v2963, %v3048
        %3050 = vmatprep.mubr.f32.mxu0 0.0
        %v3051 = vand.u32 %v2692, 4294901760
        %v3052 = vsub.f32 %v2692, %v3051
        %v3053 = vand.u32 %v3052, 4294901760
        %3054 = vmatmul.mubr.f32.gmra.mxu0 %v3053
        %v3055 = vpop.f32.mrf.mxu0
        %v3056 = vadd.f32 %v2969, %v3055
        %v3057 = vpop.f32.mrf.mxu0
        %v3058 = vadd.f32 %v2971, %v3057
        %3059 = vdwg.mxu0
        %3060 = vmatprep.subr.mxu0 0.0
        %3061 = vmatpush1.msra.mxu0 0.0
        %3062 = vmatprep.subr.mxu0 0.0
        %3063 = vmatpush1.msra.mxu0 0.0
        %3064 = vmatprep.subr.mxu0 0.0
        %3065 = vmatpush1.msra.mxu0 0.0
        %3066 = vmatprep.subr.mxu0 0.0
        %3067 = vmatpush1.msra.mxu0 0.0
        %3068 = vmatprep.subr.mxu0 0.0
        %3069 = vmatpush1.msra.mxu0 0.0
        %3070 = vmatprep.subr.mxu0 0.0
        %3071 = vmatpush1.msra.mxu0 0.0
        %3072 = vmatprep.subr.mxu0 0.0
        %3073 = vmatpush1.msra.mxu0 0.0
        %3074 = vmatprep.subr.mxu0 0.0
        %3075 = vmatpush1.msra.mxu0 0.0
        %3076 = vmatprep.subr.mxu0 0.0
        %3077 = vmatpush1.msra.mxu0 0.0
        %3078 = vmatprep.subr.mxu0 0.0
        %3079 = vmatpush1.msra.mxu0 0.0
        %3080 = vmatprep.subr.mxu0 0.0
        %3081 = vmatpush1.msra.mxu0 0.0
        %3082 = vmatprep.subr.mxu0 0.0
        %3083 = vmatpush1.msra.mxu0 0.0
        %3084 = vmatprep.subr.mxu0 0.0
        %3085 = vmatpush1.msra.mxu0 0.0
        %3086 = vmatprep.subr.mxu0 0.0
        %3087 = vmatpush1.msra.mxu0 0.0
        %v3088 = vand.u32 %v2468, 4294901760
        %v3089 = vsub.f32 %v2468, %v3088
        %v3090 = vand.u32 %v3089, 4294901760
        %3091 = vmatprep.subr.mxu0 %v3090
        %v3092 = vand.u32 %v2456, 4294901760
        %v3093 = vsub.f32 %v2456, %v3092
        %v3094 = vand.u32 %v3093, 4294901760
        %3095 = vmatpush1.msra.mxu0 %v3094
        %v3096 = vand.u32 %v2462, 4294901760
        %v3097 = vsub.f32 %v2462, %v3096
        %v3098 = vand.u32 %v3097, 4294901760
        %3099 = vmatprep.subr.mxu0 %v3098
        %v3100 = vand.u32 %v2450, 4294901760
        %v3101 = vsub.f32 %v2450, %v3100
        %v3102 = vand.u32 %v3101, 4294901760
        %3103 = vmatpush1.msra.mxu0 %v3102
        %3104 = vmatprep.subr.mxu0 0.0
        %3105 = vmatpush2.msra.mxu0 0.0
        %3106 = vmatprep.subr.mxu0 0.0
        %3107 = vmatpush2.msra.mxu0 0.0
        %3108 = vmatprep.subr.mxu0 0.0
        %3109 = vmatpush2.msra.mxu0 0.0
        %3110 = vmatprep.subr.mxu0 0.0
        %3111 = vmatpush2.msra.mxu0 0.0
        %3112 = vmatprep.subr.mxu0 0.0
        %3113 = vmatpush2.msra.mxu0 0.0
        %3114 = vmatprep.subr.mxu0 0.0
        %3115 = vmatpush2.msra.mxu0 0.0
        %3116 = vmatprep.subr.mxu0 0.0
        %3117 = vmatpush2.msra.mxu0 0.0
        %3118 = vmatprep.subr.mxu0 0.0
        %3119 = vmatpush2.msra.mxu0 0.0
        %3120 = vmatprep.subr.mxu0 0.0
        %3121 = vmatpush2.msra.mxu0 0.0
        %3122 = vmatprep.subr.mxu0 0.0
        %3123 = vmatpush2.msra.mxu0 0.0
        %3124 = vmatprep.subr.mxu0 0.0
        %3125 = vmatpush2.msra.mxu0 0.0
        %3126 = vmatprep.subr.mxu0 0.0
        %3127 = vmatpush2.msra.mxu0 0.0
        %3128 = vmatprep.subr.mxu0 0.0
        %3129 = vmatpush2.msra.mxu0 0.0
        %3130 = vmatprep.subr.mxu0 0.0
        %3131 = vmatpush2.msra.mxu0 0.0
        %3132 = vmatprep.subr.mxu0 0.0
        %3133 = vmatpush2.msra.mxu0 0.0
        %3134 = vmatprep.subr.mxu0 0.0
        %3135 = vmatpush2.msra.mxu0 0.0
        %3136 = vmatprep.mubr.f32.mxu0 0.0
        %v3137 = vand.u32 %v2689, 4294901760
        %3138 = vmatmul.mubr.f32.gmra.mxu0 %v3137
        %v3139 = vpop.f32.mrf.mxu0
        %v3140 = vadd.f32 %v3047, %v3139
        %v3141 = vpop.f32.mrf.mxu0
        %v3142 = vadd.f32 %v3049, %v3141
        %3143 = vmatprep.mubr.f32.mxu0 0.0
        %v3144 = vand.u32 %v2692, 4294901760
        %3145 = vmatmul.mubr.f32.gmra.mxu0 %v3144
        %v3146 = vpop.f32.mrf.mxu0
        %v3147 = vadd.f32 %v3056, %v3146
        %v3148 = vpop.f32.mrf.mxu0
        %v3149 = vadd.f32 %v3058, %v3148
        %3150 = vdwg.mxu0
        %3151 = vmatprep.subr.mxu0 0.0
        %3152 = vmatpush1.msra.mxu0 0.0
        %3153 = vmatprep.subr.mxu0 0.0
        %3154 = vmatpush1.msra.mxu0 0.0
        %3155 = vmatprep.subr.mxu0 0.0
        %3156 = vmatpush1.msra.mxu0 0.0
        %3157 = vmatprep.subr.mxu0 0.0
        %3158 = vmatpush1.msra.mxu0 0.0
        %3159 = vmatprep.subr.mxu0 0.0
        %3160 = vmatpush1.msra.mxu0 0.0
        %3161 = vmatprep.subr.mxu0 0.0
        %3162 = vmatpush1.msra.mxu0 0.0
        %3163 = vmatprep.subr.mxu0 0.0
        %3164 = vmatpush1.msra.mxu0 0.0
        %3165 = vmatprep.subr.mxu0 0.0
        %3166 = vmatpush1.msra.mxu0 0.0
        %3167 = vmatprep.subr.mxu0 0.0
        %3168 = vmatpush1.msra.mxu0 0.0
        %3169 = vmatprep.subr.mxu0 0.0
        %3170 = vmatpush1.msra.mxu0 0.0
        %3171 = vmatprep.subr.mxu0 0.0
        %3172 = vmatpush1.msra.mxu0 0.0
        %3173 = vmatprep.subr.mxu0 0.0
        %3174 = vmatpush1.msra.mxu0 0.0
        %3175 = vmatprep.subr.mxu0 0.0
        %3176 = vmatpush1.msra.mxu0 0.0
        %3177 = vmatprep.subr.mxu0 0.0
        %3178 = vmatpush1.msra.mxu0 0.0
        %v3179 = vand.u32 %v2468, 4294901760
        %3180 = vmatprep.subr.mxu0 %v3179
        %v3181 = vand.u32 %v2456, 4294901760
        %3182 = vmatpush1.msra.mxu0 %v3181
        %v3183 = vand.u32 %v2462, 4294901760
        %3184 = vmatprep.subr.mxu0 %v3183
        %v3185 = vand.u32 %v2450, 4294901760
        %3186 = vmatpush1.msra.mxu0 %v3185
        %3187 = vmatprep.subr.mxu0 0.0
        %3188 = vmatpush2.msra.mxu0 0.0
        %3189 = vmatprep.subr.mxu0 0.0
        %3190 = vmatpush2.msra.mxu0 0.0
        %3191 = vmatprep.subr.mxu0 0.0
        %3192 = vmatpush2.msra.mxu0 0.0
        %3193 = vmatprep.subr.mxu0 0.0
        %3194 = vmatpush2.msra.mxu0 0.0
        %3195 = vmatprep.subr.mxu0 0.0
        %3196 = vmatpush2.msra.mxu0 0.0
        %3197 = vmatprep.subr.mxu0 0.0
        %3198 = vmatpush2.msra.mxu0 0.0
        %3199 = vmatprep.subr.mxu0 0.0
        %3200 = vmatpush2.msra.mxu0 0.0
        %3201 = vmatprep.subr.mxu0 0.0
        %3202 = vmatpush2.msra.mxu0 0.0
        %3203 = vmatprep.subr.mxu0 0.0
        %3204 = vmatpush2.msra.mxu0 0.0
        %3205 = vmatprep.subr.mxu0 0.0
        %3206 = vmatpush2.msra.mxu0 0.0
        %3207 = vmatprep.subr.mxu0 0.0
        %3208 = vmatpush2.msra.mxu0 0.0
        %3209 = vmatprep.subr.mxu0 0.0
        %3210 = vmatpush2.msra.mxu0 0.0
        %3211 = vmatprep.subr.mxu0 0.0
        %3212 = vmatpush2.msra.mxu0 0.0
        %3213 = vmatprep.subr.mxu0 0.0
        %3214 = vmatpush2.msra.mxu0 0.0
        %3215 = vmatprep.subr.mxu0 0.0
        %3216 = vmatpush2.msra.mxu0 0.0
        %3217 = vmatprep.subr.mxu0 0.0
        %3218 = vmatpush2.msra.mxu0 0.0
        %3219 = vmatprep.mubr.f32.mxu0 0.0
        %v3220 = vand.u32 %v2689, 4294901760
        %3221 = vmatmul.mubr.f32.gmra.mxu0 %v3220
        %v3222 = vpop.f32.mrf.mxu0
        %v3223 = vadd.f32 %v3140, %v3222
        %v3224 = vpop.f32.mrf.mxu0
        %v3225 = vadd.f32 %v3142, %v3224
        %3226 = vmatprep.mubr.f32.mxu0 0.0
        %v3227 = vand.u32 %v2692, 4294901760
        %3228 = vmatmul.mubr.f32.gmra.mxu0 %v3227
        %v3229 = vpop.f32.mrf.mxu0
        %v3230 = vadd.f32 %v3147, %v3229
        %v3231 = vpop.f32.mrf.mxu0
        %v3232 = vadd.f32 %v3149, %v3231
        %3233 = vdwg.mxu0
        %3234 = vmatprep.subr.mxu0 0.0
        %3235 = vmatpush1.msra.mxu0 0.0
        %3236 = vmatprep.subr.mxu0 0.0
        %3237 = vmatpush1.msra.mxu0 0.0
        %3238 = vmatprep.subr.mxu0 0.0
        %3239 = vmatpush1.msra.mxu0 0.0
        %3240 = vmatprep.subr.mxu0 0.0
        %3241 = vmatpush1.msra.mxu0 0.0
        %3242 = vmatprep.subr.mxu0 0.0
        %3243 = vmatpush1.msra.mxu0 0.0
        %3244 = vmatprep.subr.mxu0 0.0
        %3245 = vmatpush1.msra.mxu0 0.0
        %3246 = vmatprep.subr.mxu0 0.0
        %3247 = vmatpush1.msra.mxu0 0.0
        %3248 = vmatprep.subr.mxu0 0.0
        %3249 = vmatpush1.msra.mxu0 0.0
        %3250 = vmatprep.subr.mxu0 0.0
        %3251 = vmatpush1.msra.mxu0 0.0
        %3252 = vmatprep.subr.mxu0 0.0
        %3253 = vmatpush1.msra.mxu0 0.0
        %3254 = vmatprep.subr.mxu0 0.0
        %3255 = vmatpush1.msra.mxu0 0.0
        %3256 = vmatprep.subr.mxu0 0.0
        %3257 = vmatpush1.msra.mxu0 0.0
        %3258 = vmatprep.subr.mxu0 0.0
        %3259 = vmatpush1.msra.mxu0 0.0
        %3260 = vmatprep.subr.mxu0 0.0
        %3261 = vmatpush1.msra.mxu0 0.0
        %v3262 = vand.u32 %v2492, 4294901760
        %3263 = vmatprep.subr.mxu0 %v3262
        %v3264 = vand.u32 %v2480, 4294901760
        %3265 = vmatpush1.msra.mxu0 %v3264
        %v3266 = vand.u32 %v2486, 4294901760
        %3267 = vmatprep.subr.mxu0 %v3266
        %v3268 = vand.u32 %v2474, 4294901760
        %3269 = vmatpush1.msra.mxu0 %v3268
        %3270 = vmatprep.subr.mxu0 0.0
        %3271 = vmatpush2.msra.mxu0 0.0
        %3272 = vmatprep.subr.mxu0 0.0
        %3273 = vmatpush2.msra.mxu0 0.0
        %3274 = vmatprep.subr.mxu0 0.0
        %3275 = vmatpush2.msra.mxu0 0.0
        %3276 = vmatprep.subr.mxu0 0.0
        %3277 = vmatpush2.msra.mxu0 0.0
        %3278 = vmatprep.subr.mxu0 0.0
        %3279 = vmatpush2.msra.mxu0 0.0
        %3280 = vmatprep.subr.mxu0 0.0
        %3281 = vmatpush2.msra.mxu0 0.0
        %3282 = vmatprep.subr.mxu0 0.0
        %3283 = vmatpush2.msra.mxu0 0.0
        %3284 = vmatprep.subr.mxu0 0.0
        %3285 = vmatpush2.msra.mxu0 0.0
        %3286 = vmatprep.subr.mxu0 0.0
        %3287 = vmatpush2.msra.mxu0 0.0
        %3288 = vmatprep.subr.mxu0 0.0
        %3289 = vmatpush2.msra.mxu0 0.0
        %3290 = vmatprep.subr.mxu0 0.0
        %3291 = vmatpush2.msra.mxu0 0.0
        %3292 = vmatprep.subr.mxu0 0.0
        %3293 = vmatpush2.msra.mxu0 0.0
        %3294 = vmatprep.subr.mxu0 0.0
        %3295 = vmatpush2.msra.mxu0 0.0
        %3296 = vmatprep.subr.mxu0 0.0
        %3297 = vmatpush2.msra.mxu0 0.0
        %3298 = vmatprep.subr.mxu0 0.0
        %3299 = vmatpush2.msra.mxu0 0.0
        %3300 = vmatprep.subr.mxu0 0.0
        %3301 = vmatpush2.msra.mxu0 0.0
        %3302 = vmatprep.mubr.f32.mxu0 0.0
        %v3303 = vand.u32 %v2689, 4294901760
        %v3304 = vsub.f32 %v2689, %v3303
        %v3305 = vand.u32 %v3304, 4294901760
        %v3306 = vsub.f32 %v3304, %v3305
        %v3307 = vand.u32 %v3306, 4294901760
        %3308 = vmatmul.mubr.f32.gmra.mxu0 %v3307
        %v3309 = vpop.f32.mrf.mxu0
        %v3310 = vadd.f32 0.0, %v3309
        %v3311 = vpop.f32.mrf.mxu0
        %v3312 = vadd.f32 0.0, %v3311
        %3313 = vmatprep.mubr.f32.mxu0 0.0
        %v3314 = vand.u32 %v2692, 4294901760
        %v3315 = vsub.f32 %v2692, %v3314
        %v3316 = vand.u32 %v3315, 4294901760
        %v3317 = vsub.f32 %v3315, %v3316
        %v3318 = vand.u32 %v3317, 4294901760
        %3319 = vmatmul.mubr.f32.gmra.mxu0 %v3318
        %v3320 = vpop.f32.mrf.mxu0
        %v3321 = vadd.f32 0.0, %v3320
        %v3322 = vpop.f32.mrf.mxu0
        %v3323 = vadd.f32 0.0, %v3322
        %3324 = vdwg.mxu0
        %3325 = vmatprep.subr.mxu0 0.0
        %3326 = vmatpush1.msra.mxu0 0.0
        %3327 = vmatprep.subr.mxu0 0.0
        %3328 = vmatpush1.msra.mxu0 0.0
        %3329 = vmatprep.subr.mxu0 0.0
        %3330 = vmatpush1.msra.mxu0 0.0
        %3331 = vmatprep.subr.mxu0 0.0
        %3332 = vmatpush1.msra.mxu0 0.0
        %3333 = vmatprep.subr.mxu0 0.0
        %3334 = vmatpush1.msra.mxu0 0.0
        %3335 = vmatprep.subr.mxu0 0.0
        %3336 = vmatpush1.msra.mxu0 0.0
        %3337 = vmatprep.subr.mxu0 0.0
        %3338 = vmatpush1.msra.mxu0 0.0
        %3339 = vmatprep.subr.mxu0 0.0
        %3340 = vmatpush1.msra.mxu0 0.0
        %3341 = vmatprep.subr.mxu0 0.0
        %3342 = vmatpush1.msra.mxu0 0.0
        %3343 = vmatprep.subr.mxu0 0.0
        %3344 = vmatpush1.msra.mxu0 0.0
        %3345 = vmatprep.subr.mxu0 0.0
        %3346 = vmatpush1.msra.mxu0 0.0
        %3347 = vmatprep.subr.mxu0 0.0
        %3348 = vmatpush1.msra.mxu0 0.0
        %3349 = vmatprep.subr.mxu0 0.0
        %3350 = vmatpush1.msra.mxu0 0.0
        %3351 = vmatprep.subr.mxu0 0.0
        %3352 = vmatpush1.msra.mxu0 0.0
        %v3353 = vand.u32 %v2492, 4294901760
        %v3354 = vsub.f32 %v2492, %v3353
        %v3355 = vand.u32 %v3354, 4294901760
        %v3356 = vsub.f32 %v3354, %v3355
        %v3357 = vand.u32 %v3356, 4294901760
        %3358 = vmatprep.subr.mxu0 %v3357
        %v3359 = vand.u32 %v2480, 4294901760
        %v3360 = vsub.f32 %v2480, %v3359
        %v3361 = vand.u32 %v3360, 4294901760
        %v3362 = vsub.f32 %v3360, %v3361
        %v3363 = vand.u32 %v3362, 4294901760
        %3364 = vmatpush1.msra.mxu0 %v3363
        %v3365 = vand.u32 %v2486, 4294901760
        %v3366 = vsub.f32 %v2486, %v3365
        %v3367 = vand.u32 %v3366, 4294901760
        %v3368 = vsub.f32 %v3366, %v3367
        %v3369 = vand.u32 %v3368, 4294901760
        %3370 = vmatprep.subr.mxu0 %v3369
        %v3371 = vand.u32 %v2474, 4294901760
        %v3372 = vsub.f32 %v2474, %v3371
        %v3373 = vand.u32 %v3372, 4294901760
        %v3374 = vsub.f32 %v3372, %v3373
        %v3375 = vand.u32 %v3374, 4294901760
        %3376 = vmatpush1.msra.mxu0 %v3375
        %3377 = vmatprep.subr.mxu0 0.0
        %3378 = vmatpush2.msra.mxu0 0.0
        %3379 = vmatprep.subr.mxu0 0.0
        %3380 = vmatpush2.msra.mxu0 0.0
        %3381 = vmatprep.subr.mxu0 0.0
        %3382 = vmatpush2.msra.mxu0 0.0
        %3383 = vmatprep.subr.mxu0 0.0
        %3384 = vmatpush2.msra.mxu0 0.0
        %3385 = vmatprep.subr.mxu0 0.0
        %3386 = vmatpush2.msra.mxu0 0.0
        %3387 = vmatprep.subr.mxu0 0.0
        %3388 = vmatpush2.msra.mxu0 0.0
        %3389 = vmatprep.subr.mxu0 0.0
        %3390 = vmatpush2.msra.mxu0 0.0
        %3391 = vmatprep.subr.mxu0 0.0
        %3392 = vmatpush2.msra.mxu0 0.0
        %3393 = vmatprep.subr.mxu0 0.0
        %3394 = vmatpush2.msra.mxu0 0.0
        %3395 = vmatprep.subr.mxu0 0.0
        %3396 = vmatpush2.msra.mxu0 0.0
        %3397 = vmatprep.subr.mxu0 0.0
        %3398 = vmatpush2.msra.mxu0 0.0
        %3399 = vmatprep.subr.mxu0 0.0
        %3400 = vmatpush2.msra.mxu0 0.0
        %3401 = vmatprep.subr.mxu0 0.0
        %3402 = vmatpush2.msra.mxu0 0.0
        %3403 = vmatprep.subr.mxu0 0.0
        %3404 = vmatpush2.msra.mxu0 0.0
        %3405 = vmatprep.subr.mxu0 0.0
        %3406 = vmatpush2.msra.mxu0 0.0
        %3407 = vmatprep.subr.mxu0 0.0
        %3408 = vmatpush2.msra.mxu0 0.0
        %3409 = vmatprep.mubr.f32.mxu0 0.0
        %v3410 = vand.u32 %v2689, 4294901760
        %3411 = vmatmul.mubr.f32.gmra.mxu0 %v3410
        %v3412 = vpop.f32.mrf.mxu0
        %v3413 = vadd.f32 %v3310, %v3412
        %v3414 = vpop.f32.mrf.mxu0
        %v3415 = vadd.f32 %v3312, %v3414
        %3416 = vmatprep.mubr.f32.mxu0 0.0
        %v3417 = vand.u32 %v2692, 4294901760
        %3418 = vmatmul.mubr.f32.gmra.mxu0 %v3417
        %v3419 = vpop.f32.mrf.mxu0
        %v3420 = vadd.f32 %v3321, %v3419
        %v3421 = vpop.f32.mrf.mxu0
        %v3422 = vadd.f32 %v3323, %v3421
        %3423 = vdwg.mxu0
        %3424 = vmatprep.subr.mxu0 0.0
        %3425 = vmatpush1.msra.mxu0 0.0
        %3426 = vmatprep.subr.mxu0 0.0
        %3427 = vmatpush1.msra.mxu0 0.0
        %3428 = vmatprep.subr.mxu0 0.0
        %3429 = vmatpush1.msra.mxu0 0.0
        %3430 = vmatprep.subr.mxu0 0.0
        %3431 = vmatpush1.msra.mxu0 0.0
        %3432 = vmatprep.subr.mxu0 0.0
        %3433 = vmatpush1.msra.mxu0 0.0
        %3434 = vmatprep.subr.mxu0 0.0
        %3435 = vmatpush1.msra.mxu0 0.0
        %3436 = vmatprep.subr.mxu0 0.0
        %3437 = vmatpush1.msra.mxu0 0.0
        %3438 = vmatprep.subr.mxu0 0.0
        %3439 = vmatpush1.msra.mxu0 0.0
        %3440 = vmatprep.subr.mxu0 0.0
        %3441 = vmatpush1.msra.mxu0 0.0
        %3442 = vmatprep.subr.mxu0 0.0
        %3443 = vmatpush1.msra.mxu0 0.0
        %3444 = vmatprep.subr.mxu0 0.0
        %3445 = vmatpush1.msra.mxu0 0.0
        %3446 = vmatprep.subr.mxu0 0.0
        %3447 = vmatpush1.msra.mxu0 0.0
        %3448 = vmatprep.subr.mxu0 0.0
        %3449 = vmatpush1.msra.mxu0 0.0
        %3450 = vmatprep.subr.mxu0 0.0
        %3451 = vmatpush1.msra.mxu0 0.0
        %v3452 = vand.u32 %v2492, 4294901760
        %v3453 = vsub.f32 %v2492, %v3452
        %3454 = vmatprep.subr.mxu0 %v3453
        %v3455 = vand.u32 %v2480, 4294901760
        %v3456 = vsub.f32 %v2480, %v3455
        %3457 = vmatpush1.msra.mxu0 %v3456
        %v3458 = vand.u32 %v2486, 4294901760
        %v3459 = vsub.f32 %v2486, %v3458
        %3460 = vmatprep.subr.mxu0 %v3459
        %v3461 = vand.u32 %v2474, 4294901760
        %v3462 = vsub.f32 %v2474, %v3461
        %3463 = vmatpush1.msra.mxu0 %v3462
        %3464 = vmatprep.subr.mxu0 0.0
        %3465 = vmatpush2.msra.mxu0 0.0
        %3466 = vmatprep.subr.mxu0 0.0
        %3467 = vmatpush2.msra.mxu0 0.0
        %3468 = vmatprep.subr.mxu0 0.0
        %3469 = vmatpush2.msra.mxu0 0.0
        %3470 = vmatprep.subr.mxu0 0.0
        %3471 = vmatpush2.msra.mxu0 0.0
        %3472 = vmatprep.subr.mxu0 0.0
        %3473 = vmatpush2.msra.mxu0 0.0
        %3474 = vmatprep.subr.mxu0 0.0
        %3475 = vmatpush2.msra.mxu0 0.0
        %3476 = vmatprep.subr.mxu0 0.0
        %3477 = vmatpush2.msra.mxu0 0.0
        %3478 = vmatprep.subr.mxu0 0.0
        %3479 = vmatpush2.msra.mxu0 0.0
        %3480 = vmatprep.subr.mxu0 0.0
        %3481 = vmatpush2.msra.mxu0 0.0
        %3482 = vmatprep.subr.mxu0 0.0
        %3483 = vmatpush2.msra.mxu0 0.0
        %3484 = vmatprep.subr.mxu0 0.0
        %3485 = vmatpush2.msra.mxu0 0.0
        %3486 = vmatprep.subr.mxu0 0.0
        %3487 = vmatpush2.msra.mxu0 0.0
        %3488 = vmatprep.subr.mxu0 0.0
        %3489 = vmatpush2.msra.mxu0 0.0
        %3490 = vmatprep.subr.mxu0 0.0
        %3491 = vmatpush2.msra.mxu0 0.0
        %3492 = vmatprep.subr.mxu0 0.0
        %3493 = vmatpush2.msra.mxu0 0.0
        %3494 = vmatprep.subr.mxu0 0.0
        %3495 = vmatpush2.msra.mxu0 0.0
        %3496 = vmatprep.mubr.f32.mxu0 0.0
        %v3497 = vand.u32 %v2689, 4294901760
        %v3498 = vsub.f32 %v2689, %v3497
        %3499 = vmatmul.mubr.f32.gmra.mxu0 %v3498
        %v3500 = vpop.f32.mrf.mxu0
        %v3501 = vadd.f32 %v3413, %v3500
        %v3502 = vpop.f32.mrf.mxu0
        %v3503 = vadd.f32 %v3415, %v3502
        %3504 = vmatprep.mubr.f32.mxu0 0.0
        %v3505 = vand.u32 %v2692, 4294901760
        %v3506 = vsub.f32 %v2692, %v3505
        %3507 = vmatmul.mubr.f32.gmra.mxu0 %v3506
        %v3508 = vpop.f32.mrf.mxu0
        %v3509 = vadd.f32 %v3420, %v3508
        %v3510 = vpop.f32.mrf.mxu0
        %v3511 = vadd.f32 %v3422, %v3510
        %3512 = vdwg.mxu0
        %3513 = vmatprep.subr.mxu0 0.0
        %3514 = vmatpush1.msra.mxu0 0.0
        %3515 = vmatprep.subr.mxu0 0.0
        %3516 = vmatpush1.msra.mxu0 0.0
        %3517 = vmatprep.subr.mxu0 0.0
        %3518 = vmatpush1.msra.mxu0 0.0
        %3519 = vmatprep.subr.mxu0 0.0
        %3520 = vmatpush1.msra.mxu0 0.0
        %3521 = vmatprep.subr.mxu0 0.0
        %3522 = vmatpush1.msra.mxu0 0.0
        %3523 = vmatprep.subr.mxu0 0.0
        %3524 = vmatpush1.msra.mxu0 0.0
        %3525 = vmatprep.subr.mxu0 0.0
        %3526 = vmatpush1.msra.mxu0 0.0
        %3527 = vmatprep.subr.mxu0 0.0
        %3528 = vmatpush1.msra.mxu0 0.0
        %3529 = vmatprep.subr.mxu0 0.0
        %3530 = vmatpush1.msra.mxu0 0.0
        %3531 = vmatprep.subr.mxu0 0.0
        %3532 = vmatpush1.msra.mxu0 0.0
        %3533 = vmatprep.subr.mxu0 0.0
        %3534 = vmatpush1.msra.mxu0 0.0
        %3535 = vmatprep.subr.mxu0 0.0
        %3536 = vmatpush1.msra.mxu0 0.0
        %3537 = vmatprep.subr.mxu0 0.0
        %3538 = vmatpush1.msra.mxu0 0.0
        %3539 = vmatprep.subr.mxu0 0.0
        %3540 = vmatpush1.msra.mxu0 0.0
        %v3541 = vand.u32 %v2492, 4294901760
        %3542 = vmatprep.subr.mxu0 %v3541
        %v3543 = vand.u32 %v2480, 4294901760
        %3544 = vmatpush1.msra.mxu0 %v3543
        %v3545 = vand.u32 %v2486, 4294901760
        %3546 = vmatprep.subr.mxu0 %v3545
        %v3547 = vand.u32 %v2474, 4294901760
        %3548 = vmatpush1.msra.mxu0 %v3547
        %3549 = vmatprep.subr.mxu0 0.0
        %3550 = vmatpush2.msra.mxu0 0.0
        %3551 = vmatprep.subr.mxu0 0.0
        %3552 = vmatpush2.msra.mxu0 0.0
        %3553 = vmatprep.subr.mxu0 0.0
        %3554 = vmatpush2.msra.mxu0 0.0
        %3555 = vmatprep.subr.mxu0 0.0
        %3556 = vmatpush2.msra.mxu0 0.0
        %3557 = vmatprep.subr.mxu0 0.0
        %3558 = vmatpush2.msra.mxu0 0.0
        %3559 = vmatprep.subr.mxu0 0.0
        %3560 = vmatpush2.msra.mxu0 0.0
        %3561 = vmatprep.subr.mxu0 0.0
        %3562 = vmatpush2.msra.mxu0 0.0
        %3563 = vmatprep.subr.mxu0 0.0
        %3564 = vmatpush2.msra.mxu0 0.0
        %3565 = vmatprep.subr.mxu0 0.0
        %3566 = vmatpush2.msra.mxu0 0.0
        %3567 = vmatprep.subr.mxu0 0.0
        %3568 = vmatpush2.msra.mxu0 0.0
        %3569 = vmatprep.subr.mxu0 0.0
        %3570 = vmatpush2.msra.mxu0 0.0
        %3571 = vmatprep.subr.mxu0 0.0
        %3572 = vmatpush2.msra.mxu0 0.0
        %3573 = vmatprep.subr.mxu0 0.0
        %3574 = vmatpush2.msra.mxu0 0.0
        %3575 = vmatprep.subr.mxu0 0.0
        %3576 = vmatpush2.msra.mxu0 0.0
        %3577 = vmatprep.subr.mxu0 0.0
        %3578 = vmatpush2.msra.mxu0 0.0
        %3579 = vmatprep.subr.mxu0 0.0
        %3580 = vmatpush2.msra.mxu0 0.0
        %3581 = vmatprep.mubr.f32.mxu0 0.0
        %v3582 = vand.u32 %v2689, 4294901760
        %v3583 = vsub.f32 %v2689, %v3582
        %v3584 = vand.u32 %v3583, 4294901760
        %3585 = vmatmul.mubr.f32.gmra.mxu0 %v3584
        %v3586 = vpop.f32.mrf.mxu0
        %v3587 = vadd.f32 %v3501, %v3586
        %v3588 = vpop.f32.mrf.mxu0
        %v3589 = vadd.f32 %v3503, %v3588
        %3590 = vmatprep.mubr.f32.mxu0 0.0
        %v3591 = vand.u32 %v2692, 4294901760
        %v3592 = vsub.f32 %v2692, %v3591
        %v3593 = vand.u32 %v3592, 4294901760
        %3594 = vmatmul.mubr.f32.gmra.mxu0 %v3593
        %v3595 = vpop.f32.mrf.mxu0
        %v3596 = vadd.f32 %v3509, %v3595
        %v3597 = vpop.f32.mrf.mxu0
        %v3598 = vadd.f32 %v3511, %v3597
        %3599 = vdwg.mxu0
        %3600 = vmatprep.subr.mxu0 0.0
        %3601 = vmatpush1.msra.mxu0 0.0
        %3602 = vmatprep.subr.mxu0 0.0
        %3603 = vmatpush1.msra.mxu0 0.0
        %3604 = vmatprep.subr.mxu0 0.0
        %3605 = vmatpush1.msra.mxu0 0.0
        %3606 = vmatprep.subr.mxu0 0.0
        %3607 = vmatpush1.msra.mxu0 0.0
        %3608 = vmatprep.subr.mxu0 0.0
        %3609 = vmatpush1.msra.mxu0 0.0
        %3610 = vmatprep.subr.mxu0 0.0
        %3611 = vmatpush1.msra.mxu0 0.0
        %3612 = vmatprep.subr.mxu0 0.0
        %3613 = vmatpush1.msra.mxu0 0.0
        %3614 = vmatprep.subr.mxu0 0.0
        %3615 = vmatpush1.msra.mxu0 0.0
        %3616 = vmatprep.subr.mxu0 0.0
        %3617 = vmatpush1.msra.mxu0 0.0
        %3618 = vmatprep.subr.mxu0 0.0
        %3619 = vmatpush1.msra.mxu0 0.0
        %3620 = vmatprep.subr.mxu0 0.0
        %3621 = vmatpush1.msra.mxu0 0.0
        %3622 = vmatprep.subr.mxu0 0.0
        %3623 = vmatpush1.msra.mxu0 0.0
        %3624 = vmatprep.subr.mxu0 0.0
        %3625 = vmatpush1.msra.mxu0 0.0
        %3626 = vmatprep.subr.mxu0 0.0
        %3627 = vmatpush1.msra.mxu0 0.0
        %v3628 = vand.u32 %v2492, 4294901760
        %v3629 = vsub.f32 %v2492, %v3628
        %v3630 = vand.u32 %v3629, 4294901760
        %3631 = vmatprep.subr.mxu0 %v3630
        %v3632 = vand.u32 %v2480, 4294901760
        %v3633 = vsub.f32 %v2480, %v3632
        %v3634 = vand.u32 %v3633, 4294901760
        %3635 = vmatpush1.msra.mxu0 %v3634
        %v3636 = vand.u32 %v2486, 4294901760
        %v3637 = vsub.f32 %v2486, %v3636
        %v3638 = vand.u32 %v3637, 4294901760
        %3639 = vmatprep.subr.mxu0 %v3638
        %v3640 = vand.u32 %v2474, 4294901760
        %v3641 = vsub.f32 %v2474, %v3640
        %v3642 = vand.u32 %v3641, 4294901760
        %3643 = vmatpush1.msra.mxu0 %v3642
        %3644 = vmatprep.subr.mxu0 0.0
        %3645 = vmatpush2.msra.mxu0 0.0
        %3646 = vmatprep.subr.mxu0 0.0
        %3647 = vmatpush2.msra.mxu0 0.0
        %3648 = vmatprep.subr.mxu0 0.0
        %3649 = vmatpush2.msra.mxu0 0.0
        %3650 = vmatprep.subr.mxu0 0.0
        %3651 = vmatpush2.msra.mxu0 0.0
        %3652 = vmatprep.subr.mxu0 0.0
        %3653 = vmatpush2.msra.mxu0 0.0
        %3654 = vmatprep.subr.mxu0 0.0
        %3655 = vmatpush2.msra.mxu0 0.0
        %3656 = vmatprep.subr.mxu0 0.0
        %3657 = vmatpush2.msra.mxu0 0.0
        %3658 = vmatprep.subr.mxu0 0.0
        %3659 = vmatpush2.msra.mxu0 0.0
        %3660 = vmatprep.subr.mxu0 0.0
        %3661 = vmatpush2.msra.mxu0 0.0
        %3662 = vmatprep.subr.mxu0 0.0
        %3663 = vmatpush2.msra.mxu0 0.0
        %3664 = vmatprep.subr.mxu0 0.0
        %3665 = vmatpush2.msra.mxu0 0.0
        %3666 = vmatprep.subr.mxu0 0.0
        %3667 = vmatpush2.msra.mxu0 0.0
        %3668 = vmatprep.subr.mxu0 0.0
        %3669 = vmatpush2.msra.mxu0 0.0
        %3670 = vmatprep.subr.mxu0 0.0
        %3671 = vmatpush2.msra.mxu0 0.0
        %3672 = vmatprep.subr.mxu0 0.0
        %3673 = vmatpush2.msra.mxu0 0.0
        %3674 = vmatprep.subr.mxu0 0.0
        %3675 = vmatpush2.msra.mxu0 0.0
        %3676 = vmatprep.mubr.f32.mxu0 0.0
        %v3677 = vand.u32 %v2689, 4294901760
        %3678 = vmatmul.mubr.f32.gmra.mxu0 %v3677
        %v3679 = vpop.f32.mrf.mxu0
        %v3680 = vadd.f32 %v3587, %v3679
        %v3681 = vpop.f32.mrf.mxu0
        %v3682 = vadd.f32 %v3589, %v3681
        %3683 = vmatprep.mubr.f32.mxu0 0.0
        %v3684 = vand.u32 %v2692, 4294901760
        %3685 = vmatmul.mubr.f32.gmra.mxu0 %v3684
        %v3686 = vpop.f32.mrf.mxu0
        %v3687 = vadd.f32 %v3596, %v3686
        %v3688 = vpop.f32.mrf.mxu0
        %v3689 = vadd.f32 %v3598, %v3688
        %3690 = vdwg.mxu0
        %3691 = vmatprep.subr.mxu0 0.0
        %3692 = vmatpush1.msra.mxu0 0.0
        %3693 = vmatprep.subr.mxu0 0.0
        %3694 = vmatpush1.msra.mxu0 0.0
        %3695 = vmatprep.subr.mxu0 0.0
        %3696 = vmatpush1.msra.mxu0 0.0
        %3697 = vmatprep.subr.mxu0 0.0
        %3698 = vmatpush1.msra.mxu0 0.0
        %3699 = vmatprep.subr.mxu0 0.0
        %3700 = vmatpush1.msra.mxu0 0.0
        %3701 = vmatprep.subr.mxu0 0.0
        %3702 = vmatpush1.msra.mxu0 0.0
        %3703 = vmatprep.subr.mxu0 0.0
        %3704 = vmatpush1.msra.mxu0 0.0
        %3705 = vmatprep.subr.mxu0 0.0
        %3706 = vmatpush1.msra.mxu0 0.0
        %3707 = vmatprep.subr.mxu0 0.0
        %3708 = vmatpush1.msra.mxu0 0.0
        %3709 = vmatprep.subr.mxu0 0.0
        %3710 = vmatpush1.msra.mxu0 0.0
        %3711 = vmatprep.subr.mxu0 0.0
        %3712 = vmatpush1.msra.mxu0 0.0
        %3713 = vmatprep.subr.mxu0 0.0
        %3714 = vmatpush1.msra.mxu0 0.0
        %3715 = vmatprep.subr.mxu0 0.0
        %3716 = vmatpush1.msra.mxu0 0.0
        %3717 = vmatprep.subr.mxu0 0.0
        %3718 = vmatpush1.msra.mxu0 0.0
        %v3719 = vand.u32 %v2492, 4294901760
        %3720 = vmatprep.subr.mxu0 %v3719
        %v3721 = vand.u32 %v2480, 4294901760
        %3722 = vmatpush1.msra.mxu0 %v3721
        %v3723 = vand.u32 %v2486, 4294901760
        %3724 = vmatprep.subr.mxu0 %v3723
        %v3725 = vand.u32 %v2474, 4294901760
        %3726 = vmatpush1.msra.mxu0 %v3725
        %3727 = vmatprep.subr.mxu0 0.0
        %3728 = vmatpush2.msra.mxu0 0.0
        %3729 = vmatprep.subr.mxu0 0.0
        %3730 = vmatpush2.msra.mxu0 0.0
        %3731 = vmatprep.subr.mxu0 0.0
        %3732 = vmatpush2.msra.mxu0 0.0
        %3733 = vmatprep.subr.mxu0 0.0
        %3734 = vmatpush2.msra.mxu0 0.0
        %3735 = vmatprep.subr.mxu0 0.0
        %3736 = vmatpush2.msra.mxu0 0.0
        %3737 = vmatprep.subr.mxu0 0.0
        %3738 = vmatpush2.msra.mxu0 0.0
        %3739 = vmatprep.subr.mxu0 0.0
        %3740 = vmatpush2.msra.mxu0 0.0
        %3741 = vmatprep.subr.mxu0 0.0
        %3742 = vmatpush2.msra.mxu0 0.0
        %3743 = vmatprep.subr.mxu0 0.0
        %3744 = vmatpush2.msra.mxu0 0.0
        %3745 = vmatprep.subr.mxu0 0.0
        %3746 = vmatpush2.msra.mxu0 0.0
        %3747 = vmatprep.subr.mxu0 0.0
        %3748 = vmatpush2.msra.mxu0 0.0
        %3749 = vmatprep.subr.mxu0 0.0
        %3750 = vmatpush2.msra.mxu0 0.0
        %3751 = vmatprep.subr.mxu0 0.0
        %3752 = vmatpush2.msra.mxu0 0.0
        %3753 = vmatprep.subr.mxu0 0.0
        %3754 = vmatpush2.msra.mxu0 0.0
        %3755 = vmatprep.subr.mxu0 0.0
        %3756 = vmatpush2.msra.mxu0 0.0
        %3757 = vmatprep.subr.mxu0 0.0
        %3758 = vmatpush2.msra.mxu0 0.0
        %3759 = vmatprep.mubr.f32.mxu0 0.0
        %v3760 = vand.u32 %v2689, 4294901760
        %3761 = vmatmul.mubr.f32.gmra.mxu0 %v3760
        %v3762 = vpop.f32.mrf.mxu0
        %v3763 = vadd.f32 %v3680, %v3762
        %v3764 = vpop.f32.mrf.mxu0
        %v3765 = vadd.f32 %v3682, %v3764
        %3766 = vmatprep.mubr.f32.mxu0 0.0
        %v3767 = vand.u32 %v2692, 4294901760
        %3768 = vmatmul.mubr.f32.gmra.mxu0 %v3767
        %v3769 = vpop.f32.mrf.mxu0
        %v3770 = vadd.f32 %v3687, %v3769
        %v3771 = vpop.f32.mrf.mxu0
        %v3772 = vadd.f32 %v3689, %v3771
        %3773 = vdwg.mxu0
        %3774 = vmatprep.subr.mxu0 0.0
        %3775 = vmatpush1.msra.mxu0 0.0
        %3776 = vmatprep.subr.mxu0 0.0
        %3777 = vmatpush1.msra.mxu0 0.0
        %3778 = vmatprep.subr.mxu0 0.0
        %3779 = vmatpush1.msra.mxu0 0.0
        %3780 = vmatprep.subr.mxu0 0.0
        %3781 = vmatpush1.msra.mxu0 0.0
        %3782 = vmatprep.subr.mxu0 0.0
        %3783 = vmatpush1.msra.mxu0 0.0
        %3784 = vmatprep.subr.mxu0 0.0
        %3785 = vmatpush1.msra.mxu0 0.0
        %3786 = vmatprep.subr.mxu0 0.0
        %3787 = vmatpush1.msra.mxu0 0.0
        %3788 = vmatprep.subr.mxu0 0.0
        %3789 = vmatpush1.msra.mxu0 0.0
        %3790 = vmatprep.subr.mxu0 0.0
        %3791 = vmatpush1.msra.mxu0 0.0
        %3792 = vmatprep.subr.mxu0 0.0
        %3793 = vmatpush1.msra.mxu0 0.0
        %3794 = vmatprep.subr.mxu0 0.0
        %3795 = vmatpush1.msra.mxu0 0.0
        %3796 = vmatprep.subr.mxu0 0.0
        %3797 = vmatpush1.msra.mxu0 0.0
        %3798 = vmatprep.subr.mxu0 0.0
        %3799 = vmatpush1.msra.mxu0 0.0
        %3800 = vmatprep.subr.mxu0 0.0
        %3801 = vmatpush1.msra.mxu0 0.0
        %v3802 = vand.u32 %v2516, 4294901760
        %3803 = vmatprep.subr.mxu0 %v3802
        %v3804 = vand.u32 %v2504, 4294901760
        %3805 = vmatpush1.msra.mxu0 %v3804
        %v3806 = vand.u32 %v2510, 4294901760
        %3807 = vmatprep.subr.mxu0 %v3806
        %v3808 = vand.u32 %v2498, 4294901760
        %3809 = vmatpush1.msra.mxu0 %v3808
        %3810 = vmatprep.subr.mxu0 0.0
        %3811 = vmatpush2.msra.mxu0 0.0
        %3812 = vmatprep.subr.mxu0 0.0
        %3813 = vmatpush2.msra.mxu0 0.0
        %3814 = vmatprep.subr.mxu0 0.0
        %3815 = vmatpush2.msra.mxu0 0.0
        %3816 = vmatprep.subr.mxu0 0.0
        %3817 = vmatpush2.msra.mxu0 0.0
        %3818 = vmatprep.subr.mxu0 0.0
        %3819 = vmatpush2.msra.mxu0 0.0
        %3820 = vmatprep.subr.mxu0 0.0
        %3821 = vmatpush2.msra.mxu0 0.0
        %3822 = vmatprep.subr.mxu0 0.0
        %3823 = vmatpush2.msra.mxu0 0.0
        %3824 = vmatprep.subr.mxu0 0.0
        %3825 = vmatpush2.msra.mxu0 0.0
        %3826 = vmatprep.subr.mxu0 0.0
        %3827 = vmatpush2.msra.mxu0 0.0
        %3828 = vmatprep.subr.mxu0 0.0
        %3829 = vmatpush2.msra.mxu0 0.0
        %3830 = vmatprep.subr.mxu0 0.0
        %3831 = vmatpush2.msra.mxu0 0.0
        %3832 = vmatprep.subr.mxu0 0.0
        %3833 = vmatpush2.msra.mxu0 0.0
        %3834 = vmatprep.subr.mxu0 0.0
        %3835 = vmatpush2.msra.mxu0 0.0
        %3836 = vmatprep.subr.mxu0 0.0
        %3837 = vmatpush2.msra.mxu0 0.0
        %3838 = vmatprep.subr.mxu0 0.0
        %3839 = vmatpush2.msra.mxu0 0.0
        %3840 = vmatprep.subr.mxu0 0.0
        %3841 = vmatpush2.msra.mxu0 0.0
        %3842 = vmatprep.mubr.f32.mxu0 0.0
        %v3843 = vand.u32 %v2689, 4294901760
        %v3844 = vsub.f32 %v2689, %v3843
        %v3845 = vand.u32 %v3844, 4294901760
        %v3846 = vsub.f32 %v3844, %v3845
        %v3847 = vand.u32 %v3846, 4294901760
        %3848 = vmatmul.mubr.f32.gmra.mxu0 %v3847
        %v3849 = vpop.f32.mrf.mxu0
        %v3850 = vadd.f32 0.0, %v3849
        %v3851 = vpop.f32.mrf.mxu0
        %v3852 = vadd.f32 0.0, %v3851
        %3853 = vmatprep.mubr.f32.mxu0 0.0
        %v3854 = vand.u32 %v2692, 4294901760
        %v3855 = vsub.f32 %v2692, %v3854
        %v3856 = vand.u32 %v3855, 4294901760
        %v3857 = vsub.f32 %v3855, %v3856
        %v3858 = vand.u32 %v3857, 4294901760
        %3859 = vmatmul.mubr.f32.gmra.mxu0 %v3858
        %v3860 = vpop.f32.mrf.mxu0
        %v3861 = vadd.f32 0.0, %v3860
        %v3862 = vpop.f32.mrf.mxu0
        %v3863 = vadd.f32 0.0, %v3862
        %3864 = vdwg.mxu0
        %3865 = vmatprep.subr.mxu0 0.0
        %3866 = vmatpush1.msra.mxu0 0.0
        %3867 = vmatprep.subr.mxu0 0.0
        %3868 = vmatpush1.msra.mxu0 0.0
        %3869 = vmatprep.subr.mxu0 0.0
        %3870 = vmatpush1.msra.mxu0 0.0
        %3871 = vmatprep.subr.mxu0 0.0
        %3872 = vmatpush1.msra.mxu0 0.0
        %3873 = vmatprep.subr.mxu0 0.0
        %3874 = vmatpush1.msra.mxu0 0.0
        %3875 = vmatprep.subr.mxu0 0.0
        %3876 = vmatpush1.msra.mxu0 0.0
        %3877 = vmatprep.subr.mxu0 0.0
        %3878 = vmatpush1.msra.mxu0 0.0
        %3879 = vmatprep.subr.mxu0 0.0
        %3880 = vmatpush1.msra.mxu0 0.0
        %3881 = vmatprep.subr.mxu0 0.0
        %3882 = vmatpush1.msra.mxu0 0.0
        %3883 = vmatprep.subr.mxu0 0.0
        %3884 = vmatpush1.msra.mxu0 0.0
        %3885 = vmatprep.subr.mxu0 0.0
        %3886 = vmatpush1.msra.mxu0 0.0
        %3887 = vmatprep.subr.mxu0 0.0
        %3888 = vmatpush1.msra.mxu0 0.0
        %3889 = vmatprep.subr.mxu0 0.0
        %3890 = vmatpush1.msra.mxu0 0.0
        %3891 = vmatprep.subr.mxu0 0.0
        %3892 = vmatpush1.msra.mxu0 0.0
        %v3893 = vand.u32 %v2516, 4294901760
        %v3894 = vsub.f32 %v2516, %v3893
        %v3895 = vand.u32 %v3894, 4294901760
        %v3896 = vsub.f32 %v3894, %v3895
        %v3897 = vand.u32 %v3896, 4294901760
        %3898 = vmatprep.subr.mxu0 %v3897
        %v3899 = vand.u32 %v2504, 4294901760
        %v3900 = vsub.f32 %v2504, %v3899
        %v3901 = vand.u32 %v3900, 4294901760
        %v3902 = vsub.f32 %v3900, %v3901
        %v3903 = vand.u32 %v3902, 4294901760
        %3904 = vmatpush1.msra.mxu0 %v3903
        %v3905 = vand.u32 %v2510, 4294901760
        %v3906 = vsub.f32 %v2510, %v3905
        %v3907 = vand.u32 %v3906, 4294901760
        %v3908 = vsub.f32 %v3906, %v3907
        %v3909 = vand.u32 %v3908, 4294901760
        %3910 = vmatprep.subr.mxu0 %v3909
        %v3911 = vand.u32 %v2498, 4294901760
        %v3912 = vsub.f32 %v2498, %v3911
        %v3913 = vand.u32 %v3912, 4294901760
        %v3914 = vsub.f32 %v3912, %v3913
        %v3915 = vand.u32 %v3914, 4294901760
        %3916 = vmatpush1.msra.mxu0 %v3915
        %3917 = vmatprep.subr.mxu0 0.0
        %3918 = vmatpush2.msra.mxu0 0.0
        %3919 = vmatprep.subr.mxu0 0.0
        %3920 = vmatpush2.msra.mxu0 0.0
        %3921 = vmatprep.subr.mxu0 0.0
        %3922 = vmatpush2.msra.mxu0 0.0
        %3923 = vmatprep.subr.mxu0 0.0
        %3924 = vmatpush2.msra.mxu0 0.0
        %3925 = vmatprep.subr.mxu0 0.0
        %3926 = vmatpush2.msra.mxu0 0.0
        %3927 = vmatprep.subr.mxu0 0.0
        %3928 = vmatpush2.msra.mxu0 0.0
        %3929 = vmatprep.subr.mxu0 0.0
        %3930 = vmatpush2.msra.mxu0 0.0
        %3931 = vmatprep.subr.mxu0 0.0
        %3932 = vmatpush2.msra.mxu0 0.0
        %3933 = vmatprep.subr.mxu0 0.0
        %3934 = vmatpush2.msra.mxu0 0.0
        %3935 = vmatprep.subr.mxu0 0.0
        %3936 = vmatpush2.msra.mxu0 0.0
        %3937 = vmatprep.subr.mxu0 0.0
        %3938 = vmatpush2.msra.mxu0 0.0
        %3939 = vmatprep.subr.mxu0 0.0
        %3940 = vmatpush2.msra.mxu0 0.0
        %3941 = vmatprep.subr.mxu0 0.0
        %3942 = vmatpush2.msra.mxu0 0.0
        %3943 = vmatprep.subr.mxu0 0.0
        %3944 = vmatpush2.msra.mxu0 0.0
        %3945 = vmatprep.subr.mxu0 0.0
        %3946 = vmatpush2.msra.mxu0 0.0
        %3947 = vmatprep.subr.mxu0 0.0
        %3948 = vmatpush2.msra.mxu0 0.0
        %3949 = vmatprep.mubr.f32.mxu0 0.0
        %v3950 = vand.u32 %v2689, 4294901760
        %3951 = vmatmul.mubr.f32.gmra.mxu0 %v3950
        %v3952 = vpop.f32.mrf.mxu0
        %v3953 = vadd.f32 %v3850, %v3952
        %v3954 = vpop.f32.mrf.mxu0
        %v3955 = vadd.f32 %v3852, %v3954
        %3956 = vmatprep.mubr.f32.mxu0 0.0
        %v3957 = vand.u32 %v2692, 4294901760
        %3958 = vmatmul.mubr.f32.gmra.mxu0 %v3957
        %v3959 = vpop.f32.mrf.mxu0
        %v3960 = vadd.f32 %v3861, %v3959
        %v3961 = vpop.f32.mrf.mxu0
        %v3962 = vadd.f32 %v3863, %v3961
        %3963 = vdwg.mxu0
        %3964 = vmatprep.subr.mxu0 0.0
        %3965 = vmatpush1.msra.mxu0 0.0
        %3966 = vmatprep.subr.mxu0 0.0
        %3967 = vmatpush1.msra.mxu0 0.0
        %3968 = vmatprep.subr.mxu0 0.0
        %3969 = vmatpush1.msra.mxu0 0.0
        %3970 = vmatprep.subr.mxu0 0.0
        %3971 = vmatpush1.msra.mxu0 0.0
        %3972 = vmatprep.subr.mxu0 0.0
        %3973 = vmatpush1.msra.mxu0 0.0
        %3974 = vmatprep.subr.mxu0 0.0
        %3975 = vmatpush1.msra.mxu0 0.0
        %3976 = vmatprep.subr.mxu0 0.0
        %3977 = vmatpush1.msra.mxu0 0.0
        %3978 = vmatprep.subr.mxu0 0.0
        %3979 = vmatpush1.msra.mxu0 0.0
        %3980 = vmatprep.subr.mxu0 0.0
        %3981 = vmatpush1.msra.mxu0 0.0
        %3982 = vmatprep.subr.mxu0 0.0
        %3983 = vmatpush1.msra.mxu0 0.0
        %3984 = vmatprep.subr.mxu0 0.0
        %3985 = vmatpush1.msra.mxu0 0.0
        %3986 = vmatprep.subr.mxu0 0.0
        %3987 = vmatpush1.msra.mxu0 0.0
        %3988 = vmatprep.subr.mxu0 0.0
        %3989 = vmatpush1.msra.mxu0 0.0
        %3990 = vmatprep.subr.mxu0 0.0
        %3991 = vmatpush1.msra.mxu0 0.0
        %v3992 = vand.u32 %v2516, 4294901760
        %v3993 = vsub.f32 %v2516, %v3992
        %3994 = vmatprep.subr.mxu0 %v3993
        %v3995 = vand.u32 %v2504, 4294901760
        %v3996 = vsub.f32 %v2504, %v3995
        %3997 = vmatpush1.msra.mxu0 %v3996
        %v3998 = vand.u32 %v2510, 4294901760
        %v3999 = vsub.f32 %v2510, %v3998
        %4000 = vmatprep.subr.mxu0 %v3999
        %v4001 = vand.u32 %v2498, 4294901760
        %v4002 = vsub.f32 %v2498, %v4001
        %4003 = vmatpush1.msra.mxu0 %v4002
        %4004 = vmatprep.subr.mxu0 0.0
        %4005 = vmatpush2.msra.mxu0 0.0
        %4006 = vmatprep.subr.mxu0 0.0
        %4007 = vmatpush2.msra.mxu0 0.0
        %4008 = vmatprep.subr.mxu0 0.0
        %4009 = vmatpush2.msra.mxu0 0.0
        %4010 = vmatprep.subr.mxu0 0.0
        %4011 = vmatpush2.msra.mxu0 0.0
        %4012 = vmatprep.subr.mxu0 0.0
        %4013 = vmatpush2.msra.mxu0 0.0
        %4014 = vmatprep.subr.mxu0 0.0
        %4015 = vmatpush2.msra.mxu0 0.0
        %4016 = vmatprep.subr.mxu0 0.0
        %4017 = vmatpush2.msra.mxu0 0.0
        %4018 = vmatprep.subr.mxu0 0.0
        %4019 = vmatpush2.msra.mxu0 0.0
        %4020 = vmatprep.subr.mxu0 0.0
        %4021 = vmatpush2.msra.mxu0 0.0
        %4022 = vmatprep.subr.mxu0 0.0
        %4023 = vmatpush2.msra.mxu0 0.0
        %4024 = vmatprep.subr.mxu0 0.0
        %4025 = vmatpush2.msra.mxu0 0.0
        %4026 = vmatprep.subr.mxu0 0.0
        %4027 = vmatpush2.msra.mxu0 0.0
        %4028 = vmatprep.subr.mxu0 0.0
        %4029 = vmatpush2.msra.mxu0 0.0
        %4030 = vmatprep.subr.mxu0 0.0
        %4031 = vmatpush2.msra.mxu0 0.0
        %4032 = vmatprep.subr.mxu0 0.0
        %4033 = vmatpush2.msra.mxu0 0.0
        %4034 = vmatprep.subr.mxu0 0.0
        %4035 = vmatpush2.msra.mxu0 0.0
        %4036 = vmatprep.mubr.f32.mxu0 0.0
        %v4037 = vand.u32 %v2689, 4294901760
        %v4038 = vsub.f32 %v2689, %v4037
        %4039 = vmatmul.mubr.f32.gmra.mxu0 %v4038
        %v4040 = vpop.f32.mrf.mxu0
        %v4041 = vadd.f32 %v3953, %v4040
        %v4042 = vpop.f32.mrf.mxu0
        %v4043 = vadd.f32 %v3955, %v4042
        %4044 = vmatprep.mubr.f32.mxu0 0.0
        %v4045 = vand.u32 %v2692, 4294901760
        %v4046 = vsub.f32 %v2692, %v4045
        %4047 = vmatmul.mubr.f32.gmra.mxu0 %v4046
        %v4048 = vpop.f32.mrf.mxu0
        %v4049 = vadd.f32 %v3960, %v4048
        %v4050 = vpop.f32.mrf.mxu0
        %v4051 = vadd.f32 %v3962, %v4050
        %4052 = vdwg.mxu0
        %4053 = vmatprep.subr.mxu0 0.0
        %4054 = vmatpush1.msra.mxu0 0.0
        %4055 = vmatprep.subr.mxu0 0.0
        %4056 = vmatpush1.msra.mxu0 0.0
        %4057 = vmatprep.subr.mxu0 0.0
        %4058 = vmatpush1.msra.mxu0 0.0
        %4059 = vmatprep.subr.mxu0 0.0
        %4060 = vmatpush1.msra.mxu0 0.0
        %4061 = vmatprep.subr.mxu0 0.0
        %4062 = vmatpush1.msra.mxu0 0.0
        %4063 = vmatprep.subr.mxu0 0.0
        %4064 = vmatpush1.msra.mxu0 0.0
        %4065 = vmatprep.subr.mxu0 0.0
        %4066 = vmatpush1.msra.mxu0 0.0
        %4067 = vmatprep.subr.mxu0 0.0
        %4068 = vmatpush1.msra.mxu0 0.0
        %4069 = vmatprep.subr.mxu0 0.0
        %4070 = vmatpush1.msra.mxu0 0.0
        %4071 = vmatprep.subr.mxu0 0.0
        %4072 = vmatpush1.msra.mxu0 0.0
        %4073 = vmatprep.subr.mxu0 0.0
        %4074 = vmatpush1.msra.mxu0 0.0
        %4075 = vmatprep.subr.mxu0 0.0
        %4076 = vmatpush1.msra.mxu0 0.0
        %4077 = vmatprep.subr.mxu0 0.0
        %4078 = vmatpush1.msra.mxu0 0.0
        %4079 = vmatprep.subr.mxu0 0.0
        %4080 = vmatpush1.msra.mxu0 0.0
        %v4081 = vand.u32 %v2516, 4294901760
        %4082 = vmatprep.subr.mxu0 %v4081
        %v4083 = vand.u32 %v2504, 4294901760
        %4084 = vmatpush1.msra.mxu0 %v4083
        %v4085 = vand.u32 %v2510, 4294901760
        %4086 = vmatprep.subr.mxu0 %v4085
        %v4087 = vand.u32 %v2498, 4294901760
        %4088 = vmatpush1.msra.mxu0 %v4087
        %4089 = vmatprep.subr.mxu0 0.0
        %4090 = vmatpush2.msra.mxu0 0.0
        %4091 = vmatprep.subr.mxu0 0.0
        %4092 = vmatpush2.msra.mxu0 0.0
        %4093 = vmatprep.subr.mxu0 0.0
        %4094 = vmatpush2.msra.mxu0 0.0
        %4095 = vmatprep.subr.mxu0 0.0
        %4096 = vmatpush2.msra.mxu0 0.0
        %4097 = vmatprep.subr.mxu0 0.0
        %4098 = vmatpush2.msra.mxu0 0.0
        %4099 = vmatprep.subr.mxu0 0.0
        %4100 = vmatpush2.msra.mxu0 0.0
        %4101 = vmatprep.subr.mxu0 0.0
        %4102 = vmatpush2.msra.mxu0 0.0
        %4103 = vmatprep.subr.mxu0 0.0
        %4104 = vmatpush2.msra.mxu0 0.0
        %4105 = vmatprep.subr.mxu0 0.0
        %4106 = vmatpush2.msra.mxu0 0.0
        %4107 = vmatprep.subr.mxu0 0.0
        %4108 = vmatpush2.msra.mxu0 0.0
        %4109 = vmatprep.subr.mxu0 0.0
        %4110 = vmatpush2.msra.mxu0 0.0
        %4111 = vmatprep.subr.mxu0 0.0
        %4112 = vmatpush2.msra.mxu0 0.0
        %4113 = vmatprep.subr.mxu0 0.0
        %4114 = vmatpush2.msra.mxu0 0.0
        %4115 = vmatprep.subr.mxu0 0.0
        %4116 = vmatpush2.msra.mxu0 0.0
        %4117 = vmatprep.subr.mxu0 0.0
        %4118 = vmatpush2.msra.mxu0 0.0
        %4119 = vmatprep.subr.mxu0 0.0
        %4120 = vmatpush2.msra.mxu0 0.0
        %4121 = vmatprep.mubr.f32.mxu0 0.0
        %v4122 = vand.u32 %v2689, 4294901760
        %v4123 = vsub.f32 %v2689, %v4122
        %v4124 = vand.u32 %v4123, 4294901760
        %4125 = vmatmul.mubr.f32.gmra.mxu0 %v4124
        %v4126 = vpop.f32.mrf.mxu0
        %v4127 = vadd.f32 %v4041, %v4126
        %v4128 = vpop.f32.mrf.mxu0
        %v4129 = vadd.f32 %v4043, %v4128
        %4130 = vmatprep.mubr.f32.mxu0 0.0
        %v4131 = vand.u32 %v2692, 4294901760
        %v4132 = vsub.f32 %v2692, %v4131
        %v4133 = vand.u32 %v4132, 4294901760
        %4134 = vmatmul.mubr.f32.gmra.mxu0 %v4133
        %v4135 = vpop.f32.mrf.mxu0
        %v4136 = vadd.f32 %v4049, %v4135
        %v4137 = vpop.f32.mrf.mxu0
        %v4138 = vadd.f32 %v4051, %v4137
        %4139 = vdwg.mxu0
        %4140 = vmatprep.subr.mxu0 0.0
        %4141 = vmatpush1.msra.mxu0 0.0
        %4142 = vmatprep.subr.mxu0 0.0
        %4143 = vmatpush1.msra.mxu0 0.0
        %4144 = vmatprep.subr.mxu0 0.0
        %4145 = vmatpush1.msra.mxu0 0.0
        %4146 = vmatprep.subr.mxu0 0.0
        %4147 = vmatpush1.msra.mxu0 0.0
        %4148 = vmatprep.subr.mxu0 0.0
        %4149 = vmatpush1.msra.mxu0 0.0
        %4150 = vmatprep.subr.mxu0 0.0
        %4151 = vmatpush1.msra.mxu0 0.0
        %4152 = vmatprep.subr.mxu0 0.0
        %4153 = vmatpush1.msra.mxu0 0.0
        %4154 = vmatprep.subr.mxu0 0.0
        %4155 = vmatpush1.msra.mxu0 0.0
        %4156 = vmatprep.subr.mxu0 0.0
        %4157 = vmatpush1.msra.mxu0 0.0
        %4158 = vmatprep.subr.mxu0 0.0
        %4159 = vmatpush1.msra.mxu0 0.0
        %4160 = vmatprep.subr.mxu0 0.0
        %4161 = vmatpush1.msra.mxu0 0.0
        %4162 = vmatprep.subr.mxu0 0.0
        %4163 = vmatpush1.msra.mxu0 0.0
        %4164 = vmatprep.subr.mxu0 0.0
        %4165 = vmatpush1.msra.mxu0 0.0
        %4166 = vmatprep.subr.mxu0 0.0
        %4167 = vmatpush1.msra.mxu0 0.0
        %v4168 = vand.u32 %v2516, 4294901760
        %v4169 = vsub.f32 %v2516, %v4168
        %v4170 = vand.u32 %v4169, 4294901760
        %4171 = vmatprep.subr.mxu0 %v4170
        %v4172 = vand.u32 %v2504, 4294901760
        %v4173 = vsub.f32 %v2504, %v4172
        %v4174 = vand.u32 %v4173, 4294901760
        %4175 = vmatpush1.msra.mxu0 %v4174
        %v4176 = vand.u32 %v2510, 4294901760
        %v4177 = vsub.f32 %v2510, %v4176
        %v4178 = vand.u32 %v4177, 4294901760
        %4179 = vmatprep.subr.mxu0 %v4178
        %v4180 = vand.u32 %v2498, 4294901760
        %v4181 = vsub.f32 %v2498, %v4180
        %v4182 = vand.u32 %v4181, 4294901760
        %4183 = vmatpush1.msra.mxu0 %v4182
        %4184 = vmatprep.subr.mxu0 0.0
        %4185 = vmatpush2.msra.mxu0 0.0
        %4186 = vmatprep.subr.mxu0 0.0
        %4187 = vmatpush2.msra.mxu0 0.0
        %4188 = vmatprep.subr.mxu0 0.0
        %4189 = vmatpush2.msra.mxu0 0.0
        %4190 = vmatprep.subr.mxu0 0.0
        %4191 = vmatpush2.msra.mxu0 0.0
        %4192 = vmatprep.subr.mxu0 0.0
        %4193 = vmatpush2.msra.mxu0 0.0
        %4194 = vmatprep.subr.mxu0 0.0
        %4195 = vmatpush2.msra.mxu0 0.0
        %4196 = vmatprep.subr.mxu0 0.0
        %4197 = vmatpush2.msra.mxu0 0.0
        %4198 = vmatprep.subr.mxu0 0.0
        %4199 = vmatpush2.msra.mxu0 0.0
        %4200 = vmatprep.subr.mxu0 0.0
        %4201 = vmatpush2.msra.mxu0 0.0
        %4202 = vmatprep.subr.mxu0 0.0
        %4203 = vmatpush2.msra.mxu0 0.0
        %4204 = vmatprep.subr.mxu0 0.0
        %4205 = vmatpush2.msra.mxu0 0.0
        %4206 = vmatprep.subr.mxu0 0.0
        %4207 = vmatpush2.msra.mxu0 0.0
        %4208 = vmatprep.subr.mxu0 0.0
        %4209 = vmatpush2.msra.mxu0 0.0
        %4210 = vmatprep.subr.mxu0 0.0
        %4211 = vmatpush2.msra.mxu0 0.0
        %4212 = vmatprep.subr.mxu0 0.0
        %4213 = vmatpush2.msra.mxu0 0.0
        %4214 = vmatprep.subr.mxu0 0.0
        %4215 = vmatpush2.msra.mxu0 0.0
        %4216 = vmatprep.mubr.f32.mxu0 0.0
        %v4217 = vand.u32 %v2689, 4294901760
        %4218 = vmatmul.mubr.f32.gmra.mxu0 %v4217
        %v4219 = vpop.f32.mrf.mxu0
        %v4220 = vadd.f32 %v4127, %v4219
        %v4221 = vpop.f32.mrf.mxu0
        %v4222 = vadd.f32 %v4129, %v4221
        %4223 = vmatprep.mubr.f32.mxu0 0.0
        %v4224 = vand.u32 %v2692, 4294901760
        %4225 = vmatmul.mubr.f32.gmra.mxu0 %v4224
        %v4226 = vpop.f32.mrf.mxu0
        %v4227 = vadd.f32 %v4136, %v4226
        %v4228 = vpop.f32.mrf.mxu0
        %v4229 = vadd.f32 %v4138, %v4228
        %4230 = vdwg.mxu0
        %4231 = vmatprep.subr.mxu0 0.0
        %4232 = vmatpush1.msra.mxu0 0.0
        %4233 = vmatprep.subr.mxu0 0.0
        %4234 = vmatpush1.msra.mxu0 0.0
        %4235 = vmatprep.subr.mxu0 0.0
        %4236 = vmatpush1.msra.mxu0 0.0
        %4237 = vmatprep.subr.mxu0 0.0
        %4238 = vmatpush1.msra.mxu0 0.0
        %4239 = vmatprep.subr.mxu0 0.0
        %4240 = vmatpush1.msra.mxu0 0.0
        %4241 = vmatprep.subr.mxu0 0.0
        %4242 = vmatpush1.msra.mxu0 0.0
        %4243 = vmatprep.subr.mxu0 0.0
        %4244 = vmatpush1.msra.mxu0 0.0
        %4245 = vmatprep.subr.mxu0 0.0
        %4246 = vmatpush1.msra.mxu0 0.0
        %4247 = vmatprep.subr.mxu0 0.0
        %4248 = vmatpush1.msra.mxu0 0.0
        %4249 = vmatprep.subr.mxu0 0.0
        %4250 = vmatpush1.msra.mxu0 0.0
        %4251 = vmatprep.subr.mxu0 0.0
        %4252 = vmatpush1.msra.mxu0 0.0
        %4253 = vmatprep.subr.mxu0 0.0
        %4254 = vmatpush1.msra.mxu0 0.0
        %4255 = vmatprep.subr.mxu0 0.0
        %4256 = vmatpush1.msra.mxu0 0.0
        %4257 = vmatprep.subr.mxu0 0.0
        %4258 = vmatpush1.msra.mxu0 0.0
        %v4259 = vand.u32 %v2516, 4294901760
        %4260 = vmatprep.subr.mxu0 %v4259
        %v4261 = vand.u32 %v2504, 4294901760
        %4262 = vmatpush1.msra.mxu0 %v4261
        %v4263 = vand.u32 %v2510, 4294901760
        %4264 = vmatprep.subr.mxu0 %v4263
        %v4265 = vand.u32 %v2498, 4294901760
        %4266 = vmatpush1.msra.mxu0 %v4265
        %4267 = vmatprep.subr.mxu0 0.0
        %4268 = vmatpush2.msra.mxu0 0.0
        %4269 = vmatprep.subr.mxu0 0.0
        %4270 = vmatpush2.msra.mxu0 0.0
        %4271 = vmatprep.subr.mxu0 0.0
        %4272 = vmatpush2.msra.mxu0 0.0
        %4273 = vmatprep.subr.mxu0 0.0
        %4274 = vmatpush2.msra.mxu0 0.0
        %4275 = vmatprep.subr.mxu0 0.0
        %4276 = vmatpush2.msra.mxu0 0.0
        %4277 = vmatprep.subr.mxu0 0.0
        %4278 = vmatpush2.msra.mxu0 0.0
        %4279 = vmatprep.subr.mxu0 0.0
        %4280 = vmatpush2.msra.mxu0 0.0
        %4281 = vmatprep.subr.mxu0 0.0
        %4282 = vmatpush2.msra.mxu0 0.0
        %4283 = vmatprep.subr.mxu0 0.0
        %4284 = vmatpush2.msra.mxu0 0.0
        %4285 = vmatprep.subr.mxu0 0.0
        %4286 = vmatpush2.msra.mxu0 0.0
        %4287 = vmatprep.subr.mxu0 0.0
        %4288 = vmatpush2.msra.mxu0 0.0
        %4289 = vmatprep.subr.mxu0 0.0
        %4290 = vmatpush2.msra.mxu0 0.0
        %4291 = vmatprep.subr.mxu0 0.0
        %4292 = vmatpush2.msra.mxu0 0.0
        %4293 = vmatprep.subr.mxu0 0.0
        %4294 = vmatpush2.msra.mxu0 0.0
        %4295 = vmatprep.subr.mxu0 0.0
        %4296 = vmatpush2.msra.mxu0 0.0
        %4297 = vmatprep.subr.mxu0 0.0
        %4298 = vmatpush2.msra.mxu0 0.0
        %4299 = vmatprep.mubr.f32.mxu0 0.0
        %v4300 = vand.u32 %v2689, 4294901760
        %4301 = vmatmul.mubr.f32.gmra.mxu0 %v4300
        %v4302 = vpop.f32.mrf.mxu0
        %v4303 = vadd.f32 %v4220, %v4302
        %v4304 = vpop.f32.mrf.mxu0
        %v4305 = vadd.f32 %v4222, %v4304
        %4306 = vmatprep.mubr.f32.mxu0 0.0
        %v4307 = vand.u32 %v2692, 4294901760
        %4308 = vmatmul.mubr.f32.gmra.mxu0 %v4307
        %v4309 = vpop.f32.mrf.mxu0
        %v4310 = vadd.f32 %v4227, %v4309
        %v4311 = vpop.f32.mrf.mxu0
        %v4312 = vadd.f32 %v4229, %v4311
        %4313 = vdwg.mxu0
        %4314 = vmatprep.subr.mxu0 0.0
        %4315 = vmatpush1.msra.mxu0 0.0
        %4316 = vmatprep.subr.mxu0 0.0
        %4317 = vmatpush1.msra.mxu0 0.0
        %4318 = vmatprep.subr.mxu0 0.0
        %4319 = vmatpush1.msra.mxu0 0.0
        %4320 = vmatprep.subr.mxu0 0.0
        %4321 = vmatpush1.msra.mxu0 0.0
        %4322 = vmatprep.subr.mxu0 0.0
        %4323 = vmatpush1.msra.mxu0 0.0
        %4324 = vmatprep.subr.mxu0 0.0
        %4325 = vmatpush1.msra.mxu0 0.0
        %4326 = vmatprep.subr.mxu0 0.0
        %4327 = vmatpush1.msra.mxu0 0.0
        %4328 = vmatprep.subr.mxu0 0.0
        %4329 = vmatpush1.msra.mxu0 0.0
        %4330 = vmatprep.subr.mxu0 0.0
        %4331 = vmatpush1.msra.mxu0 0.0
        %4332 = vmatprep.subr.mxu0 0.0
        %4333 = vmatpush1.msra.mxu0 0.0
        %4334 = vmatprep.subr.mxu0 0.0
        %4335 = vmatpush1.msra.mxu0 0.0
        %4336 = vmatprep.subr.mxu0 0.0
        %4337 = vmatpush1.msra.mxu0 0.0
        %4338 = vmatprep.subr.mxu0 0.0
        %4339 = vmatpush1.msra.mxu0 0.0
        %4340 = vmatprep.subr.mxu0 0.0
        %4341 = vmatpush1.msra.mxu0 0.0
        %v4342 = vand.u32 %v2540, 4294901760
        %4343 = vmatprep.subr.mxu0 %v4342
        %v4344 = vand.u32 %v2528, 4294901760
        %4345 = vmatpush1.msra.mxu0 %v4344
        %v4346 = vand.u32 %v2534, 4294901760
        %4347 = vmatprep.subr.mxu0 %v4346
        %v4348 = vand.u32 %v2522, 4294901760
        %4349 = vmatpush1.msra.mxu0 %v4348
        %4350 = vmatprep.subr.mxu0 0.0
        %4351 = vmatpush2.msra.mxu0 0.0
        %4352 = vmatprep.subr.mxu0 0.0
        %4353 = vmatpush2.msra.mxu0 0.0
        %4354 = vmatprep.subr.mxu0 0.0
        %4355 = vmatpush2.msra.mxu0 0.0
        %4356 = vmatprep.subr.mxu0 0.0
        %4357 = vmatpush2.msra.mxu0 0.0
        %4358 = vmatprep.subr.mxu0 0.0
        %4359 = vmatpush2.msra.mxu0 0.0
        %4360 = vmatprep.subr.mxu0 0.0
        %4361 = vmatpush2.msra.mxu0 0.0
        %4362 = vmatprep.subr.mxu0 0.0
        %4363 = vmatpush2.msra.mxu0 0.0
        %4364 = vmatprep.subr.mxu0 0.0
        %4365 = vmatpush2.msra.mxu0 0.0
        %4366 = vmatprep.subr.mxu0 0.0
        %4367 = vmatpush2.msra.mxu0 0.0
        %4368 = vmatprep.subr.mxu0 0.0
        %4369 = vmatpush2.msra.mxu0 0.0
        %4370 = vmatprep.subr.mxu0 0.0
        %4371 = vmatpush2.msra.mxu0 0.0
        %4372 = vmatprep.subr.mxu0 0.0
        %4373 = vmatpush2.msra.mxu0 0.0
        %4374 = vmatprep.subr.mxu0 0.0
        %4375 = vmatpush2.msra.mxu0 0.0
        %4376 = vmatprep.subr.mxu0 0.0
        %4377 = vmatpush2.msra.mxu0 0.0
        %4378 = vmatprep.subr.mxu0 0.0
        %4379 = vmatpush2.msra.mxu0 0.0
        %4380 = vmatprep.subr.mxu0 0.0
        %4381 = vmatpush2.msra.mxu0 0.0
        %4382 = vmatprep.mubr.f32.mxu0 0.0
        %v4383 = vand.u32 %v2689, 4294901760
        %v4384 = vsub.f32 %v2689, %v4383
        %v4385 = vand.u32 %v4384, 4294901760
        %v4386 = vsub.f32 %v4384, %v4385
        %v4387 = vand.u32 %v4386, 4294901760
        %4388 = vmatmul.mubr.f32.gmra.mxu0 %v4387
        %v4389 = vpop.f32.mrf.mxu0
        %v4390 = vadd.f32 0.0, %v4389
        %v4391 = vpop.f32.mrf.mxu0
        %v4392 = vadd.f32 0.0, %v4391
        %4393 = vmatprep.mubr.f32.mxu0 0.0
        %v4394 = vand.u32 %v2692, 4294901760
        %v4395 = vsub.f32 %v2692, %v4394
        %v4396 = vand.u32 %v4395, 4294901760
        %v4397 = vsub.f32 %v4395, %v4396
        %v4398 = vand.u32 %v4397, 4294901760
        %4399 = vmatmul.mubr.f32.gmra.mxu0 %v4398
        %v4400 = vpop.f32.mrf.mxu0
        %v4401 = vadd.f32 0.0, %v4400
        %v4402 = vpop.f32.mrf.mxu0
        %v4403 = vadd.f32 0.0, %v4402
        %4404 = vdwg.mxu0
        %4405 = vmatprep.subr.mxu0 0.0
        %4406 = vmatpush1.msra.mxu0 0.0
        %4407 = vmatprep.subr.mxu0 0.0
        %4408 = vmatpush1.msra.mxu0 0.0
        %4409 = vmatprep.subr.mxu0 0.0
        %4410 = vmatpush1.msra.mxu0 0.0
        %4411 = vmatprep.subr.mxu0 0.0
        %4412 = vmatpush1.msra.mxu0 0.0
        %4413 = vmatprep.subr.mxu0 0.0
        %4414 = vmatpush1.msra.mxu0 0.0
        %4415 = vmatprep.subr.mxu0 0.0
        %4416 = vmatpush1.msra.mxu0 0.0
        %4417 = vmatprep.subr.mxu0 0.0
        %4418 = vmatpush1.msra.mxu0 0.0
        %4419 = vmatprep.subr.mxu0 0.0
        %4420 = vmatpush1.msra.mxu0 0.0
        %4421 = vmatprep.subr.mxu0 0.0
        %4422 = vmatpush1.msra.mxu0 0.0
        %4423 = vmatprep.subr.mxu0 0.0
        %4424 = vmatpush1.msra.mxu0 0.0
        %4425 = vmatprep.subr.mxu0 0.0
        %4426 = vmatpush1.msra.mxu0 0.0
        %4427 = vmatprep.subr.mxu0 0.0
        %4428 = vmatpush1.msra.mxu0 0.0
        %4429 = vmatprep.subr.mxu0 0.0
        %4430 = vmatpush1.msra.mxu0 0.0
        %4431 = vmatprep.subr.mxu0 0.0
        %4432 = vmatpush1.msra.mxu0 0.0
        %v4433 = vand.u32 %v2540, 4294901760
        %v4434 = vsub.f32 %v2540, %v4433
        %v4435 = vand.u32 %v4434, 4294901760
        %v4436 = vsub.f32 %v4434, %v4435
        %v4437 = vand.u32 %v4436, 4294901760
        %4438 = vmatprep.subr.mxu0 %v4437
        %v4439 = vand.u32 %v2528, 4294901760
        %v4440 = vsub.f32 %v2528, %v4439
        %v4441 = vand.u32 %v4440, 4294901760
        %v4442 = vsub.f32 %v4440, %v4441
        %v4443 = vand.u32 %v4442, 4294901760
        %4444 = vmatpush1.msra.mxu0 %v4443
        %v4445 = vand.u32 %v2534, 4294901760
        %v4446 = vsub.f32 %v2534, %v4445
        %v4447 = vand.u32 %v4446, 4294901760
        %v4448 = vsub.f32 %v4446, %v4447
        %v4449 = vand.u32 %v4448, 4294901760
        %4450 = vmatprep.subr.mxu0 %v4449
        %v4451 = vand.u32 %v2522, 4294901760
        %v4452 = vsub.f32 %v2522, %v4451
        %v4453 = vand.u32 %v4452, 4294901760
        %v4454 = vsub.f32 %v4452, %v4453
        %v4455 = vand.u32 %v4454, 4294901760
        %4456 = vmatpush1.msra.mxu0 %v4455
        %4457 = vmatprep.subr.mxu0 0.0
        %4458 = vmatpush2.msra.mxu0 0.0
        %4459 = vmatprep.subr.mxu0 0.0
        %4460 = vmatpush2.msra.mxu0 0.0
        %4461 = vmatprep.subr.mxu0 0.0
        %4462 = vmatpush2.msra.mxu0 0.0
        %4463 = vmatprep.subr.mxu0 0.0
        %4464 = vmatpush2.msra.mxu0 0.0
        %4465 = vmatprep.subr.mxu0 0.0
        %4466 = vmatpush2.msra.mxu0 0.0
        %4467 = vmatprep.subr.mxu0 0.0
        %4468 = vmatpush2.msra.mxu0 0.0
        %4469 = vmatprep.subr.mxu0 0.0
        %4470 = vmatpush2.msra.mxu0 0.0
        %4471 = vmatprep.subr.mxu0 0.0
        %4472 = vmatpush2.msra.mxu0 0.0
        %4473 = vmatprep.subr.mxu0 0.0
        %4474 = vmatpush2.msra.mxu0 0.0
        %4475 = vmatprep.subr.mxu0 0.0
        %4476 = vmatpush2.msra.mxu0 0.0
        %4477 = vmatprep.subr.mxu0 0.0
        %4478 = vmatpush2.msra.mxu0 0.0
        %4479 = vmatprep.subr.mxu0 0.0
        %4480 = vmatpush2.msra.mxu0 0.0
        %4481 = vmatprep.subr.mxu0 0.0
        %4482 = vmatpush2.msra.mxu0 0.0
        %4483 = vmatprep.subr.mxu0 0.0
        %4484 = vmatpush2.msra.mxu0 0.0
        %4485 = vmatprep.subr.mxu0 0.0
        %4486 = vmatpush2.msra.mxu0 0.0
        %4487 = vmatprep.subr.mxu0 0.0
        %4488 = vmatpush2.msra.mxu0 0.0
        %4489 = vmatprep.mubr.f32.mxu0 0.0
        %v4490 = vand.u32 %v2689, 4294901760
        %4491 = vmatmul.mubr.f32.gmra.mxu0 %v4490
        %v4492 = vpop.f32.mrf.mxu0
        %v4493 = vadd.f32 %v4390, %v4492
        %v4494 = vpop.f32.mrf.mxu0
        %v4495 = vadd.f32 %v4392, %v4494
        %4496 = vmatprep.mubr.f32.mxu0 0.0
        %v4497 = vand.u32 %v2692, 4294901760
        %4498 = vmatmul.mubr.f32.gmra.mxu0 %v4497
        %v4499 = vpop.f32.mrf.mxu0
        %v4500 = vadd.f32 %v4401, %v4499
        %v4501 = vpop.f32.mrf.mxu0
        %v4502 = vadd.f32 %v4403, %v4501
        %4503 = vdwg.mxu0
        %4504 = vmatprep.subr.mxu0 0.0
        %4505 = vmatpush1.msra.mxu0 0.0
        %4506 = vmatprep.subr.mxu0 0.0
        %4507 = vmatpush1.msra.mxu0 0.0
        %4508 = vmatprep.subr.mxu0 0.0
        %4509 = vmatpush1.msra.mxu0 0.0
        %4510 = vmatprep.subr.mxu0 0.0
        %4511 = vmatpush1.msra.mxu0 0.0
        %4512 = vmatprep.subr.mxu0 0.0
        %4513 = vmatpush1.msra.mxu0 0.0
        %4514 = vmatprep.subr.mxu0 0.0
        %4515 = vmatpush1.msra.mxu0 0.0
        %4516 = vmatprep.subr.mxu0 0.0
        %4517 = vmatpush1.msra.mxu0 0.0
        %4518 = vmatprep.subr.mxu0 0.0
        %4519 = vmatpush1.msra.mxu0 0.0
        %4520 = vmatprep.subr.mxu0 0.0
        %4521 = vmatpush1.msra.mxu0 0.0
        %4522 = vmatprep.subr.mxu0 0.0
        %4523 = vmatpush1.msra.mxu0 0.0
        %4524 = vmatprep.subr.mxu0 0.0
        %4525 = vmatpush1.msra.mxu0 0.0
        %4526 = vmatprep.subr.mxu0 0.0
        %4527 = vmatpush1.msra.mxu0 0.0
        %4528 = vmatprep.subr.mxu0 0.0
        %4529 = vmatpush1.msra.mxu0 0.0
        %4530 = vmatprep.subr.mxu0 0.0
        %4531 = vmatpush1.msra.mxu0 0.0
        %v4532 = vand.u32 %v2540, 4294901760
        %v4533 = vsub.f32 %v2540, %v4532
        %4534 = vmatprep.subr.mxu0 %v4533
        %v4535 = vand.u32 %v2528, 4294901760
        %v4536 = vsub.f32 %v2528, %v4535
        %4537 = vmatpush1.msra.mxu0 %v4536
        %v4538 = vand.u32 %v2534, 4294901760
        %v4539 = vsub.f32 %v2534, %v4538
        %4540 = vmatprep.subr.mxu0 %v4539
        %v4541 = vand.u32 %v2522, 4294901760
        %v4542 = vsub.f32 %v2522, %v4541
        %4543 = vmatpush1.msra.mxu0 %v4542
        %4544 = vmatprep.subr.mxu0 0.0
        %4545 = vmatpush2.msra.mxu0 0.0
        %4546 = vmatprep.subr.mxu0 0.0
        %4547 = vmatpush2.msra.mxu0 0.0
        %4548 = vmatprep.subr.mxu0 0.0
        %4549 = vmatpush2.msra.mxu0 0.0
        %4550 = vmatprep.subr.mxu0 0.0
        %4551 = vmatpush2.msra.mxu0 0.0
        %4552 = vmatprep.subr.mxu0 0.0
        %4553 = vmatpush2.msra.mxu0 0.0
        %4554 = vmatprep.subr.mxu0 0.0
        %4555 = vmatpush2.msra.mxu0 0.0
        %4556 = vmatprep.subr.mxu0 0.0
        %4557 = vmatpush2.msra.mxu0 0.0
        %4558 = vmatprep.subr.mxu0 0.0
        %4559 = vmatpush2.msra.mxu0 0.0
        %4560 = vmatprep.subr.mxu0 0.0
        %4561 = vmatpush2.msra.mxu0 0.0
        %4562 = vmatprep.subr.mxu0 0.0
        %4563 = vmatpush2.msra.mxu0 0.0
        %4564 = vmatprep.subr.mxu0 0.0
        %4565 = vmatpush2.msra.mxu0 0.0
        %4566 = vmatprep.subr.mxu0 0.0
        %4567 = vmatpush2.msra.mxu0 0.0
        %4568 = vmatprep.subr.mxu0 0.0
        %4569 = vmatpush2.msra.mxu0 0.0
        %4570 = vmatprep.subr.mxu0 0.0
        %4571 = vmatpush2.msra.mxu0 0.0
        %4572 = vmatprep.subr.mxu0 0.0
        %4573 = vmatpush2.msra.mxu0 0.0
        %4574 = vmatprep.subr.mxu0 0.0
        %4575 = vmatpush2.msra.mxu0 0.0
        %4576 = vmatprep.mubr.f32.mxu0 0.0
        %v4577 = vand.u32 %v2689, 4294901760
        %v4578 = vsub.f32 %v2689, %v4577
        %4579 = vmatmul.mubr.f32.gmra.mxu0 %v4578
        %v4580 = vpop.f32.mrf.mxu0
        %v4581 = vadd.f32 %v4493, %v4580
        %v4582 = vpop.f32.mrf.mxu0
        %v4583 = vadd.f32 %v4495, %v4582
        %4584 = vmatprep.mubr.f32.mxu0 0.0
        %v4585 = vand.u32 %v2692, 4294901760
        %v4586 = vsub.f32 %v2692, %v4585
        %4587 = vmatmul.mubr.f32.gmra.mxu0 %v4586
        %v4588 = vpop.f32.mrf.mxu0
        %v4589 = vadd.f32 %v4500, %v4588
        %v4590 = vpop.f32.mrf.mxu0
        %v4591 = vadd.f32 %v4502, %v4590
        %4592 = vdwg.mxu0
        %4593 = vmatprep.subr.mxu0 0.0
        %4594 = vmatpush1.msra.mxu0 0.0
        %4595 = vmatprep.subr.mxu0 0.0
        %4596 = vmatpush1.msra.mxu0 0.0
        %4597 = vmatprep.subr.mxu0 0.0
        %4598 = vmatpush1.msra.mxu0 0.0
        %4599 = vmatprep.subr.mxu0 0.0
        %4600 = vmatpush1.msra.mxu0 0.0
        %4601 = vmatprep.subr.mxu0 0.0
        %4602 = vmatpush1.msra.mxu0 0.0
        %4603 = vmatprep.subr.mxu0 0.0
        %4604 = vmatpush1.msra.mxu0 0.0
        %4605 = vmatprep.subr.mxu0 0.0
        %4606 = vmatpush1.msra.mxu0 0.0
        %4607 = vmatprep.subr.mxu0 0.0
        %4608 = vmatpush1.msra.mxu0 0.0
        %4609 = vmatprep.subr.mxu0 0.0
        %4610 = vmatpush1.msra.mxu0 0.0
        %4611 = vmatprep.subr.mxu0 0.0
        %4612 = vmatpush1.msra.mxu0 0.0
        %4613 = vmatprep.subr.mxu0 0.0
        %4614 = vmatpush1.msra.mxu0 0.0
        %4615 = vmatprep.subr.mxu0 0.0
        %4616 = vmatpush1.msra.mxu0 0.0
        %4617 = vmatprep.subr.mxu0 0.0
        %4618 = vmatpush1.msra.mxu0 0.0
        %4619 = vmatprep.subr.mxu0 0.0
        %4620 = vmatpush1.msra.mxu0 0.0
        %v4621 = vand.u32 %v2540, 4294901760
        %4622 = vmatprep.subr.mxu0 %v4621
        %v4623 = vand.u32 %v2528, 4294901760
        %4624 = vmatpush1.msra.mxu0 %v4623
        %v4625 = vand.u32 %v2534, 4294901760
        %4626 = vmatprep.subr.mxu0 %v4625
        %v4627 = vand.u32 %v2522, 4294901760
        %4628 = vmatpush1.msra.mxu0 %v4627
        %4629 = vmatprep.subr.mxu0 0.0
        %4630 = vmatpush2.msra.mxu0 0.0
        %4631 = vmatprep.subr.mxu0 0.0
        %4632 = vmatpush2.msra.mxu0 0.0
        %4633 = vmatprep.subr.mxu0 0.0
        %4634 = vmatpush2.msra.mxu0 0.0
        %4635 = vmatprep.subr.mxu0 0.0
        %4636 = vmatpush2.msra.mxu0 0.0
        %4637 = vmatprep.subr.mxu0 0.0
        %4638 = vmatpush2.msra.mxu0 0.0
        %4639 = vmatprep.subr.mxu0 0.0
        %4640 = vmatpush2.msra.mxu0 0.0
        %4641 = vmatprep.subr.mxu0 0.0
        %4642 = vmatpush2.msra.mxu0 0.0
        %4643 = vmatprep.subr.mxu0 0.0
        %4644 = vmatpush2.msra.mxu0 0.0
        %4645 = vmatprep.subr.mxu0 0.0
        %4646 = vmatpush2.msra.mxu0 0.0
        %4647 = vmatprep.subr.mxu0 0.0
        %4648 = vmatpush2.msra.mxu0 0.0
        %4649 = vmatprep.subr.mxu0 0.0
        %4650 = vmatpush2.msra.mxu0 0.0
        %4651 = vmatprep.subr.mxu0 0.0
        %4652 = vmatpush2.msra.mxu0 0.0
        %4653 = vmatprep.subr.mxu0 0.0
        %4654 = vmatpush2.msra.mxu0 0.0
        %4655 = vmatprep.subr.mxu0 0.0
        %4656 = vmatpush2.msra.mxu0 0.0
        %4657 = vmatprep.subr.mxu0 0.0
        %4658 = vmatpush2.msra.mxu0 0.0
        %4659 = vmatprep.subr.mxu0 0.0
        %4660 = vmatpush2.msra.mxu0 0.0
        %4661 = vmatprep.mubr.f32.mxu0 0.0
        %v4662 = vand.u32 %v2689, 4294901760
        %v4663 = vsub.f32 %v2689, %v4662
        %v4664 = vand.u32 %v4663, 4294901760
        %4665 = vmatmul.mubr.f32.gmra.mxu0 %v4664
        %v4666 = vpop.f32.mrf.mxu0
        %v4667 = vadd.f32 %v4581, %v4666
        %v4668 = vpop.f32.mrf.mxu0
        %v4669 = vadd.f32 %v4583, %v4668
        %4670 = vmatprep.mubr.f32.mxu0 0.0
        %v4671 = vand.u32 %v2692, 4294901760
        %v4672 = vsub.f32 %v2692, %v4671
        %v4673 = vand.u32 %v4672, 4294901760
        %4674 = vmatmul.mubr.f32.gmra.mxu0 %v4673
        %v4675 = vpop.f32.mrf.mxu0
        %v4676 = vadd.f32 %v4589, %v4675
        %v4677 = vpop.f32.mrf.mxu0
        %v4678 = vadd.f32 %v4591, %v4677
        %4679 = vdwg.mxu0
        %4680 = vmatprep.subr.mxu0 0.0
        %4681 = vmatpush1.msra.mxu0 0.0
        %4682 = vmatprep.subr.mxu0 0.0
        %4683 = vmatpush1.msra.mxu0 0.0
        %4684 = vmatprep.subr.mxu0 0.0
        %4685 = vmatpush1.msra.mxu0 0.0
        %4686 = vmatprep.subr.mxu0 0.0
        %4687 = vmatpush1.msra.mxu0 0.0
        %4688 = vmatprep.subr.mxu0 0.0
        %4689 = vmatpush1.msra.mxu0 0.0
        %4690 = vmatprep.subr.mxu0 0.0
        %4691 = vmatpush1.msra.mxu0 0.0
        %4692 = vmatprep.subr.mxu0 0.0
        %4693 = vmatpush1.msra.mxu0 0.0
        %4694 = vmatprep.subr.mxu0 0.0
        %4695 = vmatpush1.msra.mxu0 0.0
        %4696 = vmatprep.subr.mxu0 0.0
        %4697 = vmatpush1.msra.mxu0 0.0
        %4698 = vmatprep.subr.mxu0 0.0
        %4699 = vmatpush1.msra.mxu0 0.0
        %4700 = vmatprep.subr.mxu0 0.0
        %4701 = vmatpush1.msra.mxu0 0.0
        %4702 = vmatprep.subr.mxu0 0.0
        %4703 = vmatpush1.msra.mxu0 0.0
        %4704 = vmatprep.subr.mxu0 0.0
        %4705 = vmatpush1.msra.mxu0 0.0
        %4706 = vmatprep.subr.mxu0 0.0
        %4707 = vmatpush1.msra.mxu0 0.0
        %v4708 = vand.u32 %v2540, 4294901760
        %v4709 = vsub.f32 %v2540, %v4708
        %v4710 = vand.u32 %v4709, 4294901760
        %4711 = vmatprep.subr.mxu0 %v4710
        %v4712 = vand.u32 %v2528, 4294901760
        %v4713 = vsub.f32 %v2528, %v4712
        %v4714 = vand.u32 %v4713, 4294901760
        %4715 = vmatpush1.msra.mxu0 %v4714
        %v4716 = vand.u32 %v2534, 4294901760
        %v4717 = vsub.f32 %v2534, %v4716
        %v4718 = vand.u32 %v4717, 4294901760
        %4719 = vmatprep.subr.mxu0 %v4718
        %v4720 = vand.u32 %v2522, 4294901760
        %v4721 = vsub.f32 %v2522, %v4720
        %v4722 = vand.u32 %v4721, 4294901760
        %4723 = vmatpush1.msra.mxu0 %v4722
        %4724 = vmatprep.subr.mxu0 0.0
        %4725 = vmatpush2.msra.mxu0 0.0
        %4726 = vmatprep.subr.mxu0 0.0
        %4727 = vmatpush2.msra.mxu0 0.0
        %4728 = vmatprep.subr.mxu0 0.0
        %4729 = vmatpush2.msra.mxu0 0.0
        %4730 = vmatprep.subr.mxu0 0.0
        %4731 = vmatpush2.msra.mxu0 0.0
        %4732 = vmatprep.subr.mxu0 0.0
        %4733 = vmatpush2.msra.mxu0 0.0
        %4734 = vmatprep.subr.mxu0 0.0
        %4735 = vmatpush2.msra.mxu0 0.0
        %4736 = vmatprep.subr.mxu0 0.0
        %4737 = vmatpush2.msra.mxu0 0.0
        %4738 = vmatprep.subr.mxu0 0.0
        %4739 = vmatpush2.msra.mxu0 0.0
        %4740 = vmatprep.subr.mxu0 0.0
        %4741 = vmatpush2.msra.mxu0 0.0
        %4742 = vmatprep.subr.mxu0 0.0
        %4743 = vmatpush2.msra.mxu0 0.0
        %4744 = vmatprep.subr.mxu0 0.0
        %4745 = vmatpush2.msra.mxu0 0.0
        %4746 = vmatprep.subr.mxu0 0.0
        %4747 = vmatpush2.msra.mxu0 0.0
        %4748 = vmatprep.subr.mxu0 0.0
        %4749 = vmatpush2.msra.mxu0 0.0
        %4750 = vmatprep.subr.mxu0 0.0
        %4751 = vmatpush2.msra.mxu0 0.0
        %4752 = vmatprep.subr.mxu0 0.0
        %4753 = vmatpush2.msra.mxu0 0.0
        %4754 = vmatprep.subr.mxu0 0.0
        %4755 = vmatpush2.msra.mxu0 0.0
        %4756 = vmatprep.mubr.f32.mxu0 0.0
        %v4757 = vand.u32 %v2689, 4294901760
        %4758 = vmatmul.mubr.f32.gmra.mxu0 %v4757
        %v4759 = vpop.f32.mrf.mxu0
        %v4760 = vadd.f32 %v4667, %v4759
        %v4761 = vpop.f32.mrf.mxu0
        %v4762 = vadd.f32 %v4669, %v4761
        %4763 = vmatprep.mubr.f32.mxu0 0.0
        %v4764 = vand.u32 %v2692, 4294901760
        %4765 = vmatmul.mubr.f32.gmra.mxu0 %v4764
        %v4766 = vpop.f32.mrf.mxu0
        %v4767 = vadd.f32 %v4676, %v4766
        %v4768 = vpop.f32.mrf.mxu0
        %v4769 = vadd.f32 %v4678, %v4768
        %4770 = vdwg.mxu0
        %4771 = vmatprep.subr.mxu0 0.0
        %4772 = vmatpush1.msra.mxu0 0.0
        %4773 = vmatprep.subr.mxu0 0.0
        %4774 = vmatpush1.msra.mxu0 0.0
        %4775 = vmatprep.subr.mxu0 0.0
        %4776 = vmatpush1.msra.mxu0 0.0
        %4777 = vmatprep.subr.mxu0 0.0
        %4778 = vmatpush1.msra.mxu0 0.0
        %4779 = vmatprep.subr.mxu0 0.0
        %4780 = vmatpush1.msra.mxu0 0.0
        %4781 = vmatprep.subr.mxu0 0.0
        %4782 = vmatpush1.msra.mxu0 0.0
        %4783 = vmatprep.subr.mxu0 0.0
        %4784 = vmatpush1.msra.mxu0 0.0
        %4785 = vmatprep.subr.mxu0 0.0
        %4786 = vmatpush1.msra.mxu0 0.0
        %4787 = vmatprep.subr.mxu0 0.0
        %4788 = vmatpush1.msra.mxu0 0.0
        %4789 = vmatprep.subr.mxu0 0.0
        %4790 = vmatpush1.msra.mxu0 0.0
        %4791 = vmatprep.subr.mxu0 0.0
        %4792 = vmatpush1.msra.mxu0 0.0
        %4793 = vmatprep.subr.mxu0 0.0
        %4794 = vmatpush1.msra.mxu0 0.0
        %4795 = vmatprep.subr.mxu0 0.0
        %4796 = vmatpush1.msra.mxu0 0.0
        %4797 = vmatprep.subr.mxu0 0.0
        %4798 = vmatpush1.msra.mxu0 0.0
        %v4799 = vand.u32 %v2540, 4294901760
        %4800 = vmatprep.subr.mxu0 %v4799
        %v4801 = vand.u32 %v2528, 4294901760
        %4802 = vmatpush1.msra.mxu0 %v4801
        %v4803 = vand.u32 %v2534, 4294901760
        %4804 = vmatprep.subr.mxu0 %v4803
        %v4805 = vand.u32 %v2522, 4294901760
        %4806 = vmatpush1.msra.mxu0 %v4805
        %4807 = vmatprep.subr.mxu0 0.0
        %4808 = vmatpush2.msra.mxu0 0.0
        %4809 = vmatprep.subr.mxu0 0.0
        %4810 = vmatpush2.msra.mxu0 0.0
        %4811 = vmatprep.subr.mxu0 0.0
        %4812 = vmatpush2.msra.mxu0 0.0
        %4813 = vmatprep.subr.mxu0 0.0
        %4814 = vmatpush2.msra.mxu0 0.0
        %4815 = vmatprep.subr.mxu0 0.0
        %4816 = vmatpush2.msra.mxu0 0.0
        %4817 = vmatprep.subr.mxu0 0.0
        %4818 = vmatpush2.msra.mxu0 0.0
        %4819 = vmatprep.subr.mxu0 0.0
        %4820 = vmatpush2.msra.mxu0 0.0
        %4821 = vmatprep.subr.mxu0 0.0
        %4822 = vmatpush2.msra.mxu0 0.0
        %4823 = vmatprep.subr.mxu0 0.0
        %4824 = vmatpush2.msra.mxu0 0.0
        %4825 = vmatprep.subr.mxu0 0.0
        %4826 = vmatpush2.msra.mxu0 0.0
        %4827 = vmatprep.subr.mxu0 0.0
        %4828 = vmatpush2.msra.mxu0 0.0
        %4829 = vmatprep.subr.mxu0 0.0
        %4830 = vmatpush2.msra.mxu0 0.0
        %4831 = vmatprep.subr.mxu0 0.0
        %4832 = vmatpush2.msra.mxu0 0.0
        %4833 = vmatprep.subr.mxu0 0.0
        %4834 = vmatpush2.msra.mxu0 0.0
        %4835 = vmatprep.subr.mxu0 0.0
        %4836 = vmatpush2.msra.mxu0 0.0
        %4837 = vmatprep.subr.mxu0 0.0
        %4838 = vmatpush2.msra.mxu0 0.0
        %4839 = vmatprep.mubr.f32.mxu0 0.0
        %v4840 = vand.u32 %v2689, 4294901760
        %4841 = vmatmul.mubr.f32.gmra.mxu0 %v4840
        %v4842 = vpop.f32.mrf.mxu0
        %v4843 = vadd.f32 %v4760, %v4842
        %v4844 = vpop.f32.mrf.mxu0
        %v4845 = vadd.f32 %v4762, %v4844
        %4846 = vmatprep.mubr.f32.mxu0 0.0
        %v4847 = vand.u32 %v2692, 4294901760
        %4848 = vmatmul.mubr.f32.gmra.mxu0 %v4847
        %v4849 = vpop.f32.mrf.mxu0
        %v4850 = vadd.f32 %v4767, %v4849
        %v4851 = vpop.f32.mrf.mxu0
        %v4852 = vadd.f32 %v4769, %v4851
        %4853 = vdwg.mxu0
        %4854 = vmatprep.subr.mxu0 0.0
        %4855 = vmatpush1.msra.mxu0 0.0
        %4856 = vmatprep.subr.mxu0 0.0
        %4857 = vmatpush1.msra.mxu0 0.0
        %4858 = vmatprep.subr.mxu0 0.0
        %4859 = vmatpush1.msra.mxu0 0.0
        %4860 = vmatprep.subr.mxu0 0.0
        %4861 = vmatpush1.msra.mxu0 0.0
        %4862 = vmatprep.subr.mxu0 0.0
        %4863 = vmatpush1.msra.mxu0 0.0
        %4864 = vmatprep.subr.mxu0 0.0
        %4865 = vmatpush1.msra.mxu0 0.0
        %4866 = vmatprep.subr.mxu0 0.0
        %4867 = vmatpush1.msra.mxu0 0.0
        %4868 = vmatprep.subr.mxu0 0.0
        %4869 = vmatpush1.msra.mxu0 0.0
        %4870 = vmatprep.subr.mxu0 0.0
        %4871 = vmatpush1.msra.mxu0 0.0
        %4872 = vmatprep.subr.mxu0 0.0
        %4873 = vmatpush1.msra.mxu0 0.0
        %4874 = vmatprep.subr.mxu0 0.0
        %4875 = vmatpush1.msra.mxu0 0.0
        %4876 = vmatprep.subr.mxu0 0.0
        %4877 = vmatpush1.msra.mxu0 0.0
        %4878 = vmatprep.subr.mxu0 0.0
        %4879 = vmatpush1.msra.mxu0 0.0
        %4880 = vmatprep.subr.mxu0 0.0
        %4881 = vmatpush1.msra.mxu0 0.0
        %v4882 = vand.u32 %v2564, 4294901760
        %4883 = vmatprep.subr.mxu0 %v4882
        %v4884 = vand.u32 %v2552, 4294901760
        %4885 = vmatpush1.msra.mxu0 %v4884
        %v4886 = vand.u32 %v2558, 4294901760
        %4887 = vmatprep.subr.mxu0 %v4886
        %v4888 = vand.u32 %v2546, 4294901760
        %4889 = vmatpush1.msra.mxu0 %v4888
        %4890 = vmatprep.subr.mxu0 0.0
        %4891 = vmatpush2.msra.mxu0 0.0
        %4892 = vmatprep.subr.mxu0 0.0
        %4893 = vmatpush2.msra.mxu0 0.0
        %4894 = vmatprep.subr.mxu0 0.0
        %4895 = vmatpush2.msra.mxu0 0.0
        %4896 = vmatprep.subr.mxu0 0.0
        %4897 = vmatpush2.msra.mxu0 0.0
        %4898 = vmatprep.subr.mxu0 0.0
        %4899 = vmatpush2.msra.mxu0 0.0
        %4900 = vmatprep.subr.mxu0 0.0
        %4901 = vmatpush2.msra.mxu0 0.0
        %4902 = vmatprep.subr.mxu0 0.0
        %4903 = vmatpush2.msra.mxu0 0.0
        %4904 = vmatprep.subr.mxu0 0.0
        %4905 = vmatpush2.msra.mxu0 0.0
        %4906 = vmatprep.subr.mxu0 0.0
        %4907 = vmatpush2.msra.mxu0 0.0
        %4908 = vmatprep.subr.mxu0 0.0
        %4909 = vmatpush2.msra.mxu0 0.0
        %4910 = vmatprep.subr.mxu0 0.0
        %4911 = vmatpush2.msra.mxu0 0.0
        %4912 = vmatprep.subr.mxu0 0.0
        %4913 = vmatpush2.msra.mxu0 0.0
        %4914 = vmatprep.subr.mxu0 0.0
        %4915 = vmatpush2.msra.mxu0 0.0
        %4916 = vmatprep.subr.mxu0 0.0
        %4917 = vmatpush2.msra.mxu0 0.0
        %4918 = vmatprep.subr.mxu0 0.0
        %4919 = vmatpush2.msra.mxu0 0.0
        %4920 = vmatprep.subr.mxu0 0.0
        %4921 = vmatpush2.msra.mxu0 0.0
        %4922 = vmatprep.mubr.f32.mxu0 0.0
        %v4923 = vand.u32 %v2689, 4294901760
        %v4924 = vsub.f32 %v2689, %v4923
        %v4925 = vand.u32 %v4924, 4294901760
        %v4926 = vsub.f32 %v4924, %v4925
        %v4927 = vand.u32 %v4926, 4294901760
        %4928 = vmatmul.mubr.f32.gmra.mxu0 %v4927
        %v4929 = vpop.f32.mrf.mxu0
        %v4930 = vadd.f32 0.0, %v4929
        %v4931 = vpop.f32.mrf.mxu0
        %v4932 = vadd.f32 0.0, %v4931
        %4933 = vmatprep.mubr.f32.mxu0 0.0
        %v4934 = vand.u32 %v2692, 4294901760
        %v4935 = vsub.f32 %v2692, %v4934
        %v4936 = vand.u32 %v4935, 4294901760
        %v4937 = vsub.f32 %v4935, %v4936
        %v4938 = vand.u32 %v4937, 4294901760
        %4939 = vmatmul.mubr.f32.gmra.mxu0 %v4938
        %v4940 = vpop.f32.mrf.mxu0
        %v4941 = vadd.f32 0.0, %v4940
        %v4942 = vpop.f32.mrf.mxu0
        %v4943 = vadd.f32 0.0, %v4942
        %4944 = vdwg.mxu0
        %4945 = vmatprep.subr.mxu0 0.0
        %4946 = vmatpush1.msra.mxu0 0.0
        %4947 = vmatprep.subr.mxu0 0.0
        %4948 = vmatpush1.msra.mxu0 0.0
        %4949 = vmatprep.subr.mxu0 0.0
        %4950 = vmatpush1.msra.mxu0 0.0
        %4951 = vmatprep.subr.mxu0 0.0
        %4952 = vmatpush1.msra.mxu0 0.0
        %4953 = vmatprep.subr.mxu0 0.0
        %4954 = vmatpush1.msra.mxu0 0.0
        %4955 = vmatprep.subr.mxu0 0.0
        %4956 = vmatpush1.msra.mxu0 0.0
        %4957 = vmatprep.subr.mxu0 0.0
        %4958 = vmatpush1.msra.mxu0 0.0
        %4959 = vmatprep.subr.mxu0 0.0
        %4960 = vmatpush1.msra.mxu0 0.0
        %4961 = vmatprep.subr.mxu0 0.0
        %4962 = vmatpush1.msra.mxu0 0.0
        %4963 = vmatprep.subr.mxu0 0.0
        %4964 = vmatpush1.msra.mxu0 0.0
        %4965 = vmatprep.subr.mxu0 0.0
        %4966 = vmatpush1.msra.mxu0 0.0
        %4967 = vmatprep.subr.mxu0 0.0
        %4968 = vmatpush1.msra.mxu0 0.0
        %4969 = vmatprep.subr.mxu0 0.0
        %4970 = vmatpush1.msra.mxu0 0.0
        %4971 = vmatprep.subr.mxu0 0.0
        %4972 = vmatpush1.msra.mxu0 0.0
        %v4973 = vand.u32 %v2564, 4294901760
        %v4974 = vsub.f32 %v2564, %v4973
        %v4975 = vand.u32 %v4974, 4294901760
        %v4976 = vsub.f32 %v4974, %v4975
        %v4977 = vand.u32 %v4976, 4294901760
        %4978 = vmatprep.subr.mxu0 %v4977
        %v4979 = vand.u32 %v2552, 4294901760
        %v4980 = vsub.f32 %v2552, %v4979
        %v4981 = vand.u32 %v4980, 4294901760
        %v4982 = vsub.f32 %v4980, %v4981
        %v4983 = vand.u32 %v4982, 4294901760
        %4984 = vmatpush1.msra.mxu0 %v4983
        %v4985 = vand.u32 %v2558, 4294901760
        %v4986 = vsub.f32 %v2558, %v4985
        %v4987 = vand.u32 %v4986, 4294901760
        %v4988 = vsub.f32 %v4986, %v4987
        %v4989 = vand.u32 %v4988, 4294901760
        %4990 = vmatprep.subr.mxu0 %v4989
        %v4991 = vand.u32 %v2546, 4294901760
        %v4992 = vsub.f32 %v2546, %v4991
        %v4993 = vand.u32 %v4992, 4294901760
        %v4994 = vsub.f32 %v4992, %v4993
        %v4995 = vand.u32 %v4994, 4294901760
        %4996 = vmatpush1.msra.mxu0 %v4995
        %4997 = vmatprep.subr.mxu0 0.0
        %4998 = vmatpush2.msra.mxu0 0.0
        %4999 = vmatprep.subr.mxu0 0.0
        %5000 = vmatpush2.msra.mxu0 0.0
        %5001 = vmatprep.subr.mxu0 0.0
        %5002 = vmatpush2.msra.mxu0 0.0
        %5003 = vmatprep.subr.mxu0 0.0
        %5004 = vmatpush2.msra.mxu0 0.0
        %5005 = vmatprep.subr.mxu0 0.0
        %5006 = vmatpush2.msra.mxu0 0.0
        %5007 = vmatprep.subr.mxu0 0.0
        %5008 = vmatpush2.msra.mxu0 0.0
        %5009 = vmatprep.subr.mxu0 0.0
        %5010 = vmatpush2.msra.mxu0 0.0
        %5011 = vmatprep.subr.mxu0 0.0
        %5012 = vmatpush2.msra.mxu0 0.0
        %5013 = vmatprep.subr.mxu0 0.0
        %5014 = vmatpush2.msra.mxu0 0.0
        %5015 = vmatprep.subr.mxu0 0.0
        %5016 = vmatpush2.msra.mxu0 0.0
        %5017 = vmatprep.subr.mxu0 0.0
        %5018 = vmatpush2.msra.mxu0 0.0
        %5019 = vmatprep.subr.mxu0 0.0
        %5020 = vmatpush2.msra.mxu0 0.0
        %5021 = vmatprep.subr.mxu0 0.0
        %5022 = vmatpush2.msra.mxu0 0.0
        %5023 = vmatprep.subr.mxu0 0.0
        %5024 = vmatpush2.msra.mxu0 0.0
        %5025 = vmatprep.subr.mxu0 0.0
        %5026 = vmatpush2.msra.mxu0 0.0
        %5027 = vmatprep.subr.mxu0 0.0
        %5028 = vmatpush2.msra.mxu0 0.0
        %5029 = vmatprep.mubr.f32.mxu0 0.0
        %v5030 = vand.u32 %v2689, 4294901760
        %5031 = vmatmul.mubr.f32.gmra.mxu0 %v5030
        %v5032 = vpop.f32.mrf.mxu0
        %v5033 = vadd.f32 %v4930, %v5032
        %v5034 = vpop.f32.mrf.mxu0
        %v5035 = vadd.f32 %v4932, %v5034
        %5036 = vmatprep.mubr.f32.mxu0 0.0
        %v5037 = vand.u32 %v2692, 4294901760
        %5038 = vmatmul.mubr.f32.gmra.mxu0 %v5037
        %v5039 = vpop.f32.mrf.mxu0
        %v5040 = vadd.f32 %v4941, %v5039
        %v5041 = vpop.f32.mrf.mxu0
        %v5042 = vadd.f32 %v4943, %v5041
        %5043 = vdwg.mxu0
        %5044 = vmatprep.subr.mxu0 0.0
        %5045 = vmatpush1.msra.mxu0 0.0
        %5046 = vmatprep.subr.mxu0 0.0
        %5047 = vmatpush1.msra.mxu0 0.0
        %5048 = vmatprep.subr.mxu0 0.0
        %5049 = vmatpush1.msra.mxu0 0.0
        %5050 = vmatprep.subr.mxu0 0.0
        %5051 = vmatpush1.msra.mxu0 0.0
        %5052 = vmatprep.subr.mxu0 0.0
        %5053 = vmatpush1.msra.mxu0 0.0
        %5054 = vmatprep.subr.mxu0 0.0
        %5055 = vmatpush1.msra.mxu0 0.0
        %5056 = vmatprep.subr.mxu0 0.0
        %5057 = vmatpush1.msra.mxu0 0.0
        %5058 = vmatprep.subr.mxu0 0.0
        %5059 = vmatpush1.msra.mxu0 0.0
        %5060 = vmatprep.subr.mxu0 0.0
        %5061 = vmatpush1.msra.mxu0 0.0
        %5062 = vmatprep.subr.mxu0 0.0
        %5063 = vmatpush1.msra.mxu0 0.0
        %5064 = vmatprep.subr.mxu0 0.0
        %5065 = vmatpush1.msra.mxu0 0.0
        %5066 = vmatprep.subr.mxu0 0.0
        %5067 = vmatpush1.msra.mxu0 0.0
        %5068 = vmatprep.subr.mxu0 0.0
        %5069 = vmatpush1.msra.mxu0 0.0
        %5070 = vmatprep.subr.mxu0 0.0
        %5071 = vmatpush1.msra.mxu0 0.0
        %v5072 = vand.u32 %v2564, 4294901760
        %v5073 = vsub.f32 %v2564, %v5072
        %5074 = vmatprep.subr.mxu0 %v5073
        %v5075 = vand.u32 %v2552, 4294901760
        %v5076 = vsub.f32 %v2552, %v5075
        %5077 = vmatpush1.msra.mxu0 %v5076
        %v5078 = vand.u32 %v2558, 4294901760
        %v5079 = vsub.f32 %v2558, %v5078
        %5080 = vmatprep.subr.mxu0 %v5079
        %v5081 = vand.u32 %v2546, 4294901760
        %v5082 = vsub.f32 %v2546, %v5081
        %5083 = vmatpush1.msra.mxu0 %v5082
        %5084 = vmatprep.subr.mxu0 0.0
        %5085 = vmatpush2.msra.mxu0 0.0
        %5086 = vmatprep.subr.mxu0 0.0
        %5087 = vmatpush2.msra.mxu0 0.0
        %5088 = vmatprep.subr.mxu0 0.0
        %5089 = vmatpush2.msra.mxu0 0.0
        %5090 = vmatprep.subr.mxu0 0.0
        %5091 = vmatpush2.msra.mxu0 0.0
        %5092 = vmatprep.subr.mxu0 0.0
        %5093 = vmatpush2.msra.mxu0 0.0
        %5094 = vmatprep.subr.mxu0 0.0
        %5095 = vmatpush2.msra.mxu0 0.0
        %5096 = vmatprep.subr.mxu0 0.0
        %5097 = vmatpush2.msra.mxu0 0.0
        %5098 = vmatprep.subr.mxu0 0.0
        %5099 = vmatpush2.msra.mxu0 0.0
        %5100 = vmatprep.subr.mxu0 0.0
        %5101 = vmatpush2.msra.mxu0 0.0
        %5102 = vmatprep.subr.mxu0 0.0
        %5103 = vmatpush2.msra.mxu0 0.0
        %5104 = vmatprep.subr.mxu0 0.0
        %5105 = vmatpush2.msra.mxu0 0.0
        %5106 = vmatprep.subr.mxu0 0.0
        %5107 = vmatpush2.msra.mxu0 0.0
        %5108 = vmatprep.subr.mxu0 0.0
        %5109 = vmatpush2.msra.mxu0 0.0
        %5110 = vmatprep.subr.mxu0 0.0
        %5111 = vmatpush2.msra.mxu0 0.0
        %5112 = vmatprep.subr.mxu0 0.0
        %5113 = vmatpush2.msra.mxu0 0.0
        %5114 = vmatprep.subr.mxu0 0.0
        %5115 = vmatpush2.msra.mxu0 0.0
        %5116 = vmatprep.mubr.f32.mxu0 0.0
        %v5117 = vand.u32 %v2689, 4294901760
        %v5118 = vsub.f32 %v2689, %v5117
        %5119 = vmatmul.mubr.f32.gmra.mxu0 %v5118
        %v5120 = vpop.f32.mrf.mxu0
        %v5121 = vadd.f32 %v5033, %v5120
        %v5122 = vpop.f32.mrf.mxu0
        %v5123 = vadd.f32 %v5035, %v5122
        %5124 = vmatprep.mubr.f32.mxu0 0.0
        %v5125 = vand.u32 %v2692, 4294901760
        %v5126 = vsub.f32 %v2692, %v5125
        %5127 = vmatmul.mubr.f32.gmra.mxu0 %v5126
        %v5128 = vpop.f32.mrf.mxu0
        %v5129 = vadd.f32 %v5040, %v5128
        %v5130 = vpop.f32.mrf.mxu0
        %v5131 = vadd.f32 %v5042, %v5130
        %5132 = vdwg.mxu0
        %5133 = vmatprep.subr.mxu0 0.0
        %5134 = vmatpush1.msra.mxu0 0.0
        %5135 = vmatprep.subr.mxu0 0.0
        %5136 = vmatpush1.msra.mxu0 0.0
        %5137 = vmatprep.subr.mxu0 0.0
        %5138 = vmatpush1.msra.mxu0 0.0
        %5139 = vmatprep.subr.mxu0 0.0
        %5140 = vmatpush1.msra.mxu0 0.0
        %5141 = vmatprep.subr.mxu0 0.0
        %5142 = vmatpush1.msra.mxu0 0.0
        %5143 = vmatprep.subr.mxu0 0.0
        %5144 = vmatpush1.msra.mxu0 0.0
        %5145 = vmatprep.subr.mxu0 0.0
        %5146 = vmatpush1.msra.mxu0 0.0
        %5147 = vmatprep.subr.mxu0 0.0
        %5148 = vmatpush1.msra.mxu0 0.0
        %5149 = vmatprep.subr.mxu0 0.0
        %5150 = vmatpush1.msra.mxu0 0.0
        %5151 = vmatprep.subr.mxu0 0.0
        %5152 = vmatpush1.msra.mxu0 0.0
        %5153 = vmatprep.subr.mxu0 0.0
        %5154 = vmatpush1.msra.mxu0 0.0
        %5155 = vmatprep.subr.mxu0 0.0
        %5156 = vmatpush1.msra.mxu0 0.0
        %5157 = vmatprep.subr.mxu0 0.0
        %5158 = vmatpush1.msra.mxu0 0.0
        %5159 = vmatprep.subr.mxu0 0.0
        %5160 = vmatpush1.msra.mxu0 0.0
        %v5161 = vand.u32 %v2564, 4294901760
        %5162 = vmatprep.subr.mxu0 %v5161
        %v5163 = vand.u32 %v2552, 4294901760
        %5164 = vmatpush1.msra.mxu0 %v5163
        %v5165 = vand.u32 %v2558, 4294901760
        %5166 = vmatprep.subr.mxu0 %v5165
        %v5167 = vand.u32 %v2546, 4294901760
        %5168 = vmatpush1.msra.mxu0 %v5167
        %5169 = vmatprep.subr.mxu0 0.0
        %5170 = vmatpush2.msra.mxu0 0.0
        %5171 = vmatprep.subr.mxu0 0.0
        %5172 = vmatpush2.msra.mxu0 0.0
        %5173 = vmatprep.subr.mxu0 0.0
        %5174 = vmatpush2.msra.mxu0 0.0
        %5175 = vmatprep.subr.mxu0 0.0
        %5176 = vmatpush2.msra.mxu0 0.0
        %5177 = vmatprep.subr.mxu0 0.0
        %5178 = vmatpush2.msra.mxu0 0.0
        %5179 = vmatprep.subr.mxu0 0.0
        %5180 = vmatpush2.msra.mxu0 0.0
        %5181 = vmatprep.subr.mxu0 0.0
        %5182 = vmatpush2.msra.mxu0 0.0
        %5183 = vmatprep.subr.mxu0 0.0
        %5184 = vmatpush2.msra.mxu0 0.0
        %5185 = vmatprep.subr.mxu0 0.0
        %5186 = vmatpush2.msra.mxu0 0.0
        %5187 = vmatprep.subr.mxu0 0.0
        %5188 = vmatpush2.msra.mxu0 0.0
        %5189 = vmatprep.subr.mxu0 0.0
        %5190 = vmatpush2.msra.mxu0 0.0
        %5191 = vmatprep.subr.mxu0 0.0
        %5192 = vmatpush2.msra.mxu0 0.0
        %5193 = vmatprep.subr.mxu0 0.0
        %5194 = vmatpush2.msra.mxu0 0.0
        %5195 = vmatprep.subr.mxu0 0.0
        %5196 = vmatpush2.msra.mxu0 0.0
        %5197 = vmatprep.subr.mxu0 0.0
        %5198 = vmatpush2.msra.mxu0 0.0
        %5199 = vmatprep.subr.mxu0 0.0
        %5200 = vmatpush2.msra.mxu0 0.0
        %5201 = vmatprep.mubr.f32.mxu0 0.0
        %v5202 = vand.u32 %v2689, 4294901760
        %v5203 = vsub.f32 %v2689, %v5202
        %v5204 = vand.u32 %v5203, 4294901760
        %5205 = vmatmul.mubr.f32.gmra.mxu0 %v5204
        %v5206 = vpop.f32.mrf.mxu0
        %v5207 = vadd.f32 %v5121, %v5206
        %v5208 = vpop.f32.mrf.mxu0
        %v5209 = vadd.f32 %v5123, %v5208
        %5210 = vmatprep.mubr.f32.mxu0 0.0
        %v5211 = vand.u32 %v2692, 4294901760
        %v5212 = vsub.f32 %v2692, %v5211
        %v5213 = vand.u32 %v5212, 4294901760
        %5214 = vmatmul.mubr.f32.gmra.mxu0 %v5213
        %v5215 = vpop.f32.mrf.mxu0
        %v5216 = vadd.f32 %v5129, %v5215
        %v5217 = vpop.f32.mrf.mxu0
        %v5218 = vadd.f32 %v5131, %v5217
        %5219 = vdwg.mxu0
        %5220 = vmatprep.subr.mxu0 0.0
        %5221 = vmatpush1.msra.mxu0 0.0
        %5222 = vmatprep.subr.mxu0 0.0
        %5223 = vmatpush1.msra.mxu0 0.0
        %5224 = vmatprep.subr.mxu0 0.0
        %5225 = vmatpush1.msra.mxu0 0.0
        %5226 = vmatprep.subr.mxu0 0.0
        %5227 = vmatpush1.msra.mxu0 0.0
        %5228 = vmatprep.subr.mxu0 0.0
        %5229 = vmatpush1.msra.mxu0 0.0
        %5230 = vmatprep.subr.mxu0 0.0
        %5231 = vmatpush1.msra.mxu0 0.0
        %5232 = vmatprep.subr.mxu0 0.0
        %5233 = vmatpush1.msra.mxu0 0.0
        %5234 = vmatprep.subr.mxu0 0.0
        %5235 = vmatpush1.msra.mxu0 0.0
        %5236 = vmatprep.subr.mxu0 0.0
        %5237 = vmatpush1.msra.mxu0 0.0
        %5238 = vmatprep.subr.mxu0 0.0
        %5239 = vmatpush1.msra.mxu0 0.0
        %5240 = vmatprep.subr.mxu0 0.0
        %5241 = vmatpush1.msra.mxu0 0.0
        %5242 = vmatprep.subr.mxu0 0.0
        %5243 = vmatpush1.msra.mxu0 0.0
        %5244 = vmatprep.subr.mxu0 0.0
        %5245 = vmatpush1.msra.mxu0 0.0
        %5246 = vmatprep.subr.mxu0 0.0
        %5247 = vmatpush1.msra.mxu0 0.0
        %v5248 = vand.u32 %v2564, 4294901760
        %v5249 = vsub.f32 %v2564, %v5248
        %v5250 = vand.u32 %v5249, 4294901760
        %5251 = vmatprep.subr.mxu0 %v5250
        %v5252 = vand.u32 %v2552, 4294901760
        %v5253 = vsub.f32 %v2552, %v5252
        %v5254 = vand.u32 %v5253, 4294901760
        %5255 = vmatpush1.msra.mxu0 %v5254
        %v5256 = vand.u32 %v2558, 4294901760
        %v5257 = vsub.f32 %v2558, %v5256
        %v5258 = vand.u32 %v5257, 4294901760
        %5259 = vmatprep.subr.mxu0 %v5258
        %v5260 = vand.u32 %v2546, 4294901760
        %v5261 = vsub.f32 %v2546, %v5260
        %v5262 = vand.u32 %v5261, 4294901760
        %5263 = vmatpush1.msra.mxu0 %v5262
        %5264 = vmatprep.subr.mxu0 0.0
        %5265 = vmatpush2.msra.mxu0 0.0
        %5266 = vmatprep.subr.mxu0 0.0
        %5267 = vmatpush2.msra.mxu0 0.0
        %5268 = vmatprep.subr.mxu0 0.0
        %5269 = vmatpush2.msra.mxu0 0.0
        %5270 = vmatprep.subr.mxu0 0.0
        %5271 = vmatpush2.msra.mxu0 0.0
        %5272 = vmatprep.subr.mxu0 0.0
        %5273 = vmatpush2.msra.mxu0 0.0
        %5274 = vmatprep.subr.mxu0 0.0
        %5275 = vmatpush2.msra.mxu0 0.0
        %5276 = vmatprep.subr.mxu0 0.0
        %5277 = vmatpush2.msra.mxu0 0.0
        %5278 = vmatprep.subr.mxu0 0.0
        %5279 = vmatpush2.msra.mxu0 0.0
        %5280 = vmatprep.subr.mxu0 0.0
        %5281 = vmatpush2.msra.mxu0 0.0
        %5282 = vmatprep.subr.mxu0 0.0
        %5283 = vmatpush2.msra.mxu0 0.0
        %5284 = vmatprep.subr.mxu0 0.0
        %5285 = vmatpush2.msra.mxu0 0.0
        %5286 = vmatprep.subr.mxu0 0.0
        %5287 = vmatpush2.msra.mxu0 0.0
        %5288 = vmatprep.subr.mxu0 0.0
        %5289 = vmatpush2.msra.mxu0 0.0
        %5290 = vmatprep.subr.mxu0 0.0
        %5291 = vmatpush2.msra.mxu0 0.0
        %5292 = vmatprep.subr.mxu0 0.0
        %5293 = vmatpush2.msra.mxu0 0.0
        %5294 = vmatprep.subr.mxu0 0.0
        %5295 = vmatpush2.msra.mxu0 0.0
        %5296 = vmatprep.mubr.f32.mxu0 0.0
        %v5297 = vand.u32 %v2689, 4294901760
        %5298 = vmatmul.mubr.f32.gmra.mxu0 %v5297
        %v5299 = vpop.f32.mrf.mxu0
        %v5300 = vadd.f32 %v5207, %v5299
        %v5301 = vpop.f32.mrf.mxu0
        %v5302 = vadd.f32 %v5209, %v5301
        %5303 = vmatprep.mubr.f32.mxu0 0.0
        %v5304 = vand.u32 %v2692, 4294901760
        %5305 = vmatmul.mubr.f32.gmra.mxu0 %v5304
        %v5306 = vpop.f32.mrf.mxu0
        %v5307 = vadd.f32 %v5216, %v5306
        %v5308 = vpop.f32.mrf.mxu0
        %v5309 = vadd.f32 %v5218, %v5308
        %5310 = vdwg.mxu0
        %5311 = vmatprep.subr.mxu0 0.0
        %5312 = vmatpush1.msra.mxu0 0.0
        %5313 = vmatprep.subr.mxu0 0.0
        %5314 = vmatpush1.msra.mxu0 0.0
        %5315 = vmatprep.subr.mxu0 0.0
        %5316 = vmatpush1.msra.mxu0 0.0
        %5317 = vmatprep.subr.mxu0 0.0
        %5318 = vmatpush1.msra.mxu0 0.0
        %5319 = vmatprep.subr.mxu0 0.0
        %5320 = vmatpush1.msra.mxu0 0.0
        %5321 = vmatprep.subr.mxu0 0.0
        %5322 = vmatpush1.msra.mxu0 0.0
        %5323 = vmatprep.subr.mxu0 0.0
        %5324 = vmatpush1.msra.mxu0 0.0
        %5325 = vmatprep.subr.mxu0 0.0
        %5326 = vmatpush1.msra.mxu0 0.0
        %5327 = vmatprep.subr.mxu0 0.0
        %5328 = vmatpush1.msra.mxu0 0.0
        %5329 = vmatprep.subr.mxu0 0.0
        %5330 = vmatpush1.msra.mxu0 0.0
        %5331 = vmatprep.subr.mxu0 0.0
        %5332 = vmatpush1.msra.mxu0 0.0
        %5333 = vmatprep.subr.mxu0 0.0
        %5334 = vmatpush1.msra.mxu0 0.0
        %5335 = vmatprep.subr.mxu0 0.0
        %5336 = vmatpush1.msra.mxu0 0.0
        %5337 = vmatprep.subr.mxu0 0.0
        %5338 = vmatpush1.msra.mxu0 0.0
        %v5339 = vand.u32 %v2564, 4294901760
        %5340 = vmatprep.subr.mxu0 %v5339
        %v5341 = vand.u32 %v2552, 4294901760
        %5342 = vmatpush1.msra.mxu0 %v5341
        %v5343 = vand.u32 %v2558, 4294901760
        %5344 = vmatprep.subr.mxu0 %v5343
        %v5345 = vand.u32 %v2546, 4294901760
        %5346 = vmatpush1.msra.mxu0 %v5345
        %5347 = vmatprep.subr.mxu0 0.0
        %5348 = vmatpush2.msra.mxu0 0.0
        %5349 = vmatprep.subr.mxu0 0.0
        %5350 = vmatpush2.msra.mxu0 0.0
        %5351 = vmatprep.subr.mxu0 0.0
        %5352 = vmatpush2.msra.mxu0 0.0
        %5353 = vmatprep.subr.mxu0 0.0
        %5354 = vmatpush2.msra.mxu0 0.0
        %5355 = vmatprep.subr.mxu0 0.0
        %5356 = vmatpush2.msra.mxu0 0.0
        %5357 = vmatprep.subr.mxu0 0.0
        %5358 = vmatpush2.msra.mxu0 0.0
        %5359 = vmatprep.subr.mxu0 0.0
        %5360 = vmatpush2.msra.mxu0 0.0
        %5361 = vmatprep.subr.mxu0 0.0
        %5362 = vmatpush2.msra.mxu0 0.0
        %5363 = vmatprep.subr.mxu0 0.0
        %5364 = vmatpush2.msra.mxu0 0.0
        %5365 = vmatprep.subr.mxu0 0.0
        %5366 = vmatpush2.msra.mxu0 0.0
        %5367 = vmatprep.subr.mxu0 0.0
        %5368 = vmatpush2.msra.mxu0 0.0
        %5369 = vmatprep.subr.mxu0 0.0
        %5370 = vmatpush2.msra.mxu0 0.0
        %5371 = vmatprep.subr.mxu0 0.0
        %5372 = vmatpush2.msra.mxu0 0.0
        %5373 = vmatprep.subr.mxu0 0.0
        %5374 = vmatpush2.msra.mxu0 0.0
        %5375 = vmatprep.subr.mxu0 0.0
        %5376 = vmatpush2.msra.mxu0 0.0
        %5377 = vmatprep.subr.mxu0 0.0
        %5378 = vmatpush2.msra.mxu0 0.0
        %5379 = vmatprep.mubr.f32.mxu0 0.0
        %v5380 = vand.u32 %v2689, 4294901760
        %5381 = vmatmul.mubr.f32.gmra.mxu0 %v5380
        %v5382 = vpop.f32.mrf.mxu0
        %v5383 = vadd.f32 %v5300, %v5382
        %v5384 = vpop.f32.mrf.mxu0
        %v5385 = vadd.f32 %v5302, %v5384
        %5386 = vmatprep.mubr.f32.mxu0 0.0
        %v5387 = vand.u32 %v2692, 4294901760
        %5388 = vmatmul.mubr.f32.gmra.mxu0 %v5387
        %v5389 = vpop.f32.mrf.mxu0
        %v5390 = vadd.f32 %v5307, %v5389
        %v5391 = vpop.f32.mrf.mxu0
        %v5392 = vadd.f32 %v5309, %v5391
        %5393 = vdwg.mxu0
        %5394 = vmatprep.subr.mxu0 0.0
        %5395 = vmatpush1.msra.mxu0 0.0
        %5396 = vmatprep.subr.mxu0 0.0
        %5397 = vmatpush1.msra.mxu0 0.0
        %5398 = vmatprep.subr.mxu0 0.0
        %5399 = vmatpush1.msra.mxu0 0.0
        %5400 = vmatprep.subr.mxu0 0.0
        %5401 = vmatpush1.msra.mxu0 0.0
        %5402 = vmatprep.subr.mxu0 0.0
        %5403 = vmatpush1.msra.mxu0 0.0
        %5404 = vmatprep.subr.mxu0 0.0
        %5405 = vmatpush1.msra.mxu0 0.0
        %5406 = vmatprep.subr.mxu0 0.0
        %5407 = vmatpush1.msra.mxu0 0.0
        %5408 = vmatprep.subr.mxu0 0.0
        %5409 = vmatpush1.msra.mxu0 0.0
        %5410 = vmatprep.subr.mxu0 0.0
        %5411 = vmatpush1.msra.mxu0 0.0
        %5412 = vmatprep.subr.mxu0 0.0
        %5413 = vmatpush1.msra.mxu0 0.0
        %5414 = vmatprep.subr.mxu0 0.0
        %5415 = vmatpush1.msra.mxu0 0.0
        %5416 = vmatprep.subr.mxu0 0.0
        %5417 = vmatpush1.msra.mxu0 0.0
        %5418 = vmatprep.subr.mxu0 0.0
        %5419 = vmatpush1.msra.mxu0 0.0
        %5420 = vmatprep.subr.mxu0 0.0
        %5421 = vmatpush1.msra.mxu0 0.0
        %v5422 = vand.u32 %v2588, 4294901760
        %5423 = vmatprep.subr.mxu0 %v5422
        %v5424 = vand.u32 %v2576, 4294901760
        %5425 = vmatpush1.msra.mxu0 %v5424
        %v5426 = vand.u32 %v2582, 4294901760
        %5427 = vmatprep.subr.mxu0 %v5426
        %v5428 = vand.u32 %v2570, 4294901760
        %5429 = vmatpush1.msra.mxu0 %v5428
        %5430 = vmatprep.subr.mxu0 0.0
        %5431 = vmatpush2.msra.mxu0 0.0
        %5432 = vmatprep.subr.mxu0 0.0
        %5433 = vmatpush2.msra.mxu0 0.0
        %5434 = vmatprep.subr.mxu0 0.0
        %5435 = vmatpush2.msra.mxu0 0.0
        %5436 = vmatprep.subr.mxu0 0.0
        %5437 = vmatpush2.msra.mxu0 0.0
        %5438 = vmatprep.subr.mxu0 0.0
        %5439 = vmatpush2.msra.mxu0 0.0
        %5440 = vmatprep.subr.mxu0 0.0
        %5441 = vmatpush2.msra.mxu0 0.0
        %5442 = vmatprep.subr.mxu0 0.0
        %5443 = vmatpush2.msra.mxu0 0.0
        %5444 = vmatprep.subr.mxu0 0.0
        %5445 = vmatpush2.msra.mxu0 0.0
        %5446 = vmatprep.subr.mxu0 0.0
        %5447 = vmatpush2.msra.mxu0 0.0
        %5448 = vmatprep.subr.mxu0 0.0
        %5449 = vmatpush2.msra.mxu0 0.0
        %5450 = vmatprep.subr.mxu0 0.0
        %5451 = vmatpush2.msra.mxu0 0.0
        %5452 = vmatprep.subr.mxu0 0.0
        %5453 = vmatpush2.msra.mxu0 0.0
        %5454 = vmatprep.subr.mxu0 0.0
        %5455 = vmatpush2.msra.mxu0 0.0
        %5456 = vmatprep.subr.mxu0 0.0
        %5457 = vmatpush2.msra.mxu0 0.0
        %5458 = vmatprep.subr.mxu0 0.0
        %5459 = vmatpush2.msra.mxu0 0.0
        %5460 = vmatprep.subr.mxu0 0.0
        %5461 = vmatpush2.msra.mxu0 0.0
        %5462 = vmatprep.mubr.f32.mxu0 0.0
        %v5463 = vand.u32 %v2689, 4294901760
        %v5464 = vsub.f32 %v2689, %v5463
        %v5465 = vand.u32 %v5464, 4294901760
        %v5466 = vsub.f32 %v5464, %v5465
        %v5467 = vand.u32 %v5466, 4294901760
        %5468 = vmatmul.mubr.f32.gmra.mxu0 %v5467
        %v5469 = vpop.f32.mrf.mxu0
        %v5470 = vadd.f32 0.0, %v5469
        %v5471 = vpop.f32.mrf.mxu0
        %v5472 = vadd.f32 0.0, %v5471
        %5473 = vmatprep.mubr.f32.mxu0 0.0
        %v5474 = vand.u32 %v2692, 4294901760
        %v5475 = vsub.f32 %v2692, %v5474
        %v5476 = vand.u32 %v5475, 4294901760
        %v5477 = vsub.f32 %v5475, %v5476
        %v5478 = vand.u32 %v5477, 4294901760
        %5479 = vmatmul.mubr.f32.gmra.mxu0 %v5478
        %v5480 = vpop.f32.mrf.mxu0
        %v5481 = vadd.f32 0.0, %v5480
        %v5482 = vpop.f32.mrf.mxu0
        %v5483 = vadd.f32 0.0, %v5482
        %5484 = vdwg.mxu0
        %5485 = vmatprep.subr.mxu0 0.0
        %5486 = vmatpush1.msra.mxu0 0.0
        %5487 = vmatprep.subr.mxu0 0.0
        %5488 = vmatpush1.msra.mxu0 0.0
        %5489 = vmatprep.subr.mxu0 0.0
        %5490 = vmatpush1.msra.mxu0 0.0
        %5491 = vmatprep.subr.mxu0 0.0
        %5492 = vmatpush1.msra.mxu0 0.0
        %5493 = vmatprep.subr.mxu0 0.0
        %5494 = vmatpush1.msra.mxu0 0.0
        %5495 = vmatprep.subr.mxu0 0.0
        %5496 = vmatpush1.msra.mxu0 0.0
        %5497 = vmatprep.subr.mxu0 0.0
        %5498 = vmatpush1.msra.mxu0 0.0
        %5499 = vmatprep.subr.mxu0 0.0
        %5500 = vmatpush1.msra.mxu0 0.0
        %5501 = vmatprep.subr.mxu0 0.0
        %5502 = vmatpush1.msra.mxu0 0.0
        %5503 = vmatprep.subr.mxu0 0.0
        %5504 = vmatpush1.msra.mxu0 0.0
        %5505 = vmatprep.subr.mxu0 0.0
        %5506 = vmatpush1.msra.mxu0 0.0
        %5507 = vmatprep.subr.mxu0 0.0
        %5508 = vmatpush1.msra.mxu0 0.0
        %5509 = vmatprep.subr.mxu0 0.0
        %5510 = vmatpush1.msra.mxu0 0.0
        %5511 = vmatprep.subr.mxu0 0.0
        %5512 = vmatpush1.msra.mxu0 0.0
        %v5513 = vand.u32 %v2588, 4294901760
        %v5514 = vsub.f32 %v2588, %v5513
        %v5515 = vand.u32 %v5514, 4294901760
        %v5516 = vsub.f32 %v5514, %v5515
        %v5517 = vand.u32 %v5516, 4294901760
        %5518 = vmatprep.subr.mxu0 %v5517
        %v5519 = vand.u32 %v2576, 4294901760
        %v5520 = vsub.f32 %v2576, %v5519
        %v5521 = vand.u32 %v5520, 4294901760
        %v5522 = vsub.f32 %v5520, %v5521
        %v5523 = vand.u32 %v5522, 4294901760
        %5524 = vmatpush1.msra.mxu0 %v5523
        %v5525 = vand.u32 %v2582, 4294901760
        %v5526 = vsub.f32 %v2582, %v5525
        %v5527 = vand.u32 %v5526, 4294901760
        %v5528 = vsub.f32 %v5526, %v5527
        %v5529 = vand.u32 %v5528, 4294901760
        %5530 = vmatprep.subr.mxu0 %v5529
        %v5531 = vand.u32 %v2570, 4294901760
        %v5532 = vsub.f32 %v2570, %v5531
        %v5533 = vand.u32 %v5532, 4294901760
        %v5534 = vsub.f32 %v5532, %v5533
        %v5535 = vand.u32 %v5534, 4294901760
        %5536 = vmatpush1.msra.mxu0 %v5535
        %5537 = vmatprep.subr.mxu0 0.0
        %5538 = vmatpush2.msra.mxu0 0.0
        %5539 = vmatprep.subr.mxu0 0.0
        %5540 = vmatpush2.msra.mxu0 0.0
        %5541 = vmatprep.subr.mxu0 0.0
        %5542 = vmatpush2.msra.mxu0 0.0
        %5543 = vmatprep.subr.mxu0 0.0
        %5544 = vmatpush2.msra.mxu0 0.0
        %5545 = vmatprep.subr.mxu0 0.0
        %5546 = vmatpush2.msra.mxu0 0.0
        %5547 = vmatprep.subr.mxu0 0.0
        %5548 = vmatpush2.msra.mxu0 0.0
        %5549 = vmatprep.subr.mxu0 0.0
        %5550 = vmatpush2.msra.mxu0 0.0
        %5551 = vmatprep.subr.mxu0 0.0
        %5552 = vmatpush2.msra.mxu0 0.0
        %5553 = vmatprep.subr.mxu0 0.0
        %5554 = vmatpush2.msra.mxu0 0.0
        %5555 = vmatprep.subr.mxu0 0.0
        %5556 = vmatpush2.msra.mxu0 0.0
        %5557 = vmatprep.subr.mxu0 0.0
        %5558 = vmatpush2.msra.mxu0 0.0
        %5559 = vmatprep.subr.mxu0 0.0
        %5560 = vmatpush2.msra.mxu0 0.0
        %5561 = vmatprep.subr.mxu0 0.0
        %5562 = vmatpush2.msra.mxu0 0.0
        %5563 = vmatprep.subr.mxu0 0.0
        %5564 = vmatpush2.msra.mxu0 0.0
        %5565 = vmatprep.subr.mxu0 0.0
        %5566 = vmatpush2.msra.mxu0 0.0
        %5567 = vmatprep.subr.mxu0 0.0
        %5568 = vmatpush2.msra.mxu0 0.0
        %5569 = vmatprep.mubr.f32.mxu0 0.0
        %v5570 = vand.u32 %v2689, 4294901760
        %5571 = vmatmul.mubr.f32.gmra.mxu0 %v5570
        %v5572 = vpop.f32.mrf.mxu0
        %v5573 = vadd.f32 %v5470, %v5572
        %v5574 = vpop.f32.mrf.mxu0
        %v5575 = vadd.f32 %v5472, %v5574
        %5576 = vmatprep.mubr.f32.mxu0 0.0
        %v5577 = vand.u32 %v2692, 4294901760
        %5578 = vmatmul.mubr.f32.gmra.mxu0 %v5577
        %v5579 = vpop.f32.mrf.mxu0
        %v5580 = vadd.f32 %v5481, %v5579
        %v5581 = vpop.f32.mrf.mxu0
        %v5582 = vadd.f32 %v5483, %v5581
        %5583 = vdwg.mxu0
        %5584 = vmatprep.subr.mxu0 0.0
        %5585 = vmatpush1.msra.mxu0 0.0
        %5586 = vmatprep.subr.mxu0 0.0
        %5587 = vmatpush1.msra.mxu0 0.0
        %5588 = vmatprep.subr.mxu0 0.0
        %5589 = vmatpush1.msra.mxu0 0.0
        %5590 = vmatprep.subr.mxu0 0.0
        %5591 = vmatpush1.msra.mxu0 0.0
        %5592 = vmatprep.subr.mxu0 0.0
        %5593 = vmatpush1.msra.mxu0 0.0
        %5594 = vmatprep.subr.mxu0 0.0
        %5595 = vmatpush1.msra.mxu0 0.0
        %5596 = vmatprep.subr.mxu0 0.0
        %5597 = vmatpush1.msra.mxu0 0.0
        %5598 = vmatprep.subr.mxu0 0.0
        %5599 = vmatpush1.msra.mxu0 0.0
        %5600 = vmatprep.subr.mxu0 0.0
        %5601 = vmatpush1.msra.mxu0 0.0
        %5602 = vmatprep.subr.mxu0 0.0
        %5603 = vmatpush1.msra.mxu0 0.0
        %5604 = vmatprep.subr.mxu0 0.0
        %5605 = vmatpush1.msra.mxu0 0.0
        %5606 = vmatprep.subr.mxu0 0.0
        %5607 = vmatpush1.msra.mxu0 0.0
        %5608 = vmatprep.subr.mxu0 0.0
        %5609 = vmatpush1.msra.mxu0 0.0
        %5610 = vmatprep.subr.mxu0 0.0
        %5611 = vmatpush1.msra.mxu0 0.0
        %v5612 = vand.u32 %v2588, 4294901760
        %v5613 = vsub.f32 %v2588, %v5612
        %5614 = vmatprep.subr.mxu0 %v5613
        %v5615 = vand.u32 %v2576, 4294901760
        %v5616 = vsub.f32 %v2576, %v5615
        %5617 = vmatpush1.msra.mxu0 %v5616
        %v5618 = vand.u32 %v2582, 4294901760
        %v5619 = vsub.f32 %v2582, %v5618
        %5620 = vmatprep.subr.mxu0 %v5619
        %v5621 = vand.u32 %v2570, 4294901760
        %v5622 = vsub.f32 %v2570, %v5621
        %5623 = vmatpush1.msra.mxu0 %v5622
        %5624 = vmatprep.subr.mxu0 0.0
        %5625 = vmatpush2.msra.mxu0 0.0
        %5626 = vmatprep.subr.mxu0 0.0
        %5627 = vmatpush2.msra.mxu0 0.0
        %5628 = vmatprep.subr.mxu0 0.0
        %5629 = vmatpush2.msra.mxu0 0.0
        %5630 = vmatprep.subr.mxu0 0.0
        %5631 = vmatpush2.msra.mxu0 0.0
        %5632 = vmatprep.subr.mxu0 0.0
        %5633 = vmatpush2.msra.mxu0 0.0
        %5634 = vmatprep.subr.mxu0 0.0
        %5635 = vmatpush2.msra.mxu0 0.0
        %5636 = vmatprep.subr.mxu0 0.0
        %5637 = vmatpush2.msra.mxu0 0.0
        %5638 = vmatprep.subr.mxu0 0.0
        %5639 = vmatpush2.msra.mxu0 0.0
        %5640 = vmatprep.subr.mxu0 0.0
        %5641 = vmatpush2.msra.mxu0 0.0
        %5642 = vmatprep.subr.mxu0 0.0
        %5643 = vmatpush2.msra.mxu0 0.0
        %5644 = vmatprep.subr.mxu0 0.0
        %5645 = vmatpush2.msra.mxu0 0.0
        %5646 = vmatprep.subr.mxu0 0.0
        %5647 = vmatpush2.msra.mxu0 0.0
        %5648 = vmatprep.subr.mxu0 0.0
        %5649 = vmatpush2.msra.mxu0 0.0
        %5650 = vmatprep.subr.mxu0 0.0
        %5651 = vmatpush2.msra.mxu0 0.0
        %5652 = vmatprep.subr.mxu0 0.0
        %5653 = vmatpush2.msra.mxu0 0.0
        %5654 = vmatprep.subr.mxu0 0.0
        %5655 = vmatpush2.msra.mxu0 0.0
        %5656 = vmatprep.mubr.f32.mxu0 0.0
        %v5657 = vand.u32 %v2689, 4294901760
        %v5658 = vsub.f32 %v2689, %v5657
        %5659 = vmatmul.mubr.f32.gmra.mxu0 %v5658
        %v5660 = vpop.f32.mrf.mxu0
        %v5661 = vadd.f32 %v5573, %v5660
        %v5662 = vpop.f32.mrf.mxu0
        %v5663 = vadd.f32 %v5575, %v5662
        %5664 = vmatprep.mubr.f32.mxu0 0.0
        %v5665 = vand.u32 %v2692, 4294901760
        %v5666 = vsub.f32 %v2692, %v5665
        %5667 = vmatmul.mubr.f32.gmra.mxu0 %v5666
        %v5668 = vpop.f32.mrf.mxu0
        %v5669 = vadd.f32 %v5580, %v5668
        %v5670 = vpop.f32.mrf.mxu0
        %v5671 = vadd.f32 %v5582, %v5670
        %5672 = vdwg.mxu0
        %5673 = vmatprep.subr.mxu0 0.0
        %5674 = vmatpush1.msra.mxu0 0.0
        %5675 = vmatprep.subr.mxu0 0.0
        %5676 = vmatpush1.msra.mxu0 0.0
        %5677 = vmatprep.subr.mxu0 0.0
        %5678 = vmatpush1.msra.mxu0 0.0
        %5679 = vmatprep.subr.mxu0 0.0
        %5680 = vmatpush1.msra.mxu0 0.0
        %5681 = vmatprep.subr.mxu0 0.0
        %5682 = vmatpush1.msra.mxu0 0.0
        %5683 = vmatprep.subr.mxu0 0.0
        %5684 = vmatpush1.msra.mxu0 0.0
        %5685 = vmatprep.subr.mxu0 0.0
        %5686 = vmatpush1.msra.mxu0 0.0
        %5687 = vmatprep.subr.mxu0 0.0
        %5688 = vmatpush1.msra.mxu0 0.0
        %5689 = vmatprep.subr.mxu0 0.0
        %5690 = vmatpush1.msra.mxu0 0.0
        %5691 = vmatprep.subr.mxu0 0.0
        %5692 = vmatpush1.msra.mxu0 0.0
        %5693 = vmatprep.subr.mxu0 0.0
        %5694 = vmatpush1.msra.mxu0 0.0
        %5695 = vmatprep.subr.mxu0 0.0
        %5696 = vmatpush1.msra.mxu0 0.0
        %5697 = vmatprep.subr.mxu0 0.0
        %5698 = vmatpush1.msra.mxu0 0.0
        %5699 = vmatprep.subr.mxu0 0.0
        %5700 = vmatpush1.msra.mxu0 0.0
        %v5701 = vand.u32 %v2588, 4294901760
        %5702 = vmatprep.subr.mxu0 %v5701
        %v5703 = vand.u32 %v2576, 4294901760
        %5704 = vmatpush1.msra.mxu0 %v5703
        %v5705 = vand.u32 %v2582, 4294901760
        %5706 = vmatprep.subr.mxu0 %v5705
        %v5707 = vand.u32 %v2570, 4294901760
        %5708 = vmatpush1.msra.mxu0 %v5707
        %5709 = vmatprep.subr.mxu0 0.0
        %5710 = vmatpush2.msra.mxu0 0.0
        %5711 = vmatprep.subr.mxu0 0.0
        %5712 = vmatpush2.msra.mxu0 0.0
        %5713 = vmatprep.subr.mxu0 0.0
        %5714 = vmatpush2.msra.mxu0 0.0
        %5715 = vmatprep.subr.mxu0 0.0
        %5716 = vmatpush2.msra.mxu0 0.0
        %5717 = vmatprep.subr.mxu0 0.0
        %5718 = vmatpush2.msra.mxu0 0.0
        %5719 = vmatprep.subr.mxu0 0.0
        %5720 = vmatpush2.msra.mxu0 0.0
        %5721 = vmatprep.subr.mxu0 0.0
        %5722 = vmatpush2.msra.mxu0 0.0
        %5723 = vmatprep.subr.mxu0 0.0
        %5724 = vmatpush2.msra.mxu0 0.0
        %5725 = vmatprep.subr.mxu0 0.0
        %5726 = vmatpush2.msra.mxu0 0.0
        %5727 = vmatprep.subr.mxu0 0.0
        %5728 = vmatpush2.msra.mxu0 0.0
        %5729 = vmatprep.subr.mxu0 0.0
        %5730 = vmatpush2.msra.mxu0 0.0
        %5731 = vmatprep.subr.mxu0 0.0
        %5732 = vmatpush2.msra.mxu0 0.0
        %5733 = vmatprep.subr.mxu0 0.0
        %5734 = vmatpush2.msra.mxu0 0.0
        %5735 = vmatprep.subr.mxu0 0.0
        %5736 = vmatpush2.msra.mxu0 0.0
        %5737 = vmatprep.subr.mxu0 0.0
        %5738 = vmatpush2.msra.mxu0 0.0
        %5739 = vmatprep.subr.mxu0 0.0
        %5740 = vmatpush2.msra.mxu0 0.0
        %5741 = vmatprep.mubr.f32.mxu0 0.0
        %v5742 = vand.u32 %v2689, 4294901760
        %v5743 = vsub.f32 %v2689, %v5742
        %v5744 = vand.u32 %v5743, 4294901760
        %5745 = vmatmul.mubr.f32.gmra.mxu0 %v5744
        %v5746 = vpop.f32.mrf.mxu0
        %v5747 = vadd.f32 %v5661, %v5746
        %v5748 = vpop.f32.mrf.mxu0
        %v5749 = vadd.f32 %v5663, %v5748
        %5750 = vmatprep.mubr.f32.mxu0 0.0
        %v5751 = vand.u32 %v2692, 4294901760
        %v5752 = vsub.f32 %v2692, %v5751
        %v5753 = vand.u32 %v5752, 4294901760
        %5754 = vmatmul.mubr.f32.gmra.mxu0 %v5753
        %v5755 = vpop.f32.mrf.mxu0
        %v5756 = vadd.f32 %v5669, %v5755
        %v5757 = vpop.f32.mrf.mxu0
        %v5758 = vadd.f32 %v5671, %v5757
        %5759 = vdwg.mxu0
        %5760 = vmatprep.subr.mxu0 0.0
        %5761 = vmatpush1.msra.mxu0 0.0
        %5762 = vmatprep.subr.mxu0 0.0
        %5763 = vmatpush1.msra.mxu0 0.0
        %5764 = vmatprep.subr.mxu0 0.0
        %5765 = vmatpush1.msra.mxu0 0.0
        %5766 = vmatprep.subr.mxu0 0.0
        %5767 = vmatpush1.msra.mxu0 0.0
        %5768 = vmatprep.subr.mxu0 0.0
        %5769 = vmatpush1.msra.mxu0 0.0
        %5770 = vmatprep.subr.mxu0 0.0
        %5771 = vmatpush1.msra.mxu0 0.0
        %5772 = vmatprep.subr.mxu0 0.0
        %5773 = vmatpush1.msra.mxu0 0.0
        %5774 = vmatprep.subr.mxu0 0.0
        %5775 = vmatpush1.msra.mxu0 0.0
        %5776 = vmatprep.subr.mxu0 0.0
        %5777 = vmatpush1.msra.mxu0 0.0
        %5778 = vmatprep.subr.mxu0 0.0
        %5779 = vmatpush1.msra.mxu0 0.0
        %5780 = vmatprep.subr.mxu0 0.0
        %5781 = vmatpush1.msra.mxu0 0.0
        %5782 = vmatprep.subr.mxu0 0.0
        %5783 = vmatpush1.msra.mxu0 0.0
        %5784 = vmatprep.subr.mxu0 0.0
        %5785 = vmatpush1.msra.mxu0 0.0
        %5786 = vmatprep.subr.mxu0 0.0
        %5787 = vmatpush1.msra.mxu0 0.0
        %v5788 = vand.u32 %v2588, 4294901760
        %v5789 = vsub.f32 %v2588, %v5788
        %v5790 = vand.u32 %v5789, 4294901760
        %5791 = vmatprep.subr.mxu0 %v5790
        %v5792 = vand.u32 %v2576, 4294901760
        %v5793 = vsub.f32 %v2576, %v5792
        %v5794 = vand.u32 %v5793, 4294901760
        %5795 = vmatpush1.msra.mxu0 %v5794
        %v5796 = vand.u32 %v2582, 4294901760
        %v5797 = vsub.f32 %v2582, %v5796
        %v5798 = vand.u32 %v5797, 4294901760
        %5799 = vmatprep.subr.mxu0 %v5798
        %v5800 = vand.u32 %v2570, 4294901760
        %v5801 = vsub.f32 %v2570, %v5800
        %v5802 = vand.u32 %v5801, 4294901760
        %5803 = vmatpush1.msra.mxu0 %v5802
        %5804 = vmatprep.subr.mxu0 0.0
        %5805 = vmatpush2.msra.mxu0 0.0
        %5806 = vmatprep.subr.mxu0 0.0
        %5807 = vmatpush2.msra.mxu0 0.0
        %5808 = vmatprep.subr.mxu0 0.0
        %5809 = vmatpush2.msra.mxu0 0.0
        %5810 = vmatprep.subr.mxu0 0.0
        %5811 = vmatpush2.msra.mxu0 0.0
        %5812 = vmatprep.subr.mxu0 0.0
        %5813 = vmatpush2.msra.mxu0 0.0
        %5814 = vmatprep.subr.mxu0 0.0
        %5815 = vmatpush2.msra.mxu0 0.0
        %5816 = vmatprep.subr.mxu0 0.0
        %5817 = vmatpush2.msra.mxu0 0.0
        %5818 = vmatprep.subr.mxu0 0.0
        %5819 = vmatpush2.msra.mxu0 0.0
        %5820 = vmatprep.subr.mxu0 0.0
        %5821 = vmatpush2.msra.mxu0 0.0
        %5822 = vmatprep.subr.mxu0 0.0
        %5823 = vmatpush2.msra.mxu0 0.0
        %5824 = vmatprep.subr.mxu0 0.0
        %5825 = vmatpush2.msra.mxu0 0.0
        %5826 = vmatprep.subr.mxu0 0.0
        %5827 = vmatpush2.msra.mxu0 0.0
        %5828 = vmatprep.subr.mxu0 0.0
        %5829 = vmatpush2.msra.mxu0 0.0
        %5830 = vmatprep.subr.mxu0 0.0
        %5831 = vmatpush2.msra.mxu0 0.0
        %5832 = vmatprep.subr.mxu0 0.0
        %5833 = vmatpush2.msra.mxu0 0.0
        %5834 = vmatprep.subr.mxu0 0.0
        %5835 = vmatpush2.msra.mxu0 0.0
        %5836 = vmatprep.mubr.f32.mxu0 0.0
        %v5837 = vand.u32 %v2689, 4294901760
        %5838 = vmatmul.mubr.f32.gmra.mxu0 %v5837
        %v5839 = vpop.f32.mrf.mxu0
        %v5840 = vadd.f32 %v5747, %v5839
        %v5841 = vpop.f32.mrf.mxu0
        %v5842 = vadd.f32 %v5749, %v5841
        %5843 = vmatprep.mubr.f32.mxu0 0.0
        %v5844 = vand.u32 %v2692, 4294901760
        %5845 = vmatmul.mubr.f32.gmra.mxu0 %v5844
        %v5846 = vpop.f32.mrf.mxu0
        %v5847 = vadd.f32 %v5756, %v5846
        %v5848 = vpop.f32.mrf.mxu0
        %v5849 = vadd.f32 %v5758, %v5848
        %5850 = vdwg.mxu0
        %5851 = vmatprep.subr.mxu0 0.0
        %5852 = vmatpush1.msra.mxu0 0.0
        %5853 = vmatprep.subr.mxu0 0.0
        %5854 = vmatpush1.msra.mxu0 0.0
        %5855 = vmatprep.subr.mxu0 0.0
        %5856 = vmatpush1.msra.mxu0 0.0
        %5857 = vmatprep.subr.mxu0 0.0
        %5858 = vmatpush1.msra.mxu0 0.0
        %5859 = vmatprep.subr.mxu0 0.0
        %5860 = vmatpush1.msra.mxu0 0.0
        %5861 = vmatprep.subr.mxu0 0.0
        %5862 = vmatpush1.msra.mxu0 0.0
        %5863 = vmatprep.subr.mxu0 0.0
        %5864 = vmatpush1.msra.mxu0 0.0
        %5865 = vmatprep.subr.mxu0 0.0
        %5866 = vmatpush1.msra.mxu0 0.0
        %5867 = vmatprep.subr.mxu0 0.0
        %5868 = vmatpush1.msra.mxu0 0.0
        %5869 = vmatprep.subr.mxu0 0.0
        %5870 = vmatpush1.msra.mxu0 0.0
        %5871 = vmatprep.subr.mxu0 0.0
        %5872 = vmatpush1.msra.mxu0 0.0
        %5873 = vmatprep.subr.mxu0 0.0
        %5874 = vmatpush1.msra.mxu0 0.0
        %5875 = vmatprep.subr.mxu0 0.0
        %5876 = vmatpush1.msra.mxu0 0.0
        %5877 = vmatprep.subr.mxu0 0.0
        %5878 = vmatpush1.msra.mxu0 0.0
        %v5879 = vand.u32 %v2588, 4294901760
        %5880 = vmatprep.subr.mxu0 %v5879
        %v5881 = vand.u32 %v2576, 4294901760
        %5882 = vmatpush1.msra.mxu0 %v5881
        %v5883 = vand.u32 %v2582, 4294901760
        %5884 = vmatprep.subr.mxu0 %v5883
        %v5885 = vand.u32 %v2570, 4294901760
        %5886 = vmatpush1.msra.mxu0 %v5885
        %5887 = vmatprep.subr.mxu0 0.0
        %5888 = vmatpush2.msra.mxu0 0.0
        %5889 = vmatprep.subr.mxu0 0.0
        %5890 = vmatpush2.msra.mxu0 0.0
        %5891 = vmatprep.subr.mxu0 0.0
        %5892 = vmatpush2.msra.mxu0 0.0
        %5893 = vmatprep.subr.mxu0 0.0
        %5894 = vmatpush2.msra.mxu0 0.0
        %5895 = vmatprep.subr.mxu0 0.0
        %5896 = vmatpush2.msra.mxu0 0.0
        %5897 = vmatprep.subr.mxu0 0.0
        %5898 = vmatpush2.msra.mxu0 0.0
        %5899 = vmatprep.subr.mxu0 0.0
        %5900 = vmatpush2.msra.mxu0 0.0
        %5901 = vmatprep.subr.mxu0 0.0
        %5902 = vmatpush2.msra.mxu0 0.0
        %5903 = vmatprep.subr.mxu0 0.0
        %5904 = vmatpush2.msra.mxu0 0.0
        %5905 = vmatprep.subr.mxu0 0.0
        %5906 = vmatpush2.msra.mxu0 0.0
        %5907 = vmatprep.subr.mxu0 0.0
        %5908 = vmatpush2.msra.mxu0 0.0
        %5909 = vmatprep.subr.mxu0 0.0
        %5910 = vmatpush2.msra.mxu0 0.0
        %5911 = vmatprep.subr.mxu0 0.0
        %5912 = vmatpush2.msra.mxu0 0.0
        %5913 = vmatprep.subr.mxu0 0.0
        %5914 = vmatpush2.msra.mxu0 0.0
        %5915 = vmatprep.subr.mxu0 0.0
        %5916 = vmatpush2.msra.mxu0 0.0
        %5917 = vmatprep.subr.mxu0 0.0
        %5918 = vmatpush2.msra.mxu0 0.0
        %5919 = vmatprep.mubr.f32.mxu0 0.0
        %v5920 = vand.u32 %v2689, 4294901760
        %5921 = vmatmul.mubr.f32.gmra.mxu0 %v5920
        %v5922 = vpop.f32.mrf.mxu0
        %v5923 = vadd.f32 %v5840, %v5922
        %v5924 = vpop.f32.mrf.mxu0
        %v5925 = vadd.f32 %v5842, %v5924
        %5926 = vmatprep.mubr.f32.mxu0 0.0
        %v5927 = vand.u32 %v2692, 4294901760
        %5928 = vmatmul.mubr.f32.gmra.mxu0 %v5927
        %v5929 = vpop.f32.mrf.mxu0
        %v5930 = vadd.f32 %v5847, %v5929
        %v5931 = vpop.f32.mrf.mxu0
        %v5932 = vadd.f32 %v5849, %v5931
        %5933 = vdwg.mxu0
        %5934 = vmatprep.subr.mxu0 0.0
        %5935 = vmatpush1.msra.mxu0 0.0
        %5936 = vmatprep.subr.mxu0 0.0
        %5937 = vmatpush1.msra.mxu0 0.0
        %5938 = vmatprep.subr.mxu0 0.0
        %5939 = vmatpush1.msra.mxu0 0.0
        %5940 = vmatprep.subr.mxu0 0.0
        %5941 = vmatpush1.msra.mxu0 0.0
        %5942 = vmatprep.subr.mxu0 0.0
        %5943 = vmatpush1.msra.mxu0 0.0
        %5944 = vmatprep.subr.mxu0 0.0
        %5945 = vmatpush1.msra.mxu0 0.0
        %5946 = vmatprep.subr.mxu0 0.0
        %5947 = vmatpush1.msra.mxu0 0.0
        %5948 = vmatprep.subr.mxu0 0.0
        %5949 = vmatpush1.msra.mxu0 0.0
        %5950 = vmatprep.subr.mxu0 0.0
        %5951 = vmatpush1.msra.mxu0 0.0
        %5952 = vmatprep.subr.mxu0 0.0
        %5953 = vmatpush1.msra.mxu0 0.0
        %5954 = vmatprep.subr.mxu0 0.0
        %5955 = vmatpush1.msra.mxu0 0.0
        %5956 = vmatprep.subr.mxu0 0.0
        %5957 = vmatpush1.msra.mxu0 0.0
        %5958 = vmatprep.subr.mxu0 0.0
        %5959 = vmatpush1.msra.mxu0 0.0
        %5960 = vmatprep.subr.mxu0 0.0
        %5961 = vmatpush1.msra.mxu0 0.0
        %v5962 = vand.u32 %v2612, 4294901760
        %5963 = vmatprep.subr.mxu0 %v5962
        %v5964 = vand.u32 %v2600, 4294901760
        %5965 = vmatpush1.msra.mxu0 %v5964
        %v5966 = vand.u32 %v2606, 4294901760
        %5967 = vmatprep.subr.mxu0 %v5966
        %v5968 = vand.u32 %v2594, 4294901760
        %5969 = vmatpush1.msra.mxu0 %v5968
        %5970 = vmatprep.subr.mxu0 0.0
        %5971 = vmatpush2.msra.mxu0 0.0
        %5972 = vmatprep.subr.mxu0 0.0
        %5973 = vmatpush2.msra.mxu0 0.0
        %5974 = vmatprep.subr.mxu0 0.0
        %5975 = vmatpush2.msra.mxu0 0.0
        %5976 = vmatprep.subr.mxu0 0.0
        %5977 = vmatpush2.msra.mxu0 0.0
        %5978 = vmatprep.subr.mxu0 0.0
        %5979 = vmatpush2.msra.mxu0 0.0
        %5980 = vmatprep.subr.mxu0 0.0
        %5981 = vmatpush2.msra.mxu0 0.0
        %5982 = vmatprep.subr.mxu0 0.0
        %5983 = vmatpush2.msra.mxu0 0.0
        %5984 = vmatprep.subr.mxu0 0.0
        %5985 = vmatpush2.msra.mxu0 0.0
        %5986 = vmatprep.subr.mxu0 0.0
        %5987 = vmatpush2.msra.mxu0 0.0
        %5988 = vmatprep.subr.mxu0 0.0
        %5989 = vmatpush2.msra.mxu0 0.0
        %5990 = vmatprep.subr.mxu0 0.0
        %5991 = vmatpush2.msra.mxu0 0.0
        %5992 = vmatprep.subr.mxu0 0.0
        %5993 = vmatpush2.msra.mxu0 0.0
        %5994 = vmatprep.subr.mxu0 0.0
        %5995 = vmatpush2.msra.mxu0 0.0
        %5996 = vmatprep.subr.mxu0 0.0
        %5997 = vmatpush2.msra.mxu0 0.0
        %5998 = vmatprep.subr.mxu0 0.0
        %5999 = vmatpush2.msra.mxu0 0.0
        %6000 = vmatprep.subr.mxu0 0.0
        %6001 = vmatpush2.msra.mxu0 0.0
        %6002 = vmatprep.mubr.f32.mxu0 0.0
        %v6003 = vand.u32 %v2689, 4294901760
        %v6004 = vsub.f32 %v2689, %v6003
        %v6005 = vand.u32 %v6004, 4294901760
        %v6006 = vsub.f32 %v6004, %v6005
        %v6007 = vand.u32 %v6006, 4294901760
        %6008 = vmatmul.mubr.f32.gmra.mxu0 %v6007
        %v6009 = vpop.f32.mrf.mxu0
        %v6010 = vadd.f32 0.0, %v6009
        %v6011 = vpop.f32.mrf.mxu0
        %v6012 = vadd.f32 0.0, %v6011
        %6013 = vmatprep.mubr.f32.mxu0 0.0
        %v6014 = vand.u32 %v2692, 4294901760
        %v6015 = vsub.f32 %v2692, %v6014
        %v6016 = vand.u32 %v6015, 4294901760
        %v6017 = vsub.f32 %v6015, %v6016
        %v6018 = vand.u32 %v6017, 4294901760
        %6019 = vmatmul.mubr.f32.gmra.mxu0 %v6018
        %v6020 = vpop.f32.mrf.mxu0
        %v6021 = vadd.f32 0.0, %v6020
        %v6022 = vpop.f32.mrf.mxu0
        %v6023 = vadd.f32 0.0, %v6022
        %6024 = vdwg.mxu0
        %6025 = vmatprep.subr.mxu0 0.0
        %6026 = vmatpush1.msra.mxu0 0.0
        %6027 = vmatprep.subr.mxu0 0.0
        %6028 = vmatpush1.msra.mxu0 0.0
        %6029 = vmatprep.subr.mxu0 0.0
        %6030 = vmatpush1.msra.mxu0 0.0
        %6031 = vmatprep.subr.mxu0 0.0
        %6032 = vmatpush1.msra.mxu0 0.0
        %6033 = vmatprep.subr.mxu0 0.0
        %6034 = vmatpush1.msra.mxu0 0.0
        %6035 = vmatprep.subr.mxu0 0.0
        %6036 = vmatpush1.msra.mxu0 0.0
        %6037 = vmatprep.subr.mxu0 0.0
        %6038 = vmatpush1.msra.mxu0 0.0
        %6039 = vmatprep.subr.mxu0 0.0
        %6040 = vmatpush1.msra.mxu0 0.0
        %6041 = vmatprep.subr.mxu0 0.0
        %6042 = vmatpush1.msra.mxu0 0.0
        %6043 = vmatprep.subr.mxu0 0.0
        %6044 = vmatpush1.msra.mxu0 0.0
        %6045 = vmatprep.subr.mxu0 0.0
        %6046 = vmatpush1.msra.mxu0 0.0
        %6047 = vmatprep.subr.mxu0 0.0
        %6048 = vmatpush1.msra.mxu0 0.0
        %6049 = vmatprep.subr.mxu0 0.0
        %6050 = vmatpush1.msra.mxu0 0.0
        %6051 = vmatprep.subr.mxu0 0.0
        %6052 = vmatpush1.msra.mxu0 0.0
        %v6053 = vand.u32 %v2612, 4294901760
        %v6054 = vsub.f32 %v2612, %v6053
        %v6055 = vand.u32 %v6054, 4294901760
        %v6056 = vsub.f32 %v6054, %v6055
        %v6057 = vand.u32 %v6056, 4294901760
        %6058 = vmatprep.subr.mxu0 %v6057
        %v6059 = vand.u32 %v2600, 4294901760
        %v6060 = vsub.f32 %v2600, %v6059
        %v6061 = vand.u32 %v6060, 4294901760
        %v6062 = vsub.f32 %v6060, %v6061
        %v6063 = vand.u32 %v6062, 4294901760
        %6064 = vmatpush1.msra.mxu0 %v6063
        %v6065 = vand.u32 %v2606, 4294901760
        %v6066 = vsub.f32 %v2606, %v6065
        %v6067 = vand.u32 %v6066, 4294901760
        %v6068 = vsub.f32 %v6066, %v6067
        %v6069 = vand.u32 %v6068, 4294901760
        %6070 = vmatprep.subr.mxu0 %v6069
        %v6071 = vand.u32 %v2594, 4294901760
        %v6072 = vsub.f32 %v2594, %v6071
        %v6073 = vand.u32 %v6072, 4294901760
        %v6074 = vsub.f32 %v6072, %v6073
        %v6075 = vand.u32 %v6074, 4294901760
        %6076 = vmatpush1.msra.mxu0 %v6075
        %6077 = vmatprep.subr.mxu0 0.0
        %6078 = vmatpush2.msra.mxu0 0.0
        %6079 = vmatprep.subr.mxu0 0.0
        %6080 = vmatpush2.msra.mxu0 0.0
        %6081 = vmatprep.subr.mxu0 0.0
        %6082 = vmatpush2.msra.mxu0 0.0
        %6083 = vmatprep.subr.mxu0 0.0
        %6084 = vmatpush2.msra.mxu0 0.0
        %6085 = vmatprep.subr.mxu0 0.0
        %6086 = vmatpush2.msra.mxu0 0.0
        %6087 = vmatprep.subr.mxu0 0.0
        %6088 = vmatpush2.msra.mxu0 0.0
        %6089 = vmatprep.subr.mxu0 0.0
        %6090 = vmatpush2.msra.mxu0 0.0
        %6091 = vmatprep.subr.mxu0 0.0
        %6092 = vmatpush2.msra.mxu0 0.0
        %6093 = vmatprep.subr.mxu0 0.0
        %6094 = vmatpush2.msra.mxu0 0.0
        %6095 = vmatprep.subr.mxu0 0.0
        %6096 = vmatpush2.msra.mxu0 0.0
        %6097 = vmatprep.subr.mxu0 0.0
        %6098 = vmatpush2.msra.mxu0 0.0
        %6099 = vmatprep.subr.mxu0 0.0
        %6100 = vmatpush2.msra.mxu0 0.0
        %6101 = vmatprep.subr.mxu0 0.0
        %6102 = vmatpush2.msra.mxu0 0.0
        %6103 = vmatprep.subr.mxu0 0.0
        %6104 = vmatpush2.msra.mxu0 0.0
        %6105 = vmatprep.subr.mxu0 0.0
        %6106 = vmatpush2.msra.mxu0 0.0
        %6107 = vmatprep.subr.mxu0 0.0
        %6108 = vmatpush2.msra.mxu0 0.0
        %6109 = vmatprep.mubr.f32.mxu0 0.0
        %v6110 = vand.u32 %v2689, 4294901760
        %6111 = vmatmul.mubr.f32.gmra.mxu0 %v6110
        %v6112 = vpop.f32.mrf.mxu0
        %v6113 = vadd.f32 %v6010, %v6112
        %v6114 = vpop.f32.mrf.mxu0
        %v6115 = vadd.f32 %v6012, %v6114
        %6116 = vmatprep.mubr.f32.mxu0 0.0
        %v6117 = vand.u32 %v2692, 4294901760
        %6118 = vmatmul.mubr.f32.gmra.mxu0 %v6117
        %v6119 = vpop.f32.mrf.mxu0
        %v6120 = vadd.f32 %v6021, %v6119
        %v6121 = vpop.f32.mrf.mxu0
        %v6122 = vadd.f32 %v6023, %v6121
        %6123 = vdwg.mxu0
        %6124 = vmatprep.subr.mxu0 0.0
        %6125 = vmatpush1.msra.mxu0 0.0
        %6126 = vmatprep.subr.mxu0 0.0
        %6127 = vmatpush1.msra.mxu0 0.0
        %6128 = vmatprep.subr.mxu0 0.0
        %6129 = vmatpush1.msra.mxu0 0.0
        %6130 = vmatprep.subr.mxu0 0.0
        %6131 = vmatpush1.msra.mxu0 0.0
        %6132 = vmatprep.subr.mxu0 0.0
        %6133 = vmatpush1.msra.mxu0 0.0
        %6134 = vmatprep.subr.mxu0 0.0
        %6135 = vmatpush1.msra.mxu0 0.0
        %6136 = vmatprep.subr.mxu0 0.0
        %6137 = vmatpush1.msra.mxu0 0.0
        %6138 = vmatprep.subr.mxu0 0.0
        %6139 = vmatpush1.msra.mxu0 0.0
        %6140 = vmatprep.subr.mxu0 0.0
        %6141 = vmatpush1.msra.mxu0 0.0
        %6142 = vmatprep.subr.mxu0 0.0
        %6143 = vmatpush1.msra.mxu0 0.0
        %6144 = vmatprep.subr.mxu0 0.0
        %6145 = vmatpush1.msra.mxu0 0.0
        %6146 = vmatprep.subr.mxu0 0.0
        %6147 = vmatpush1.msra.mxu0 0.0
        %6148 = vmatprep.subr.mxu0 0.0
        %6149 = vmatpush1.msra.mxu0 0.0
        %6150 = vmatprep.subr.mxu0 0.0
        %6151 = vmatpush1.msra.mxu0 0.0
        %v6152 = vand.u32 %v2612, 4294901760
        %v6153 = vsub.f32 %v2612, %v6152
        %6154 = vmatprep.subr.mxu0 %v6153
        %v6155 = vand.u32 %v2600, 4294901760
        %v6156 = vsub.f32 %v2600, %v6155
        %6157 = vmatpush1.msra.mxu0 %v6156
        %v6158 = vand.u32 %v2606, 4294901760
        %v6159 = vsub.f32 %v2606, %v6158
        %6160 = vmatprep.subr.mxu0 %v6159
        %v6161 = vand.u32 %v2594, 4294901760
        %v6162 = vsub.f32 %v2594, %v6161
        %6163 = vmatpush1.msra.mxu0 %v6162
        %6164 = vmatprep.subr.mxu0 0.0
        %6165 = vmatpush2.msra.mxu0 0.0
        %6166 = vmatprep.subr.mxu0 0.0
        %6167 = vmatpush2.msra.mxu0 0.0
        %6168 = vmatprep.subr.mxu0 0.0
        %6169 = vmatpush2.msra.mxu0 0.0
        %6170 = vmatprep.subr.mxu0 0.0
        %6171 = vmatpush2.msra.mxu0 0.0
        %6172 = vmatprep.subr.mxu0 0.0
        %6173 = vmatpush2.msra.mxu0 0.0
        %6174 = vmatprep.subr.mxu0 0.0
        %6175 = vmatpush2.msra.mxu0 0.0
        %6176 = vmatprep.subr.mxu0 0.0
        %6177 = vmatpush2.msra.mxu0 0.0
        %6178 = vmatprep.subr.mxu0 0.0
        %6179 = vmatpush2.msra.mxu0 0.0
        %6180 = vmatprep.subr.mxu0 0.0
        %6181 = vmatpush2.msra.mxu0 0.0
        %6182 = vmatprep.subr.mxu0 0.0
        %6183 = vmatpush2.msra.mxu0 0.0
        %6184 = vmatprep.subr.mxu0 0.0
        %6185 = vmatpush2.msra.mxu0 0.0
        %6186 = vmatprep.subr.mxu0 0.0
        %6187 = vmatpush2.msra.mxu0 0.0
        %6188 = vmatprep.subr.mxu0 0.0
        %6189 = vmatpush2.msra.mxu0 0.0
        %6190 = vmatprep.subr.mxu0 0.0
        %6191 = vmatpush2.msra.mxu0 0.0
        %6192 = vmatprep.subr.mxu0 0.0
        %6193 = vmatpush2.msra.mxu0 0.0
        %6194 = vmatprep.subr.mxu0 0.0
        %6195 = vmatpush2.msra.mxu0 0.0
        %6196 = vmatprep.mubr.f32.mxu0 0.0
        %v6197 = vand.u32 %v2689, 4294901760
        %v6198 = vsub.f32 %v2689, %v6197
        %6199 = vmatmul.mubr.f32.gmra.mxu0 %v6198
        %v6200 = vpop.f32.mrf.mxu0
        %v6201 = vadd.f32 %v6113, %v6200
        %v6202 = vpop.f32.mrf.mxu0
        %v6203 = vadd.f32 %v6115, %v6202
        %6204 = vmatprep.mubr.f32.mxu0 0.0
        %v6205 = vand.u32 %v2692, 4294901760
        %v6206 = vsub.f32 %v2692, %v6205
        %6207 = vmatmul.mubr.f32.gmra.mxu0 %v6206
        %v6208 = vpop.f32.mrf.mxu0
        %v6209 = vadd.f32 %v6120, %v6208
        %v6210 = vpop.f32.mrf.mxu0
        %v6211 = vadd.f32 %v6122, %v6210
        %6212 = vdwg.mxu0
        %6213 = vmatprep.subr.mxu0 0.0
        %6214 = vmatpush1.msra.mxu0 0.0
        %6215 = vmatprep.subr.mxu0 0.0
        %6216 = vmatpush1.msra.mxu0 0.0
        %6217 = vmatprep.subr.mxu0 0.0
        %6218 = vmatpush1.msra.mxu0 0.0
        %6219 = vmatprep.subr.mxu0 0.0
        %6220 = vmatpush1.msra.mxu0 0.0
        %6221 = vmatprep.subr.mxu0 0.0
        %6222 = vmatpush1.msra.mxu0 0.0
        %6223 = vmatprep.subr.mxu0 0.0
        %6224 = vmatpush1.msra.mxu0 0.0
        %6225 = vmatprep.subr.mxu0 0.0
        %6226 = vmatpush1.msra.mxu0 0.0
        %6227 = vmatprep.subr.mxu0 0.0
        %6228 = vmatpush1.msra.mxu0 0.0
        %6229 = vmatprep.subr.mxu0 0.0
        %6230 = vmatpush1.msra.mxu0 0.0
        %6231 = vmatprep.subr.mxu0 0.0
        %6232 = vmatpush1.msra.mxu0 0.0
        %6233 = vmatprep.subr.mxu0 0.0
        %6234 = vmatpush1.msra.mxu0 0.0
        %6235 = vmatprep.subr.mxu0 0.0
        %6236 = vmatpush1.msra.mxu0 0.0
        %6237 = vmatprep.subr.mxu0 0.0
        %6238 = vmatpush1.msra.mxu0 0.0
        %6239 = vmatprep.subr.mxu0 0.0
        %6240 = vmatpush1.msra.mxu0 0.0
        %v6241 = vand.u32 %v2612, 4294901760
        %6242 = vmatprep.subr.mxu0 %v6241
        %v6243 = vand.u32 %v2600, 4294901760
        %6244 = vmatpush1.msra.mxu0 %v6243
        %v6245 = vand.u32 %v2606, 4294901760
        %6246 = vmatprep.subr.mxu0 %v6245
        %v6247 = vand.u32 %v2594, 4294901760
        %6248 = vmatpush1.msra.mxu0 %v6247
        %6249 = vmatprep.subr.mxu0 0.0
        %6250 = vmatpush2.msra.mxu0 0.0
        %6251 = vmatprep.subr.mxu0 0.0
        %6252 = vmatpush2.msra.mxu0 0.0
        %6253 = vmatprep.subr.mxu0 0.0
        %6254 = vmatpush2.msra.mxu0 0.0
        %6255 = vmatprep.subr.mxu0 0.0
        %6256 = vmatpush2.msra.mxu0 0.0
        %6257 = vmatprep.subr.mxu0 0.0
        %6258 = vmatpush2.msra.mxu0 0.0
        %6259 = vmatprep.subr.mxu0 0.0
        %6260 = vmatpush2.msra.mxu0 0.0
        %6261 = vmatprep.subr.mxu0 0.0
        %6262 = vmatpush2.msra.mxu0 0.0
        %6263 = vmatprep.subr.mxu0 0.0
        %6264 = vmatpush2.msra.mxu0 0.0
        %6265 = vmatprep.subr.mxu0 0.0
        %6266 = vmatpush2.msra.mxu0 0.0
        %6267 = vmatprep.subr.mxu0 0.0
        %6268 = vmatpush2.msra.mxu0 0.0
        %6269 = vmatprep.subr.mxu0 0.0
        %6270 = vmatpush2.msra.mxu0 0.0
        %6271 = vmatprep.subr.mxu0 0.0
        %6272 = vmatpush2.msra.mxu0 0.0
        %6273 = vmatprep.subr.mxu0 0.0
        %6274 = vmatpush2.msra.mxu0 0.0
        %6275 = vmatprep.subr.mxu0 0.0
        %6276 = vmatpush2.msra.mxu0 0.0
        %6277 = vmatprep.subr.mxu0 0.0
        %6278 = vmatpush2.msra.mxu0 0.0
        %6279 = vmatprep.subr.mxu0 0.0
        %6280 = vmatpush2.msra.mxu0 0.0
        %6281 = vmatprep.mubr.f32.mxu0 0.0
        %v6282 = vand.u32 %v2689, 4294901760
        %v6283 = vsub.f32 %v2689, %v6282
        %v6284 = vand.u32 %v6283, 4294901760
        %6285 = vmatmul.mubr.f32.gmra.mxu0 %v6284
        %v6286 = vpop.f32.mrf.mxu0
        %v6287 = vadd.f32 %v6201, %v6286
        %v6288 = vpop.f32.mrf.mxu0
        %v6289 = vadd.f32 %v6203, %v6288
        %6290 = vmatprep.mubr.f32.mxu0 0.0
        %v6291 = vand.u32 %v2692, 4294901760
        %v6292 = vsub.f32 %v2692, %v6291
        %v6293 = vand.u32 %v6292, 4294901760
        %6294 = vmatmul.mubr.f32.gmra.mxu0 %v6293
        %v6295 = vpop.f32.mrf.mxu0
        %v6296 = vadd.f32 %v6209, %v6295
        %v6297 = vpop.f32.mrf.mxu0
        %v6298 = vadd.f32 %v6211, %v6297
        %6299 = vdwg.mxu0
        %6300 = vmatprep.subr.mxu0 0.0
        %6301 = vmatpush1.msra.mxu0 0.0
        %6302 = vmatprep.subr.mxu0 0.0
        %6303 = vmatpush1.msra.mxu0 0.0
        %6304 = vmatprep.subr.mxu0 0.0
        %6305 = vmatpush1.msra.mxu0 0.0
        %6306 = vmatprep.subr.mxu0 0.0
        %6307 = vmatpush1.msra.mxu0 0.0
        %6308 = vmatprep.subr.mxu0 0.0
        %6309 = vmatpush1.msra.mxu0 0.0
        %6310 = vmatprep.subr.mxu0 0.0
        %6311 = vmatpush1.msra.mxu0 0.0
        %6312 = vmatprep.subr.mxu0 0.0
        %6313 = vmatpush1.msra.mxu0 0.0
        %6314 = vmatprep.subr.mxu0 0.0
        %6315 = vmatpush1.msra.mxu0 0.0
        %6316 = vmatprep.subr.mxu0 0.0
        %6317 = vmatpush1.msra.mxu0 0.0
        %6318 = vmatprep.subr.mxu0 0.0
        %6319 = vmatpush1.msra.mxu0 0.0
        %6320 = vmatprep.subr.mxu0 0.0
        %6321 = vmatpush1.msra.mxu0 0.0
        %6322 = vmatprep.subr.mxu0 0.0
        %6323 = vmatpush1.msra.mxu0 0.0
        %6324 = vmatprep.subr.mxu0 0.0
        %6325 = vmatpush1.msra.mxu0 0.0
        %6326 = vmatprep.subr.mxu0 0.0
        %6327 = vmatpush1.msra.mxu0 0.0
        %v6328 = vand.u32 %v2612, 4294901760
        %v6329 = vsub.f32 %v2612, %v6328
        %v6330 = vand.u32 %v6329, 4294901760
        %6331 = vmatprep.subr.mxu0 %v6330
        %v6332 = vand.u32 %v2600, 4294901760
        %v6333 = vsub.f32 %v2600, %v6332
        %v6334 = vand.u32 %v6333, 4294901760
        %6335 = vmatpush1.msra.mxu0 %v6334
        %v6336 = vand.u32 %v2606, 4294901760
        %v6337 = vsub.f32 %v2606, %v6336
        %v6338 = vand.u32 %v6337, 4294901760
        %6339 = vmatprep.subr.mxu0 %v6338
        %v6340 = vand.u32 %v2594, 4294901760
        %v6341 = vsub.f32 %v2594, %v6340
        %v6342 = vand.u32 %v6341, 4294901760
        %6343 = vmatpush1.msra.mxu0 %v6342
        %6344 = vmatprep.subr.mxu0 0.0
        %6345 = vmatpush2.msra.mxu0 0.0
        %6346 = vmatprep.subr.mxu0 0.0
        %6347 = vmatpush2.msra.mxu0 0.0
        %6348 = vmatprep.subr.mxu0 0.0
        %6349 = vmatpush2.msra.mxu0 0.0
        %6350 = vmatprep.subr.mxu0 0.0
        %6351 = vmatpush2.msra.mxu0 0.0
        %6352 = vmatprep.subr.mxu0 0.0
        %6353 = vmatpush2.msra.mxu0 0.0
        %6354 = vmatprep.subr.mxu0 0.0
        %6355 = vmatpush2.msra.mxu0 0.0
        %6356 = vmatprep.subr.mxu0 0.0
        %6357 = vmatpush2.msra.mxu0 0.0
        %6358 = vmatprep.subr.mxu0 0.0
        %6359 = vmatpush2.msra.mxu0 0.0
        %6360 = vmatprep.subr.mxu0 0.0
        %6361 = vmatpush2.msra.mxu0 0.0
        %6362 = vmatprep.subr.mxu0 0.0
        %6363 = vmatpush2.msra.mxu0 0.0
        %6364 = vmatprep.subr.mxu0 0.0
        %6365 = vmatpush2.msra.mxu0 0.0
        %6366 = vmatprep.subr.mxu0 0.0
        %6367 = vmatpush2.msra.mxu0 0.0
        %6368 = vmatprep.subr.mxu0 0.0
        %6369 = vmatpush2.msra.mxu0 0.0
        %6370 = vmatprep.subr.mxu0 0.0
        %6371 = vmatpush2.msra.mxu0 0.0
        %6372 = vmatprep.subr.mxu0 0.0
        %6373 = vmatpush2.msra.mxu0 0.0
        %6374 = vmatprep.subr.mxu0 0.0
        %6375 = vmatpush2.msra.mxu0 0.0
        %6376 = vmatprep.mubr.f32.mxu0 0.0
        %v6377 = vand.u32 %v2689, 4294901760
        %6378 = vmatmul.mubr.f32.gmra.mxu0 %v6377
        %v6379 = vpop.f32.mrf.mxu0
        %v6380 = vadd.f32 %v6287, %v6379
        %v6381 = vpop.f32.mrf.mxu0
        %v6382 = vadd.f32 %v6289, %v6381
        %6383 = vmatprep.mubr.f32.mxu0 0.0
        %v6384 = vand.u32 %v2692, 4294901760
        %6385 = vmatmul.mubr.f32.gmra.mxu0 %v6384
        %v6386 = vpop.f32.mrf.mxu0
        %v6387 = vadd.f32 %v6296, %v6386
        %v6388 = vpop.f32.mrf.mxu0
        %v6389 = vadd.f32 %v6298, %v6388
        %6390 = vdwg.mxu0
        %6391 = vmatprep.subr.mxu0 0.0
        %6392 = vmatpush1.msra.mxu0 0.0
        %6393 = vmatprep.subr.mxu0 0.0
        %6394 = vmatpush1.msra.mxu0 0.0
        %6395 = vmatprep.subr.mxu0 0.0
        %6396 = vmatpush1.msra.mxu0 0.0
        %6397 = vmatprep.subr.mxu0 0.0
        %6398 = vmatpush1.msra.mxu0 0.0
        %6399 = vmatprep.subr.mxu0 0.0
        %6400 = vmatpush1.msra.mxu0 0.0
        %6401 = vmatprep.subr.mxu0 0.0
        %6402 = vmatpush1.msra.mxu0 0.0
        %6403 = vmatprep.subr.mxu0 0.0
        %6404 = vmatpush1.msra.mxu0 0.0
        %6405 = vmatprep.subr.mxu0 0.0
        %6406 = vmatpush1.msra.mxu0 0.0
        %6407 = vmatprep.subr.mxu0 0.0
        %6408 = vmatpush1.msra.mxu0 0.0
        %6409 = vmatprep.subr.mxu0 0.0
        %6410 = vmatpush1.msra.mxu0 0.0
        %6411 = vmatprep.subr.mxu0 0.0
        %6412 = vmatpush1.msra.mxu0 0.0
        %6413 = vmatprep.subr.mxu0 0.0
        %6414 = vmatpush1.msra.mxu0 0.0
        %6415 = vmatprep.subr.mxu0 0.0
        %6416 = vmatpush1.msra.mxu0 0.0
        %6417 = vmatprep.subr.mxu0 0.0
        %6418 = vmatpush1.msra.mxu0 0.0
        %v6419 = vand.u32 %v2612, 4294901760
        %6420 = vmatprep.subr.mxu0 %v6419
        %v6421 = vand.u32 %v2600, 4294901760
        %6422 = vmatpush1.msra.mxu0 %v6421
        %v6423 = vand.u32 %v2606, 4294901760
        %6424 = vmatprep.subr.mxu0 %v6423
        %v6425 = vand.u32 %v2594, 4294901760
        %6426 = vmatpush1.msra.mxu0 %v6425
        %6427 = vmatprep.subr.mxu0 0.0
        %6428 = vmatpush2.msra.mxu0 0.0
        %6429 = vmatprep.subr.mxu0 0.0
        %6430 = vmatpush2.msra.mxu0 0.0
        %6431 = vmatprep.subr.mxu0 0.0
        %6432 = vmatpush2.msra.mxu0 0.0
        %6433 = vmatprep.subr.mxu0 0.0
        %6434 = vmatpush2.msra.mxu0 0.0
        %6435 = vmatprep.subr.mxu0 0.0
        %6436 = vmatpush2.msra.mxu0 0.0
        %6437 = vmatprep.subr.mxu0 0.0
        %6438 = vmatpush2.msra.mxu0 0.0
        %6439 = vmatprep.subr.mxu0 0.0
        %6440 = vmatpush2.msra.mxu0 0.0
        %6441 = vmatprep.subr.mxu0 0.0
        %6442 = vmatpush2.msra.mxu0 0.0
        %6443 = vmatprep.subr.mxu0 0.0
        %6444 = vmatpush2.msra.mxu0 0.0
        %6445 = vmatprep.subr.mxu0 0.0
        %6446 = vmatpush2.msra.mxu0 0.0
        %6447 = vmatprep.subr.mxu0 0.0
        %6448 = vmatpush2.msra.mxu0 0.0
        %6449 = vmatprep.subr.mxu0 0.0
        %6450 = vmatpush2.msra.mxu0 0.0
        %6451 = vmatprep.subr.mxu0 0.0
        %6452 = vmatpush2.msra.mxu0 0.0
        %6453 = vmatprep.subr.mxu0 0.0
        %6454 = vmatpush2.msra.mxu0 0.0
        %6455 = vmatprep.subr.mxu0 0.0
        %6456 = vmatpush2.msra.mxu0 0.0
        %6457 = vmatprep.subr.mxu0 0.0
        %6458 = vmatpush2.msra.mxu0 0.0
        %6459 = vmatprep.mubr.f32.mxu0 0.0
        %v6460 = vand.u32 %v2689, 4294901760
        %6461 = vmatmul.mubr.f32.gmra.mxu0 %v6460
        %v6462 = vpop.f32.mrf.mxu0
        %v6463 = vadd.f32 %v6380, %v6462
        %v6464 = vpop.f32.mrf.mxu0
        %v6465 = vadd.f32 %v6382, %v6464
        %6466 = vmatprep.mubr.f32.mxu0 0.0
        %v6467 = vand.u32 %v2692, 4294901760
        %6468 = vmatmul.mubr.f32.gmra.mxu0 %v6467
        %v6469 = vpop.f32.mrf.mxu0
        %v6470 = vadd.f32 %v6387, %v6469
        %v6471 = vpop.f32.mrf.mxu0
        %v6472 = vadd.f32 %v6389, %v6471
        %6473 = vdwg.mxu0
        %6474 = vmatprep.subr.mxu0 0.0
        %6475 = vmatpush1.msra.mxu0 0.0
        %6476 = vmatprep.subr.mxu0 0.0
        %6477 = vmatpush1.msra.mxu0 0.0
        %6478 = vmatprep.subr.mxu0 0.0
        %6479 = vmatpush1.msra.mxu0 0.0
        %6480 = vmatprep.subr.mxu0 0.0
        %6481 = vmatpush1.msra.mxu0 0.0
        %6482 = vmatprep.subr.mxu0 0.0
        %6483 = vmatpush1.msra.mxu0 0.0
        %6484 = vmatprep.subr.mxu0 0.0
        %6485 = vmatpush1.msra.mxu0 0.0
        %6486 = vmatprep.subr.mxu0 0.0
        %6487 = vmatpush1.msra.mxu0 0.0
        %6488 = vmatprep.subr.mxu0 0.0
        %6489 = vmatpush1.msra.mxu0 0.0
        %6490 = vmatprep.subr.mxu0 0.0
        %6491 = vmatpush1.msra.mxu0 0.0
        %6492 = vmatprep.subr.mxu0 0.0
        %6493 = vmatpush1.msra.mxu0 0.0
        %6494 = vmatprep.subr.mxu0 0.0
        %6495 = vmatpush1.msra.mxu0 0.0
        %6496 = vmatprep.subr.mxu0 0.0
        %6497 = vmatpush1.msra.mxu0 0.0
        %6498 = vmatprep.subr.mxu0 0.0
        %6499 = vmatpush1.msra.mxu0 0.0
        %6500 = vmatprep.subr.mxu0 0.0
        %6501 = vmatpush1.msra.mxu0 0.0
        %v6502 = vand.u32 %v2636, 4294901760
        %6503 = vmatprep.subr.mxu0 %v6502
        %v6504 = vand.u32 %v2624, 4294901760
        %6505 = vmatpush1.msra.mxu0 %v6504
        %v6506 = vand.u32 %v2630, 4294901760
        %6507 = vmatprep.subr.mxu0 %v6506
        %v6508 = vand.u32 %v2618, 4294901760
        %6509 = vmatpush1.msra.mxu0 %v6508
        %6510 = vmatprep.subr.mxu0 0.0
        %6511 = vmatpush2.msra.mxu0 0.0
        %6512 = vmatprep.subr.mxu0 0.0
        %6513 = vmatpush2.msra.mxu0 0.0
        %6514 = vmatprep.subr.mxu0 0.0
        %6515 = vmatpush2.msra.mxu0 0.0
        %6516 = vmatprep.subr.mxu0 0.0
        %6517 = vmatpush2.msra.mxu0 0.0
        %6518 = vmatprep.subr.mxu0 0.0
        %6519 = vmatpush2.msra.mxu0 0.0
        %6520 = vmatprep.subr.mxu0 0.0
        %6521 = vmatpush2.msra.mxu0 0.0
        %6522 = vmatprep.subr.mxu0 0.0
        %6523 = vmatpush2.msra.mxu0 0.0
        %6524 = vmatprep.subr.mxu0 0.0
        %6525 = vmatpush2.msra.mxu0 0.0
        %6526 = vmatprep.subr.mxu0 0.0
        %6527 = vmatpush2.msra.mxu0 0.0
        %6528 = vmatprep.subr.mxu0 0.0
        %6529 = vmatpush2.msra.mxu0 0.0
        %6530 = vmatprep.subr.mxu0 0.0
        %6531 = vmatpush2.msra.mxu0 0.0
        %6532 = vmatprep.subr.mxu0 0.0
        %6533 = vmatpush2.msra.mxu0 0.0
        %6534 = vmatprep.subr.mxu0 0.0
        %6535 = vmatpush2.msra.mxu0 0.0
        %6536 = vmatprep.subr.mxu0 0.0
        %6537 = vmatpush2.msra.mxu0 0.0
        %6538 = vmatprep.subr.mxu0 0.0
        %6539 = vmatpush2.msra.mxu0 0.0
        %6540 = vmatprep.subr.mxu0 0.0
        %6541 = vmatpush2.msra.mxu0 0.0
        %6542 = vmatprep.mubr.f32.mxu0 0.0
        %v6543 = vand.u32 %v2689, 4294901760
        %v6544 = vsub.f32 %v2689, %v6543
        %v6545 = vand.u32 %v6544, 4294901760
        %v6546 = vsub.f32 %v6544, %v6545
        %v6547 = vand.u32 %v6546, 4294901760
        %6548 = vmatmul.mubr.f32.gmra.mxu0 %v6547
        %v6549 = vpop.f32.mrf.mxu0
        %v6550 = vadd.f32 0.0, %v6549
        %v6551 = vpop.f32.mrf.mxu0
        %v6552 = vadd.f32 0.0, %v6551
        %6553 = vmatprep.mubr.f32.mxu0 0.0
        %v6554 = vand.u32 %v2692, 4294901760
        %v6555 = vsub.f32 %v2692, %v6554
        %v6556 = vand.u32 %v6555, 4294901760
        %v6557 = vsub.f32 %v6555, %v6556
        %v6558 = vand.u32 %v6557, 4294901760
        %6559 = vmatmul.mubr.f32.gmra.mxu0 %v6558
        %v6560 = vpop.f32.mrf.mxu0
        %v6561 = vadd.f32 0.0, %v6560
        %v6562 = vpop.f32.mrf.mxu0
        %v6563 = vadd.f32 0.0, %v6562
        %6564 = vdwg.mxu0
        %6565 = vmatprep.subr.mxu0 0.0
        %6566 = vmatpush1.msra.mxu0 0.0
        %6567 = vmatprep.subr.mxu0 0.0
        %6568 = vmatpush1.msra.mxu0 0.0
        %6569 = vmatprep.subr.mxu0 0.0
        %6570 = vmatpush1.msra.mxu0 0.0
        %6571 = vmatprep.subr.mxu0 0.0
        %6572 = vmatpush1.msra.mxu0 0.0
        %6573 = vmatprep.subr.mxu0 0.0
        %6574 = vmatpush1.msra.mxu0 0.0
        %6575 = vmatprep.subr.mxu0 0.0
        %6576 = vmatpush1.msra.mxu0 0.0
        %6577 = vmatprep.subr.mxu0 0.0
        %6578 = vmatpush1.msra.mxu0 0.0
        %6579 = vmatprep.subr.mxu0 0.0
        %6580 = vmatpush1.msra.mxu0 0.0
        %6581 = vmatprep.subr.mxu0 0.0
        %6582 = vmatpush1.msra.mxu0 0.0
        %6583 = vmatprep.subr.mxu0 0.0
        %6584 = vmatpush1.msra.mxu0 0.0
        %6585 = vmatprep.subr.mxu0 0.0
        %6586 = vmatpush1.msra.mxu0 0.0
        %6587 = vmatprep.subr.mxu0 0.0
        %6588 = vmatpush1.msra.mxu0 0.0
        %6589 = vmatprep.subr.mxu0 0.0
        %6590 = vmatpush1.msra.mxu0 0.0
        %6591 = vmatprep.subr.mxu0 0.0
        %6592 = vmatpush1.msra.mxu0 0.0
        %v6593 = vand.u32 %v2636, 4294901760
        %v6594 = vsub.f32 %v2636, %v6593
        %v6595 = vand.u32 %v6594, 4294901760
        %v6596 = vsub.f32 %v6594, %v6595
        %v6597 = vand.u32 %v6596, 4294901760
        %6598 = vmatprep.subr.mxu0 %v6597
        %v6599 = vand.u32 %v2624, 4294901760
        %v6600 = vsub.f32 %v2624, %v6599
        %v6601 = vand.u32 %v6600, 4294901760
        %v6602 = vsub.f32 %v6600, %v6601
        %v6603 = vand.u32 %v6602, 4294901760
        %6604 = vmatpush1.msra.mxu0 %v6603
        %v6605 = vand.u32 %v2630, 4294901760
        %v6606 = vsub.f32 %v2630, %v6605
        %v6607 = vand.u32 %v6606, 4294901760
        %v6608 = vsub.f32 %v6606, %v6607
        %v6609 = vand.u32 %v6608, 4294901760
        %6610 = vmatprep.subr.mxu0 %v6609
        %v6611 = vand.u32 %v2618, 4294901760
        %v6612 = vsub.f32 %v2618, %v6611
        %v6613 = vand.u32 %v6612, 4294901760
        %v6614 = vsub.f32 %v6612, %v6613
        %v6615 = vand.u32 %v6614, 4294901760
        %6616 = vmatpush1.msra.mxu0 %v6615
        %6617 = vmatprep.subr.mxu0 0.0
        %6618 = vmatpush2.msra.mxu0 0.0
        %6619 = vmatprep.subr.mxu0 0.0
        %6620 = vmatpush2.msra.mxu0 0.0
        %6621 = vmatprep.subr.mxu0 0.0
        %6622 = vmatpush2.msra.mxu0 0.0
        %6623 = vmatprep.subr.mxu0 0.0
        %6624 = vmatpush2.msra.mxu0 0.0
        %6625 = vmatprep.subr.mxu0 0.0
        %6626 = vmatpush2.msra.mxu0 0.0
        %6627 = vmatprep.subr.mxu0 0.0
        %6628 = vmatpush2.msra.mxu0 0.0
        %6629 = vmatprep.subr.mxu0 0.0
        %6630 = vmatpush2.msra.mxu0 0.0
        %6631 = vmatprep.subr.mxu0 0.0
        %6632 = vmatpush2.msra.mxu0 0.0
        %6633 = vmatprep.subr.mxu0 0.0
        %6634 = vmatpush2.msra.mxu0 0.0
        %6635 = vmatprep.subr.mxu0 0.0
        %6636 = vmatpush2.msra.mxu0 0.0
        %6637 = vmatprep.subr.mxu0 0.0
        %6638 = vmatpush2.msra.mxu0 0.0
        %6639 = vmatprep.subr.mxu0 0.0
        %6640 = vmatpush2.msra.mxu0 0.0
        %6641 = vmatprep.subr.mxu0 0.0
        %6642 = vmatpush2.msra.mxu0 0.0
        %6643 = vmatprep.subr.mxu0 0.0
        %6644 = vmatpush2.msra.mxu0 0.0
        %6645 = vmatprep.subr.mxu0 0.0
        %6646 = vmatpush2.msra.mxu0 0.0
        %6647 = vmatprep.subr.mxu0 0.0
        %6648 = vmatpush2.msra.mxu0 0.0
        %6649 = vmatprep.mubr.f32.mxu0 0.0
        %v6650 = vand.u32 %v2689, 4294901760
        %6651 = vmatmul.mubr.f32.gmra.mxu0 %v6650
        %v6652 = vpop.f32.mrf.mxu0
        %v6653 = vadd.f32 %v6550, %v6652
        %v6654 = vpop.f32.mrf.mxu0
        %v6655 = vadd.f32 %v6552, %v6654
        %6656 = vmatprep.mubr.f32.mxu0 0.0
        %v6657 = vand.u32 %v2692, 4294901760
        %6658 = vmatmul.mubr.f32.gmra.mxu0 %v6657
        %v6659 = vpop.f32.mrf.mxu0
        %v6660 = vadd.f32 %v6561, %v6659
        %v6661 = vpop.f32.mrf.mxu0
        %v6662 = vadd.f32 %v6563, %v6661
        %6663 = vdwg.mxu0
        %6664 = vmatprep.subr.mxu0 0.0
        %6665 = vmatpush1.msra.mxu0 0.0
        %6666 = vmatprep.subr.mxu0 0.0
        %6667 = vmatpush1.msra.mxu0 0.0
        %6668 = vmatprep.subr.mxu0 0.0
        %6669 = vmatpush1.msra.mxu0 0.0
        %6670 = vmatprep.subr.mxu0 0.0
        %6671 = vmatpush1.msra.mxu0 0.0
        %6672 = vmatprep.subr.mxu0 0.0
        %6673 = vmatpush1.msra.mxu0 0.0
        %6674 = vmatprep.subr.mxu0 0.0
        %6675 = vmatpush1.msra.mxu0 0.0
        %6676 = vmatprep.subr.mxu0 0.0
        %6677 = vmatpush1.msra.mxu0 0.0
        %6678 = vmatprep.subr.mxu0 0.0
        %6679 = vmatpush1.msra.mxu0 0.0
        %6680 = vmatprep.subr.mxu0 0.0
        %6681 = vmatpush1.msra.mxu0 0.0
        %6682 = vmatprep.subr.mxu0 0.0
        %6683 = vmatpush1.msra.mxu0 0.0
        %6684 = vmatprep.subr.mxu0 0.0
        %6685 = vmatpush1.msra.mxu0 0.0
        %6686 = vmatprep.subr.mxu0 0.0
        %6687 = vmatpush1.msra.mxu0 0.0
        %6688 = vmatprep.subr.mxu0 0.0
        %6689 = vmatpush1.msra.mxu0 0.0
        %6690 = vmatprep.subr.mxu0 0.0
        %6691 = vmatpush1.msra.mxu0 0.0
        %v6692 = vand.u32 %v2636, 4294901760
        %v6693 = vsub.f32 %v2636, %v6692
        %6694 = vmatprep.subr.mxu0 %v6693
        %v6695 = vand.u32 %v2624, 4294901760
        %v6696 = vsub.f32 %v2624, %v6695
        %6697 = vmatpush1.msra.mxu0 %v6696
        %v6698 = vand.u32 %v2630, 4294901760
        %v6699 = vsub.f32 %v2630, %v6698
        %6700 = vmatprep.subr.mxu0 %v6699
        %v6701 = vand.u32 %v2618, 4294901760
        %v6702 = vsub.f32 %v2618, %v6701
        %6703 = vmatpush1.msra.mxu0 %v6702
        %6704 = vmatprep.subr.mxu0 0.0
        %6705 = vmatpush2.msra.mxu0 0.0
        %6706 = vmatprep.subr.mxu0 0.0
        %6707 = vmatpush2.msra.mxu0 0.0
        %6708 = vmatprep.subr.mxu0 0.0
        %6709 = vmatpush2.msra.mxu0 0.0
        %6710 = vmatprep.subr.mxu0 0.0
        %6711 = vmatpush2.msra.mxu0 0.0
        %6712 = vmatprep.subr.mxu0 0.0
        %6713 = vmatpush2.msra.mxu0 0.0
        %6714 = vmatprep.subr.mxu0 0.0
        %6715 = vmatpush2.msra.mxu0 0.0
        %6716 = vmatprep.subr.mxu0 0.0
        %6717 = vmatpush2.msra.mxu0 0.0
        %6718 = vmatprep.subr.mxu0 0.0
        %6719 = vmatpush2.msra.mxu0 0.0
        %6720 = vmatprep.subr.mxu0 0.0
        %6721 = vmatpush2.msra.mxu0 0.0
        %6722 = vmatprep.subr.mxu0 0.0
        %6723 = vmatpush2.msra.mxu0 0.0
        %6724 = vmatprep.subr.mxu0 0.0
        %6725 = vmatpush2.msra.mxu0 0.0
        %6726 = vmatprep.subr.mxu0 0.0
        %6727 = vmatpush2.msra.mxu0 0.0
        %6728 = vmatprep.subr.mxu0 0.0
        %6729 = vmatpush2.msra.mxu0 0.0
        %6730 = vmatprep.subr.mxu0 0.0
        %6731 = vmatpush2.msra.mxu0 0.0
        %6732 = vmatprep.subr.mxu0 0.0
        %6733 = vmatpush2.msra.mxu0 0.0
        %6734 = vmatprep.subr.mxu0 0.0
        %6735 = vmatpush2.msra.mxu0 0.0
        %6736 = vmatprep.mubr.f32.mxu0 0.0
        %v6737 = vand.u32 %v2689, 4294901760
        %v6738 = vsub.f32 %v2689, %v6737
        %6739 = vmatmul.mubr.f32.gmra.mxu0 %v6738
        %v6740 = vpop.f32.mrf.mxu0
        %v6741 = vadd.f32 %v6653, %v6740
        %v6742 = vpop.f32.mrf.mxu0
        %v6743 = vadd.f32 %v6655, %v6742
        %6744 = vmatprep.mubr.f32.mxu0 0.0
        %v6745 = vand.u32 %v2692, 4294901760
        %v6746 = vsub.f32 %v2692, %v6745
        %6747 = vmatmul.mubr.f32.gmra.mxu0 %v6746
        %v6748 = vpop.f32.mrf.mxu0
        %v6749 = vadd.f32 %v6660, %v6748
        %v6750 = vpop.f32.mrf.mxu0
        %v6751 = vadd.f32 %v6662, %v6750
        %6752 = vdwg.mxu0
        %6753 = vmatprep.subr.mxu0 0.0
        %6754 = vmatpush1.msra.mxu0 0.0
        %6755 = vmatprep.subr.mxu0 0.0
        %6756 = vmatpush1.msra.mxu0 0.0
        %6757 = vmatprep.subr.mxu0 0.0
        %6758 = vmatpush1.msra.mxu0 0.0
        %6759 = vmatprep.subr.mxu0 0.0
        %6760 = vmatpush1.msra.mxu0 0.0
        %6761 = vmatprep.subr.mxu0 0.0
        %6762 = vmatpush1.msra.mxu0 0.0
        %6763 = vmatprep.subr.mxu0 0.0
        %6764 = vmatpush1.msra.mxu0 0.0
        %6765 = vmatprep.subr.mxu0 0.0
        %6766 = vmatpush1.msra.mxu0 0.0
        %6767 = vmatprep.subr.mxu0 0.0
        %6768 = vmatpush1.msra.mxu0 0.0
        %6769 = vmatprep.subr.mxu0 0.0
        %6770 = vmatpush1.msra.mxu0 0.0
        %6771 = vmatprep.subr.mxu0 0.0
        %6772 = vmatpush1.msra.mxu0 0.0
        %6773 = vmatprep.subr.mxu0 0.0
        %6774 = vmatpush1.msra.mxu0 0.0
        %6775 = vmatprep.subr.mxu0 0.0
        %6776 = vmatpush1.msra.mxu0 0.0
        %6777 = vmatprep.subr.mxu0 0.0
        %6778 = vmatpush1.msra.mxu0 0.0
        %6779 = vmatprep.subr.mxu0 0.0
        %6780 = vmatpush1.msra.mxu0 0.0
        %v6781 = vand.u32 %v2636, 4294901760
        %6782 = vmatprep.subr.mxu0 %v6781
        %v6783 = vand.u32 %v2624, 4294901760
        %6784 = vmatpush1.msra.mxu0 %v6783
        %v6785 = vand.u32 %v2630, 4294901760
        %6786 = vmatprep.subr.mxu0 %v6785
        %v6787 = vand.u32 %v2618, 4294901760
        %6788 = vmatpush1.msra.mxu0 %v6787
        %6789 = vmatprep.subr.mxu0 0.0
        %6790 = vmatpush2.msra.mxu0 0.0
        %6791 = vmatprep.subr.mxu0 0.0
        %6792 = vmatpush2.msra.mxu0 0.0
        %6793 = vmatprep.subr.mxu0 0.0
        %6794 = vmatpush2.msra.mxu0 0.0
        %6795 = vmatprep.subr.mxu0 0.0
        %6796 = vmatpush2.msra.mxu0 0.0
        %6797 = vmatprep.subr.mxu0 0.0
        %6798 = vmatpush2.msra.mxu0 0.0
        %6799 = vmatprep.subr.mxu0 0.0
        %6800 = vmatpush2.msra.mxu0 0.0
        %6801 = vmatprep.subr.mxu0 0.0
        %6802 = vmatpush2.msra.mxu0 0.0
        %6803 = vmatprep.subr.mxu0 0.0
        %6804 = vmatpush2.msra.mxu0 0.0
        %6805 = vmatprep.subr.mxu0 0.0
        %6806 = vmatpush2.msra.mxu0 0.0
        %6807 = vmatprep.subr.mxu0 0.0
        %6808 = vmatpush2.msra.mxu0 0.0
        %6809 = vmatprep.subr.mxu0 0.0
        %6810 = vmatpush2.msra.mxu0 0.0
        %6811 = vmatprep.subr.mxu0 0.0
        %6812 = vmatpush2.msra.mxu0 0.0
        %6813 = vmatprep.subr.mxu0 0.0
        %6814 = vmatpush2.msra.mxu0 0.0
        %6815 = vmatprep.subr.mxu0 0.0
        %6816 = vmatpush2.msra.mxu0 0.0
        %6817 = vmatprep.subr.mxu0 0.0
        %6818 = vmatpush2.msra.mxu0 0.0
        %6819 = vmatprep.subr.mxu0 0.0
        %6820 = vmatpush2.msra.mxu0 0.0
        %6821 = vmatprep.mubr.f32.mxu0 0.0
        %v6822 = vand.u32 %v2689, 4294901760
        %v6823 = vsub.f32 %v2689, %v6822
        %v6824 = vand.u32 %v6823, 4294901760
        %6825 = vmatmul.mubr.f32.gmra.mxu0 %v6824
        %v6826 = vpop.f32.mrf.mxu0
        %v6827 = vadd.f32 %v6741, %v6826
        %v6828 = vpop.f32.mrf.mxu0
        %v6829 = vadd.f32 %v6743, %v6828
        %6830 = vmatprep.mubr.f32.mxu0 0.0
        %v6831 = vand.u32 %v2692, 4294901760
        %v6832 = vsub.f32 %v2692, %v6831
        %v6833 = vand.u32 %v6832, 4294901760
        %6834 = vmatmul.mubr.f32.gmra.mxu0 %v6833
        %v6835 = vpop.f32.mrf.mxu0
        %v6836 = vadd.f32 %v6749, %v6835
        %v6837 = vpop.f32.mrf.mxu0
        %v6838 = vadd.f32 %v6751, %v6837
        %6839 = vdwg.mxu0
        %6840 = vmatprep.subr.mxu0 0.0
        %6841 = vmatpush1.msra.mxu0 0.0
        %6842 = vmatprep.subr.mxu0 0.0
        %6843 = vmatpush1.msra.mxu0 0.0
        %6844 = vmatprep.subr.mxu0 0.0
        %6845 = vmatpush1.msra.mxu0 0.0
        %6846 = vmatprep.subr.mxu0 0.0
        %6847 = vmatpush1.msra.mxu0 0.0
        %6848 = vmatprep.subr.mxu0 0.0
        %6849 = vmatpush1.msra.mxu0 0.0
        %6850 = vmatprep.subr.mxu0 0.0
        %6851 = vmatpush1.msra.mxu0 0.0
        %6852 = vmatprep.subr.mxu0 0.0
        %6853 = vmatpush1.msra.mxu0 0.0
        %6854 = vmatprep.subr.mxu0 0.0
        %6855 = vmatpush1.msra.mxu0 0.0
        %6856 = vmatprep.subr.mxu0 0.0
        %6857 = vmatpush1.msra.mxu0 0.0
        %6858 = vmatprep.subr.mxu0 0.0
        %6859 = vmatpush1.msra.mxu0 0.0
        %6860 = vmatprep.subr.mxu0 0.0
        %6861 = vmatpush1.msra.mxu0 0.0
        %6862 = vmatprep.subr.mxu0 0.0
        %6863 = vmatpush1.msra.mxu0 0.0
        %6864 = vmatprep.subr.mxu0 0.0
        %6865 = vmatpush1.msra.mxu0 0.0
        %6866 = vmatprep.subr.mxu0 0.0
        %6867 = vmatpush1.msra.mxu0 0.0
        %v6868 = vand.u32 %v2636, 4294901760
        %v6869 = vsub.f32 %v2636, %v6868
        %v6870 = vand.u32 %v6869, 4294901760
        %6871 = vmatprep.subr.mxu0 %v6870
        %v6872 = vand.u32 %v2624, 4294901760
        %v6873 = vsub.f32 %v2624, %v6872
        %v6874 = vand.u32 %v6873, 4294901760
        %6875 = vmatpush1.msra.mxu0 %v6874
        %v6876 = vand.u32 %v2630, 4294901760
        %v6877 = vsub.f32 %v2630, %v6876
        %v6878 = vand.u32 %v6877, 4294901760
        %6879 = vmatprep.subr.mxu0 %v6878
        %v6880 = vand.u32 %v2618, 4294901760
        %v6881 = vsub.f32 %v2618, %v6880
        %v6882 = vand.u32 %v6881, 4294901760
        %6883 = vmatpush1.msra.mxu0 %v6882
        %6884 = vmatprep.subr.mxu0 0.0
        %6885 = vmatpush2.msra.mxu0 0.0
        %6886 = vmatprep.subr.mxu0 0.0
        %6887 = vmatpush2.msra.mxu0 0.0
        %6888 = vmatprep.subr.mxu0 0.0
        %6889 = vmatpush2.msra.mxu0 0.0
        %6890 = vmatprep.subr.mxu0 0.0
        %6891 = vmatpush2.msra.mxu0 0.0
        %6892 = vmatprep.subr.mxu0 0.0
        %6893 = vmatpush2.msra.mxu0 0.0
        %6894 = vmatprep.subr.mxu0 0.0
        %6895 = vmatpush2.msra.mxu0 0.0
        %6896 = vmatprep.subr.mxu0 0.0
        %6897 = vmatpush2.msra.mxu0 0.0
        %6898 = vmatprep.subr.mxu0 0.0
        %6899 = vmatpush2.msra.mxu0 0.0
        %6900 = vmatprep.subr.mxu0 0.0
        %6901 = vmatpush2.msra.mxu0 0.0
        %6902 = vmatprep.subr.mxu0 0.0
        %6903 = vmatpush2.msra.mxu0 0.0
        %6904 = vmatprep.subr.mxu0 0.0
        %6905 = vmatpush2.msra.mxu0 0.0
        %6906 = vmatprep.subr.mxu0 0.0
        %6907 = vmatpush2.msra.mxu0 0.0
        %6908 = vmatprep.subr.mxu0 0.0
        %6909 = vmatpush2.msra.mxu0 0.0
        %6910 = vmatprep.subr.mxu0 0.0
        %6911 = vmatpush2.msra.mxu0 0.0
        %6912 = vmatprep.subr.mxu0 0.0
        %6913 = vmatpush2.msra.mxu0 0.0
        %6914 = vmatprep.subr.mxu0 0.0
        %6915 = vmatpush2.msra.mxu0 0.0
        %6916 = vmatprep.mubr.f32.mxu0 0.0
        %v6917 = vand.u32 %v2689, 4294901760
        %6918 = vmatmul.mubr.f32.gmra.mxu0 %v6917
        %v6919 = vpop.f32.mrf.mxu0
        %v6920 = vadd.f32 %v6827, %v6919
        %v6921 = vpop.f32.mrf.mxu0
        %v6922 = vadd.f32 %v6829, %v6921
        %6923 = vmatprep.mubr.f32.mxu0 0.0
        %v6924 = vand.u32 %v2692, 4294901760
        %6925 = vmatmul.mubr.f32.gmra.mxu0 %v6924
        %v6926 = vpop.f32.mrf.mxu0
        %v6927 = vadd.f32 %v6836, %v6926
        %v6928 = vpop.f32.mrf.mxu0
        %v6929 = vadd.f32 %v6838, %v6928
        %6930 = vdwg.mxu0
        %6931 = vmatprep.subr.mxu0 0.0
        %6932 = vmatpush1.msra.mxu0 0.0
        %6933 = vmatprep.subr.mxu0 0.0
        %6934 = vmatpush1.msra.mxu0 0.0
        %6935 = vmatprep.subr.mxu0 0.0
        %6936 = vmatpush1.msra.mxu0 0.0
        %6937 = vmatprep.subr.mxu0 0.0
        %6938 = vmatpush1.msra.mxu0 0.0
        %6939 = vmatprep.subr.mxu0 0.0
        %6940 = vmatpush1.msra.mxu0 0.0
        %6941 = vmatprep.subr.mxu0 0.0
        %6942 = vmatpush1.msra.mxu0 0.0
        %6943 = vmatprep.subr.mxu0 0.0
        %6944 = vmatpush1.msra.mxu0 0.0
        %6945 = vmatprep.subr.mxu0 0.0
        %6946 = vmatpush1.msra.mxu0 0.0
        %6947 = vmatprep.subr.mxu0 0.0
        %6948 = vmatpush1.msra.mxu0 0.0
        %6949 = vmatprep.subr.mxu0 0.0
        %6950 = vmatpush1.msra.mxu0 0.0
        %6951 = vmatprep.subr.mxu0 0.0
        %6952 = vmatpush1.msra.mxu0 0.0
        %6953 = vmatprep.subr.mxu0 0.0
        %6954 = vmatpush1.msra.mxu0 0.0
        %6955 = vmatprep.subr.mxu0 0.0
        %6956 = vmatpush1.msra.mxu0 0.0
        %6957 = vmatprep.subr.mxu0 0.0
        %6958 = vmatpush1.msra.mxu0 0.0
        %v6959 = vand.u32 %v2636, 4294901760
        %6960 = vmatprep.subr.mxu0 %v6959
        %v6961 = vand.u32 %v2624, 4294901760
        %6962 = vmatpush1.msra.mxu0 %v6961
        %v6963 = vand.u32 %v2630, 4294901760
        %6964 = vmatprep.subr.mxu0 %v6963
        %v6965 = vand.u32 %v2618, 4294901760
        %6966 = vmatpush1.msra.mxu0 %v6965
        %6967 = vmatprep.subr.mxu0 0.0
        %6968 = vmatpush2.msra.mxu0 0.0
        %6969 = vmatprep.subr.mxu0 0.0
        %6970 = vmatpush2.msra.mxu0 0.0
        %6971 = vmatprep.subr.mxu0 0.0
        %6972 = vmatpush2.msra.mxu0 0.0
        %6973 = vmatprep.subr.mxu0 0.0
        %6974 = vmatpush2.msra.mxu0 0.0
        %6975 = vmatprep.subr.mxu0 0.0
        %6976 = vmatpush2.msra.mxu0 0.0
        %6977 = vmatprep.subr.mxu0 0.0
        %6978 = vmatpush2.msra.mxu0 0.0
        %6979 = vmatprep.subr.mxu0 0.0
        %6980 = vmatpush2.msra.mxu0 0.0
        %6981 = vmatprep.subr.mxu0 0.0
        %6982 = vmatpush2.msra.mxu0 0.0
        %6983 = vmatprep.subr.mxu0 0.0
        %6984 = vmatpush2.msra.mxu0 0.0
        %6985 = vmatprep.subr.mxu0 0.0
        %6986 = vmatpush2.msra.mxu0 0.0
        %6987 = vmatprep.subr.mxu0 0.0
        %6988 = vmatpush2.msra.mxu0 0.0
        %6989 = vmatprep.subr.mxu0 0.0
        %6990 = vmatpush2.msra.mxu0 0.0
        %6991 = vmatprep.subr.mxu0 0.0
        %6992 = vmatpush2.msra.mxu0 0.0
        %6993 = vmatprep.subr.mxu0 0.0
        %6994 = vmatpush2.msra.mxu0 0.0
        %6995 = vmatprep.subr.mxu0 0.0
        %6996 = vmatpush2.msra.mxu0 0.0
        %6997 = vmatprep.subr.mxu0 0.0
        %6998 = vmatpush2.msra.mxu0 0.0
        %6999 = vmatprep.mubr.f32.mxu0 0.0
        %v7000 = vand.u32 %v2689, 4294901760
        %7001 = vmatmul.mubr.f32.gmra.mxu0 %v7000
        %v7002 = vpop.f32.mrf.mxu0
        %v7003 = vadd.f32 %v6920, %v7002
        %v7004 = vpop.f32.mrf.mxu0
        %v7005 = vadd.f32 %v6922, %v7004
        %7006 = vmatprep.mubr.f32.mxu0 0.0
        %v7007 = vand.u32 %v2692, 4294901760
        %7008 = vmatmul.mubr.f32.gmra.mxu0 %v7007
        %v7009 = vpop.f32.mrf.mxu0
        %v7010 = vadd.f32 %v6927, %v7009
        %v7011 = vpop.f32.mrf.mxu0
        %v7012 = vadd.f32 %v6929, %v7011
        %7013 = vdwg.mxu0
        %7014 = vmatprep.subr.mxu0 0.0
        %7015 = vmatpush1.msra.mxu0 0.0
        %7016 = vmatprep.subr.mxu0 0.0
        %7017 = vmatpush1.msra.mxu0 0.0
        %7018 = vmatprep.subr.mxu0 0.0
        %7019 = vmatpush1.msra.mxu0 0.0
        %7020 = vmatprep.subr.mxu0 0.0
        %7021 = vmatpush1.msra.mxu0 0.0
        %7022 = vmatprep.subr.mxu0 0.0
        %7023 = vmatpush1.msra.mxu0 0.0
        %7024 = vmatprep.subr.mxu0 0.0
        %7025 = vmatpush1.msra.mxu0 0.0
        %7026 = vmatprep.subr.mxu0 0.0
        %7027 = vmatpush1.msra.mxu0 0.0
        %7028 = vmatprep.subr.mxu0 0.0
        %7029 = vmatpush1.msra.mxu0 0.0
        %7030 = vmatprep.subr.mxu0 0.0
        %7031 = vmatpush1.msra.mxu0 0.0
        %7032 = vmatprep.subr.mxu0 0.0
        %7033 = vmatpush1.msra.mxu0 0.0
        %7034 = vmatprep.subr.mxu0 0.0
        %7035 = vmatpush1.msra.mxu0 0.0
        %7036 = vmatprep.subr.mxu0 0.0
        %7037 = vmatpush1.msra.mxu0 0.0
        %7038 = vmatprep.subr.mxu0 0.0
        %7039 = vmatpush1.msra.mxu0 0.0
        %7040 = vmatprep.subr.mxu0 0.0
        %7041 = vmatpush1.msra.mxu0 0.0
        %v7042 = vand.u32 %v2660, 4294901760
        %7043 = vmatprep.subr.mxu0 %v7042
        %v7044 = vand.u32 %v2648, 4294901760
        %7045 = vmatpush1.msra.mxu0 %v7044
        %v7046 = vand.u32 %v2654, 4294901760
        %7047 = vmatprep.subr.mxu0 %v7046
        %v7048 = vand.u32 %v2642, 4294901760
        %7049 = vmatpush1.msra.mxu0 %v7048
        %7050 = vmatprep.subr.mxu0 0.0
        %7051 = vmatpush2.msra.mxu0 0.0
        %7052 = vmatprep.subr.mxu0 0.0
        %7053 = vmatpush2.msra.mxu0 0.0
        %7054 = vmatprep.subr.mxu0 0.0
        %7055 = vmatpush2.msra.mxu0 0.0
        %7056 = vmatprep.subr.mxu0 0.0
        %7057 = vmatpush2.msra.mxu0 0.0
        %7058 = vmatprep.subr.mxu0 0.0
        %7059 = vmatpush2.msra.mxu0 0.0
        %7060 = vmatprep.subr.mxu0 0.0
        %7061 = vmatpush2.msra.mxu0 0.0
        %7062 = vmatprep.subr.mxu0 0.0
        %7063 = vmatpush2.msra.mxu0 0.0
        %7064 = vmatprep.subr.mxu0 0.0
        %7065 = vmatpush2.msra.mxu0 0.0
        %7066 = vmatprep.subr.mxu0 0.0
        %7067 = vmatpush2.msra.mxu0 0.0
        %7068 = vmatprep.subr.mxu0 0.0
        %7069 = vmatpush2.msra.mxu0 0.0
        %7070 = vmatprep.subr.mxu0 0.0
        %7071 = vmatpush2.msra.mxu0 0.0
        %7072 = vmatprep.subr.mxu0 0.0
        %7073 = vmatpush2.msra.mxu0 0.0
        %7074 = vmatprep.subr.mxu0 0.0
        %7075 = vmatpush2.msra.mxu0 0.0
        %7076 = vmatprep.subr.mxu0 0.0
        %7077 = vmatpush2.msra.mxu0 0.0
        %7078 = vmatprep.subr.mxu0 0.0
        %7079 = vmatpush2.msra.mxu0 0.0
        %7080 = vmatprep.subr.mxu0 0.0
        %7081 = vmatpush2.msra.mxu0 0.0
        %7082 = vmatprep.mubr.f32.mxu0 0.0
        %v7083 = vand.u32 %v2689, 4294901760
        %v7084 = vsub.f32 %v2689, %v7083
        %v7085 = vand.u32 %v7084, 4294901760
        %v7086 = vsub.f32 %v7084, %v7085
        %v7087 = vand.u32 %v7086, 4294901760
        %7088 = vmatmul.mubr.f32.gmra.mxu0 %v7087
        %v7089 = vpop.f32.mrf.mxu0
        %v7090 = vadd.f32 0.0, %v7089
        %v7091 = vpop.f32.mrf.mxu0
        %v7092 = vadd.f32 0.0, %v7091
        %7093 = vmatprep.mubr.f32.mxu0 0.0
        %v7094 = vand.u32 %v2692, 4294901760
        %v7095 = vsub.f32 %v2692, %v7094
        %v7096 = vand.u32 %v7095, 4294901760
        %v7097 = vsub.f32 %v7095, %v7096
        %v7098 = vand.u32 %v7097, 4294901760
        %7099 = vmatmul.mubr.f32.gmra.mxu0 %v7098
        %v7100 = vpop.f32.mrf.mxu0
        %v7101 = vadd.f32 0.0, %v7100
        %v7102 = vpop.f32.mrf.mxu0
        %v7103 = vadd.f32 0.0, %v7102
        %7104 = vdwg.mxu0
        %7105 = vmatprep.subr.mxu0 0.0
        %7106 = vmatpush1.msra.mxu0 0.0
        %7107 = vmatprep.subr.mxu0 0.0
        %7108 = vmatpush1.msra.mxu0 0.0
        %7109 = vmatprep.subr.mxu0 0.0
        %7110 = vmatpush1.msra.mxu0 0.0
        %7111 = vmatprep.subr.mxu0 0.0
        %7112 = vmatpush1.msra.mxu0 0.0
        %7113 = vmatprep.subr.mxu0 0.0
        %7114 = vmatpush1.msra.mxu0 0.0
        %7115 = vmatprep.subr.mxu0 0.0
        %7116 = vmatpush1.msra.mxu0 0.0
        %7117 = vmatprep.subr.mxu0 0.0
        %7118 = vmatpush1.msra.mxu0 0.0
        %7119 = vmatprep.subr.mxu0 0.0
        %7120 = vmatpush1.msra.mxu0 0.0
        %7121 = vmatprep.subr.mxu0 0.0
        %7122 = vmatpush1.msra.mxu0 0.0
        %7123 = vmatprep.subr.mxu0 0.0
        %7124 = vmatpush1.msra.mxu0 0.0
        %7125 = vmatprep.subr.mxu0 0.0
        %7126 = vmatpush1.msra.mxu0 0.0
        %7127 = vmatprep.subr.mxu0 0.0
        %7128 = vmatpush1.msra.mxu0 0.0
        %7129 = vmatprep.subr.mxu0 0.0
        %7130 = vmatpush1.msra.mxu0 0.0
        %7131 = vmatprep.subr.mxu0 0.0
        %7132 = vmatpush1.msra.mxu0 0.0
        %v7133 = vand.u32 %v2660, 4294901760
        %v7134 = vsub.f32 %v2660, %v7133
        %v7135 = vand.u32 %v7134, 4294901760
        %v7136 = vsub.f32 %v7134, %v7135
        %v7137 = vand.u32 %v7136, 4294901760
        %7138 = vmatprep.subr.mxu0 %v7137
        %v7139 = vand.u32 %v2648, 4294901760
        %v7140 = vsub.f32 %v2648, %v7139
        %v7141 = vand.u32 %v7140, 4294901760
        %v7142 = vsub.f32 %v7140, %v7141
        %v7143 = vand.u32 %v7142, 4294901760
        %7144 = vmatpush1.msra.mxu0 %v7143
        %v7145 = vand.u32 %v2654, 4294901760
        %v7146 = vsub.f32 %v2654, %v7145
        %v7147 = vand.u32 %v7146, 4294901760
        %v7148 = vsub.f32 %v7146, %v7147
        %v7149 = vand.u32 %v7148, 4294901760
        %7150 = vmatprep.subr.mxu0 %v7149
        %v7151 = vand.u32 %v2642, 4294901760
        %v7152 = vsub.f32 %v2642, %v7151
        %v7153 = vand.u32 %v7152, 4294901760
        %v7154 = vsub.f32 %v7152, %v7153
        %v7155 = vand.u32 %v7154, 4294901760
        %7156 = vmatpush1.msra.mxu0 %v7155
        %7157 = vmatprep.subr.mxu0 0.0
        %7158 = vmatpush2.msra.mxu0 0.0
        %7159 = vmatprep.subr.mxu0 0.0
        %7160 = vmatpush2.msra.mxu0 0.0
        %7161 = vmatprep.subr.mxu0 0.0
        %7162 = vmatpush2.msra.mxu0 0.0
        %7163 = vmatprep.subr.mxu0 0.0
        %7164 = vmatpush2.msra.mxu0 0.0
        %7165 = vmatprep.subr.mxu0 0.0
        %7166 = vmatpush2.msra.mxu0 0.0
        %7167 = vmatprep.subr.mxu0 0.0
        %7168 = vmatpush2.msra.mxu0 0.0
        %7169 = vmatprep.subr.mxu0 0.0
        %7170 = vmatpush2.msra.mxu0 0.0
        %7171 = vmatprep.subr.mxu0 0.0
        %7172 = vmatpush2.msra.mxu0 0.0
        %7173 = vmatprep.subr.mxu0 0.0
        %7174 = vmatpush2.msra.mxu0 0.0
        %7175 = vmatprep.subr.mxu0 0.0
        %7176 = vmatpush2.msra.mxu0 0.0
        %7177 = vmatprep.subr.mxu0 0.0
        %7178 = vmatpush2.msra.mxu0 0.0
        %7179 = vmatprep.subr.mxu0 0.0
        %7180 = vmatpush2.msra.mxu0 0.0
        %7181 = vmatprep.subr.mxu0 0.0
        %7182 = vmatpush2.msra.mxu0 0.0
        %7183 = vmatprep.subr.mxu0 0.0
        %7184 = vmatpush2.msra.mxu0 0.0
        %7185 = vmatprep.subr.mxu0 0.0
        %7186 = vmatpush2.msra.mxu0 0.0
        %7187 = vmatprep.subr.mxu0 0.0
        %7188 = vmatpush2.msra.mxu0 0.0
        %7189 = vmatprep.mubr.f32.mxu0 0.0
        %v7190 = vand.u32 %v2689, 4294901760
        %7191 = vmatmul.mubr.f32.gmra.mxu0 %v7190
        %v7192 = vpop.f32.mrf.mxu0
        %v7193 = vadd.f32 %v7090, %v7192
        %v7194 = vpop.f32.mrf.mxu0
        %v7195 = vadd.f32 %v7092, %v7194
        %7196 = vmatprep.mubr.f32.mxu0 0.0
        %v7197 = vand.u32 %v2692, 4294901760
        %7198 = vmatmul.mubr.f32.gmra.mxu0 %v7197
        %v7199 = vpop.f32.mrf.mxu0
        %v7200 = vadd.f32 %v7101, %v7199
        %v7201 = vpop.f32.mrf.mxu0
        %v7202 = vadd.f32 %v7103, %v7201
        %7203 = vdwg.mxu0
        %7204 = vmatprep.subr.mxu0 0.0
        %7205 = vmatpush1.msra.mxu0 0.0
        %7206 = vmatprep.subr.mxu0 0.0
        %7207 = vmatpush1.msra.mxu0 0.0
        %7208 = vmatprep.subr.mxu0 0.0
        %7209 = vmatpush1.msra.mxu0 0.0
        %7210 = vmatprep.subr.mxu0 0.0
        %7211 = vmatpush1.msra.mxu0 0.0
        %7212 = vmatprep.subr.mxu0 0.0
        %7213 = vmatpush1.msra.mxu0 0.0
        %7214 = vmatprep.subr.mxu0 0.0
        %7215 = vmatpush1.msra.mxu0 0.0
        %7216 = vmatprep.subr.mxu0 0.0
        %7217 = vmatpush1.msra.mxu0 0.0
        %7218 = vmatprep.subr.mxu0 0.0
        %7219 = vmatpush1.msra.mxu0 0.0
        %7220 = vmatprep.subr.mxu0 0.0
        %7221 = vmatpush1.msra.mxu0 0.0
        %7222 = vmatprep.subr.mxu0 0.0
        %7223 = vmatpush1.msra.mxu0 0.0
        %7224 = vmatprep.subr.mxu0 0.0
        %7225 = vmatpush1.msra.mxu0 0.0
        %7226 = vmatprep.subr.mxu0 0.0
        %7227 = vmatpush1.msra.mxu0 0.0
        %7228 = vmatprep.subr.mxu0 0.0
        %7229 = vmatpush1.msra.mxu0 0.0
        %7230 = vmatprep.subr.mxu0 0.0
        %7231 = vmatpush1.msra.mxu0 0.0
        %v7232 = vand.u32 %v2660, 4294901760
        %v7233 = vsub.f32 %v2660, %v7232
        %7234 = vmatprep.subr.mxu0 %v7233
        %v7235 = vand.u32 %v2648, 4294901760
        %v7236 = vsub.f32 %v2648, %v7235
        %7237 = vmatpush1.msra.mxu0 %v7236
        %v7238 = vand.u32 %v2654, 4294901760
        %v7239 = vsub.f32 %v2654, %v7238
        %7240 = vmatprep.subr.mxu0 %v7239
        %v7241 = vand.u32 %v2642, 4294901760
        %v7242 = vsub.f32 %v2642, %v7241
        %7243 = vmatpush1.msra.mxu0 %v7242
        %7244 = vmatprep.subr.mxu0 0.0
        %7245 = vmatpush2.msra.mxu0 0.0
        %7246 = vmatprep.subr.mxu0 0.0
        %7247 = vmatpush2.msra.mxu0 0.0
        %7248 = vmatprep.subr.mxu0 0.0
        %7249 = vmatpush2.msra.mxu0 0.0
        %7250 = vmatprep.subr.mxu0 0.0
        %7251 = vmatpush2.msra.mxu0 0.0
        %7252 = vmatprep.subr.mxu0 0.0
        %7253 = vmatpush2.msra.mxu0 0.0
        %7254 = vmatprep.subr.mxu0 0.0
        %7255 = vmatpush2.msra.mxu0 0.0
        %7256 = vmatprep.subr.mxu0 0.0
        %7257 = vmatpush2.msra.mxu0 0.0
        %7258 = vmatprep.subr.mxu0 0.0
        %7259 = vmatpush2.msra.mxu0 0.0
        %7260 = vmatprep.subr.mxu0 0.0
        %7261 = vmatpush2.msra.mxu0 0.0
        %7262 = vmatprep.subr.mxu0 0.0
        %7263 = vmatpush2.msra.mxu0 0.0
        %7264 = vmatprep.subr.mxu0 0.0
        %7265 = vmatpush2.msra.mxu0 0.0
        %7266 = vmatprep.subr.mxu0 0.0
        %7267 = vmatpush2.msra.mxu0 0.0
        %7268 = vmatprep.subr.mxu0 0.0
        %7269 = vmatpush2.msra.mxu0 0.0
        %7270 = vmatprep.subr.mxu0 0.0
        %7271 = vmatpush2.msra.mxu0 0.0
        %7272 = vmatprep.subr.mxu0 0.0
        %7273 = vmatpush2.msra.mxu0 0.0
        %7274 = vmatprep.subr.mxu0 0.0
        %7275 = vmatpush2.msra.mxu0 0.0
        %7276 = vmatprep.mubr.f32.mxu0 0.0
        %v7277 = vand.u32 %v2689, 4294901760
        %v7278 = vsub.f32 %v2689, %v7277
        %7279 = vmatmul.mubr.f32.gmra.mxu0 %v7278
        %v7280 = vpop.f32.mrf.mxu0
        %v7281 = vadd.f32 %v7193, %v7280
        %v7282 = vpop.f32.mrf.mxu0
        %v7283 = vadd.f32 %v7195, %v7282
        %7284 = vmatprep.mubr.f32.mxu0 0.0
        %v7285 = vand.u32 %v2692, 4294901760
        %v7286 = vsub.f32 %v2692, %v7285
        %7287 = vmatmul.mubr.f32.gmra.mxu0 %v7286
        %v7288 = vpop.f32.mrf.mxu0
        %v7289 = vadd.f32 %v7200, %v7288
        %v7290 = vpop.f32.mrf.mxu0
        %v7291 = vadd.f32 %v7202, %v7290
        %7292 = vdwg.mxu0
        %7293 = vmatprep.subr.mxu0 0.0
        %7294 = vmatpush1.msra.mxu0 0.0
        %7295 = vmatprep.subr.mxu0 0.0
        %7296 = vmatpush1.msra.mxu0 0.0
        %7297 = vmatprep.subr.mxu0 0.0
        %7298 = vmatpush1.msra.mxu0 0.0
        %7299 = vmatprep.subr.mxu0 0.0
        %7300 = vmatpush1.msra.mxu0 0.0
        %7301 = vmatprep.subr.mxu0 0.0
        %7302 = vmatpush1.msra.mxu0 0.0
        %7303 = vmatprep.subr.mxu0 0.0
        %7304 = vmatpush1.msra.mxu0 0.0
        %7305 = vmatprep.subr.mxu0 0.0
        %7306 = vmatpush1.msra.mxu0 0.0
        %7307 = vmatprep.subr.mxu0 0.0
        %7308 = vmatpush1.msra.mxu0 0.0
        %7309 = vmatprep.subr.mxu0 0.0
        %7310 = vmatpush1.msra.mxu0 0.0
        %7311 = vmatprep.subr.mxu0 0.0
        %7312 = vmatpush1.msra.mxu0 0.0
        %7313 = vmatprep.subr.mxu0 0.0
        %7314 = vmatpush1.msra.mxu0 0.0
        %7315 = vmatprep.subr.mxu0 0.0
        %7316 = vmatpush1.msra.mxu0 0.0
        %7317 = vmatprep.subr.mxu0 0.0
        %7318 = vmatpush1.msra.mxu0 0.0
        %7319 = vmatprep.subr.mxu0 0.0
        %7320 = vmatpush1.msra.mxu0 0.0
        %v7321 = vand.u32 %v2660, 4294901760
        %7322 = vmatprep.subr.mxu0 %v7321
        %v7323 = vand.u32 %v2648, 4294901760
        %7324 = vmatpush1.msra.mxu0 %v7323
        %v7325 = vand.u32 %v2654, 4294901760
        %7326 = vmatprep.subr.mxu0 %v7325
        %v7327 = vand.u32 %v2642, 4294901760
        %7328 = vmatpush1.msra.mxu0 %v7327
        %7329 = vmatprep.subr.mxu0 0.0
        %7330 = vmatpush2.msra.mxu0 0.0
        %7331 = vmatprep.subr.mxu0 0.0
        %7332 = vmatpush2.msra.mxu0 0.0
        %7333 = vmatprep.subr.mxu0 0.0
        %7334 = vmatpush2.msra.mxu0 0.0
        %7335 = vmatprep.subr.mxu0 0.0
        %7336 = vmatpush2.msra.mxu0 0.0
        %7337 = vmatprep.subr.mxu0 0.0
        %7338 = vmatpush2.msra.mxu0 0.0
        %7339 = vmatprep.subr.mxu0 0.0
        %7340 = vmatpush2.msra.mxu0 0.0
        %7341 = vmatprep.subr.mxu0 0.0
        %7342 = vmatpush2.msra.mxu0 0.0
        %7343 = vmatprep.subr.mxu0 0.0
        %7344 = vmatpush2.msra.mxu0 0.0
        %7345 = vmatprep.subr.mxu0 0.0
        %7346 = vmatpush2.msra.mxu0 0.0
        %7347 = vmatprep.subr.mxu0 0.0
        %7348 = vmatpush2.msra.mxu0 0.0
        %7349 = vmatprep.subr.mxu0 0.0
        %7350 = vmatpush2.msra.mxu0 0.0
        %7351 = vmatprep.subr.mxu0 0.0
        %7352 = vmatpush2.msra.mxu0 0.0
        %7353 = vmatprep.subr.mxu0 0.0
        %7354 = vmatpush2.msra.mxu0 0.0
        %7355 = vmatprep.subr.mxu0 0.0
        %7356 = vmatpush2.msra.mxu0 0.0
        %7357 = vmatprep.subr.mxu0 0.0
        %7358 = vmatpush2.msra.mxu0 0.0
        %7359 = vmatprep.subr.mxu0 0.0
        %7360 = vmatpush2.msra.mxu0 0.0
        %7361 = vmatprep.mubr.f32.mxu0 0.0
        %v7362 = vand.u32 %v2689, 4294901760
        %v7363 = vsub.f32 %v2689, %v7362
        %v7364 = vand.u32 %v7363, 4294901760
        %7365 = vmatmul.mubr.f32.gmra.mxu0 %v7364
        %v7366 = vpop.f32.mrf.mxu0
        %v7367 = vadd.f32 %v7281, %v7366
        %v7368 = vpop.f32.mrf.mxu0
        %v7369 = vadd.f32 %v7283, %v7368
        %7370 = vmatprep.mubr.f32.mxu0 0.0
        %v7371 = vand.u32 %v2692, 4294901760
        %v7372 = vsub.f32 %v2692, %v7371
        %v7373 = vand.u32 %v7372, 4294901760
        %7374 = vmatmul.mubr.f32.gmra.mxu0 %v7373
        %v7375 = vpop.f32.mrf.mxu0
        %v7376 = vadd.f32 %v7289, %v7375
        %v7377 = vpop.f32.mrf.mxu0
        %v7378 = vadd.f32 %v7291, %v7377
        %7379 = vdwg.mxu0
        %7380 = vmatprep.subr.mxu0 0.0
        %7381 = vmatpush1.msra.mxu0 0.0
        %7382 = vmatprep.subr.mxu0 0.0
        %7383 = vmatpush1.msra.mxu0 0.0
        %7384 = vmatprep.subr.mxu0 0.0
        %7385 = vmatpush1.msra.mxu0 0.0
        %7386 = vmatprep.subr.mxu0 0.0
        %7387 = vmatpush1.msra.mxu0 0.0
        %7388 = vmatprep.subr.mxu0 0.0
        %7389 = vmatpush1.msra.mxu0 0.0
        %7390 = vmatprep.subr.mxu0 0.0
        %7391 = vmatpush1.msra.mxu0 0.0
        %7392 = vmatprep.subr.mxu0 0.0
        %7393 = vmatpush1.msra.mxu0 0.0
        %7394 = vmatprep.subr.mxu0 0.0
        %7395 = vmatpush1.msra.mxu0 0.0
        %7396 = vmatprep.subr.mxu0 0.0
        %7397 = vmatpush1.msra.mxu0 0.0
        %7398 = vmatprep.subr.mxu0 0.0
        %7399 = vmatpush1.msra.mxu0 0.0
        %7400 = vmatprep.subr.mxu0 0.0
        %7401 = vmatpush1.msra.mxu0 0.0
        %7402 = vmatprep.subr.mxu0 0.0
        %7403 = vmatpush1.msra.mxu0 0.0
        %7404 = vmatprep.subr.mxu0 0.0
        %7405 = vmatpush1.msra.mxu0 0.0
        %7406 = vmatprep.subr.mxu0 0.0
        %7407 = vmatpush1.msra.mxu0 0.0
        %v7408 = vand.u32 %v2660, 4294901760
        %v7409 = vsub.f32 %v2660, %v7408
        %v7410 = vand.u32 %v7409, 4294901760
        %7411 = vmatprep.subr.mxu0 %v7410
        %v7412 = vand.u32 %v2648, 4294901760
        %v7413 = vsub.f32 %v2648, %v7412
        %v7414 = vand.u32 %v7413, 4294901760
        %7415 = vmatpush1.msra.mxu0 %v7414
        %v7416 = vand.u32 %v2654, 4294901760
        %v7417 = vsub.f32 %v2654, %v7416
        %v7418 = vand.u32 %v7417, 4294901760
        %7419 = vmatprep.subr.mxu0 %v7418
        %v7420 = vand.u32 %v2642, 4294901760
        %v7421 = vsub.f32 %v2642, %v7420
        %v7422 = vand.u32 %v7421, 4294901760
        %7423 = vmatpush1.msra.mxu0 %v7422
        %7424 = vmatprep.subr.mxu0 0.0
        %7425 = vmatpush2.msra.mxu0 0.0
        %7426 = vmatprep.subr.mxu0 0.0
        %7427 = vmatpush2.msra.mxu0 0.0
        %7428 = vmatprep.subr.mxu0 0.0
        %7429 = vmatpush2.msra.mxu0 0.0
        %7430 = vmatprep.subr.mxu0 0.0
        %7431 = vmatpush2.msra.mxu0 0.0
        %7432 = vmatprep.subr.mxu0 0.0
        %7433 = vmatpush2.msra.mxu0 0.0
        %7434 = vmatprep.subr.mxu0 0.0
        %7435 = vmatpush2.msra.mxu0 0.0
        %7436 = vmatprep.subr.mxu0 0.0
        %7437 = vmatpush2.msra.mxu0 0.0
        %7438 = vmatprep.subr.mxu0 0.0
        %7439 = vmatpush2.msra.mxu0 0.0
        %7440 = vmatprep.subr.mxu0 0.0
        %7441 = vmatpush2.msra.mxu0 0.0
        %7442 = vmatprep.subr.mxu0 0.0
        %7443 = vmatpush2.msra.mxu0 0.0
        %7444 = vmatprep.subr.mxu0 0.0
        %7445 = vmatpush2.msra.mxu0 0.0
        %7446 = vmatprep.subr.mxu0 0.0
        %7447 = vmatpush2.msra.mxu0 0.0
        %7448 = vmatprep.subr.mxu0 0.0
        %7449 = vmatpush2.msra.mxu0 0.0
        %7450 = vmatprep.subr.mxu0 0.0
        %7451 = vmatpush2.msra.mxu0 0.0
        %7452 = vmatprep.subr.mxu0 0.0
        %7453 = vmatpush2.msra.mxu0 0.0
        %7454 = vmatprep.subr.mxu0 0.0
        %7455 = vmatpush2.msra.mxu0 0.0
        %7456 = vmatprep.mubr.f32.mxu0 0.0
        %v7457 = vand.u32 %v2689, 4294901760
        %7458 = vmatmul.mubr.f32.gmra.mxu0 %v7457
        %v7459 = vpop.f32.mrf.mxu0
        %v7460 = vadd.f32 %v7367, %v7459
        %v7461 = vpop.f32.mrf.mxu0
        %v7462 = vadd.f32 %v7369, %v7461
        %7463 = vmatprep.mubr.f32.mxu0 0.0
        %v7464 = vand.u32 %v2692, 4294901760
        %7465 = vmatmul.mubr.f32.gmra.mxu0 %v7464
        %v7466 = vpop.f32.mrf.mxu0
        %v7467 = vadd.f32 %v7376, %v7466
        %v7468 = vpop.f32.mrf.mxu0
        %v7469 = vadd.f32 %v7378, %v7468
        %7470 = vdwg.mxu0
        %7471 = vmatprep.subr.mxu0 0.0
        %7472 = vmatpush1.msra.mxu0 0.0
        %7473 = vmatprep.subr.mxu0 0.0
        %7474 = vmatpush1.msra.mxu0 0.0
        %7475 = vmatprep.subr.mxu0 0.0
        %7476 = vmatpush1.msra.mxu0 0.0
        %7477 = vmatprep.subr.mxu0 0.0
        %7478 = vmatpush1.msra.mxu0 0.0
        %7479 = vmatprep.subr.mxu0 0.0
        %7480 = vmatpush1.msra.mxu0 0.0
        %7481 = vmatprep.subr.mxu0 0.0
        %7482 = vmatpush1.msra.mxu0 0.0
        %7483 = vmatprep.subr.mxu0 0.0
        %7484 = vmatpush1.msra.mxu0 0.0
        %7485 = vmatprep.subr.mxu0 0.0
        %7486 = vmatpush1.msra.mxu0 0.0
        %7487 = vmatprep.subr.mxu0 0.0
        %7488 = vmatpush1.msra.mxu0 0.0
        %7489 = vmatprep.subr.mxu0 0.0
        %7490 = vmatpush1.msra.mxu0 0.0
        %7491 = vmatprep.subr.mxu0 0.0
        %7492 = vmatpush1.msra.mxu0 0.0
        %7493 = vmatprep.subr.mxu0 0.0
        %7494 = vmatpush1.msra.mxu0 0.0
        %7495 = vmatprep.subr.mxu0 0.0
        %7496 = vmatpush1.msra.mxu0 0.0
        %7497 = vmatprep.subr.mxu0 0.0
        %7498 = vmatpush1.msra.mxu0 0.0
        %v7499 = vand.u32 %v2660, 4294901760
        %7500 = vmatprep.subr.mxu0 %v7499
        %v7501 = vand.u32 %v2648, 4294901760
        %7502 = vmatpush1.msra.mxu0 %v7501
        %v7503 = vand.u32 %v2654, 4294901760
        %7504 = vmatprep.subr.mxu0 %v7503
        %v7505 = vand.u32 %v2642, 4294901760
        %7506 = vmatpush1.msra.mxu0 %v7505
        %7507 = vmatprep.subr.mxu0 0.0
        %7508 = vmatpush2.msra.mxu0 0.0
        %7509 = vmatprep.subr.mxu0 0.0
        %7510 = vmatpush2.msra.mxu0 0.0
        %7511 = vmatprep.subr.mxu0 0.0
        %7512 = vmatpush2.msra.mxu0 0.0
        %7513 = vmatprep.subr.mxu0 0.0
        %7514 = vmatpush2.msra.mxu0 0.0
        %7515 = vmatprep.subr.mxu0 0.0
        %7516 = vmatpush2.msra.mxu0 0.0
        %7517 = vmatprep.subr.mxu0 0.0
        %7518 = vmatpush2.msra.mxu0 0.0
        %7519 = vmatprep.subr.mxu0 0.0
        %7520 = vmatpush2.msra.mxu0 0.0
        %7521 = vmatprep.subr.mxu0 0.0
        %7522 = vmatpush2.msra.mxu0 0.0
        %7523 = vmatprep.subr.mxu0 0.0
        %7524 = vmatpush2.msra.mxu0 0.0
        %7525 = vmatprep.subr.mxu0 0.0
        %7526 = vmatpush2.msra.mxu0 0.0
        %7527 = vmatprep.subr.mxu0 0.0
        %7528 = vmatpush2.msra.mxu0 0.0
        %7529 = vmatprep.subr.mxu0 0.0
        %7530 = vmatpush2.msra.mxu0 0.0
        %7531 = vmatprep.subr.mxu0 0.0
        %7532 = vmatpush2.msra.mxu0 0.0
        %7533 = vmatprep.subr.mxu0 0.0
        %7534 = vmatpush2.msra.mxu0 0.0
        %7535 = vmatprep.subr.mxu0 0.0
        %7536 = vmatpush2.msra.mxu0 0.0
        %7537 = vmatprep.subr.mxu0 0.0
        %7538 = vmatpush2.msra.mxu0 0.0
        %7539 = vmatprep.mubr.f32.mxu0 0.0
        %v7540 = vand.u32 %v2689, 4294901760
        %7541 = vmatmul.mubr.f32.gmra.mxu0 %v7540
        %v7542 = vpop.f32.mrf.mxu0
        %v7543 = vadd.f32 %v7460, %v7542
        %v7544 = vpop.f32.mrf.mxu0
        %v7545 = vadd.f32 %v7462, %v7544
        %7546 = vmatprep.mubr.f32.mxu0 0.0
        %v7547 = vand.u32 %v2692, 4294901760
        %7548 = vmatmul.mubr.f32.gmra.mxu0 %v7547
        %v7549 = vpop.f32.mrf.mxu0
        %v7550 = vadd.f32 %v7467, %v7549
        %v7551 = vpop.f32.mrf.mxu0
        %v7552 = vadd.f32 %v7469, %v7551
        %7553 = vdwg.mxu0
        %7554 = vmatprep.subr.mxu0 0.0
        %7555 = vmatpush1.msra.mxu0 0.0
        %7556 = vmatprep.subr.mxu0 0.0
        %7557 = vmatpush1.msra.mxu0 0.0
        %7558 = vmatprep.subr.mxu0 0.0
        %7559 = vmatpush1.msra.mxu0 0.0
        %7560 = vmatprep.subr.mxu0 0.0
        %7561 = vmatpush1.msra.mxu0 0.0
        %7562 = vmatprep.subr.mxu0 0.0
        %7563 = vmatpush1.msra.mxu0 0.0
        %7564 = vmatprep.subr.mxu0 0.0
        %7565 = vmatpush1.msra.mxu0 0.0
        %7566 = vmatprep.subr.mxu0 0.0
        %7567 = vmatpush1.msra.mxu0 0.0
        %7568 = vmatprep.subr.mxu0 0.0
        %7569 = vmatpush1.msra.mxu0 0.0
        %7570 = vmatprep.subr.mxu0 0.0
        %7571 = vmatpush1.msra.mxu0 0.0
        %7572 = vmatprep.subr.mxu0 0.0
        %7573 = vmatpush1.msra.mxu0 0.0
        %7574 = vmatprep.subr.mxu0 0.0
        %7575 = vmatpush1.msra.mxu0 0.0
        %7576 = vmatprep.subr.mxu0 0.0
        %7577 = vmatpush1.msra.mxu0 0.0
        %7578 = vmatprep.subr.mxu0 0.0
        %7579 = vmatpush1.msra.mxu0 0.0
        %7580 = vmatprep.subr.mxu0 0.0
        %7581 = vmatpush1.msra.mxu0 0.0
        %v7582 = vand.u32 %v2684, 4294901760
        %7583 = vmatprep.subr.mxu0 %v7582
        %v7584 = vand.u32 %v2672, 4294901760
        %7585 = vmatpush1.msra.mxu0 %v7584
        %v7586 = vand.u32 %v2678, 4294901760
        %7587 = vmatprep.subr.mxu0 %v7586
        %v7588 = vand.u32 %v2666, 4294901760
        %7589 = vmatpush1.msra.mxu0 %v7588
        %7590 = vmatprep.subr.mxu0 0.0
        %7591 = vmatpush2.msra.mxu0 0.0
        %7592 = vmatprep.subr.mxu0 0.0
        %7593 = vmatpush2.msra.mxu0 0.0
        %7594 = vmatprep.subr.mxu0 0.0
        %7595 = vmatpush2.msra.mxu0 0.0
        %7596 = vmatprep.subr.mxu0 0.0
        %7597 = vmatpush2.msra.mxu0 0.0
        %7598 = vmatprep.subr.mxu0 0.0
        %7599 = vmatpush2.msra.mxu0 0.0
        %7600 = vmatprep.subr.mxu0 0.0
        %7601 = vmatpush2.msra.mxu0 0.0
        %7602 = vmatprep.subr.mxu0 0.0
        %7603 = vmatpush2.msra.mxu0 0.0
        %7604 = vmatprep.subr.mxu0 0.0
        %7605 = vmatpush2.msra.mxu0 0.0
        %7606 = vmatprep.subr.mxu0 0.0
        %7607 = vmatpush2.msra.mxu0 0.0
        %7608 = vmatprep.subr.mxu0 0.0
        %7609 = vmatpush2.msra.mxu0 0.0
        %7610 = vmatprep.subr.mxu0 0.0
        %7611 = vmatpush2.msra.mxu0 0.0
        %7612 = vmatprep.subr.mxu0 0.0
        %7613 = vmatpush2.msra.mxu0 0.0
        %7614 = vmatprep.subr.mxu0 0.0
        %7615 = vmatpush2.msra.mxu0 0.0
        %7616 = vmatprep.subr.mxu0 0.0
        %7617 = vmatpush2.msra.mxu0 0.0
        %7618 = vmatprep.subr.mxu0 0.0
        %7619 = vmatpush2.msra.mxu0 0.0
        %7620 = vmatprep.subr.mxu0 0.0
        %7621 = vmatpush2.msra.mxu0 0.0
        %7622 = vmatprep.mubr.f32.mxu0 0.0
        %v7623 = vand.u32 %v2689, 4294901760
        %v7624 = vsub.f32 %v2689, %v7623
        %v7625 = vand.u32 %v7624, 4294901760
        %v7626 = vsub.f32 %v7624, %v7625
        %v7627 = vand.u32 %v7626, 4294901760
        %7628 = vmatmul.mubr.f32.gmra.mxu0 %v7627
        %v7629 = vpop.f32.mrf.mxu0
        %v7630 = vadd.f32 0.0, %v7629
        %v7631 = vpop.f32.mrf.mxu0
        %v7632 = vadd.f32 0.0, %v7631
        %7633 = vmatprep.mubr.f32.mxu0 0.0
        %v7634 = vand.u32 %v2692, 4294901760
        %v7635 = vsub.f32 %v2692, %v7634
        %v7636 = vand.u32 %v7635, 4294901760
        %v7637 = vsub.f32 %v7635, %v7636
        %v7638 = vand.u32 %v7637, 4294901760
        %7639 = vmatmul.mubr.f32.gmra.mxu0 %v7638
        %v7640 = vpop.f32.mrf.mxu0
        %v7641 = vadd.f32 0.0, %v7640
        %v7642 = vpop.f32.mrf.mxu0
        %v7643 = vadd.f32 0.0, %v7642
        %7644 = vdwg.mxu0
        %7645 = vmatprep.subr.mxu0 0.0
        %7646 = vmatpush1.msra.mxu0 0.0
        %7647 = vmatprep.subr.mxu0 0.0
        %7648 = vmatpush1.msra.mxu0 0.0
        %7649 = vmatprep.subr.mxu0 0.0
        %7650 = vmatpush1.msra.mxu0 0.0
        %7651 = vmatprep.subr.mxu0 0.0
        %7652 = vmatpush1.msra.mxu0 0.0
        %7653 = vmatprep.subr.mxu0 0.0
        %7654 = vmatpush1.msra.mxu0 0.0
        %7655 = vmatprep.subr.mxu0 0.0
        %7656 = vmatpush1.msra.mxu0 0.0
        %7657 = vmatprep.subr.mxu0 0.0
        %7658 = vmatpush1.msra.mxu0 0.0
        %7659 = vmatprep.subr.mxu0 0.0
        %7660 = vmatpush1.msra.mxu0 0.0
        %7661 = vmatprep.subr.mxu0 0.0
        %7662 = vmatpush1.msra.mxu0 0.0
        %7663 = vmatprep.subr.mxu0 0.0
        %7664 = vmatpush1.msra.mxu0 0.0
        %7665 = vmatprep.subr.mxu0 0.0
        %7666 = vmatpush1.msra.mxu0 0.0
        %7667 = vmatprep.subr.mxu0 0.0
        %7668 = vmatpush1.msra.mxu0 0.0
        %7669 = vmatprep.subr.mxu0 0.0
        %7670 = vmatpush1.msra.mxu0 0.0
        %7671 = vmatprep.subr.mxu0 0.0
        %7672 = vmatpush1.msra.mxu0 0.0
        %v7673 = vand.u32 %v2684, 4294901760
        %v7674 = vsub.f32 %v2684, %v7673
        %v7675 = vand.u32 %v7674, 4294901760
        %v7676 = vsub.f32 %v7674, %v7675
        %v7677 = vand.u32 %v7676, 4294901760
        %7678 = vmatprep.subr.mxu0 %v7677
        %v7679 = vand.u32 %v2672, 4294901760
        %v7680 = vsub.f32 %v2672, %v7679
        %v7681 = vand.u32 %v7680, 4294901760
        %v7682 = vsub.f32 %v7680, %v7681
        %v7683 = vand.u32 %v7682, 4294901760
        %7684 = vmatpush1.msra.mxu0 %v7683
        %v7685 = vand.u32 %v2678, 4294901760
        %v7686 = vsub.f32 %v2678, %v7685
        %v7687 = vand.u32 %v7686, 4294901760
        %v7688 = vsub.f32 %v7686, %v7687
        %v7689 = vand.u32 %v7688, 4294901760
        %7690 = vmatprep.subr.mxu0 %v7689
        %v7691 = vand.u32 %v2666, 4294901760
        %v7692 = vsub.f32 %v2666, %v7691
        %v7693 = vand.u32 %v7692, 4294901760
        %v7694 = vsub.f32 %v7692, %v7693
        %v7695 = vand.u32 %v7694, 4294901760
        %7696 = vmatpush1.msra.mxu0 %v7695
        %7697 = vmatprep.subr.mxu0 0.0
        %7698 = vmatpush2.msra.mxu0 0.0
        %7699 = vmatprep.subr.mxu0 0.0
        %7700 = vmatpush2.msra.mxu0 0.0
        %7701 = vmatprep.subr.mxu0 0.0
        %7702 = vmatpush2.msra.mxu0 0.0
        %7703 = vmatprep.subr.mxu0 0.0
        %7704 = vmatpush2.msra.mxu0 0.0
        %7705 = vmatprep.subr.mxu0 0.0
        %7706 = vmatpush2.msra.mxu0 0.0
        %7707 = vmatprep.subr.mxu0 0.0
        %7708 = vmatpush2.msra.mxu0 0.0
        %7709 = vmatprep.subr.mxu0 0.0
        %7710 = vmatpush2.msra.mxu0 0.0
        %7711 = vmatprep.subr.mxu0 0.0
        %7712 = vmatpush2.msra.mxu0 0.0
        %7713 = vmatprep.subr.mxu0 0.0
        %7714 = vmatpush2.msra.mxu0 0.0
        %7715 = vmatprep.subr.mxu0 0.0
        %7716 = vmatpush2.msra.mxu0 0.0
        %7717 = vmatprep.subr.mxu0 0.0
        %7718 = vmatpush2.msra.mxu0 0.0
        %7719 = vmatprep.subr.mxu0 0.0
        %7720 = vmatpush2.msra.mxu0 0.0
        %7721 = vmatprep.subr.mxu0 0.0
        %7722 = vmatpush2.msra.mxu0 0.0
        %7723 = vmatprep.subr.mxu0 0.0
        %7724 = vmatpush2.msra.mxu0 0.0
        %7725 = vmatprep.subr.mxu0 0.0
        %7726 = vmatpush2.msra.mxu0 0.0
        %7727 = vmatprep.subr.mxu0 0.0
        %7728 = vmatpush2.msra.mxu0 0.0
        %7729 = vmatprep.mubr.f32.mxu0 0.0
        %v7730 = vand.u32 %v2689, 4294901760
        %7731 = vmatmul.mubr.f32.gmra.mxu0 %v7730
        %v7732 = vpop.f32.mrf.mxu0
        %v7733 = vadd.f32 %v7630, %v7732
        %v7734 = vpop.f32.mrf.mxu0
        %v7735 = vadd.f32 %v7632, %v7734
        %7736 = vmatprep.mubr.f32.mxu0 0.0
        %v7737 = vand.u32 %v2692, 4294901760
        %7738 = vmatmul.mubr.f32.gmra.mxu0 %v7737
        %v7739 = vpop.f32.mrf.mxu0
        %v7740 = vadd.f32 %v7641, %v7739
        %v7741 = vpop.f32.mrf.mxu0
        %v7742 = vadd.f32 %v7643, %v7741
        %7743 = vdwg.mxu0
        %7744 = vmatprep.subr.mxu0 0.0
        %7745 = vmatpush1.msra.mxu0 0.0
        %7746 = vmatprep.subr.mxu0 0.0
        %7747 = vmatpush1.msra.mxu0 0.0
        %7748 = vmatprep.subr.mxu0 0.0
        %7749 = vmatpush1.msra.mxu0 0.0
        %7750 = vmatprep.subr.mxu0 0.0
        %7751 = vmatpush1.msra.mxu0 0.0
        %7752 = vmatprep.subr.mxu0 0.0
        %7753 = vmatpush1.msra.mxu0 0.0
        %7754 = vmatprep.subr.mxu0 0.0
        %7755 = vmatpush1.msra.mxu0 0.0
        %7756 = vmatprep.subr.mxu0 0.0
        %7757 = vmatpush1.msra.mxu0 0.0
        %7758 = vmatprep.subr.mxu0 0.0
        %7759 = vmatpush1.msra.mxu0 0.0
        %7760 = vmatprep.subr.mxu0 0.0
        %7761 = vmatpush1.msra.mxu0 0.0
        %7762 = vmatprep.subr.mxu0 0.0
        %7763 = vmatpush1.msra.mxu0 0.0
        %7764 = vmatprep.subr.mxu0 0.0
        %7765 = vmatpush1.msra.mxu0 0.0
        %7766 = vmatprep.subr.mxu0 0.0
        %7767 = vmatpush1.msra.mxu0 0.0
        %7768 = vmatprep.subr.mxu0 0.0
        %7769 = vmatpush1.msra.mxu0 0.0
        %7770 = vmatprep.subr.mxu0 0.0
        %7771 = vmatpush1.msra.mxu0 0.0
        %v7772 = vand.u32 %v2684, 4294901760
        %v7773 = vsub.f32 %v2684, %v7772
        %7774 = vmatprep.subr.mxu0 %v7773
        %v7775 = vand.u32 %v2672, 4294901760
        %v7776 = vsub.f32 %v2672, %v7775
        %7777 = vmatpush1.msra.mxu0 %v7776
        %v7778 = vand.u32 %v2678, 4294901760
        %v7779 = vsub.f32 %v2678, %v7778
        %7780 = vmatprep.subr.mxu0 %v7779
        %v7781 = vand.u32 %v2666, 4294901760
        %v7782 = vsub.f32 %v2666, %v7781
        %7783 = vmatpush1.msra.mxu0 %v7782
        %7784 = vmatprep.subr.mxu0 0.0
        %7785 = vmatpush2.msra.mxu0 0.0
        %7786 = vmatprep.subr.mxu0 0.0
        %7787 = vmatpush2.msra.mxu0 0.0
        %7788 = vmatprep.subr.mxu0 0.0
        %7789 = vmatpush2.msra.mxu0 0.0
        %7790 = vmatprep.subr.mxu0 0.0
        %7791 = vmatpush2.msra.mxu0 0.0
        %7792 = vmatprep.subr.mxu0 0.0
        %7793 = vmatpush2.msra.mxu0 0.0
        %7794 = vmatprep.subr.mxu0 0.0
        %7795 = vmatpush2.msra.mxu0 0.0
        %7796 = vmatprep.subr.mxu0 0.0
        %7797 = vmatpush2.msra.mxu0 0.0
        %7798 = vmatprep.subr.mxu0 0.0
        %7799 = vmatpush2.msra.mxu0 0.0
        %7800 = vmatprep.subr.mxu0 0.0
        %7801 = vmatpush2.msra.mxu0 0.0
        %7802 = vmatprep.subr.mxu0 0.0
        %7803 = vmatpush2.msra.mxu0 0.0
        %7804 = vmatprep.subr.mxu0 0.0
        %7805 = vmatpush2.msra.mxu0 0.0
        %7806 = vmatprep.subr.mxu0 0.0
        %7807 = vmatpush2.msra.mxu0 0.0
        %7808 = vmatprep.subr.mxu0 0.0
        %7809 = vmatpush2.msra.mxu0 0.0
        %7810 = vmatprep.subr.mxu0 0.0
        %7811 = vmatpush2.msra.mxu0 0.0
        %7812 = vmatprep.subr.mxu0 0.0
        %7813 = vmatpush2.msra.mxu0 0.0
        %7814 = vmatprep.subr.mxu0 0.0
        %7815 = vmatpush2.msra.mxu0 0.0
        %7816 = vmatprep.mubr.f32.mxu0 0.0
        %v7817 = vand.u32 %v2689, 4294901760
        %v7818 = vsub.f32 %v2689, %v7817
        %7819 = vmatmul.mubr.f32.gmra.mxu0 %v7818
        %v7820 = vpop.f32.mrf.mxu0
        %v7821 = vadd.f32 %v7733, %v7820
        %v7822 = vpop.f32.mrf.mxu0
        %v7823 = vadd.f32 %v7735, %v7822
        %7824 = vmatprep.mubr.f32.mxu0 0.0
        %v7825 = vand.u32 %v2692, 4294901760
        %v7826 = vsub.f32 %v2692, %v7825
        %7827 = vmatmul.mubr.f32.gmra.mxu0 %v7826
        %v7828 = vpop.f32.mrf.mxu0
        %v7829 = vadd.f32 %v7740, %v7828
        %v7830 = vpop.f32.mrf.mxu0
        %v7831 = vadd.f32 %v7742, %v7830
        %7832 = vdwg.mxu0
        %7833 = vmatprep.subr.mxu0 0.0
        %7834 = vmatpush1.msra.mxu0 0.0
        %7835 = vmatprep.subr.mxu0 0.0
        %7836 = vmatpush1.msra.mxu0 0.0
        %7837 = vmatprep.subr.mxu0 0.0
        %7838 = vmatpush1.msra.mxu0 0.0
        %7839 = vmatprep.subr.mxu0 0.0
        %7840 = vmatpush1.msra.mxu0 0.0
        %7841 = vmatprep.subr.mxu0 0.0
        %7842 = vmatpush1.msra.mxu0 0.0
        %7843 = vmatprep.subr.mxu0 0.0
        %7844 = vmatpush1.msra.mxu0 0.0
        %7845 = vmatprep.subr.mxu0 0.0
        %7846 = vmatpush1.msra.mxu0 0.0
        %7847 = vmatprep.subr.mxu0 0.0
        %7848 = vmatpush1.msra.mxu0 0.0
        %7849 = vmatprep.subr.mxu0 0.0
        %7850 = vmatpush1.msra.mxu0 0.0
        %7851 = vmatprep.subr.mxu0 0.0
        %7852 = vmatpush1.msra.mxu0 0.0
        %7853 = vmatprep.subr.mxu0 0.0
        %7854 = vmatpush1.msra.mxu0 0.0
        %7855 = vmatprep.subr.mxu0 0.0
        %7856 = vmatpush1.msra.mxu0 0.0
        %7857 = vmatprep.subr.mxu0 0.0
        %7858 = vmatpush1.msra.mxu0 0.0
        %7859 = vmatprep.subr.mxu0 0.0
        %7860 = vmatpush1.msra.mxu0 0.0
        %v7861 = vand.u32 %v2684, 4294901760
        %7862 = vmatprep.subr.mxu0 %v7861
        %v7863 = vand.u32 %v2672, 4294901760
        %7864 = vmatpush1.msra.mxu0 %v7863
        %v7865 = vand.u32 %v2678, 4294901760
        %7866 = vmatprep.subr.mxu0 %v7865
        %v7867 = vand.u32 %v2666, 4294901760
        %7868 = vmatpush1.msra.mxu0 %v7867
        %7869 = vmatprep.subr.mxu0 0.0
        %7870 = vmatpush2.msra.mxu0 0.0
        %7871 = vmatprep.subr.mxu0 0.0
        %7872 = vmatpush2.msra.mxu0 0.0
        %7873 = vmatprep.subr.mxu0 0.0
        %7874 = vmatpush2.msra.mxu0 0.0
        %7875 = vmatprep.subr.mxu0 0.0
        %7876 = vmatpush2.msra.mxu0 0.0
        %7877 = vmatprep.subr.mxu0 0.0
        %7878 = vmatpush2.msra.mxu0 0.0
        %7879 = vmatprep.subr.mxu0 0.0
        %7880 = vmatpush2.msra.mxu0 0.0
        %7881 = vmatprep.subr.mxu0 0.0
        %7882 = vmatpush2.msra.mxu0 0.0
        %7883 = vmatprep.subr.mxu0 0.0
        %7884 = vmatpush2.msra.mxu0 0.0
        %7885 = vmatprep.subr.mxu0 0.0
        %7886 = vmatpush2.msra.mxu0 0.0
        %7887 = vmatprep.subr.mxu0 0.0
        %7888 = vmatpush2.msra.mxu0 0.0
        %7889 = vmatprep.subr.mxu0 0.0
        %7890 = vmatpush2.msra.mxu0 0.0
        %7891 = vmatprep.subr.mxu0 0.0
        %7892 = vmatpush2.msra.mxu0 0.0
        %7893 = vmatprep.subr.mxu0 0.0
        %7894 = vmatpush2.msra.mxu0 0.0
        %7895 = vmatprep.subr.mxu0 0.0
        %7896 = vmatpush2.msra.mxu0 0.0
        %7897 = vmatprep.subr.mxu0 0.0
        %7898 = vmatpush2.msra.mxu0 0.0
        %7899 = vmatprep.subr.mxu0 0.0
        %7900 = vmatpush2.msra.mxu0 0.0
        %7901 = vmatprep.mubr.f32.mxu0 0.0
        %v7902 = vand.u32 %v2689, 4294901760
        %v7903 = vsub.f32 %v2689, %v7902
        %v7904 = vand.u32 %v7903, 4294901760
        %7905 = vmatmul.mubr.f32.gmra.mxu0 %v7904
        %v7906 = vpop.f32.mrf.mxu0
        %v7907 = vadd.f32 %v7821, %v7906
        %v7908 = vpop.f32.mrf.mxu0
        %v7909 = vadd.f32 %v7823, %v7908
        %7910 = vmatprep.mubr.f32.mxu0 0.0
        %v7911 = vand.u32 %v2692, 4294901760
        %v7912 = vsub.f32 %v2692, %v7911
        %v7913 = vand.u32 %v7912, 4294901760
        %7914 = vmatmul.mubr.f32.gmra.mxu0 %v7913
        %v7915 = vpop.f32.mrf.mxu0
        %v7916 = vadd.f32 %v7829, %v7915
        %v7917 = vpop.f32.mrf.mxu0
        %v7918 = vadd.f32 %v7831, %v7917
        %7919 = vdwg.mxu0
        %7920 = vmatprep.subr.mxu0 0.0
        %7921 = vmatpush1.msra.mxu0 0.0
        %7922 = vmatprep.subr.mxu0 0.0
        %7923 = vmatpush1.msra.mxu0 0.0
        %7924 = vmatprep.subr.mxu0 0.0
        %7925 = vmatpush1.msra.mxu0 0.0
        %7926 = vmatprep.subr.mxu0 0.0
        %7927 = vmatpush1.msra.mxu0 0.0
        %7928 = vmatprep.subr.mxu0 0.0
        %7929 = vmatpush1.msra.mxu0 0.0
        %7930 = vmatprep.subr.mxu0 0.0
        %7931 = vmatpush1.msra.mxu0 0.0
        %7932 = vmatprep.subr.mxu0 0.0
        %7933 = vmatpush1.msra.mxu0 0.0
        %7934 = vmatprep.subr.mxu0 0.0
        %7935 = vmatpush1.msra.mxu0 0.0
        %7936 = vmatprep.subr.mxu0 0.0
        %7937 = vmatpush1.msra.mxu0 0.0
        %7938 = vmatprep.subr.mxu0 0.0
        %7939 = vmatpush1.msra.mxu0 0.0
        %7940 = vmatprep.subr.mxu0 0.0
        %7941 = vmatpush1.msra.mxu0 0.0
        %7942 = vmatprep.subr.mxu0 0.0
        %7943 = vmatpush1.msra.mxu0 0.0
        %7944 = vmatprep.subr.mxu0 0.0
        %7945 = vmatpush1.msra.mxu0 0.0
        %7946 = vmatprep.subr.mxu0 0.0
        %7947 = vmatpush1.msra.mxu0 0.0
        %v7948 = vand.u32 %v2684, 4294901760
        %v7949 = vsub.f32 %v2684, %v7948
        %v7950 = vand.u32 %v7949, 4294901760
        %7951 = vmatprep.subr.mxu0 %v7950
        %v7952 = vand.u32 %v2672, 4294901760
        %v7953 = vsub.f32 %v2672, %v7952
        %v7954 = vand.u32 %v7953, 4294901760
        %7955 = vmatpush1.msra.mxu0 %v7954
        %v7956 = vand.u32 %v2678, 4294901760
        %v7957 = vsub.f32 %v2678, %v7956
        %v7958 = vand.u32 %v7957, 4294901760
        %7959 = vmatprep.subr.mxu0 %v7958
        %v7960 = vand.u32 %v2666, 4294901760
        %v7961 = vsub.f32 %v2666, %v7960
        %v7962 = vand.u32 %v7961, 4294901760
        %7963 = vmatpush1.msra.mxu0 %v7962
        %7964 = vmatprep.subr.mxu0 0.0
        %7965 = vmatpush2.msra.mxu0 0.0
        %7966 = vmatprep.subr.mxu0 0.0
        %7967 = vmatpush2.msra.mxu0 0.0
        %7968 = vmatprep.subr.mxu0 0.0
        %7969 = vmatpush2.msra.mxu0 0.0
        %7970 = vmatprep.subr.mxu0 0.0
        %7971 = vmatpush2.msra.mxu0 0.0
        %7972 = vmatprep.subr.mxu0 0.0
        %7973 = vmatpush2.msra.mxu0 0.0
        %7974 = vmatprep.subr.mxu0 0.0
        %7975 = vmatpush2.msra.mxu0 0.0
        %7976 = vmatprep.subr.mxu0 0.0
        %7977 = vmatpush2.msra.mxu0 0.0
        %7978 = vmatprep.subr.mxu0 0.0
        %7979 = vmatpush2.msra.mxu0 0.0
        %7980 = vmatprep.subr.mxu0 0.0
        %7981 = vmatpush2.msra.mxu0 0.0
        %7982 = vmatprep.subr.mxu0 0.0
        %7983 = vmatpush2.msra.mxu0 0.0
        %7984 = vmatprep.subr.mxu0 0.0
        %7985 = vmatpush2.msra.mxu0 0.0
        %7986 = vmatprep.subr.mxu0 0.0
        %7987 = vmatpush2.msra.mxu0 0.0
        %7988 = vmatprep.subr.mxu0 0.0
        %7989 = vmatpush2.msra.mxu0 0.0
        %7990 = vmatprep.subr.mxu0 0.0
        %7991 = vmatpush2.msra.mxu0 0.0
        %7992 = vmatprep.subr.mxu0 0.0
        %7993 = vmatpush2.msra.mxu0 0.0
        %7994 = vmatprep.subr.mxu0 0.0
        %7995 = vmatpush2.msra.mxu0 0.0
        %7996 = vmatprep.mubr.f32.mxu0 0.0
        %v7997 = vand.u32 %v2689, 4294901760
        %7998 = vmatmul.mubr.f32.gmra.mxu0 %v7997
        %v7999 = vpop.f32.mrf.mxu0
        %v8000 = vadd.f32 %v7907, %v7999
        %v8001 = vpop.f32.mrf.mxu0
        %v8002 = vadd.f32 %v7909, %v8001
        %8003 = vmatprep.mubr.f32.mxu0 0.0
        %v8004 = vand.u32 %v2692, 4294901760
        %8005 = vmatmul.mubr.f32.gmra.mxu0 %v8004
        %v8006 = vpop.f32.mrf.mxu0
        %v8007 = vadd.f32 %v7916, %v8006
        %v8008 = vpop.f32.mrf.mxu0
        %v8009 = vadd.f32 %v7918, %v8008
        %8010 = vdwg.mxu0
        %8011 = vmatprep.subr.mxu0 0.0
        %8012 = vmatpush1.msra.mxu0 0.0
        %8013 = vmatprep.subr.mxu0 0.0
        %8014 = vmatpush1.msra.mxu0 0.0
        %8015 = vmatprep.subr.mxu0 0.0
        %8016 = vmatpush1.msra.mxu0 0.0
        %8017 = vmatprep.subr.mxu0 0.0
        %8018 = vmatpush1.msra.mxu0 0.0
        %8019 = vmatprep.subr.mxu0 0.0
        %8020 = vmatpush1.msra.mxu0 0.0
        %8021 = vmatprep.subr.mxu0 0.0
        %8022 = vmatpush1.msra.mxu0 0.0
        %8023 = vmatprep.subr.mxu0 0.0
        %8024 = vmatpush1.msra.mxu0 0.0
        %8025 = vmatprep.subr.mxu0 0.0
        %8026 = vmatpush1.msra.mxu0 0.0
        %8027 = vmatprep.subr.mxu0 0.0
        %8028 = vmatpush1.msra.mxu0 0.0
        %8029 = vmatprep.subr.mxu0 0.0
        %8030 = vmatpush1.msra.mxu0 0.0
        %8031 = vmatprep.subr.mxu0 0.0
        %8032 = vmatpush1.msra.mxu0 0.0
        %8033 = vmatprep.subr.mxu0 0.0
        %8034 = vmatpush1.msra.mxu0 0.0
        %8035 = vmatprep.subr.mxu0 0.0
        %8036 = vmatpush1.msra.mxu0 0.0
        %8037 = vmatprep.subr.mxu0 0.0
        %8038 = vmatpush1.msra.mxu0 0.0
        %v8039 = vand.u32 %v2684, 4294901760
        %8040 = vmatprep.subr.mxu0 %v8039
        %v8041 = vand.u32 %v2672, 4294901760
        %8042 = vmatpush1.msra.mxu0 %v8041
        %v8043 = vand.u32 %v2678, 4294901760
        %8044 = vmatprep.subr.mxu0 %v8043
        %v8045 = vand.u32 %v2666, 4294901760
        %8046 = vmatpush1.msra.mxu0 %v8045
        %8047 = vmatprep.subr.mxu0 0.0
        %8048 = vmatpush2.msra.mxu0 0.0
        %8049 = vmatprep.subr.mxu0 0.0
        %8050 = vmatpush2.msra.mxu0 0.0
        %8051 = vmatprep.subr.mxu0 0.0
        %8052 = vmatpush2.msra.mxu0 0.0
        %8053 = vmatprep.subr.mxu0 0.0
        %8054 = vmatpush2.msra.mxu0 0.0
        %8055 = vmatprep.subr.mxu0 0.0
        %8056 = vmatpush2.msra.mxu0 0.0
        %8057 = vmatprep.subr.mxu0 0.0
        %8058 = vmatpush2.msra.mxu0 0.0
        %8059 = vmatprep.subr.mxu0 0.0
        %8060 = vmatpush2.msra.mxu0 0.0
        %8061 = vmatprep.subr.mxu0 0.0
        %8062 = vmatpush2.msra.mxu0 0.0
        %8063 = vmatprep.subr.mxu0 0.0
        %8064 = vmatpush2.msra.mxu0 0.0
        %8065 = vmatprep.subr.mxu0 0.0
        %8066 = vmatpush2.msra.mxu0 0.0
        %8067 = vmatprep.subr.mxu0 0.0
        %8068 = vmatpush2.msra.mxu0 0.0
        %8069 = vmatprep.subr.mxu0 0.0
        %8070 = vmatpush2.msra.mxu0 0.0
        %8071 = vmatprep.subr.mxu0 0.0
        %8072 = vmatpush2.msra.mxu0 0.0
        %8073 = vmatprep.subr.mxu0 0.0
        %8074 = vmatpush2.msra.mxu0 0.0
        %8075 = vmatprep.subr.mxu0 0.0
        %8076 = vmatpush2.msra.mxu0 0.0
        %8077 = vmatprep.subr.mxu0 0.0
        %8078 = vmatpush2.msra.mxu0 0.0
        %8079 = vmatprep.mubr.f32.mxu0 0.0
        %v8080 = vand.u32 %v2689, 4294901760
        %8081 = vmatmul.mubr.f32.gmra.mxu0 %v8080
        %v8082 = vpop.f32.mrf.mxu0
        %v8083 = vadd.f32 %v8000, %v8082
        %v8084 = vpop.f32.mrf.mxu0
        %v8085 = vadd.f32 %v8002, %v8084
        %8086 = vmatprep.mubr.f32.mxu0 0.0
        %v8087 = vand.u32 %v2692, 4294901760
        %8088 = vmatmul.mubr.f32.gmra.mxu0 %v8087
        %v8089 = vpop.f32.mrf.mxu0
        %v8090 = vadd.f32 %v8007, %v8089
        %v8091 = vpop.f32.mrf.mxu0
        %v8092 = vadd.f32 %v8009, %v8091
        %8093 = vdwg.mxu0
        %v8094 = vmul.f32 %v3223, %v3223
        %v8095 = vmul.f32 %v3225, %v3225
        %v8096 = vmul.f32 %v3763, %v3763
        %v8097 = vmul.f32 %v3765, %v3765
        %v8098 = vmul.f32 %v3230, %v3230
        %v8099 = vmul.f32 %v3232, %v3232
        %v8100 = vmul.f32 %v3770, %v3770
        %v8101 = vmul.f32 %v3772, %v3772
        %v8102 = vmul.f32 %v4303, %v4303
        %v8103 = vmul.f32 %v4305, %v4305
        %v8104 = vmul.f32 %v4843, %v4843
        %v8105 = vmul.f32 %v4845, %v4845
        %v8106 = vmul.f32 %v4310, %v4310
        %v8107 = vmul.f32 %v4312, %v4312
        %v8108 = vmul.f32 %v4850, %v4850
        %v8109 = vmul.f32 %v4852, %v4852
        %v8110 = vmul.f32 %v3223, %v4303
        %v8111 = vmul.f32 %v3225, %v4305
        %v8112 = vmul.f32 %v3763, %v4843
        %v8113 = vmul.f32 %v3765, %v4845
        %v8114 = vmul.f32 %v3230, %v4310
        %v8115 = vmul.f32 %v3232, %v4312
        %v8116 = vmul.f32 %v3770, %v4850
        %v8117 = vmul.f32 %v3772, %v4852
        %v8118 = vsub.f32 %v5383, %v8094
        %v8119 = vsub.f32 %v5385, %v8095
        %v8120 = vsub.f32 %v5923, %v8096
        %v8121 = vsub.f32 %v5925, %v8097
        %v8122 = vsub.f32 %v5390, %v8098
        %v8123 = vsub.f32 %v5392, %v8099
        %v8124 = vsub.f32 %v5930, %v8100
        %v8125 = vsub.f32 %v5932, %v8101
        %v8126 = vsub.f32 %v6463, %v8102
        %v8127 = vsub.f32 %v6465, %v8103
        %v8128 = vsub.f32 %v7003, %v8104
        %v8129 = vsub.f32 %v7005, %v8105
        %v8130 = vsub.f32 %v6470, %v8106
        %v8131 = vsub.f32 %v6472, %v8107
        %v8132 = vsub.f32 %v7010, %v8108
        %v8133 = vsub.f32 %v7012, %v8109
        %v8134 = vsub.f32 %v7543, %v8110
        %v8135 = vsub.f32 %v7545, %v8111
        %v8136 = vsub.f32 %v8083, %v8112
        %v8137 = vsub.f32 %v8085, %v8113
        %v8138 = vsub.f32 %v7550, %v8114
        %v8139 = vsub.f32 %v7552, %v8115
        %v8140 = vsub.f32 %v8090, %v8116
        %v8141 = vsub.f32 %v8092, %v8117
        %v8142 = vmul.f32 %v8110, 2.0
        %v8143 = vmul.f32 %v8111, 2.0
        %v8144 = vmul.f32 %v8112, 2.0
        %v8145 = vmul.f32 %v8113, 2.0
        %v8146 = vmul.f32 %v8114, 2.0
        %v8147 = vmul.f32 %v8115, 2.0
        %v8148 = vmul.f32 %v8116, 2.0
        %v8149 = vmul.f32 %v8117, 2.0
        %v8150 = vadd.f32 %v8142, 0.0001
        %v8151 = vadd.f32 %v8143, 0.0001
        %v8152 = vadd.f32 %v8144, 0.0001
        %v8153 = vadd.f32 %v8145, 0.0001
        %v8154 = vadd.f32 %v8146, 0.0001
        %v8155 = vadd.f32 %v8147, 0.0001
        %v8156 = vadd.f32 %v8148, 0.0001
        %v8157 = vadd.f32 %v8149, 0.0001
        %v8158 = vmul.f32 %v8134, 2.0
        %v8159 = vmul.f32 %v8135, 2.0
        %v8160 = vmul.f32 %v8136, 2.0
        %v8161 = vmul.f32 %v8137, 2.0
        %v8162 = vmul.f32 %v8138, 2.0
        %v8163 = vmul.f32 %v8139, 2.0
        %v8164 = vmul.f32 %v8140, 2.0
        %v8165 = vmul.f32 %v8141, 2.0
        %v8166 = vadd.f32 %v8158, 0.0009
        %v8167 = vadd.f32 %v8159, 0.0009
        %v8168 = vadd.f32 %v8160, 0.0009
        %v8169 = vadd.f32 %v8161, 0.0009
        %v8170 = vadd.f32 %v8162, 0.0009
        %v8171 = vadd.f32 %v8163, 0.0009
        %v8172 = vadd.f32 %v8164, 0.0009
        %v8173 = vadd.f32 %v8165, 0.0009
        %v8174 = vmul.f32 %v8150, %v8166
        %v8175 = vmul.f32 %v8151, %v8167
        %v8176 = vmul.f32 %v8152, %v8168
        %v8177 = vmul.f32 %v8153, %v8169
        %v8178 = vmul.f32 %v8154, %v8170
        %v8179 = vmul.f32 %v8155, %v8171
        %v8180 = vmul.f32 %v8156, %v8172
        %v8181 = vmul.f32 %v8157, %v8173
        %v8182 = vadd.f32 %v8094, %v8102
        %v8183 = vadd.f32 %v8095, %v8103
        %v8184 = vadd.f32 %v8096, %v8104
        %v8185 = vadd.f32 %v8097, %v8105
        %v8186 = vadd.f32 %v8098, %v8106
        %v8187 = vadd.f32 %v8099, %v8107
        %v8188 = vadd.f32 %v8100, %v8108
        %v8189 = vadd.f32 %v8101, %v8109
        %v8190 = vadd.f32 %v8182, 0.0001
        %v8191 = vadd.f32 %v8183, 0.0001
        %v8192 = vadd.f32 %v8184, 0.0001
        %v8193 = vadd.f32 %v8185, 0.0001
        %v8194 = vadd.f32 %v8186, 0.0001
        %v8195 = vadd.f32 %v8187, 0.0001
        %v8196 = vadd.f32 %v8188, 0.0001
        %v8197 = vadd.f32 %v8189, 0.0001
        %v8198 = vadd.f32 %v8118, %v8126
        %v8199 = vadd.f32 %v8119, %v8127
        %v8200 = vadd.f32 %v8120, %v8128
        %v8201 = vadd.f32 %v8121, %v8129
        %v8202 = vadd.f32 %v8122, %v8130
        %v8203 = vadd.f32 %v8123, %v8131
        %v8204 = vadd.f32 %v8124, %v8132
        %v8205 = vadd.f32 %v8125, %v8133
        %v8206 = vadd.f32 %v8198, 0.0009
        %v8207 = vadd.f32 %v8199, 0.0009
        %v8208 = vadd.f32 %v8200, 0.0009
        %v8209 = vadd.f32 %v8201, 0.0009
        %v8210 = vadd.f32 %v8202, 0.0009
        %v8211 = vadd.f32 %v8203, 0.0009
        %v8212 = vadd.f32 %v8204, 0.0009
        %v8213 = vadd.f32 %v8205, 0.0009
        %v8214 = vmul.f32 %v8190, %v8206
        %v8215 = vmul.f32 %v8191, %v8207
        %v8216 = vmul.f32 %v8192, %v8208
        %v8217 = vmul.f32 %v8193, %v8209
        %v8218 = vmul.f32 %v8194, %v8210
        %v8219 = vmul.f32 %v8195, %v8211
        %v8220 = vmul.f32 %v8196, %v8212
        %v8221 = vmul.f32 %v8197, %v8213
        %v8222 = vrcp.pop %v8214
        %v8223 = vrcp.pop %v8215
        %v8224 = vrcp.pop %v8216
        %v8225 = vrcp.pop %v8217
        %v8226 = vrcp.pop %v8218
        %v8227 = vrcp.pop %v8219
        %v8228 = vrcp.pop %v8220
        %v8229 = vrcp.pop %v8221
        %v8230 = vmul.f32 %v8174, %v8222
        %v8231 = vmul.f32 %v8175, %v8223
        %v8232 = vmul.f32 %v8176, %v8224
        %v8233 = vmul.f32 %v8177, %v8225
        %v8234 = vmul.f32 %v8178, %v8226
        %v8235 = vmul.f32 %v8179, %v8227
        %v8236 = vmul.f32 %v8180, %v8228
        %v8237 = vmul.f32 %v8181, %v8229
        %v8238 = vlaneseq
        %v8239 = vshrl.u32 %v8238, 7
        %v8240 = vadd.s32 %v8239, 8
        %v8241 = vlaneseq
        %v8242 = vand.u32 %v8241, 127
        %v8243 = vadd.s32 %v8242, 128
        %v8244 = vadd.s32 %v8242, 256
        %v8245 = vadd.s32 %v8242, 384
        %vm8246 = vcmp.lt.s32.totalorder %v8242, 0
        %v8247 = vsub.s32 0, %v8242
        %v8248 = vsel %vm8246, %v8247, %v8242
        %v8249 = vshrl.u32 %v8248, 7
        %v8250 = vand.u32 %v8248, 127
        %v8251 = vsub.s32 0, %v8250
        %v8252 = vsel %vm8246, %v8251, %v8250
        %vm8253 = vcmp.lt.s32.totalorder %v8243, 0
        %v8254 = vsub.s32 0, %v8243
        %v8255 = vsel %vm8253, %v8254, %v8243
        %v8256 = vshrl.u32 %v8255, 7
        %v8257 = vand.u32 %v8255, 127
        %v8258 = vsub.s32 0, %v8257
        %v8259 = vsel %vm8253, %v8258, %v8257
        %vm8260 = vcmp.lt.s32.totalorder %v8244, 0
        %v8261 = vsub.s32 0, %v8244
        %v8262 = vsel %vm8260, %v8261, %v8244
        %v8263 = vshrl.u32 %v8262, 7
        %v8264 = vand.u32 %v8262, 127
        %v8265 = vsub.s32 0, %v8264
        %v8266 = vsel %vm8260, %v8265, %v8264
        %vm8267 = vcmp.lt.s32.totalorder %v8245, 0
        %v8268 = vsub.s32 0, %v8245
        %v8269 = vsel %vm8267, %v8268, %v8245
        %v8270 = vshrl.u32 %v8269, 7
        %v8271 = vand.u32 %v8269, 127
        %v8272 = vsub.s32 0, %v8271
        %v8273 = vsel %vm8267, %v8272, %v8271
        %vm8274 = vcmp.ne.s32.totalorder %v8252, 0
        %vm8275 = vcmp.ne.s32.totalorder %v8259, 0
        %vm8276 = vcmp.ne.s32.totalorder %v8266, 0
        %vm8277 = vcmp.ne.s32.totalorder %v8273, 0
        %vm8278 = vcmp.lt.s32.totalorder %v8252, 0
        %vm8279 = vcmp.lt.s32.totalorder %v8259, 0
        %vm8280 = vcmp.lt.s32.totalorder %v8266, 0
        %vm8281 = vcmp.lt.s32.totalorder %v8273, 0
        %vm8282 = vmand %vm8278, %vm8274
        %vm8283 = vmand %vm8279, %vm8275
        %vm8284 = vmand %vm8280, %vm8276
        %vm8285 = vmand %vm8281, %vm8277
        %v8286 = vadd.s32 %v8252, 128
        %v8287 = vadd.s32 %v8259, 128
        %v8288 = vadd.s32 %v8266, 128
        %v8289 = vadd.s32 %v8273, 128
        %v8290 = vsel %vm8282, %v8286, %v8252
        %v8291 = vsel %vm8283, %v8287, %v8259
        %v8292 = vsel %vm8284, %v8288, %v8266
        %v8293 = vsel %vm8285, %v8289, %v8273
        %vm8294 = vcmp.lt.s32.totalorder %v8239, 16
        %vm8295 = vcmp.lt.s32.totalorder %v8240, 16
        %vm8296 = vcmp.lt.s32.totalorder %v8290, 16
        %vm8297 = vcmp.lt.s32.totalorder %v8291, 16
        %vm8298 = vcmp.lt.s32.totalorder %v8292, 16
        %vm8299 = vcmp.lt.s32.totalorder %v8293, 16
        %vm8300 = vmand %vm8294, %vm8296
        %vm8301 = vmand %vm8294, %vm8297
        %vm8302 = vmand %vm8294, %vm8298
        %vm8303 = vmand %vm8294, %vm8299
        %vm8304 = vmand %vm8295, %vm8296
        %vm8305 = vmand %vm8295, %vm8297
        %vm8306 = vmand %vm8295, %vm8298
        %vm8307 = vmand %vm8295, %vm8299
        %v8308 = vsel %vm8300, %v8230, 0.0
        %v8309 = vsel %vm8301, %v8231, 0.0
        %v8310 = vsel %vm8302, %v8232, 0.0
        %v8311 = vsel %vm8303, %v8233, 0.0
        %v8312 = vsel %vm8304, %v8234, 0.0
        %v8313 = vsel %vm8305, %v8235, 0.0
        %v8314 = vsel %vm8306, %v8236, 0.0
        %v8315 = vsel %vm8307, %v8237, 0.0
        %v8316 = vadd.f32 %v8308, %v8309
        %v8317 = vadd.f32 %v8316, %v8310
        %v8318 = vadd.f32 %v8317, %v8311
        %v8319 = vadd.f32 %v8318, %v8312
        %v8320 = vadd.f32 %v8319, %v8313
        %v8321 = vadd.f32 %v8320, %v8314
        %v8322 = vadd.f32 %v8321, %v8315
        %8323 = vadd.xlane.f32.xlu0 %v8322
        %v8324 = vpop.xlane.xlu0 %8323
        %v8325 = vrot.slane %v8324, 4
        %v8326 = vadd.f32 %v8324, %v8325
        %v8327 = vrot.slane %v8326, 2
        %v8328 = vadd.f32 %v8326, %v8327
        %v8329 = vrot.slane %v8328, 1
        %v8330 = vadd.f32 %v8328, %v8329
        %s8331 = vtos %v8330
        %v8332 = vstv %s8331
        %8333 = vst [vmem:[%s308] sm:$0xff] %v8332
        %s8334 = sand.u32 %s145, 1
        %s8335 = scalar_lea.sflag [#allocation4], %s8334
        %s8336 = sand.u32 %s145, 1
        %s8337 = smul.addr %s8336, 8
        %s8338 = scalar_lea.vmem [#allocation10], %s8337
        // Predicated region
        $region53: #{tpu_custom_call.1} parent=35 // pred_check
          %p8339 = pneg %p155
        $region54: #{tpu_custom_call.1} parent=35 // pred_check_branch
          %8341 = sbr.rel (%p8339) target = $region56
        $region55: #{tpu_custom_call.1} parent=35 // pred_region
          %s8343 = ssub.s32 128, 128
          %8344 = vsyncadd %s8335, %s8343
          %s8345 = sadd.s32 %s30, %s29
          %s8346 = smul.addr %s8345, 128
          %s8347 = scalar_lea.hbm %s4, %s8346
          %s8349 = sshll.u32 %s8338, 4
          %s8350 = int_to_ptr.vmem [resolvable:$true] %s8349
          %8352 = dma.vmem_to_hbm [thread:$0]  %s8350, 128, %s8347, %s8335
        $region56: #{tpu_custom_call.1} parent=35 // pred_fallthru
          _
      $region36: #{tpu_custom_call.1} parent=5 // pred_fallthru
        _
      %p8353 = scmp.le.s32.totalorder 2, %s20
      // Predicated region
      $region57: #{tpu_custom_call.1} parent=5 // pred_check
        %p8354 = pneg %p8353
      $region58: #{tpu_custom_call.1} parent=5 // pred_check_branch
        %8356 = sbr.rel (%p8354) target = $region60
      $region59: #{tpu_custom_call.1} parent=5 // pred_region
        %s8357 = ssub.s32 %s20, 2
        // Predicated region
        $region61: #{tpu_custom_call.1} parent=59 // pred_check
          %p8358 = pneg %p161
        $region62: #{tpu_custom_call.1} parent=59 // pred_check_branch
          %8360 = sbr.rel (%p8358) target = $region64
        $region63: #{tpu_custom_call.1} parent=59 // pred_region
          %s8361 = sand.u32 %s146, 1
          %s8362 = scalar_lea.sflag [#allocation4], %s8361
          %s8363 = sand.u32 %s146, 1
          %s8364 = smul.addr %s8363, 8
          %s8365 = scalar_lea.vmem [#allocation10], %s8364
          %8366 = dma.done %s8362, 128
        $region64: #{tpu_custom_call.1} parent=59 // pred_fallthru
          _
      $region60: #{tpu_custom_call.1} parent=5 // pred_fallthru
        _
    $region6: #{tpu_custom_call.1} parent=1 // loop_footer
      %s24 = sadd.s32 1, %s20
    $region7: #{tpu_custom_call.1} parent=1 // loop_footer_branch
      %19 = sbr.rel target = $region3
    $region8: #{tpu_custom_call.1} parent=1 // loop_exit
      _
    %8367 = vsyncpa [#allocation3], 1
    %s8368 = scalar_lea.sflag [#allocation3], 1
    %8369 = vsyncpa %s8368, 1
    %8370 = vsyncpa [#allocation6], 1
    %s8371 = scalar_lea.sflag [#allocation6], 1
    %8372 = vsyncpa %s8371, 1
    %8373 = vsyncpa [#allocation9], 1
    %8374 = vsyncpa [#allocation4], 1
    %s8375 = scalar_lea.sflag [#allocation4], 1
    %8376 = vsyncpa %s8375, 1

</llo_original>
